<compile_context>
chip_gen: v7x
topology: tpu7x:2x2x1
jax: 0.10.0
libtpu: 0.0.40
codegen_flags: <defaults>
</compile_context>

<pallas_src>
import functools

import jax
import jax.numpy as jnp
from jax.experimental import pallas as pl
from jax.experimental.pallas import tpu as pltpu


# Static geometry of vertical_Inception_3p.  With a single 62-row zero pad,
# every branch reads taps s = (62 - pad_k) + kh of the padded input:
#   p1 (K=25,  P=12): s in [50, 75)
#   p2 (K=75,  P=37): s in [25, 100)
#   p3 (K=125, P=62): s in [0, 125)
#   shortcut (1x1, stride 2, no pad): s = 62
_PAD = 62
_WINDOW = 125
_SC_LO = 62


def _branches_kernel(xe_ref, xo_ref, w_ref, b_ref,
                     s_ref, p4_ref, ssum_ref, ssq_ref,
                     f_ref, *, h_out, width, c_in, c_out, chunk, n_chunks):
    """Per-batch: stacked conv branches + shortcut via one matmul per chunk,
    bias, per-branch ReLU, branch sum, and BN per-channel partial sums."""
    hw = h_out * width
    g = 4 * c_out
    acc = jnp.zeros((g, hw), jnp.float32)

    for c in range(n_chunks):
        # Fill the shared im2col scratch for taps [c*chunk, (c+1)*chunk).
        # Every branch + the shortcut consume the SAME window, so the scratch
        # is filled once per chunk and used by a single stacked matmul.
        for j in range(chunk):
            tap = c * chunk + j
            base = (tap // 2) * width                  # static lane offset
            if tap % 2 == 0:
                f_ref[j * c_in:(j + 1) * c_in, :] = xe_ref[0, :, base:base + hw]
            else:
                f_ref[j * c_in:(j + 1) * c_in, :] = xo_ref[0, :, base:base + hw]
        acc = acc + jnp.dot(w_ref[c], f_ref[...],
                            preferred_element_type=jnp.float32)

    acc = acc + b_ref[...]
    p1 = jnp.maximum(acc[0 * c_out:1 * c_out], 0.0)
    p2 = jnp.maximum(acc[1 * c_out:2 * c_out], 0.0)
    p3 = jnp.maximum(acc[2 * c_out:3 * c_out], 0.0)
    s = p1 + p2 + p3
    s_ref[0] = s
    p4_ref[0] = acc[3 * c_out:4 * c_out]
    # Per-(batch, channel) partials for the train-mode BatchNorm statistics.
    ssum_ref[0] = jnp.sum(s, axis=1, keepdims=True)
    ssq_ref[0] = jnp.sum(s * s, axis=1, keepdims=True)


def _bn_add_relu_kernel(s_ref, p4_ref, scale_ref, shift_ref, o_ref):
    # out = relu(BN(s) + p4), with BN folded into per-channel scale/shift.
    o_ref[0] = jnp.maximum(
        s_ref[0] * scale_ref[...] + shift_ref[...] + p4_ref[0], 0.0)


def _embed_weight(w, tap_lo, c_in, c_out):
    """(C_out, C_in, K, 1) -> (C_out, _WINDOW*C_in) with tap-major /
    channel-minor columns placed at column offset tap_lo*C_in, zeros elsewhere."""
    k = w.shape[2]
    wt = jnp.transpose(w[:, :, :, 0], (0, 2, 1)).reshape(c_out, k * c_in)
    return jnp.pad(wt.astype(jnp.float32),
                   ((0, 0), (tap_lo * c_in, (_WINDOW - tap_lo - k) * c_in)))


def vertical_inception_3p_forward(x, params, *, chunk_taps=25, eps=1e-5):
    """Pallas forward pass of vertical_Inception_3p (train-mode BatchNorm)."""
    w1, w2, w3, ws = params["w1"], params["w2"], params["w3"], params["ws"]
    b1, b2, b3, bs = params["b1"], params["b2"], params["b3"], params["bs"]
    gamma, beta = params["gamma"], params["beta"]

    B, C_in, H, W = x.shape
    C_out = w1.shape[0]
    G = 4 * C_out
    H_out = (H - 1) // 2 + 1
    HW = H_out * W

    chunk = chunk_taps if _WINDOW % chunk_taps == 0 else 25
    n_chunks = _WINDOW // chunk

    # --- input prep: pad H once by the largest halo and split rows by parity
    #     so every stride-2 tap is a contiguous static lane slice. ------------
    xf = x.astype(jnp.float32)
    xp = jnp.pad(xf, ((0, 0), (0, 0), (_PAD, _PAD), (0, 0)))
    xe = xp[:, :, 0::2, :]
    xo = xp[:, :, 1::2, :]
    He, Ho = xe.shape[2], xo.shape[2]
    xe = xe.reshape(B, C_in, He * W)
    xo = xo.reshape(B, C_in, Ho * W)

    # --- stack all four convs into one weight matrix, pre-chunked so kernel 1
    #     reads full (G, chunk*C_in) tiles with no in-kernel lane slicing. ----
    wall = jnp.concatenate([
        _embed_weight(w1, 50, C_in, C_out),
        _embed_weight(w2, 25, C_in, C_out),
        _embed_weight(w3, 0, C_in, C_out),
        _embed_weight(ws, _SC_LO, C_in, C_out),
    ], axis=0)                                            # (G, _WINDOW*C_in)
    wall = wall.reshape(G, n_chunks, chunk * C_in).transpose(1, 0, 2)
    ball = jnp.concatenate([b1, b2, b3, bs]).reshape(G, 1).astype(jnp.float32)

    kernel = functools.partial(_branches_kernel, h_out=H_out, width=W,
                               c_in=C_in, c_out=C_out, chunk=chunk,
                               n_chunks=n_chunks)

    per_b = lambda b: (b, 0, 0)
    full2 = lambda b: (0, 0)
    full3 = lambda b: (0, 0, 0)

    s, p4, ssum, ssq = pl.pallas_call(
        kernel,
        out_shape=(
            jax.ShapeDtypeStruct((B, C_out, HW), jnp.float32),
            jax.ShapeDtypeStruct((B, C_out, HW), jnp.float32),
            jax.ShapeDtypeStruct((B, C_out, 1), jnp.float32),
            jax.ShapeDtypeStruct((B, C_out, 1), jnp.float32),
        ),
        grid_spec=pltpu.PrefetchScalarGridSpec(
            num_scalar_prefetch=0,
            grid=(B,),
            in_specs=[
                pl.BlockSpec((1, C_in, He * W), per_b),
                pl.BlockSpec((1, C_in, Ho * W), per_b),
                pl.BlockSpec(wall.shape, full3),
                pl.BlockSpec(ball.shape, full2),
            ],
            out_specs=[
                pl.BlockSpec((1, C_out, HW), per_b),
                pl.BlockSpec((1, C_out, HW), per_b),
                pl.BlockSpec((1, C_out, 1), per_b),
                pl.BlockSpec((1, C_out, 1), per_b),
            ],
            scratch_shapes=[pltpu.VMEM((chunk * C_in, HW), jnp.float32)],
        ),
        compiler_params=pltpu.CompilerParams(
            dimension_semantics=("parallel",)),
    )(xe, xo, wall, ball)

    # --- tiny cross-batch combine of the BN partial sums (train-mode stats) --
    n_elems = float(B * HW)
    mean = jnp.sum(ssum, axis=0) / n_elems                      # (C_out, 1)
    var = jnp.maximum(jnp.sum(ssq, axis=0) / n_elems - mean * mean, 0.0)
    inv = jax.lax.rsqrt(var + eps)
    scale = gamma.reshape(C_out, 1).astype(jnp.float32) * inv
    shift = beta.reshape(C_out, 1).astype(jnp.float32) - mean * scale

    out_flat = pl.pallas_call(
        _bn_add_relu_kernel,
        out_shape=jax.ShapeDtypeStruct((B, C_out, HW), jnp.float32),
        grid_spec=pltpu.PrefetchScalarGridSpec(
            num_scalar_prefetch=0,
            grid=(B,),
            in_specs=[
                pl.BlockSpec((1, C_out, HW), per_b),
                pl.BlockSpec((1, C_out, HW), per_b),
                pl.BlockSpec((C_out, 1), full2),
                pl.BlockSpec((C_out, 1), full2),
            ],
            out_specs=pl.BlockSpec((1, C_out, HW), per_b),
        ),
        compiler_params=pltpu.CompilerParams(
            dimension_semantics=("parallel",)),
    )(s, p4, scale, shift)

    # Metadata-only reshape back to NCHW.
    return out_flat.reshape(B, C_out, H_out, W).astype(x.dtype)


def _reference_forward(x, params, eps=1e-5):
    """Pure-JAX reference identical to the PyTorch module (train-mode BN)."""
    dn = ("NCHW", "OIHW", "NCHW")

    def conv(w, b, pad):
        y = jax.lax.conv_general_dilated(
            x.astype(jnp.float32), w.astype(jnp.float32),
            window_strides=(2, 1), padding=pad, dimension_numbers=dn,
            precision=jax.lax.Precision.HIGHEST)
        return y + b[None, :, None, None]

    p1 = jax.nn.relu(conv(params["w1"], params["b1"], ((12, 12), (0, 0))))
    p2 = jax.nn.relu(conv(params["w2"], params["b2"], ((37, 37), (0, 0))))
    p3 = jax.nn.relu(conv(params["w3"], params["b3"], ((62, 62), (0, 0))))
    p4 = conv(params["ws"], params["bs"], ((0, 0), (0, 0)))
    s = p1 + p2 + p3
    mean = jnp.mean(s, axis=(0, 2, 3), keepdims=True)
    var = jnp.mean(jnp.square(s - mean), axis=(0, 2, 3), keepdims=True)
    sn = (s - mean) * jax.lax.rsqrt(var + eps)
    out = (sn * params["gamma"][None, :, None, None]
           + params["beta"][None, :, None, None] + p4)
    return jax.nn.relu(out)


if __name__ == "__main__":
    key = jax.random.PRNGKey(0)
    B, C_in, C_out, H, W = 2, 4, 8, 64, 16
    keys = jax.random.split(key, 10)

    def uinit(k, shape, fan_in):
        bound = 1.0 / (fan_in ** 0.5)
        return jax.random.uniform(k, shape, jnp.float32, -bound, bound)

    params = {
        "w1": uinit(keys[1], (C_out, C_in, 25, 1), C_in * 25),
        "b1": uinit(keys[2], (C_out,), C_in * 25),
        "w2": uinit(keys[3], (C_out, C_in, 75, 1), C_in * 75),
        "b2": uinit(keys[4], (C_out,), C_in * 75),
        "w3": uinit(keys[5], (C_out, C_in, 125, 1), C_in * 125),
        "b3": uinit(keys[6], (C_out,), C_in * 125),
        "ws": uinit(keys[7], (C_out, C_in, 1, 1), C_in),
        "bs": uinit(keys[8], (C_out,), C_in),
        "gamma": jnp.ones((C_out,), jnp.float32),
        "beta": jnp.zeros((C_out,), jnp.float32),
    }
    x = jax.random.normal(keys[0], (B, C_in, H, W), dtype=jnp.float32)

    out = jax.jit(vertical_inception_3p_forward)(x, params)
    out = jax.block_until_ready(out)
    assert out.shape == (B, C_out, (H - 1) // 2 + 1, W), out.shape

    ref = _reference_forward(x, params)
    err = float(jnp.max(jnp.abs(out - ref)))
    assert err < 2e-2, f"max |err| vs reference = {err}"
    print("KERNEL_OK")
</pallas_src>

<mosaic_0001>
module attributes {stable_mosaic.version = 11 : i64} {
  func.func @_branches_kernel(%arg0: i32, %arg1: memref<1x4x1504xf32, #tpu.memory_space<vmem>>, %arg2: memref<1x4x1504xf32, #tpu.memory_space<vmem>>, %arg3: memref<5x32x100xf32, #tpu.memory_space<vmem>>, %arg4: memref<32x1xf32, #tpu.memory_space<vmem>>, %arg5: memref<1x8x512xf32, #tpu.memory_space<vmem>>, %arg6: memref<1x8x512xf32, #tpu.memory_space<vmem>>, %arg7: memref<1x8x1xf32, #tpu.memory_space<vmem>>, %arg8: memref<1x8x1xf32, #tpu.memory_space<vmem>>, %arg9: memref<100x512xf32, #tpu.memory_space<vmem>>) attributes {dimension_semantics = [#tpu.dimension_semantics<parallel>], iteration_bounds = array<i64: 2>, scalar_prefetch = 0 : i64, scratch_operands = 1 : i64, tpu.core_type = #tpu.core_type<tc>, window_params = [{transform_indices = @transform_0, window_bounds = array<i64: 1, 4, 1504>}, {transform_indices = @transform_1, window_bounds = array<i64: 1, 4, 1504>}, {pipeline_mode = #tpu.pipeline_mode<synchronous>, transform_indices = @transform_2, window_bounds = array<i64: 5, 32, 100>}, {pipeline_mode = #tpu.pipeline_mode<synchronous>, transform_indices = @transform_3, window_bounds = array<i64: 32, 1>}, {transform_indices = @transform_4, window_bounds = array<i64: 1, 8, 512>}, {transform_indices = @transform_5, window_bounds = array<i64: 1, 8, 512>}, {transform_indices = @transform_6, window_bounds = array<i64: 1, 8, 1>}, {transform_indices = @transform_7, window_bounds = array<i64: 1, 8, 1>}]} {
    %cst = arith.constant 0.000000e+00 : f32
    %0 = vector.broadcast %cst : f32 to vector<32x512xf32>
    %c0 = arith.constant 0 : index
    %c0_0 = arith.constant 0 : index
    %c0_1 = arith.constant 0 : index
    %1 = vector.load %arg1[%c0, %c0_0, %c0_1] : memref<1x4x1504xf32, #tpu.memory_space<vmem>>, vector<1x4x512xf32>
    %2 = vector.shape_cast %1 : vector<1x4x512xf32> to vector<4x512xf32>
    %c0_2 = arith.constant 0 : index
    %c0_3 = arith.constant 0 : index
    %3 = vector.load %arg9[%c0_2, %c0_3] : memref<100x512xf32, #tpu.memory_space<vmem>>, vector<4x512xf32>
    tpu.vector_store %arg9[%c0_2, %c0_3], %2 {strides = array<i32>} : memref<100x512xf32, #tpu.memory_space<vmem>>, vector<4x512xf32>,
    %c0_4 = arith.constant 0 : index
    %c0_5 = arith.constant 0 : index
    %c0_6 = arith.constant 0 : index
    %4 = vector.load %arg2[%c0_4, %c0_5, %c0_6] : memref<1x4x1504xf32, #tpu.memory_space<vmem>>, vector<1x4x512xf32>
    %5 = vector.shape_cast %4 : vector<1x4x512xf32> to vector<4x512xf32>
    %c4 = arith.constant 4 : index
    %c0_7 = arith.constant 0 : index
    %6 = vector.load %arg9[%c4, %c0_7] : memref<100x512xf32, #tpu.memory_space<vmem>>, vector<4x512xf32>
    tpu.vector_store %arg9[%c4, %c0_7], %5 {strides = array<i32>} : memref<100x512xf32, #tpu.memory_space<vmem>>, vector<4x512xf32>,
    %c0_8 = arith.constant 0 : index
    %c0_9 = arith.constant 0 : index
    %c16 = arith.constant 16 : index
    %7 = vector.load %arg1[%c0_8, %c0_9, %c16] : memref<1x4x1504xf32, #tpu.memory_space<vmem>>, vector<1x4x512xf32>
    %8 = vector.shape_cast %7 : vector<1x4x512xf32> to vector<4x512xf32>
    %c8 = arith.constant 8 : index
    %c0_10 = arith.constant 0 : index
    %9 = vector.load %arg9[%c8, %c0_10] : memref<100x512xf32, #tpu.memory_space<vmem>>, vector<4x512xf32>
    tpu.vector_store %arg9[%c8, %c0_10], %8 {strides = array<i32>} : memref<100x512xf32, #tpu.memory_space<vmem>>, vector<4x512xf32>,
    %c0_11 = arith.constant 0 : index
    %c0_12 = arith.constant 0 : index
    %c16_13 = arith.constant 16 : index
    %10 = vector.load %arg2[%c0_11, %c0_12, %c16_13] : memref<1x4x1504xf32, #tpu.memory_space<vmem>>, vector<1x4x512xf32>
    %11 = vector.shape_cast %10 : vector<1x4x512xf32> to vector<4x512xf32>
    %c12 = arith.constant 12 : index
    %c0_14 = arith.constant 0 : index
    %12 = vector.load %arg9[%c12, %c0_14] : memref<100x512xf32, #tpu.memory_space<vmem>>, vector<4x512xf32>
    tpu.vector_store %arg9[%c12, %c0_14], %11 {strides = array<i32>} : memref<100x512xf32, #tpu.memory_space<vmem>>, vector<4x512xf32>,
    %c0_15 = arith.constant 0 : index
    %c0_16 = arith.constant 0 : index
    %c32 = arith.constant 32 : index
    %13 = vector.load %arg1[%c0_15, %c0_16, %c32] : memref<1x4x1504xf32, #tpu.memory_space<vmem>>, vector<1x4x512xf32>
    %14 = vector.shape_cast %13 : vector<1x4x512xf32> to vector<4x512xf32>
    %c16_17 = arith.constant 16 : index
    %c0_18 = arith.constant 0 : index
    %15 = vector.load %arg9[%c16_17, %c0_18] : memref<100x512xf32, #tpu.memory_space<vmem>>, vector<4x512xf32>
    tpu.vector_store %arg9[%c16_17, %c0_18], %14 {strides = array<i32>} : memref<100x512xf32, #tpu.memory_space<vmem>>, vector<4x512xf32>,
    %c0_19 = arith.constant 0 : index
    %c0_20 = arith.constant 0 : index
    %c32_21 = arith.constant 32 : index
    %16 = vector.load %arg2[%c0_19, %c0_20, %c32_21] : memref<1x4x1504xf32, #tpu.memory_space<vmem>>, vector<1x4x512xf32>
    %17 = vector.shape_cast %16 : vector<1x4x512xf32> to vector<4x512xf32>
    %c20 = arith.constant 20 : index
    %c0_22 = arith.constant 0 : index
    %18 = vector.load %arg9[%c20, %c0_22] : memref<100x512xf32, #tpu.memory_space<vmem>>, vector<4x512xf32>
    tpu.vector_store %arg9[%c20, %c0_22], %17 {strides = array<i32>} : memref<100x512xf32, #tpu.memory_space<vmem>>, vector<4x512xf32>,
    %c0_23 = arith.constant 0 : index
    %c0_24 = arith.constant 0 : index
    %c48 = arith.constant 48 : index
    %19 = vector.load %arg1[%c0_23, %c0_24, %c48] : memref<1x4x1504xf32, #tpu.memory_space<vmem>>, vector<1x4x512xf32>
    %20 = vector.shape_cast %19 : vector<1x4x512xf32> to vector<4x512xf32>
    %c24 = arith.constant 24 : index
    %c0_25 = arith.constant 0 : index
    %21 = vector.load %arg9[%c24, %c0_25] : memref<100x512xf32, #tpu.memory_space<vmem>>, vector<4x512xf32>
    tpu.vector_store %arg9[%c24, %c0_25], %20 {strides = array<i32>} : memref<100x512xf32, #tpu.memory_space<vmem>>, vector<4x512xf32>,
    %c0_26 = arith.constant 0 : index
    %c0_27 = arith.constant 0 : index
    %c48_28 = arith.constant 48 : index
    %22 = vector.load %arg2[%c0_26, %c0_27, %c48_28] : memref<1x4x1504xf32, #tpu.memory_space<vmem>>, vector<1x4x512xf32>
    %23 = vector.shape_cast %22 : vector<1x4x512xf32> to vector<4x512xf32>
    %c28 = arith.constant 28 : index
    %c0_29 = arith.constant 0 : index
    %24 = vector.load %arg9[%c28, %c0_29] : memref<100x512xf32, #tpu.memory_space<vmem>>, vector<4x512xf32>
    tpu.vector_store %arg9[%c28, %c0_29], %23 {strides = array<i32>} : memref<100x512xf32, #tpu.memory_space<vmem>>, vector<4x512xf32>,
    %c0_30 = arith.constant 0 : index
    %c0_31 = arith.constant 0 : index
    %c64 = arith.constant 64 : index
    %25 = vector.load %arg1[%c0_30, %c0_31, %c64] : memref<1x4x1504xf32, #tpu.memory_space<vmem>>, vector<1x4x512xf32>
    %26 = vector.shape_cast %25 : vector<1x4x512xf32> to vector<4x512xf32>
    %c32_32 = arith.constant 32 : index
    %c0_33 = arith.constant 0 : index
    %27 = vector.load %arg9[%c32_32, %c0_33] : memref<100x512xf32, #tpu.memory_space<vmem>>, vector<4x512xf32>
    tpu.vector_store %arg9[%c32_32, %c0_33], %26 {strides = array<i32>} : memref<100x512xf32, #tpu.memory_space<vmem>>, vector<4x512xf32>,
    %c0_34 = arith.constant 0 : index
    %c0_35 = arith.constant 0 : index
    %c64_36 = arith.constant 64 : index
    %28 = vector.load %arg2[%c0_34, %c0_35, %c64_36] : memref<1x4x1504xf32, #tpu.memory_space<vmem>>, vector<1x4x512xf32>
    %29 = vector.shape_cast %28 : vector<1x4x512xf32> to vector<4x512xf32>
    %c36 = arith.constant 36 : index
    %c0_37 = arith.constant 0 : index
    %30 = vector.load %arg9[%c36, %c0_37] : memref<100x512xf32, #tpu.memory_space<vmem>>, vector<4x512xf32>
    tpu.vector_store %arg9[%c36, %c0_37], %29 {strides = array<i32>} : memref<100x512xf32, #tpu.memory_space<vmem>>, vector<4x512xf32>,
    %c0_38 = arith.constant 0 : index
    %c0_39 = arith.constant 0 : index
    %c80 = arith.constant 80 : index
    %31 = vector.load %arg1[%c0_38, %c0_39, %c80] : memref<1x4x1504xf32, #tpu.memory_space<vmem>>, vector<1x4x512xf32>
    %32 = vector.shape_cast %31 : vector<1x4x512xf32> to vector<4x512xf32>
    %c40 = arith.constant 40 : index
    %c0_40 = arith.constant 0 : index
    %33 = vector.load %arg9[%c40, %c0_40] : memref<100x512xf32, #tpu.memory_space<vmem>>, vector<4x512xf32>
    tpu.vector_store %arg9[%c40, %c0_40], %32 {strides = array<i32>} : memref<100x512xf32, #tpu.memory_space<vmem>>, vector<4x512xf32>,
    %c0_41 = arith.constant 0 : index
    %c0_42 = arith.constant 0 : index
    %c80_43 = arith.constant 80 : index
    %34 = vector.load %arg2[%c0_41, %c0_42, %c80_43] : memref<1x4x1504xf32, #tpu.memory_space<vmem>>, vector<1x4x512xf32>
    %35 = vector.shape_cast %34 : vector<1x4x512xf32> to vector<4x512xf32>
    %c44 = arith.constant 44 : index
    %c0_44 = arith.constant 0 : index
    %36 = vector.load %arg9[%c44, %c0_44] : memref<100x512xf32, #tpu.memory_space<vmem>>, vector<4x512xf32>
    tpu.vector_store %arg9[%c44, %c0_44], %35 {strides = array<i32>} : memref<100x512xf32, #tpu.memory_space<vmem>>, vector<4x512xf32>,
    %c0_45 = arith.constant 0 : index
    %c0_46 = arith.constant 0 : index
    %c96 = arith.constant 96 : index
    %37 = vector.load %arg1[%c0_45, %c0_46, %c96] : memref<1x4x1504xf32, #tpu.memory_space<vmem>>, vector<1x4x512xf32>
    %38 = vector.shape_cast %37 : vector<1x4x512xf32> to vector<4x512xf32>
    %c48_47 = arith.constant 48 : index
    %c0_48 = arith.constant 0 : index
    %39 = vector.load %arg9[%c48_47, %c0_48] : memref<100x512xf32, #tpu.memory_space<vmem>>, vector<4x512xf32>
    tpu.vector_store %arg9[%c48_47, %c0_48], %38 {strides = array<i32>} : memref<100x512xf32, #tpu.memory_space<vmem>>, vector<4x512xf32>,
    %c0_49 = arith.constant 0 : index
    %c0_50 = arith.constant 0 : index
    %c96_51 = arith.constant 96 : index
    %40 = vector.load %arg2[%c0_49, %c0_50, %c96_51] : memref<1x4x1504xf32, #tpu.memory_space<vmem>>, vector<1x4x512xf32>
    %41 = vector.shape_cast %40 : vector<1x4x512xf32> to vector<4x512xf32>
    %c52 = arith.constant 52 : index
    %c0_52 = arith.constant 0 : index
    %42 = vector.load %arg9[%c52, %c0_52] : memref<100x512xf32, #tpu.memory_space<vmem>>, vector<4x512xf32>
    tpu.vector_store %arg9[%c52, %c0_52], %41 {strides = array<i32>} : memref<100x512xf32, #tpu.memory_space<vmem>>, vector<4x512xf32>,
    %c0_53 = arith.constant 0 : index
    %c0_54 = arith.constant 0 : index
    %c112 = arith.constant 112 : index
    %43 = vector.load %arg1[%c0_53, %c0_54, %c112] : memref<1x4x1504xf32, #tpu.memory_space<vmem>>, vector<1x4x512xf32>
    %44 = vector.shape_cast %43 : vector<1x4x512xf32> to vector<4x512xf32>
    %c56 = arith.constant 56 : index
    %c0_55 = arith.constant 0 : index
    %45 = vector.load %arg9[%c56, %c0_55] : memref<100x512xf32, #tpu.memory_space<vmem>>, vector<4x512xf32>
    tpu.vector_store %arg9[%c56, %c0_55], %44 {strides = array<i32>} : memref<100x512xf32, #tpu.memory_space<vmem>>, vector<4x512xf32>,
    %c0_56 = arith.constant 0 : index
    %c0_57 = arith.constant 0 : index
    %c112_58 = arith.constant 112 : index
    %46 = vector.load %arg2[%c0_56, %c0_57, %c112_58] : memref<1x4x1504xf32, #tpu.memory_space<vmem>>, vector<1x4x512xf32>
    %47 = vector.shape_cast %46 : vector<1x4x512xf32> to vector<4x512xf32>
    %c60 = arith.constant 60 : index
    %c0_59 = arith.constant 0 : index
    %48 = vector.load %arg9[%c60, %c0_59] : memref<100x512xf32, #tpu.memory_space<vmem>>, vector<4x512xf32>
    tpu.vector_store %arg9[%c60, %c0_59], %47 {strides = array<i32>} : memref<100x512xf32, #tpu.memory_space<vmem>>, vector<4x512xf32>,
    %c0_60 = arith.constant 0 : index
    %c0_61 = arith.constant 0 : index
    %c128 = arith.constant 128 : index
    %49 = vector.load %arg1[%c0_60, %c0_61, %c128] : memref<1x4x1504xf32, #tpu.memory_space<vmem>>, vector<1x4x512xf32>
    %50 = vector.shape_cast %49 : vector<1x4x512xf32> to vector<4x512xf32>
    %c64_62 = arith.constant 64 : index
    %c0_63 = arith.constant 0 : index
    %51 = vector.load %arg9[%c64_62, %c0_63] : memref<100x512xf32, #tpu.memory_space<vmem>>, vector<4x512xf32>
    tpu.vector_store %arg9[%c64_62, %c0_63], %50 {strides = array<i32>} : memref<100x512xf32, #tpu.memory_space<vmem>>, vector<4x512xf32>,
    %c0_64 = arith.constant 0 : index
    %c0_65 = arith.constant 0 : index
    %c128_66 = arith.constant 128 : index
    %52 = vector.load %arg2[%c0_64, %c0_65, %c128_66] : memref<1x4x1504xf32, #tpu.memory_space<vmem>>, vector<1x4x512xf32>
    %53 = vector.shape_cast %52 : vector<1x4x512xf32> to vector<4x512xf32>
    %c68 = arith.constant 68 : index
    %c0_67 = arith.constant 0 : index
    %54 = vector.load %arg9[%c68, %c0_67] : memref<100x512xf32, #tpu.memory_space<vmem>>, vector<4x512xf32>
    tpu.vector_store %arg9[%c68, %c0_67], %53 {strides = array<i32>} : memref<100x512xf32, #tpu.memory_space<vmem>>, vector<4x512xf32>,
    %c0_68 = arith.constant 0 : index
    %c0_69 = arith.constant 0 : index
    %c144 = arith.constant 144 : index
    %55 = vector.load %arg1[%c0_68, %c0_69, %c144] : memref<1x4x1504xf32, #tpu.memory_space<vmem>>, vector<1x4x512xf32>
    %56 = vector.shape_cast %55 : vector<1x4x512xf32> to vector<4x512xf32>
    %c72 = arith.constant 72 : index
    %c0_70 = arith.constant 0 : index
    %57 = vector.load %arg9[%c72, %c0_70] : memref<100x512xf32, #tpu.memory_space<vmem>>, vector<4x512xf32>
    tpu.vector_store %arg9[%c72, %c0_70], %56 {strides = array<i32>} : memref<100x512xf32, #tpu.memory_space<vmem>>, vector<4x512xf32>,
    %c0_71 = arith.constant 0 : index
    %c0_72 = arith.constant 0 : index
    %c144_73 = arith.constant 144 : index
    %58 = vector.load %arg2[%c0_71, %c0_72, %c144_73] : memref<1x4x1504xf32, #tpu.memory_space<vmem>>, vector<1x4x512xf32>
    %59 = vector.shape_cast %58 : vector<1x4x512xf32> to vector<4x512xf32>
    %c76 = arith.constant 76 : index
    %c0_74 = arith.constant 0 : index
    %60 = vector.load %arg9[%c76, %c0_74] : memref<100x512xf32, #tpu.memory_space<vmem>>, vector<4x512xf32>
    tpu.vector_store %arg9[%c76, %c0_74], %59 {strides = array<i32>} : memref<100x512xf32, #tpu.memory_space<vmem>>, vector<4x512xf32>,
    %c0_75 = arith.constant 0 : index
    %c0_76 = arith.constant 0 : index
    %c160 = arith.constant 160 : index
    %61 = vector.load %arg1[%c0_75, %c0_76, %c160] : memref<1x4x1504xf32, #tpu.memory_space<vmem>>, vector<1x4x512xf32>
    %62 = vector.shape_cast %61 : vector<1x4x512xf32> to vector<4x512xf32>
    %c80_77 = arith.constant 80 : index
    %c0_78 = arith.constant 0 : index
    %63 = vector.load %arg9[%c80_77, %c0_78] : memref<100x512xf32, #tpu.memory_space<vmem>>, vector<4x512xf32>
    tpu.vector_store %arg9[%c80_77, %c0_78], %62 {strides = array<i32>} : memref<100x512xf32, #tpu.memory_space<vmem>>, vector<4x512xf32>,
    %c0_79 = arith.constant 0 : index
    %c0_80 = arith.constant 0 : index
    %c160_81 = arith.constant 160 : index
    %64 = vector.load %arg2[%c0_79, %c0_80, %c160_81] : memref<1x4x1504xf32, #tpu.memory_space<vmem>>, vector<1x4x512xf32>
    %65 = vector.shape_cast %64 : vector<1x4x512xf32> to vector<4x512xf32>
    %c84 = arith.constant 84 : index
    %c0_82 = arith.constant 0 : index
    %66 = vector.load %arg9[%c84, %c0_82] : memref<100x512xf32, #tpu.memory_space<vmem>>, vector<4x512xf32>
    tpu.vector_store %arg9[%c84, %c0_82], %65 {strides = array<i32>} : memref<100x512xf32, #tpu.memory_space<vmem>>, vector<4x512xf32>,
    %c0_83 = arith.constant 0 : index
    %c0_84 = arith.constant 0 : index
    %c176 = arith.constant 176 : index
    %67 = vector.load %arg1[%c0_83, %c0_84, %c176] : memref<1x4x1504xf32, #tpu.memory_space<vmem>>, vector<1x4x512xf32>
    %68 = vector.shape_cast %67 : vector<1x4x512xf32> to vector<4x512xf32>
    %c88 = arith.constant 88 : index
    %c0_85 = arith.constant 0 : index
    %69 = vector.load %arg9[%c88, %c0_85] : memref<100x512xf32, #tpu.memory_space<vmem>>, vector<4x512xf32>
    tpu.vector_store %arg9[%c88, %c0_85], %68 {strides = array<i32>} : memref<100x512xf32, #tpu.memory_space<vmem>>, vector<4x512xf32>,
    %c0_86 = arith.constant 0 : index
    %c0_87 = arith.constant 0 : index
    %c176_88 = arith.constant 176 : index
    %70 = vector.load %arg2[%c0_86, %c0_87, %c176_88] : memref<1x4x1504xf32, #tpu.memory_space<vmem>>, vector<1x4x512xf32>
    %71 = vector.shape_cast %70 : vector<1x4x512xf32> to vector<4x512xf32>
    %c92 = arith.constant 92 : index
    %c0_89 = arith.constant 0 : index
    %72 = vector.load %arg9[%c92, %c0_89] : memref<100x512xf32, #tpu.memory_space<vmem>>, vector<4x512xf32>
    tpu.vector_store %arg9[%c92, %c0_89], %71 {strides = array<i32>} : memref<100x512xf32, #tpu.memory_space<vmem>>, vector<4x512xf32>,
    %c0_90 = arith.constant 0 : index
    %c0_91 = arith.constant 0 : index
    %c192 = arith.constant 192 : index
    %73 = vector.load %arg1[%c0_90, %c0_91, %c192] : memref<1x4x1504xf32, #tpu.memory_space<vmem>>, vector<1x4x512xf32>
    %74 = vector.shape_cast %73 : vector<1x4x512xf32> to vector<4x512xf32>
    %c96_92 = arith.constant 96 : index
    %c0_93 = arith.constant 0 : index
    %75 = vector.load %arg9[%c96_92, %c0_93] : memref<100x512xf32, #tpu.memory_space<vmem>>, vector<4x512xf32>
    tpu.vector_store %arg9[%c96_92, %c0_93], %74 {strides = array<i32>} : memref<100x512xf32, #tpu.memory_space<vmem>>, vector<4x512xf32>,
    %c0_94 = arith.constant 0 : index
    %c0_95 = arith.constant 0 : index
    %c0_96 = arith.constant 0 : index
    %76 = vector.load %arg3[%c0_94, %c0_95, %c0_96] : memref<5x32x100xf32, #tpu.memory_space<vmem>>, vector<1x32x100xf32>
    %77 = vector.shape_cast %76 : vector<1x32x100xf32> to vector<32x100xf32>
    %c0_97 = arith.constant 0 : index
    %c0_98 = arith.constant 0 : index
    %78 = vector.load %arg9[%c0_97, %c0_98] : memref<100x512xf32, #tpu.memory_space<vmem>>, vector<100x512xf32>
    %cst_99 = arith.constant dense<0.000000e+00> : vector<32x512xf32>
    %79 = tpu.matmul %77, %78, %cst_99 {dimension_numbers = #tpu.dot_dimension_numbers<[1], [0], [0], [1], [0, 0, 1, 1], [], []>} : vector<32x100xf32>, vector<100x512xf32>, vector<32x512xf32> -> vector<32x512xf32>
    %80 = arith.addf %0, %79 : vector<32x512xf32>
    %c0_100 = arith.constant 0 : index
    %c0_101 = arith.constant 0 : index
    %c192_102 = arith.constant 192 : index
    %81 = vector.load %arg2[%c0_100, %c0_101, %c192_102] : memref<1x4x1504xf32, #tpu.memory_space<vmem>>, vector<1x4x512xf32>
    %82 = vector.shape_cast %81 : vector<1x4x512xf32> to vector<4x512xf32>
    %c0_103 = arith.constant 0 : index
    %c0_104 = arith.constant 0 : index
    %83 = vector.load %arg9[%c0_103, %c0_104] : memref<100x512xf32, #tpu.memory_space<vmem>>, vector<4x512xf32>
    tpu.vector_store %arg9[%c0_103, %c0_104], %82 {strides = array<i32>} : memref<100x512xf32, #tpu.memory_space<vmem>>, vector<4x512xf32>,
    %c0_105 = arith.constant 0 : index
    %c0_106 = arith.constant 0 : index
    %c208 = arith.constant 208 : index
    %84 = vector.load %arg1[%c0_105, %c0_106, %c208] : memref<1x4x1504xf32, #tpu.memory_space<vmem>>, vector<1x4x512xf32>
    %85 = vector.shape_cast %84 : vector<1x4x512xf32> to vector<4x512xf32>
    %c4_107 = arith.constant 4 : index
    %c0_108 = arith.constant 0 : index
    %86 = vector.load %arg9[%c4_107, %c0_108] : memref<100x512xf32, #tpu.memory_space<vmem>>, vector<4x512xf32>
    tpu.vector_store %arg9[%c4_107, %c0_108], %85 {strides = array<i32>} : memref<100x512xf32, #tpu.memory_space<vmem>>, vector<4x512xf32>,
    %c0_109 = arith.constant 0 : index
    %c0_110 = arith.constant 0 : index
    %c208_111 = arith.constant 208 : index
    %87 = vector.load %arg2[%c0_109, %c0_110, %c208_111] : memref<1x4x1504xf32, #tpu.memory_space<vmem>>, vector<1x4x512xf32>
    %88 = vector.shape_cast %87 : vector<1x4x512xf32> to vector<4x512xf32>
    %c8_112 = arith.constant 8 : index
    %c0_113 = arith.constant 0 : index
    %89 = vector.load %arg9[%c8_112, %c0_113] : memref<100x512xf32, #tpu.memory_space<vmem>>, vector<4x512xf32>
    tpu.vector_store %arg9[%c8_112, %c0_113], %88 {strides = array<i32>} : memref<100x512xf32, #tpu.memory_space<vmem>>, vector<4x512xf32>,
    %c0_114 = arith.constant 0 : index
    %c0_115 = arith.constant 0 : index
    %c224 = arith.constant 224 : index
    %90 = vector.load %arg1[%c0_114, %c0_115, %c224] : memref<1x4x1504xf32, #tpu.memory_space<vmem>>, vector<1x4x512xf32>
    %91 = vector.shape_cast %90 : vector<1x4x512xf32> to vector<4x512xf32>
    %c12_116 = arith.constant 12 : index
    %c0_117 = arith.constant 0 : index
    %92 = vector.load %arg9[%c12_116, %c0_117] : memref<100x512xf32, #tpu.memory_space<vmem>>, vector<4x512xf32>
    tpu.vector_store %arg9[%c12_116, %c0_117], %91 {strides = array<i32>} : memref<100x512xf32, #tpu.memory_space<vmem>>, vector<4x512xf32>,
    %c0_118 = arith.constant 0 : index
    %c0_119 = arith.constant 0 : index
    %c224_120 = arith.constant 224 : index
    %93 = vector.load %arg2[%c0_118, %c0_119, %c224_120] : memref<1x4x1504xf32, #tpu.memory_space<vmem>>, vector<1x4x512xf32>
    %94 = vector.shape_cast %93 : vector<1x4x512xf32> to vector<4x512xf32>
    %c16_121 = arith.constant 16 : index
    %c0_122 = arith.constant 0 : index
    %95 = vector.load %arg9[%c16_121, %c0_122] : memref<100x512xf32, #tpu.memory_space<vmem>>, vector<4x512xf32>
    tpu.vector_store %arg9[%c16_121, %c0_122], %94 {strides = array<i32>} : memref<100x512xf32, #tpu.memory_space<vmem>>, vector<4x512xf32>,
    %c0_123 = arith.constant 0 : index
    %c0_124 = arith.constant 0 : index
    %c240 = arith.constant 240 : index
    %96 = vector.load %arg1[%c0_123, %c0_124, %c240] : memref<1x4x1504xf32, #tpu.memory_space<vmem>>, vector<1x4x512xf32>
    %97 = vector.shape_cast %96 : vector<1x4x512xf32> to vector<4x512xf32>
    %c20_125 = arith.constant 20 : index
    %c0_126 = arith.constant 0 : index
    %98 = vector.load %arg9[%c20_125, %c0_126] : memref<100x512xf32, #tpu.memory_space<vmem>>, vector<4x512xf32>
    tpu.vector_store %arg9[%c20_125, %c0_126], %97 {strides = array<i32>} : memref<100x512xf32, #tpu.memory_space<vmem>>, vector<4x512xf32>,
    %c0_127 = arith.constant 0 : index
    %c0_128 = arith.constant 0 : index
    %c240_129 = arith.constant 240 : index
    %99 = vector.load %arg2[%c0_127, %c0_128, %c240_129] : memref<1x4x1504xf32, #tpu.memory_space<vmem>>, vector<1x4x512xf32>
    %100 = vector.shape_cast %99 : vector<1x4x512xf32> to vector<4x512xf32>
    %c24_130 = arith.constant 24 : index
    %c0_131 = arith.constant 0 : index
    %101 = vector.load %arg9[%c24_130, %c0_131] : memref<100x512xf32, #tpu.memory_space<vmem>>, vector<4x512xf32>
    tpu.vector_store %arg9[%c24_130, %c0_131], %100 {strides = array<i32>} : memref<100x512xf32, #tpu.memory_space<vmem>>, vector<4x512xf32>,
    %c0_132 = arith.constant 0 : index
    %c0_133 = arith.constant 0 : index
    %c256 = arith.constant 256 : index
    %102 = vector.load %arg1[%c0_132, %c0_133, %c256] : memref<1x4x1504xf32, #tpu.memory_space<vmem>>, vector<1x4x512xf32>
    %103 = vector.shape_cast %102 : vector<1x4x512xf32> to vector<4x512xf32>
    %c28_134 = arith.constant 28 : index
    %c0_135 = arith.constant 0 : index
    %104 = vector.load %arg9[%c28_134, %c0_135] : memref<100x512xf32, #tpu.memory_space<vmem>>, vector<4x512xf32>
    tpu.vector_store %arg9[%c28_134, %c0_135], %103 {strides = array<i32>} : memref<100x512xf32, #tpu.memory_space<vmem>>, vector<4x512xf32>,
    %c0_136 = arith.constant 0 : index
    %c0_137 = arith.constant 0 : index
    %c256_138 = arith.constant 256 : index
    %105 = vector.load %arg2[%c0_136, %c0_137, %c256_138] : memref<1x4x1504xf32, #tpu.memory_space<vmem>>, vector<1x4x512xf32>
    %106 = vector.shape_cast %105 : vector<1x4x512xf32> to vector<4x512xf32>
    %c32_139 = arith.constant 32 : index
    %c0_140 = arith.constant 0 : index
    %107 = vector.load %arg9[%c32_139, %c0_140] : memref<100x512xf32, #tpu.memory_space<vmem>>, vector<4x512xf32>
    tpu.vector_store %arg9[%c32_139, %c0_140], %106 {strides = array<i32>} : memref<100x512xf32, #tpu.memory_space<vmem>>, vector<4x512xf32>,
    %c0_141 = arith.constant 0 : index
    %c0_142 = arith.constant 0 : index
    %c272 = arith.constant 272 : index
    %108 = vector.load %arg1[%c0_141, %c0_142, %c272] : memref<1x4x1504xf32, #tpu.memory_space<vmem>>, vector<1x4x512xf32>
    %109 = vector.shape_cast %108 : vector<1x4x512xf32> to vector<4x512xf32>
    %c36_143 = arith.constant 36 : index
    %c0_144 = arith.constant 0 : index
    %110 = vector.load %arg9[%c36_143, %c0_144] : memref<100x512xf32, #tpu.memory_space<vmem>>, vector<4x512xf32>
    tpu.vector_store %arg9[%c36_143, %c0_144], %109 {strides = array<i32>} : memref<100x512xf32, #tpu.memory_space<vmem>>, vector<4x512xf32>,
    %c0_145 = arith.constant 0 : index
    %c0_146 = arith.constant 0 : index
    %c272_147 = arith.constant 272 : index
    %111 = vector.load %arg2[%c0_145, %c0_146, %c272_147] : memref<1x4x1504xf32, #tpu.memory_space<vmem>>, vector<1x4x512xf32>
    %112 = vector.shape_cast %111 : vector<1x4x512xf32> to vector<4x512xf32>
    %c40_148 = arith.constant 40 : index
    %c0_149 = arith.constant 0 : index
    %113 = vector.load %arg9[%c40_148, %c0_149] : memref<100x512xf32, #tpu.memory_space<vmem>>, vector<4x512xf32>
    tpu.vector_store %arg9[%c40_148, %c0_149], %112 {strides = array<i32>} : memref<100x512xf32, #tpu.memory_space<vmem>>, vector<4x512xf32>,
    %c0_150 = arith.constant 0 : index
    %c0_151 = arith.constant 0 : index
    %c288 = arith.constant 288 : index
    %114 = vector.load %arg1[%c0_150, %c0_151, %c288] : memref<1x4x1504xf32, #tpu.memory_space<vmem>>, vector<1x4x512xf32>
    %115 = vector.shape_cast %114 : vector<1x4x512xf32> to vector<4x512xf32>
    %c44_152 = arith.constant 44 : index
    %c0_153 = arith.constant 0 : index
    %116 = vector.load %arg9[%c44_152, %c0_153] : memref<100x512xf32, #tpu.memory_space<vmem>>, vector<4x512xf32>
    tpu.vector_store %arg9[%c44_152, %c0_153], %115 {strides = array<i32>} : memref<100x512xf32, #tpu.memory_space<vmem>>, vector<4x512xf32>,
    %c0_154 = arith.constant 0 : index
    %c0_155 = arith.constant 0 : index
    %c288_156 = arith.constant 288 : index
    %117 = vector.load %arg2[%c0_154, %c0_155, %c288_156] : memref<1x4x1504xf32, #tpu.memory_space<vmem>>, vector<1x4x512xf32>
    %118 = vector.shape_cast %117 : vector<1x4x512xf32> to vector<4x512xf32>
    %c48_157 = arith.constant 48 : index
    %c0_158 = arith.constant 0 : index
    %119 = vector.load %arg9[%c48_157, %c0_158] : memref<100x512xf32, #tpu.memory_space<vmem>>, vector<4x512xf32>
    tpu.vector_store %arg9[%c48_157, %c0_158], %118 {strides = array<i32>} : memref<100x512xf32, #tpu.memory_space<vmem>>, vector<4x512xf32>,
    %c0_159 = arith.constant 0 : index
    %c0_160 = arith.constant 0 : index
    %c304 = arith.constant 304 : index
    %120 = vector.load %arg1[%c0_159, %c0_160, %c304] : memref<1x4x1504xf32, #tpu.memory_space<vmem>>, vector<1x4x512xf32>
    %121 = vector.shape_cast %120 : vector<1x4x512xf32> to vector<4x512xf32>
    %c52_161 = arith.constant 52 : index
    %c0_162 = arith.constant 0 : index
    %122 = vector.load %arg9[%c52_161, %c0_162] : memref<100x512xf32, #tpu.memory_space<vmem>>, vector<4x512xf32>
    tpu.vector_store %arg9[%c52_161, %c0_162], %121 {strides = array<i32>} : memref<100x512xf32, #tpu.memory_space<vmem>>, vector<4x512xf32>,
    %c0_163 = arith.constant 0 : index
    %c0_164 = arith.constant 0 : index
    %c304_165 = arith.constant 304 : index
    %123 = vector.load %arg2[%c0_163, %c0_164, %c304_165] : memref<1x4x1504xf32, #tpu.memory_space<vmem>>, vector<1x4x512xf32>
    %124 = vector.shape_cast %123 : vector<1x4x512xf32> to vector<4x512xf32>
    %c56_166 = arith.constant 56 : index
    %c0_167 = arith.constant 0 : index
    %125 = vector.load %arg9[%c56_166, %c0_167] : memref<100x512xf32, #tpu.memory_space<vmem>>, vector<4x512xf32>
    tpu.vector_store %arg9[%c56_166, %c0_167], %124 {strides = array<i32>} : memref<100x512xf32, #tpu.memory_space<vmem>>, vector<4x512xf32>,
    %c0_168 = arith.constant 0 : index
    %c0_169 = arith.constant 0 : index
    %c320 = arith.constant 320 : index
    %126 = vector.load %arg1[%c0_168, %c0_169, %c320] : memref<1x4x1504xf32, #tpu.memory_space<vmem>>, vector<1x4x512xf32>
    %127 = vector.shape_cast %126 : vector<1x4x512xf32> to vector<4x512xf32>
    %c60_170 = arith.constant 60 : index
    %c0_171 = arith.constant 0 : index
    %128 = vector.load %arg9[%c60_170, %c0_171] : memref<100x512xf32, #tpu.memory_space<vmem>>, vector<4x512xf32>
    tpu.vector_store %arg9[%c60_170, %c0_171], %127 {strides = array<i32>} : memref<100x512xf32, #tpu.memory_space<vmem>>, vector<4x512xf32>,
    %c0_172 = arith.constant 0 : index
    %c0_173 = arith.constant 0 : index
    %c320_174 = arith.constant 320 : index
    %129 = vector.load %arg2[%c0_172, %c0_173, %c320_174] : memref<1x4x1504xf32, #tpu.memory_space<vmem>>, vector<1x4x512xf32>
    %130 = vector.shape_cast %129 : vector<1x4x512xf32> to vector<4x512xf32>
    %c64_175 = arith.constant 64 : index
    %c0_176 = arith.constant 0 : index
    %131 = vector.load %arg9[%c64_175, %c0_176] : memref<100x512xf32, #tpu.memory_space<vmem>>, vector<4x512xf32>
    tpu.vector_store %arg9[%c64_175, %c0_176], %130 {strides = array<i32>} : memref<100x512xf32, #tpu.memory_space<vmem>>, vector<4x512xf32>,
    %c0_177 = arith.constant 0 : index
    %c0_178 = arith.constant 0 : index
    %c336 = arith.constant 336 : index
    %132 = vector.load %arg1[%c0_177, %c0_178, %c336] : memref<1x4x1504xf32, #tpu.memory_space<vmem>>, vector<1x4x512xf32>
    %133 = vector.shape_cast %132 : vector<1x4x512xf32> to vector<4x512xf32>
    %c68_179 = arith.constant 68 : index
    %c0_180 = arith.constant 0 : index
    %134 = vector.load %arg9[%c68_179, %c0_180] : memref<100x512xf32, #tpu.memory_space<vmem>>, vector<4x512xf32>
    tpu.vector_store %arg9[%c68_179, %c0_180], %133 {strides = array<i32>} : memref<100x512xf32, #tpu.memory_space<vmem>>, vector<4x512xf32>,
    %c0_181 = arith.constant 0 : index
    %c0_182 = arith.constant 0 : index
    %c336_183 = arith.constant 336 : index
    %135 = vector.load %arg2[%c0_181, %c0_182, %c336_183] : memref<1x4x1504xf32, #tpu.memory_space<vmem>>, vector<1x4x512xf32>
    %136 = vector.shape_cast %135 : vector<1x4x512xf32> to vector<4x512xf32>
    %c72_184 = arith.constant 72 : index
    %c0_185 = arith.constant 0 : index
    %137 = vector.load %arg9[%c72_184, %c0_185] : memref<100x512xf32, #tpu.memory_space<vmem>>, vector<4x512xf32>
    tpu.vector_store %arg9[%c72_184, %c0_185], %136 {strides = array<i32>} : memref<100x512xf32, #tpu.memory_space<vmem>>, vector<4x512xf32>,
    %c0_186 = arith.constant 0 : index
    %c0_187 = arith.constant 0 : index
    %c352 = arith.constant 352 : index
    %138 = vector.load %arg1[%c0_186, %c0_187, %c352] : memref<1x4x1504xf32, #tpu.memory_space<vmem>>, vector<1x4x512xf32>
    %139 = vector.shape_cast %138 : vector<1x4x512xf32> to vector<4x512xf32>
    %c76_188 = arith.constant 76 : index
    %c0_189 = arith.constant 0 : index
    %140 = vector.load %arg9[%c76_188, %c0_189] : memref<100x512xf32, #tpu.memory_space<vmem>>, vector<4x512xf32>
    tpu.vector_store %arg9[%c76_188, %c0_189], %139 {strides = array<i32>} : memref<100x512xf32, #tpu.memory_space<vmem>>, vector<4x512xf32>,
    %c0_190 = arith.constant 0 : index
    %c0_191 = arith.constant 0 : index
    %c352_192 = arith.constant 352 : index
    %141 = vector.load %arg2[%c0_190, %c0_191, %c352_192] : memref<1x4x1504xf32, #tpu.memory_space<vmem>>, vector<1x4x512xf32>
    %142 = vector.shape_cast %141 : vector<1x4x512xf32> to vector<4x512xf32>
    %c80_193 = arith.constant 80 : index
    %c0_194 = arith.constant 0 : index
    %143 = vector.load %arg9[%c80_193, %c0_194] : memref<100x512xf32, #tpu.memory_space<vmem>>, vector<4x512xf32>
    tpu.vector_store %arg9[%c80_193, %c0_194], %142 {strides = array<i32>} : memref<100x512xf32, #tpu.memory_space<vmem>>, vector<4x512xf32>,
    %c0_195 = arith.constant 0 : index
    %c0_196 = arith.constant 0 : index
    %c368 = arith.constant 368 : index
    %144 = vector.load %arg1[%c0_195, %c0_196, %c368] : memref<1x4x1504xf32, #tpu.memory_space<vmem>>, vector<1x4x512xf32>
    %145 = vector.shape_cast %144 : vector<1x4x512xf32> to vector<4x512xf32>
    %c84_197 = arith.constant 84 : index
    %c0_198 = arith.constant 0 : index
    %146 = vector.load %arg9[%c84_197, %c0_198] : memref<100x512xf32, #tpu.memory_space<vmem>>, vector<4x512xf32>
    tpu.vector_store %arg9[%c84_197, %c0_198], %145 {strides = array<i32>} : memref<100x512xf32, #tpu.memory_space<vmem>>, vector<4x512xf32>,
    %c0_199 = arith.constant 0 : index
    %c0_200 = arith.constant 0 : index
    %c368_201 = arith.constant 368 : index
    %147 = vector.load %arg2[%c0_199, %c0_200, %c368_201] : memref<1x4x1504xf32, #tpu.memory_space<vmem>>, vector<1x4x512xf32>
    %148 = vector.shape_cast %147 : vector<1x4x512xf32> to vector<4x512xf32>
    %c88_202 = arith.constant 88 : index
    %c0_203 = arith.constant 0 : index
    %149 = vector.load %arg9[%c88_202, %c0_203] : memref<100x512xf32, #tpu.memory_space<vmem>>, vector<4x512xf32>
    tpu.vector_store %arg9[%c88_202, %c0_203], %148 {strides = array<i32>} : memref<100x512xf32, #tpu.memory_space<vmem>>, vector<4x512xf32>,
    %c0_204 = arith.constant 0 : index
    %c0_205 = arith.constant 0 : index
    %c384 = arith.constant 384 : index
    %150 = vector.load %arg1[%c0_204, %c0_205, %c384] : memref<1x4x1504xf32, #tpu.memory_space<vmem>>, vector<1x4x512xf32>
    %151 = vector.shape_cast %150 : vector<1x4x512xf32> to vector<4x512xf32>
    %c92_206 = arith.constant 92 : index
    %c0_207 = arith.constant 0 : index
    %152 = vector.load %arg9[%c92_206, %c0_207] : memref<100x512xf32, #tpu.memory_space<vmem>>, vector<4x512xf32>
    tpu.vector_store %arg9[%c92_206, %c0_207], %151 {strides = array<i32>} : memref<100x512xf32, #tpu.memory_space<vmem>>, vector<4x512xf32>,
    %c0_208 = arith.constant 0 : index
    %c0_209 = arith.constant 0 : index
    %c384_210 = arith.constant 384 : index
    %153 = vector.load %arg2[%c0_208, %c0_209, %c384_210] : memref<1x4x1504xf32, #tpu.memory_space<vmem>>, vector<1x4x512xf32>
    %154 = vector.shape_cast %153 : vector<1x4x512xf32> to vector<4x512xf32>
    %c96_211 = arith.constant 96 : index
    %c0_212 = arith.constant 0 : index
    %155 = vector.load %arg9[%c96_211, %c0_212] : memref<100x512xf32, #tpu.memory_space<vmem>>, vector<4x512xf32>
    tpu.vector_store %arg9[%c96_211, %c0_212], %154 {strides = array<i32>} : memref<100x512xf32, #tpu.memory_space<vmem>>, vector<4x512xf32>,
    %c1 = arith.constant 1 : index
    %c0_213 = arith.constant 0 : index
    %c0_214 = arith.constant 0 : index
    %156 = vector.load %arg3[%c1, %c0_213, %c0_214] : memref<5x32x100xf32, #tpu.memory_space<vmem>>, vector<1x32x100xf32>
    %157 = vector.shape_cast %156 : vector<1x32x100xf32> to vector<32x100xf32>
    %c0_215 = arith.constant 0 : index
    %c0_216 = arith.constant 0 : index
    %158 = vector.load %arg9[%c0_215, %c0_216] : memref<100x512xf32, #tpu.memory_space<vmem>>, vector<100x512xf32>
    %cst_217 = arith.constant dense<0.000000e+00> : vector<32x512xf32>
    %159 = tpu.matmul %157, %158, %cst_217 {dimension_numbers = #tpu.dot_dimension_numbers<[1], [0], [0], [1], [0, 0, 1, 1], [], []>} : vector<32x100xf32>, vector<100x512xf32>, vector<32x512xf32> -> vector<32x512xf32>
    %160 = arith.addf %80, %159 : vector<32x512xf32>
    %c0_218 = arith.constant 0 : index
    %c0_219 = arith.constant 0 : index
    %c400 = arith.constant 400 : index
    %161 = vector.load %arg1[%c0_218, %c0_219, %c400] : memref<1x4x1504xf32, #tpu.memory_space<vmem>>, vector<1x4x512xf32>
    %162 = vector.shape_cast %161 : vector<1x4x512xf32> to vector<4x512xf32>
    %c0_220 = arith.constant 0 : index
    %c0_221 = arith.constant 0 : index
    %163 = vector.load %arg9[%c0_220, %c0_221] : memref<100x512xf32, #tpu.memory_space<vmem>>, vector<4x512xf32>
    tpu.vector_store %arg9[%c0_220, %c0_221], %162 {strides = array<i32>} : memref<100x512xf32, #tpu.memory_space<vmem>>, vector<4x512xf32>,
    %c0_222 = arith.constant 0 : index
    %c0_223 = arith.constant 0 : index
    %c400_224 = arith.constant 400 : index
    %164 = vector.load %arg2[%c0_222, %c0_223, %c400_224] : memref<1x4x1504xf32, #tpu.memory_space<vmem>>, vector<1x4x512xf32>
    %165 = vector.shape_cast %164 : vector<1x4x512xf32> to vector<4x512xf32>
    %c4_225 = arith.constant 4 : index
    %c0_226 = arith.constant 0 : index
    %166 = vector.load %arg9[%c4_225, %c0_226] : memref<100x512xf32, #tpu.memory_space<vmem>>, vector<4x512xf32>
    tpu.vector_store %arg9[%c4_225, %c0_226], %165 {strides = array<i32>} : memref<100x512xf32, #tpu.memory_space<vmem>>, vector<4x512xf32>,
    %c0_227 = arith.constant 0 : index
    %c0_228 = arith.constant 0 : index
    %c416 = arith.constant 416 : index
    %167 = vector.load %arg1[%c0_227, %c0_228, %c416] : memref<1x4x1504xf32, #tpu.memory_space<vmem>>, vector<1x4x512xf32>
    %168 = vector.shape_cast %167 : vector<1x4x512xf32> to vector<4x512xf32>
    %c8_229 = arith.constant 8 : index
    %c0_230 = arith.constant 0 : index
    %169 = vector.load %arg9[%c8_229, %c0_230] : memref<100x512xf32, #tpu.memory_space<vmem>>, vector<4x512xf32>
    tpu.vector_store %arg9[%c8_229, %c0_230], %168 {strides = array<i32>} : memref<100x512xf32, #tpu.memory_space<vmem>>, vector<4x512xf32>,
    %c0_231 = arith.constant 0 : index
    %c0_232 = arith.constant 0 : index
    %c416_233 = arith.constant 416 : index
    %170 = vector.load %arg2[%c0_231, %c0_232, %c416_233] : memref<1x4x1504xf32, #tpu.memory_space<vmem>>, vector<1x4x512xf32>
    %171 = vector.shape_cast %170 : vector<1x4x512xf32> to vector<4x512xf32>
    %c12_234 = arith.constant 12 : index
    %c0_235 = arith.constant 0 : index
    %172 = vector.load %arg9[%c12_234, %c0_235] : memref<100x512xf32, #tpu.memory_space<vmem>>, vector<4x512xf32>
    tpu.vector_store %arg9[%c12_234, %c0_235], %171 {strides = array<i32>} : memref<100x512xf32, #tpu.memory_space<vmem>>, vector<4x512xf32>,
    %c0_236 = arith.constant 0 : index
    %c0_237 = arith.constant 0 : index
    %c432 = arith.constant 432 : index
    %173 = vector.load %arg1[%c0_236, %c0_237, %c432] : memref<1x4x1504xf32, #tpu.memory_space<vmem>>, vector<1x4x512xf32>
    %174 = vector.shape_cast %173 : vector<1x4x512xf32> to vector<4x512xf32>
    %c16_238 = arith.constant 16 : index
    %c0_239 = arith.constant 0 : index
    %175 = vector.load %arg9[%c16_238, %c0_239] : memref<100x512xf32, #tpu.memory_space<vmem>>, vector<4x512xf32>
    tpu.vector_store %arg9[%c16_238, %c0_239], %174 {strides = array<i32>} : memref<100x512xf32, #tpu.memory_space<vmem>>, vector<4x512xf32>,
    %c0_240 = arith.constant 0 : index
    %c0_241 = arith.constant 0 : index
    %c432_242 = arith.constant 432 : index
    %176 = vector.load %arg2[%c0_240, %c0_241, %c432_242] : memref<1x4x1504xf32, #tpu.memory_space<vmem>>, vector<1x4x512xf32>
    %177 = vector.shape_cast %176 : vector<1x4x512xf32> to vector<4x512xf32>
    %c20_243 = arith.constant 20 : index
    %c0_244 = arith.constant 0 : index
    %178 = vector.load %arg9[%c20_243, %c0_244] : memref<100x512xf32, #tpu.memory_space<vmem>>, vector<4x512xf32>
    tpu.vector_store %arg9[%c20_243, %c0_244], %177 {strides = array<i32>} : memref<100x512xf32, #tpu.memory_space<vmem>>, vector<4x512xf32>,
    %c0_245 = arith.constant 0 : index
    %c0_246 = arith.constant 0 : index
    %c448 = arith.constant 448 : index
    %179 = vector.load %arg1[%c0_245, %c0_246, %c448] : memref<1x4x1504xf32, #tpu.memory_space<vmem>>, vector<1x4x512xf32>
    %180 = vector.shape_cast %179 : vector<1x4x512xf32> to vector<4x512xf32>
    %c24_247 = arith.constant 24 : index
    %c0_248 = arith.constant 0 : index
    %181 = vector.load %arg9[%c24_247, %c0_248] : memref<100x512xf32, #tpu.memory_space<vmem>>, vector<4x512xf32>
    tpu.vector_store %arg9[%c24_247, %c0_248], %180 {strides = array<i32>} : memref<100x512xf32, #tpu.memory_space<vmem>>, vector<4x512xf32>,
    %c0_249 = arith.constant 0 : index
    %c0_250 = arith.constant 0 : index
    %c448_251 = arith.constant 448 : index
    %182 = vector.load %arg2[%c0_249, %c0_250, %c448_251] : memref<1x4x1504xf32, #tpu.memory_space<vmem>>, vector<1x4x512xf32>
    %183 = vector.shape_cast %182 : vector<1x4x512xf32> to vector<4x512xf32>
    %c28_252 = arith.constant 28 : index
    %c0_253 = arith.constant 0 : index
    %184 = vector.load %arg9[%c28_252, %c0_253] : memref<100x512xf32, #tpu.memory_space<vmem>>, vector<4x512xf32>
    tpu.vector_store %arg9[%c28_252, %c0_253], %183 {strides = array<i32>} : memref<100x512xf32, #tpu.memory_space<vmem>>, vector<4x512xf32>,
    %c0_254 = arith.constant 0 : index
    %c0_255 = arith.constant 0 : index
    %c464 = arith.constant 464 : index
    %185 = vector.load %arg1[%c0_254, %c0_255, %c464] : memref<1x4x1504xf32, #tpu.memory_space<vmem>>, vector<1x4x512xf32>
    %186 = vector.shape_cast %185 : vector<1x4x512xf32> to vector<4x512xf32>
    %c32_256 = arith.constant 32 : index
    %c0_257 = arith.constant 0 : index
    %187 = vector.load %arg9[%c32_256, %c0_257] : memref<100x512xf32, #tpu.memory_space<vmem>>, vector<4x512xf32>
    tpu.vector_store %arg9[%c32_256, %c0_257], %186 {strides = array<i32>} : memref<100x512xf32, #tpu.memory_space<vmem>>, vector<4x512xf32>,
    %c0_258 = arith.constant 0 : index
    %c0_259 = arith.constant 0 : index
    %c464_260 = arith.constant 464 : index
    %188 = vector.load %arg2[%c0_258, %c0_259, %c464_260] : memref<1x4x1504xf32, #tpu.memory_space<vmem>>, vector<1x4x512xf32>
    %189 = vector.shape_cast %188 : vector<1x4x512xf32> to vector<4x512xf32>
    %c36_261 = arith.constant 36 : index
    %c0_262 = arith.constant 0 : index
    %190 = vector.load %arg9[%c36_261, %c0_262] : memref<100x512xf32, #tpu.memory_space<vmem>>, vector<4x512xf32>
    tpu.vector_store %arg9[%c36_261, %c0_262], %189 {strides = array<i32>} : memref<100x512xf32, #tpu.memory_space<vmem>>, vector<4x512xf32>,
    %c0_263 = arith.constant 0 : index
    %c0_264 = arith.constant 0 : index
    %c480 = arith.constant 480 : index
    %191 = vector.load %arg1[%c0_263, %c0_264, %c480] : memref<1x4x1504xf32, #tpu.memory_space<vmem>>, vector<1x4x512xf32>
    %192 = vector.shape_cast %191 : vector<1x4x512xf32> to vector<4x512xf32>
    %c40_265 = arith.constant 40 : index
    %c0_266 = arith.constant 0 : index
    %193 = vector.load %arg9[%c40_265, %c0_266] : memref<100x512xf32, #tpu.memory_space<vmem>>, vector<4x512xf32>
    tpu.vector_store %arg9[%c40_265, %c0_266], %192 {strides = array<i32>} : memref<100x512xf32, #tpu.memory_space<vmem>>, vector<4x512xf32>,
    %c0_267 = arith.constant 0 : index
    %c0_268 = arith.constant 0 : index
    %c480_269 = arith.constant 480 : index
    %194 = vector.load %arg2[%c0_267, %c0_268, %c480_269] : memref<1x4x1504xf32, #tpu.memory_space<vmem>>, vector<1x4x512xf32>
    %195 = vector.shape_cast %194 : vector<1x4x512xf32> to vector<4x512xf32>
    %c44_270 = arith.constant 44 : index
    %c0_271 = arith.constant 0 : index
    %196 = vector.load %arg9[%c44_270, %c0_271] : memref<100x512xf32, #tpu.memory_space<vmem>>, vector<4x512xf32>
    tpu.vector_store %arg9[%c44_270, %c0_271], %195 {strides = array<i32>} : memref<100x512xf32, #tpu.memory_space<vmem>>, vector<4x512xf32>,
    %c0_272 = arith.constant 0 : index
    %c0_273 = arith.constant 0 : index
    %c496 = arith.constant 496 : index
    %197 = vector.load %arg1[%c0_272, %c0_273, %c496] : memref<1x4x1504xf32, #tpu.memory_space<vmem>>, vector<1x4x512xf32>
    %198 = vector.shape_cast %197 : vector<1x4x512xf32> to vector<4x512xf32>
    %c48_274 = arith.constant 48 : index
    %c0_275 = arith.constant 0 : index
    %199 = vector.load %arg9[%c48_274, %c0_275] : memref<100x512xf32, #tpu.memory_space<vmem>>, vector<4x512xf32>
    tpu.vector_store %arg9[%c48_274, %c0_275], %198 {strides = array<i32>} : memref<100x512xf32, #tpu.memory_space<vmem>>, vector<4x512xf32>,
    %c0_276 = arith.constant 0 : index
    %c0_277 = arith.constant 0 : index
    %c496_278 = arith.constant 496 : index
    %200 = vector.load %arg2[%c0_276, %c0_277, %c496_278] : memref<1x4x1504xf32, #tpu.memory_space<vmem>>, vector<1x4x512xf32>
    %201 = vector.shape_cast %200 : vector<1x4x512xf32> to vector<4x512xf32>
    %c52_279 = arith.constant 52 : index
    %c0_280 = arith.constant 0 : index
    %202 = vector.load %arg9[%c52_279, %c0_280] : memref<100x512xf32, #tpu.memory_space<vmem>>, vector<4x512xf32>
    tpu.vector_store %arg9[%c52_279, %c0_280], %201 {strides = array<i32>} : memref<100x512xf32, #tpu.memory_space<vmem>>, vector<4x512xf32>,
    %c0_281 = arith.constant 0 : index
    %c0_282 = arith.constant 0 : index
    %c512 = arith.constant 512 : index
    %203 = vector.load %arg1[%c0_281, %c0_282, %c512] : memref<1x4x1504xf32, #tpu.memory_space<vmem>>, vector<1x4x512xf32>
    %204 = vector.shape_cast %203 : vector<1x4x512xf32> to vector<4x512xf32>
    %c56_283 = arith.constant 56 : index
    %c0_284 = arith.constant 0 : index
    %205 = vector.load %arg9[%c56_283, %c0_284] : memref<100x512xf32, #tpu.memory_space<vmem>>, vector<4x512xf32>
    tpu.vector_store %arg9[%c56_283, %c0_284], %204 {strides = array<i32>} : memref<100x512xf32, #tpu.memory_space<vmem>>, vector<4x512xf32>,
    %c0_285 = arith.constant 0 : index
    %c0_286 = arith.constant 0 : index
    %c512_287 = arith.constant 512 : index
    %206 = vector.load %arg2[%c0_285, %c0_286, %c512_287] : memref<1x4x1504xf32, #tpu.memory_space<vmem>>, vector<1x4x512xf32>
    %207 = vector.shape_cast %206 : vector<1x4x512xf32> to vector<4x512xf32>
    %c60_288 = arith.constant 60 : index
    %c0_289 = arith.constant 0 : index
    %208 = vector.load %arg9[%c60_288, %c0_289] : memref<100x512xf32, #tpu.memory_space<vmem>>, vector<4x512xf32>
    tpu.vector_store %arg9[%c60_288, %c0_289], %207 {strides = array<i32>} : memref<100x512xf32, #tpu.memory_space<vmem>>, vector<4x512xf32>,
    %c0_290 = arith.constant 0 : index
    %c0_291 = arith.constant 0 : index
    %c528 = arith.constant 528 : index
    %209 = vector.load %arg1[%c0_290, %c0_291, %c528] : memref<1x4x1504xf32, #tpu.memory_space<vmem>>, vector<1x4x512xf32>
    %210 = vector.shape_cast %209 : vector<1x4x512xf32> to vector<4x512xf32>
    %c64_292 = arith.constant 64 : index
    %c0_293 = arith.constant 0 : index
    %211 = vector.load %arg9[%c64_292, %c0_293] : memref<100x512xf32, #tpu.memory_space<vmem>>, vector<4x512xf32>
    tpu.vector_store %arg9[%c64_292, %c0_293], %210 {strides = array<i32>} : memref<100x512xf32, #tpu.memory_space<vmem>>, vector<4x512xf32>,
    %c0_294 = arith.constant 0 : index
    %c0_295 = arith.constant 0 : index
    %c528_296 = arith.constant 528 : index
    %212 = vector.load %arg2[%c0_294, %c0_295, %c528_296] : memref<1x4x1504xf32, #tpu.memory_space<vmem>>, vector<1x4x512xf32>
    %213 = vector.shape_cast %212 : vector<1x4x512xf32> to vector<4x512xf32>
    %c68_297 = arith.constant 68 : index
    %c0_298 = arith.constant 0 : index
    %214 = vector.load %arg9[%c68_297, %c0_298] : memref<100x512xf32, #tpu.memory_space<vmem>>, vector<4x512xf32>
    tpu.vector_store %arg9[%c68_297, %c0_298], %213 {strides = array<i32>} : memref<100x512xf32, #tpu.memory_space<vmem>>, vector<4x512xf32>,
    %c0_299 = arith.constant 0 : index
    %c0_300 = arith.constant 0 : index
    %c544 = arith.constant 544 : index
    %215 = vector.load %arg1[%c0_299, %c0_300, %c544] : memref<1x4x1504xf32, #tpu.memory_space<vmem>>, vector<1x4x512xf32>
    %216 = vector.shape_cast %215 : vector<1x4x512xf32> to vector<4x512xf32>
    %c72_301 = arith.constant 72 : index
    %c0_302 = arith.constant 0 : index
    %217 = vector.load %arg9[%c72_301, %c0_302] : memref<100x512xf32, #tpu.memory_space<vmem>>, vector<4x512xf32>
    tpu.vector_store %arg9[%c72_301, %c0_302], %216 {strides = array<i32>} : memref<100x512xf32, #tpu.memory_space<vmem>>, vector<4x512xf32>,
    %c0_303 = arith.constant 0 : index
    %c0_304 = arith.constant 0 : index
    %c544_305 = arith.constant 544 : index
    %218 = vector.load %arg2[%c0_303, %c0_304, %c544_305] : memref<1x4x1504xf32, #tpu.memory_space<vmem>>, vector<1x4x512xf32>
    %219 = vector.shape_cast %218 : vector<1x4x512xf32> to vector<4x512xf32>
    %c76_306 = arith.constant 76 : index
    %c0_307 = arith.constant 0 : index
    %220 = vector.load %arg9[%c76_306, %c0_307] : memref<100x512xf32, #tpu.memory_space<vmem>>, vector<4x512xf32>
    tpu.vector_store %arg9[%c76_306, %c0_307], %219 {strides = array<i32>} : memref<100x512xf32, #tpu.memory_space<vmem>>, vector<4x512xf32>,
    %c0_308 = arith.constant 0 : index
    %c0_309 = arith.constant 0 : index
    %c560 = arith.constant 560 : index
    %221 = vector.load %arg1[%c0_308, %c0_309, %c560] : memref<1x4x1504xf32, #tpu.memory_space<vmem>>, vector<1x4x512xf32>
    %222 = vector.shape_cast %221 : vector<1x4x512xf32> to vector<4x512xf32>
    %c80_310 = arith.constant 80 : index
    %c0_311 = arith.constant 0 : index
    %223 = vector.load %arg9[%c80_310, %c0_311] : memref<100x512xf32, #tpu.memory_space<vmem>>, vector<4x512xf32>
    tpu.vector_store %arg9[%c80_310, %c0_311], %222 {strides = array<i32>} : memref<100x512xf32, #tpu.memory_space<vmem>>, vector<4x512xf32>,
    %c0_312 = arith.constant 0 : index
    %c0_313 = arith.constant 0 : index
    %c560_314 = arith.constant 560 : index
    %224 = vector.load %arg2[%c0_312, %c0_313, %c560_314] : memref<1x4x1504xf32, #tpu.memory_space<vmem>>, vector<1x4x512xf32>
    %225 = vector.shape_cast %224 : vector<1x4x512xf32> to vector<4x512xf32>
    %c84_315 = arith.constant 84 : index
    %c0_316 = arith.constant 0 : index
    %226 = vector.load %arg9[%c84_315, %c0_316] : memref<100x512xf32, #tpu.memory_space<vmem>>, vector<4x512xf32>
    tpu.vector_store %arg9[%c84_315, %c0_316], %225 {strides = array<i32>} : memref<100x512xf32, #tpu.memory_space<vmem>>, vector<4x512xf32>,
    %c0_317 = arith.constant 0 : index
    %c0_318 = arith.constant 0 : index
    %c576 = arith.constant 576 : index
    %227 = vector.load %arg1[%c0_317, %c0_318, %c576] : memref<1x4x1504xf32, #tpu.memory_space<vmem>>, vector<1x4x512xf32>
    %228 = vector.shape_cast %227 : vector<1x4x512xf32> to vector<4x512xf32>
    %c88_319 = arith.constant 88 : index
    %c0_320 = arith.constant 0 : index
    %229 = vector.load %arg9[%c88_319, %c0_320] : memref<100x512xf32, #tpu.memory_space<vmem>>, vector<4x512xf32>
    tpu.vector_store %arg9[%c88_319, %c0_320], %228 {strides = array<i32>} : memref<100x512xf32, #tpu.memory_space<vmem>>, vector<4x512xf32>,
    %c0_321 = arith.constant 0 : index
    %c0_322 = arith.constant 0 : index
    %c576_323 = arith.constant 576 : index
    %230 = vector.load %arg2[%c0_321, %c0_322, %c576_323] : memref<1x4x1504xf32, #tpu.memory_space<vmem>>, vector<1x4x512xf32>
    %231 = vector.shape_cast %230 : vector<1x4x512xf32> to vector<4x512xf32>
    %c92_324 = arith.constant 92 : index
    %c0_325 = arith.constant 0 : index
    %232 = vector.load %arg9[%c92_324, %c0_325] : memref<100x512xf32, #tpu.memory_space<vmem>>, vector<4x512xf32>
    tpu.vector_store %arg9[%c92_324, %c0_325], %231 {strides = array<i32>} : memref<100x512xf32, #tpu.memory_space<vmem>>, vector<4x512xf32>,
    %c0_326 = arith.constant 0 : index
    %c0_327 = arith.constant 0 : index
    %c592 = arith.constant 592 : index
    %233 = vector.load %arg1[%c0_326, %c0_327, %c592] : memref<1x4x1504xf32, #tpu.memory_space<vmem>>, vector<1x4x512xf32>
    %234 = vector.shape_cast %233 : vector<1x4x512xf32> to vector<4x512xf32>
    %c96_328 = arith.constant 96 : index
    %c0_329 = arith.constant 0 : index
    %235 = vector.load %arg9[%c96_328, %c0_329] : memref<100x512xf32, #tpu.memory_space<vmem>>, vector<4x512xf32>
    tpu.vector_store %arg9[%c96_328, %c0_329], %234 {strides = array<i32>} : memref<100x512xf32, #tpu.memory_space<vmem>>, vector<4x512xf32>,
    %c2 = arith.constant 2 : index
    %c0_330 = arith.constant 0 : index
    %c0_331 = arith.constant 0 : index
    %236 = vector.load %arg3[%c2, %c0_330, %c0_331] : memref<5x32x100xf32, #tpu.memory_space<vmem>>, vector<1x32x100xf32>
    %237 = vector.shape_cast %236 : vector<1x32x100xf32> to vector<32x100xf32>
    %c0_332 = arith.constant 0 : index
    %c0_333 = arith.constant 0 : index
    %238 = vector.load %arg9[%c0_332, %c0_333] : memref<100x512xf32, #tpu.memory_space<vmem>>, vector<100x512xf32>
    %cst_334 = arith.constant dense<0.000000e+00> : vector<32x512xf32>
    %239 = tpu.matmul %237, %238, %cst_334 {dimension_numbers = #tpu.dot_dimension_numbers<[1], [0], [0], [1], [0, 0, 1, 1], [], []>} : vector<32x100xf32>, vector<100x512xf32>, vector<32x512xf32> -> vector<32x512xf32>
    %240 = arith.addf %160, %239 : vector<32x512xf32>
    %c0_335 = arith.constant 0 : index
    %c0_336 = arith.constant 0 : index
    %c592_337 = arith.constant 592 : index
    %241 = vector.load %arg2[%c0_335, %c0_336, %c592_337] : memref<1x4x1504xf32, #tpu.memory_space<vmem>>, vector<1x4x512xf32>
    %242 = vector.shape_cast %241 : vector<1x4x512xf32> to vector<4x512xf32>
    %c0_338 = arith.constant 0 : index
    %c0_339 = arith.constant 0 : index
    %243 = vector.load %arg9[%c0_338, %c0_339] : memref<100x512xf32, #tpu.memory_space<vmem>>, vector<4x512xf32>
    tpu.vector_store %arg9[%c0_338, %c0_339], %242 {strides = array<i32>} : memref<100x512xf32, #tpu.memory_space<vmem>>, vector<4x512xf32>,
    %c0_340 = arith.constant 0 : index
    %c0_341 = arith.constant 0 : index
    %c608 = arith.constant 608 : index
    %244 = vector.load %arg1[%c0_340, %c0_341, %c608] : memref<1x4x1504xf32, #tpu.memory_space<vmem>>, vector<1x4x512xf32>
    %245 = vector.shape_cast %244 : vector<1x4x512xf32> to vector<4x512xf32>
    %c4_342 = arith.constant 4 : index
    %c0_343 = arith.constant 0 : index
    %246 = vector.load %arg9[%c4_342, %c0_343] : memref<100x512xf32, #tpu.memory_space<vmem>>, vector<4x512xf32>
    tpu.vector_store %arg9[%c4_342, %c0_343], %245 {strides = array<i32>} : memref<100x512xf32, #tpu.memory_space<vmem>>, vector<4x512xf32>,
    %c0_344 = arith.constant 0 : index
    %c0_345 = arith.constant 0 : index
    %c608_346 = arith.constant 608 : index
    %247 = vector.load %arg2[%c0_344, %c0_345, %c608_346] : memref<1x4x1504xf32, #tpu.memory_space<vmem>>, vector<1x4x512xf32>
    %248 = vector.shape_cast %247 : vector<1x4x512xf32> to vector<4x512xf32>
    %c8_347 = arith.constant 8 : index
    %c0_348 = arith.constant 0 : index
    %249 = vector.load %arg9[%c8_347, %c0_348] : memref<100x512xf32, #tpu.memory_space<vmem>>, vector<4x512xf32>
    tpu.vector_store %arg9[%c8_347, %c0_348], %248 {strides = array<i32>} : memref<100x512xf32, #tpu.memory_space<vmem>>, vector<4x512xf32>,
    %c0_349 = arith.constant 0 : index
    %c0_350 = arith.constant 0 : index
    %c624 = arith.constant 624 : index
    %250 = vector.load %arg1[%c0_349, %c0_350, %c624] : memref<1x4x1504xf32, #tpu.memory_space<vmem>>, vector<1x4x512xf32>
    %251 = vector.shape_cast %250 : vector<1x4x512xf32> to vector<4x512xf32>
    %c12_351 = arith.constant 12 : index
    %c0_352 = arith.constant 0 : index
    %252 = vector.load %arg9[%c12_351, %c0_352] : memref<100x512xf32, #tpu.memory_space<vmem>>, vector<4x512xf32>
    tpu.vector_store %arg9[%c12_351, %c0_352], %251 {strides = array<i32>} : memref<100x512xf32, #tpu.memory_space<vmem>>, vector<4x512xf32>,
    %c0_353 = arith.constant 0 : index
    %c0_354 = arith.constant 0 : index
    %c624_355 = arith.constant 624 : index
    %253 = vector.load %arg2[%c0_353, %c0_354, %c624_355] : memref<1x4x1504xf32, #tpu.memory_space<vmem>>, vector<1x4x512xf32>
    %254 = vector.shape_cast %253 : vector<1x4x512xf32> to vector<4x512xf32>
    %c16_356 = arith.constant 16 : index
    %c0_357 = arith.constant 0 : index
    %255 = vector.load %arg9[%c16_356, %c0_357] : memref<100x512xf32, #tpu.memory_space<vmem>>, vector<4x512xf32>
    tpu.vector_store %arg9[%c16_356, %c0_357], %254 {strides = array<i32>} : memref<100x512xf32, #tpu.memory_space<vmem>>, vector<4x512xf32>,
    %c0_358 = arith.constant 0 : index
    %c0_359 = arith.constant 0 : index
    %c640 = arith.constant 640 : index
    %256 = vector.load %arg1[%c0_358, %c0_359, %c640] : memref<1x4x1504xf32, #tpu.memory_space<vmem>>, vector<1x4x512xf32>
    %257 = vector.shape_cast %256 : vector<1x4x512xf32> to vector<4x512xf32>
    %c20_360 = arith.constant 20 : index
    %c0_361 = arith.constant 0 : index
    %258 = vector.load %arg9[%c20_360, %c0_361] : memref<100x512xf32, #tpu.memory_space<vmem>>, vector<4x512xf32>
    tpu.vector_store %arg9[%c20_360, %c0_361], %257 {strides = array<i32>} : memref<100x512xf32, #tpu.memory_space<vmem>>, vector<4x512xf32>,
    %c0_362 = arith.constant 0 : index
    %c0_363 = arith.constant 0 : index
    %c640_364 = arith.constant 640 : index
    %259 = vector.load %arg2[%c0_362, %c0_363, %c640_364] : memref<1x4x1504xf32, #tpu.memory_space<vmem>>, vector<1x4x512xf32>
    %260 = vector.shape_cast %259 : vector<1x4x512xf32> to vector<4x512xf32>
    %c24_365 = arith.constant 24 : index
    %c0_366 = arith.constant 0 : index
    %261 = vector.load %arg9[%c24_365, %c0_366] : memref<100x512xf32, #tpu.memory_space<vmem>>, vector<4x512xf32>
    tpu.vector_store %arg9[%c24_365, %c0_366], %260 {strides = array<i32>} : memref<100x512xf32, #tpu.memory_space<vmem>>, vector<4x512xf32>,
    %c0_367 = arith.constant 0 : index
    %c0_368 = arith.constant 0 : index
    %c656 = arith.constant 656 : index
    %262 = vector.load %arg1[%c0_367, %c0_368, %c656] : memref<1x4x1504xf32, #tpu.memory_space<vmem>>, vector<1x4x512xf32>
    %263 = vector.shape_cast %262 : vector<1x4x512xf32> to vector<4x512xf32>
    %c28_369 = arith.constant 28 : index
    %c0_370 = arith.constant 0 : index
    %264 = vector.load %arg9[%c28_369, %c0_370] : memref<100x512xf32, #tpu.memory_space<vmem>>, vector<4x512xf32>
    tpu.vector_store %arg9[%c28_369, %c0_370], %263 {strides = array<i32>} : memref<100x512xf32, #tpu.memory_space<vmem>>, vector<4x512xf32>,
    %c0_371 = arith.constant 0 : index
    %c0_372 = arith.constant 0 : index
    %c656_373 = arith.constant 656 : index
    %265 = vector.load %arg2[%c0_371, %c0_372, %c656_373] : memref<1x4x1504xf32, #tpu.memory_space<vmem>>, vector<1x4x512xf32>
    %266 = vector.shape_cast %265 : vector<1x4x512xf32> to vector<4x512xf32>
    %c32_374 = arith.constant 32 : index
    %c0_375 = arith.constant 0 : index
    %267 = vector.load %arg9[%c32_374, %c0_375] : memref<100x512xf32, #tpu.memory_space<vmem>>, vector<4x512xf32>
    tpu.vector_store %arg9[%c32_374, %c0_375], %266 {strides = array<i32>} : memref<100x512xf32, #tpu.memory_space<vmem>>, vector<4x512xf32>,
    %c0_376 = arith.constant 0 : index
    %c0_377 = arith.constant 0 : index
    %c672 = arith.constant 672 : index
    %268 = vector.load %arg1[%c0_376, %c0_377, %c672] : memref<1x4x1504xf32, #tpu.memory_space<vmem>>, vector<1x4x512xf32>
    %269 = vector.shape_cast %268 : vector<1x4x512xf32> to vector<4x512xf32>
    %c36_378 = arith.constant 36 : index
    %c0_379 = arith.constant 0 : index
    %270 = vector.load %arg9[%c36_378, %c0_379] : memref<100x512xf32, #tpu.memory_space<vmem>>, vector<4x512xf32>
    tpu.vector_store %arg9[%c36_378, %c0_379], %269 {strides = array<i32>} : memref<100x512xf32, #tpu.memory_space<vmem>>, vector<4x512xf32>,
    %c0_380 = arith.constant 0 : index
    %c0_381 = arith.constant 0 : index
    %c672_382 = arith.constant 672 : index
    %271 = vector.load %arg2[%c0_380, %c0_381, %c672_382] : memref<1x4x1504xf32, #tpu.memory_space<vmem>>, vector<1x4x512xf32>
    %272 = vector.shape_cast %271 : vector<1x4x512xf32> to vector<4x512xf32>
    %c40_383 = arith.constant 40 : index
    %c0_384 = arith.constant 0 : index
    %273 = vector.load %arg9[%c40_383, %c0_384] : memref<100x512xf32, #tpu.memory_space<vmem>>, vector<4x512xf32>
    tpu.vector_store %arg9[%c40_383, %c0_384], %272 {strides = array<i32>} : memref<100x512xf32, #tpu.memory_space<vmem>>, vector<4x512xf32>,
    %c0_385 = arith.constant 0 : index
    %c0_386 = arith.constant 0 : index
    %c688 = arith.constant 688 : index
    %274 = vector.load %arg1[%c0_385, %c0_386, %c688] : memref<1x4x1504xf32, #tpu.memory_space<vmem>>, vector<1x4x512xf32>
    %275 = vector.shape_cast %274 : vector<1x4x512xf32> to vector<4x512xf32>
    %c44_387 = arith.constant 44 : index
    %c0_388 = arith.constant 0 : index
    %276 = vector.load %arg9[%c44_387, %c0_388] : memref<100x512xf32, #tpu.memory_space<vmem>>, vector<4x512xf32>
    tpu.vector_store %arg9[%c44_387, %c0_388], %275 {strides = array<i32>} : memref<100x512xf32, #tpu.memory_space<vmem>>, vector<4x512xf32>,
    %c0_389 = arith.constant 0 : index
    %c0_390 = arith.constant 0 : index
    %c688_391 = arith.constant 688 : index
    %277 = vector.load %arg2[%c0_389, %c0_390, %c688_391] : memref<1x4x1504xf32, #tpu.memory_space<vmem>>, vector<1x4x512xf32>
    %278 = vector.shape_cast %277 : vector<1x4x512xf32> to vector<4x512xf32>
    %c48_392 = arith.constant 48 : index
    %c0_393 = arith.constant 0 : index
    %279 = vector.load %arg9[%c48_392, %c0_393] : memref<100x512xf32, #tpu.memory_space<vmem>>, vector<4x512xf32>
    tpu.vector_store %arg9[%c48_392, %c0_393], %278 {strides = array<i32>} : memref<100x512xf32, #tpu.memory_space<vmem>>, vector<4x512xf32>,
    %c0_394 = arith.constant 0 : index
    %c0_395 = arith.constant 0 : index
    %c704 = arith.constant 704 : index
    %280 = vector.load %arg1[%c0_394, %c0_395, %c704] : memref<1x4x1504xf32, #tpu.memory_space<vmem>>, vector<1x4x512xf32>
    %281 = vector.shape_cast %280 : vector<1x4x512xf32> to vector<4x512xf32>
    %c52_396 = arith.constant 52 : index
    %c0_397 = arith.constant 0 : index
    %282 = vector.load %arg9[%c52_396, %c0_397] : memref<100x512xf32, #tpu.memory_space<vmem>>, vector<4x512xf32>
    tpu.vector_store %arg9[%c52_396, %c0_397], %281 {strides = array<i32>} : memref<100x512xf32, #tpu.memory_space<vmem>>, vector<4x512xf32>,
    %c0_398 = arith.constant 0 : index
    %c0_399 = arith.constant 0 : index
    %c704_400 = arith.constant 704 : index
    %283 = vector.load %arg2[%c0_398, %c0_399, %c704_400] : memref<1x4x1504xf32, #tpu.memory_space<vmem>>, vector<1x4x512xf32>
    %284 = vector.shape_cast %283 : vector<1x4x512xf32> to vector<4x512xf32>
    %c56_401 = arith.constant 56 : index
    %c0_402 = arith.constant 0 : index
    %285 = vector.load %arg9[%c56_401, %c0_402] : memref<100x512xf32, #tpu.memory_space<vmem>>, vector<4x512xf32>
    tpu.vector_store %arg9[%c56_401, %c0_402], %284 {strides = array<i32>} : memref<100x512xf32, #tpu.memory_space<vmem>>, vector<4x512xf32>,
    %c0_403 = arith.constant 0 : index
    %c0_404 = arith.constant 0 : index
    %c720 = arith.constant 720 : index
    %286 = vector.load %arg1[%c0_403, %c0_404, %c720] : memref<1x4x1504xf32, #tpu.memory_space<vmem>>, vector<1x4x512xf32>
    %287 = vector.shape_cast %286 : vector<1x4x512xf32> to vector<4x512xf32>
    %c60_405 = arith.constant 60 : index
    %c0_406 = arith.constant 0 : index
    %288 = vector.load %arg9[%c60_405, %c0_406] : memref<100x512xf32, #tpu.memory_space<vmem>>, vector<4x512xf32>
    tpu.vector_store %arg9[%c60_405, %c0_406], %287 {strides = array<i32>} : memref<100x512xf32, #tpu.memory_space<vmem>>, vector<4x512xf32>,
    %c0_407 = arith.constant 0 : index
    %c0_408 = arith.constant 0 : index
    %c720_409 = arith.constant 720 : index
    %289 = vector.load %arg2[%c0_407, %c0_408, %c720_409] : memref<1x4x1504xf32, #tpu.memory_space<vmem>>, vector<1x4x512xf32>
    %290 = vector.shape_cast %289 : vector<1x4x512xf32> to vector<4x512xf32>
    %c64_410 = arith.constant 64 : index
    %c0_411 = arith.constant 0 : index
    %291 = vector.load %arg9[%c64_410, %c0_411] : memref<100x512xf32, #tpu.memory_space<vmem>>, vector<4x512xf32>
    tpu.vector_store %arg9[%c64_410, %c0_411], %290 {strides = array<i32>} : memref<100x512xf32, #tpu.memory_space<vmem>>, vector<4x512xf32>,
    %c0_412 = arith.constant 0 : index
    %c0_413 = arith.constant 0 : index
    %c736 = arith.constant 736 : index
    %292 = vector.load %arg1[%c0_412, %c0_413, %c736] : memref<1x4x1504xf32, #tpu.memory_space<vmem>>, vector<1x4x512xf32>
    %293 = vector.shape_cast %292 : vector<1x4x512xf32> to vector<4x512xf32>
    %c68_414 = arith.constant 68 : index
    %c0_415 = arith.constant 0 : index
    %294 = vector.load %arg9[%c68_414, %c0_415] : memref<100x512xf32, #tpu.memory_space<vmem>>, vector<4x512xf32>
    tpu.vector_store %arg9[%c68_414, %c0_415], %293 {strides = array<i32>} : memref<100x512xf32, #tpu.memory_space<vmem>>, vector<4x512xf32>,
    %c0_416 = arith.constant 0 : index
    %c0_417 = arith.constant 0 : index
    %c736_418 = arith.constant 736 : index
    %295 = vector.load %arg2[%c0_416, %c0_417, %c736_418] : memref<1x4x1504xf32, #tpu.memory_space<vmem>>, vector<1x4x512xf32>
    %296 = vector.shape_cast %295 : vector<1x4x512xf32> to vector<4x512xf32>
    %c72_419 = arith.constant 72 : index
    %c0_420 = arith.constant 0 : index
    %297 = vector.load %arg9[%c72_419, %c0_420] : memref<100x512xf32, #tpu.memory_space<vmem>>, vector<4x512xf32>
    tpu.vector_store %arg9[%c72_419, %c0_420], %296 {strides = array<i32>} : memref<100x512xf32, #tpu.memory_space<vmem>>, vector<4x512xf32>,
    %c0_421 = arith.constant 0 : index
    %c0_422 = arith.constant 0 : index
    %c752 = arith.constant 752 : index
    %298 = vector.load %arg1[%c0_421, %c0_422, %c752] : memref<1x4x1504xf32, #tpu.memory_space<vmem>>, vector<1x4x512xf32>
    %299 = vector.shape_cast %298 : vector<1x4x512xf32> to vector<4x512xf32>
    %c76_423 = arith.constant 76 : index
    %c0_424 = arith.constant 0 : index
    %300 = vector.load %arg9[%c76_423, %c0_424] : memref<100x512xf32, #tpu.memory_space<vmem>>, vector<4x512xf32>
    tpu.vector_store %arg9[%c76_423, %c0_424], %299 {strides = array<i32>} : memref<100x512xf32, #tpu.memory_space<vmem>>, vector<4x512xf32>,
    %c0_425 = arith.constant 0 : index
    %c0_426 = arith.constant 0 : index
    %c752_427 = arith.constant 752 : index
    %301 = vector.load %arg2[%c0_425, %c0_426, %c752_427] : memref<1x4x1504xf32, #tpu.memory_space<vmem>>, vector<1x4x512xf32>
    %302 = vector.shape_cast %301 : vector<1x4x512xf32> to vector<4x512xf32>
    %c80_428 = arith.constant 80 : index
    %c0_429 = arith.constant 0 : index
    %303 = vector.load %arg9[%c80_428, %c0_429] : memref<100x512xf32, #tpu.memory_space<vmem>>, vector<4x512xf32>
    tpu.vector_store %arg9[%c80_428, %c0_429], %302 {strides = array<i32>} : memref<100x512xf32, #tpu.memory_space<vmem>>, vector<4x512xf32>,
    %c0_430 = arith.constant 0 : index
    %c0_431 = arith.constant 0 : index
    %c768 = arith.constant 768 : index
    %304 = vector.load %arg1[%c0_430, %c0_431, %c768] : memref<1x4x1504xf32, #tpu.memory_space<vmem>>, vector<1x4x512xf32>
    %305 = vector.shape_cast %304 : vector<1x4x512xf32> to vector<4x512xf32>
    %c84_432 = arith.constant 84 : index
    %c0_433 = arith.constant 0 : index
    %306 = vector.load %arg9[%c84_432, %c0_433] : memref<100x512xf32, #tpu.memory_space<vmem>>, vector<4x512xf32>
    tpu.vector_store %arg9[%c84_432, %c0_433], %305 {strides = array<i32>} : memref<100x512xf32, #tpu.memory_space<vmem>>, vector<4x512xf32>,
    %c0_434 = arith.constant 0 : index
    %c0_435 = arith.constant 0 : index
    %c768_436 = arith.constant 768 : index
    %307 = vector.load %arg2[%c0_434, %c0_435, %c768_436] : memref<1x4x1504xf32, #tpu.memory_space<vmem>>, vector<1x4x512xf32>
    %308 = vector.shape_cast %307 : vector<1x4x512xf32> to vector<4x512xf32>
    %c88_437 = arith.constant 88 : index
    %c0_438 = arith.constant 0 : index
    %309 = vector.load %arg9[%c88_437, %c0_438] : memref<100x512xf32, #tpu.memory_space<vmem>>, vector<4x512xf32>
    tpu.vector_store %arg9[%c88_437, %c0_438], %308 {strides = array<i32>} : memref<100x512xf32, #tpu.memory_space<vmem>>, vector<4x512xf32>,
    %c0_439 = arith.constant 0 : index
    %c0_440 = arith.constant 0 : index
    %c784 = arith.constant 784 : index
    %310 = vector.load %arg1[%c0_439, %c0_440, %c784] : memref<1x4x1504xf32, #tpu.memory_space<vmem>>, vector<1x4x512xf32>
    %311 = vector.shape_cast %310 : vector<1x4x512xf32> to vector<4x512xf32>
    %c92_441 = arith.constant 92 : index
    %c0_442 = arith.constant 0 : index
    %312 = vector.load %arg9[%c92_441, %c0_442] : memref<100x512xf32, #tpu.memory_space<vmem>>, vector<4x512xf32>
    tpu.vector_store %arg9[%c92_441, %c0_442], %311 {strides = array<i32>} : memref<100x512xf32, #tpu.memory_space<vmem>>, vector<4x512xf32>,
    %c0_443 = arith.constant 0 : index
    %c0_444 = arith.constant 0 : index
    %c784_445 = arith.constant 784 : index
    %313 = vector.load %arg2[%c0_443, %c0_444, %c784_445] : memref<1x4x1504xf32, #tpu.memory_space<vmem>>, vector<1x4x512xf32>
    %314 = vector.shape_cast %313 : vector<1x4x512xf32> to vector<4x512xf32>
    %c96_446 = arith.constant 96 : index
    %c0_447 = arith.constant 0 : index
    %315 = vector.load %arg9[%c96_446, %c0_447] : memref<100x512xf32, #tpu.memory_space<vmem>>, vector<4x512xf32>
    tpu.vector_store %arg9[%c96_446, %c0_447], %314 {strides = array<i32>} : memref<100x512xf32, #tpu.memory_space<vmem>>, vector<4x512xf32>,
    %c3 = arith.constant 3 : index
    %c0_448 = arith.constant 0 : index
    %c0_449 = arith.constant 0 : index
    %316 = vector.load %arg3[%c3, %c0_448, %c0_449] : memref<5x32x100xf32, #tpu.memory_space<vmem>>, vector<1x32x100xf32>
    %317 = vector.shape_cast %316 : vector<1x32x100xf32> to vector<32x100xf32>
    %c0_450 = arith.constant 0 : index
    %c0_451 = arith.constant 0 : index
    %318 = vector.load %arg9[%c0_450, %c0_451] : memref<100x512xf32, #tpu.memory_space<vmem>>, vector<100x512xf32>
    %cst_452 = arith.constant dense<0.000000e+00> : vector<32x512xf32>
    %319 = tpu.matmul %317, %318, %cst_452 {dimension_numbers = #tpu.dot_dimension_numbers<[1], [0], [0], [1], [0, 0, 1, 1], [], []>} : vector<32x100xf32>, vector<100x512xf32>, vector<32x512xf32> -> vector<32x512xf32>
    %320 = arith.addf %240, %319 : vector<32x512xf32>
    %c0_453 = arith.constant 0 : index
    %c0_454 = arith.constant 0 : index
    %c800 = arith.constant 800 : index
    %321 = vector.load %arg1[%c0_453, %c0_454, %c800] : memref<1x4x1504xf32, #tpu.memory_space<vmem>>, vector<1x4x512xf32>
    %322 = vector.shape_cast %321 : vector<1x4x512xf32> to vector<4x512xf32>
    %c0_455 = arith.constant 0 : index
    %c0_456 = arith.constant 0 : index
    %323 = vector.load %arg9[%c0_455, %c0_456] : memref<100x512xf32, #tpu.memory_space<vmem>>, vector<4x512xf32>
    tpu.vector_store %arg9[%c0_455, %c0_456], %322 {strides = array<i32>} : memref<100x512xf32, #tpu.memory_space<vmem>>, vector<4x512xf32>,
    %c0_457 = arith.constant 0 : index
    %c0_458 = arith.constant 0 : index
    %c800_459 = arith.constant 800 : index
    %324 = vector.load %arg2[%c0_457, %c0_458, %c800_459] : memref<1x4x1504xf32, #tpu.memory_space<vmem>>, vector<1x4x512xf32>
    %325 = vector.shape_cast %324 : vector<1x4x512xf32> to vector<4x512xf32>
    %c4_460 = arith.constant 4 : index
    %c0_461 = arith.constant 0 : index
    %326 = vector.load %arg9[%c4_460, %c0_461] : memref<100x512xf32, #tpu.memory_space<vmem>>, vector<4x512xf32>
    tpu.vector_store %arg9[%c4_460, %c0_461], %325 {strides = array<i32>} : memref<100x512xf32, #tpu.memory_space<vmem>>, vector<4x512xf32>,
    %c0_462 = arith.constant 0 : index
    %c0_463 = arith.constant 0 : index
    %c816 = arith.constant 816 : index
    %327 = vector.load %arg1[%c0_462, %c0_463, %c816] : memref<1x4x1504xf32, #tpu.memory_space<vmem>>, vector<1x4x512xf32>
    %328 = vector.shape_cast %327 : vector<1x4x512xf32> to vector<4x512xf32>
    %c8_464 = arith.constant 8 : index
    %c0_465 = arith.constant 0 : index
    %329 = vector.load %arg9[%c8_464, %c0_465] : memref<100x512xf32, #tpu.memory_space<vmem>>, vector<4x512xf32>
    tpu.vector_store %arg9[%c8_464, %c0_465], %328 {strides = array<i32>} : memref<100x512xf32, #tpu.memory_space<vmem>>, vector<4x512xf32>,
    %c0_466 = arith.constant 0 : index
    %c0_467 = arith.constant 0 : index
    %c816_468 = arith.constant 816 : index
    %330 = vector.load %arg2[%c0_466, %c0_467, %c816_468] : memref<1x4x1504xf32, #tpu.memory_space<vmem>>, vector<1x4x512xf32>
    %331 = vector.shape_cast %330 : vector<1x4x512xf32> to vector<4x512xf32>
    %c12_469 = arith.constant 12 : index
    %c0_470 = arith.constant 0 : index
    %332 = vector.load %arg9[%c12_469, %c0_470] : memref<100x512xf32, #tpu.memory_space<vmem>>, vector<4x512xf32>
    tpu.vector_store %arg9[%c12_469, %c0_470], %331 {strides = array<i32>} : memref<100x512xf32, #tpu.memory_space<vmem>>, vector<4x512xf32>,
    %c0_471 = arith.constant 0 : index
    %c0_472 = arith.constant 0 : index
    %c832 = arith.constant 832 : index
    %333 = vector.load %arg1[%c0_471, %c0_472, %c832] : memref<1x4x1504xf32, #tpu.memory_space<vmem>>, vector<1x4x512xf32>
    %334 = vector.shape_cast %333 : vector<1x4x512xf32> to vector<4x512xf32>
    %c16_473 = arith.constant 16 : index
    %c0_474 = arith.constant 0 : index
    %335 = vector.load %arg9[%c16_473, %c0_474] : memref<100x512xf32, #tpu.memory_space<vmem>>, vector<4x512xf32>
    tpu.vector_store %arg9[%c16_473, %c0_474], %334 {strides = array<i32>} : memref<100x512xf32, #tpu.memory_space<vmem>>, vector<4x512xf32>,
    %c0_475 = arith.constant 0 : index
    %c0_476 = arith.constant 0 : index
    %c832_477 = arith.constant 832 : index
    %336 = vector.load %arg2[%c0_475, %c0_476, %c832_477] : memref<1x4x1504xf32, #tpu.memory_space<vmem>>, vector<1x4x512xf32>
    %337 = vector.shape_cast %336 : vector<1x4x512xf32> to vector<4x512xf32>
    %c20_478 = arith.constant 20 : index
    %c0_479 = arith.constant 0 : index
    %338 = vector.load %arg9[%c20_478, %c0_479] : memref<100x512xf32, #tpu.memory_space<vmem>>, vector<4x512xf32>
    tpu.vector_store %arg9[%c20_478, %c0_479], %337 {strides = array<i32>} : memref<100x512xf32, #tpu.memory_space<vmem>>, vector<4x512xf32>,
    %c0_480 = arith.constant 0 : index
    %c0_481 = arith.constant 0 : index
    %c848 = arith.constant 848 : index
    %339 = vector.load %arg1[%c0_480, %c0_481, %c848] : memref<1x4x1504xf32, #tpu.memory_space<vmem>>, vector<1x4x512xf32>
    %340 = vector.shape_cast %339 : vector<1x4x512xf32> to vector<4x512xf32>
    %c24_482 = arith.constant 24 : index
    %c0_483 = arith.constant 0 : index
    %341 = vector.load %arg9[%c24_482, %c0_483] : memref<100x512xf32, #tpu.memory_space<vmem>>, vector<4x512xf32>
    tpu.vector_store %arg9[%c24_482, %c0_483], %340 {strides = array<i32>} : memref<100x512xf32, #tpu.memory_space<vmem>>, vector<4x512xf32>,
    %c0_484 = arith.constant 0 : index
    %c0_485 = arith.constant 0 : index
    %c848_486 = arith.constant 848 : index
    %342 = vector.load %arg2[%c0_484, %c0_485, %c848_486] : memref<1x4x1504xf32, #tpu.memory_space<vmem>>, vector<1x4x512xf32>
    %343 = vector.shape_cast %342 : vector<1x4x512xf32> to vector<4x512xf32>
    %c28_487 = arith.constant 28 : index
    %c0_488 = arith.constant 0 : index
    %344 = vector.load %arg9[%c28_487, %c0_488] : memref<100x512xf32, #tpu.memory_space<vmem>>, vector<4x512xf32>
    tpu.vector_store %arg9[%c28_487, %c0_488], %343 {strides = array<i32>} : memref<100x512xf32, #tpu.memory_space<vmem>>, vector<4x512xf32>,
    %c0_489 = arith.constant 0 : index
    %c0_490 = arith.constant 0 : index
    %c864 = arith.constant 864 : index
    %345 = vector.load %arg1[%c0_489, %c0_490, %c864] : memref<1x4x1504xf32, #tpu.memory_space<vmem>>, vector<1x4x512xf32>
    %346 = vector.shape_cast %345 : vector<1x4x512xf32> to vector<4x512xf32>
    %c32_491 = arith.constant 32 : index
    %c0_492 = arith.constant 0 : index
    %347 = vector.load %arg9[%c32_491, %c0_492] : memref<100x512xf32, #tpu.memory_space<vmem>>, vector<4x512xf32>
    tpu.vector_store %arg9[%c32_491, %c0_492], %346 {strides = array<i32>} : memref<100x512xf32, #tpu.memory_space<vmem>>, vector<4x512xf32>,
    %c0_493 = arith.constant 0 : index
    %c0_494 = arith.constant 0 : index
    %c864_495 = arith.constant 864 : index
    %348 = vector.load %arg2[%c0_493, %c0_494, %c864_495] : memref<1x4x1504xf32, #tpu.memory_space<vmem>>, vector<1x4x512xf32>
    %349 = vector.shape_cast %348 : vector<1x4x512xf32> to vector<4x512xf32>
    %c36_496 = arith.constant 36 : index
    %c0_497 = arith.constant 0 : index
    %350 = vector.load %arg9[%c36_496, %c0_497] : memref<100x512xf32, #tpu.memory_space<vmem>>, vector<4x512xf32>
    tpu.vector_store %arg9[%c36_496, %c0_497], %349 {strides = array<i32>} : memref<100x512xf32, #tpu.memory_space<vmem>>, vector<4x512xf32>,
    %c0_498 = arith.constant 0 : index
    %c0_499 = arith.constant 0 : index
    %c880 = arith.constant 880 : index
    %351 = vector.load %arg1[%c0_498, %c0_499, %c880] : memref<1x4x1504xf32, #tpu.memory_space<vmem>>, vector<1x4x512xf32>
    %352 = vector.shape_cast %351 : vector<1x4x512xf32> to vector<4x512xf32>
    %c40_500 = arith.constant 40 : index
    %c0_501 = arith.constant 0 : index
    %353 = vector.load %arg9[%c40_500, %c0_501] : memref<100x512xf32, #tpu.memory_space<vmem>>, vector<4x512xf32>
    tpu.vector_store %arg9[%c40_500, %c0_501], %352 {strides = array<i32>} : memref<100x512xf32, #tpu.memory_space<vmem>>, vector<4x512xf32>,
    %c0_502 = arith.constant 0 : index
    %c0_503 = arith.constant 0 : index
    %c880_504 = arith.constant 880 : index
    %354 = vector.load %arg2[%c0_502, %c0_503, %c880_504] : memref<1x4x1504xf32, #tpu.memory_space<vmem>>, vector<1x4x512xf32>
    %355 = vector.shape_cast %354 : vector<1x4x512xf32> to vector<4x512xf32>
    %c44_505 = arith.constant 44 : index
    %c0_506 = arith.constant 0 : index
    %356 = vector.load %arg9[%c44_505, %c0_506] : memref<100x512xf32, #tpu.memory_space<vmem>>, vector<4x512xf32>
    tpu.vector_store %arg9[%c44_505, %c0_506], %355 {strides = array<i32>} : memref<100x512xf32, #tpu.memory_space<vmem>>, vector<4x512xf32>,
    %c0_507 = arith.constant 0 : index
    %c0_508 = arith.constant 0 : index
    %c896 = arith.constant 896 : index
    %357 = vector.load %arg1[%c0_507, %c0_508, %c896] : memref<1x4x1504xf32, #tpu.memory_space<vmem>>, vector<1x4x512xf32>
    %358 = vector.shape_cast %357 : vector<1x4x512xf32> to vector<4x512xf32>
    %c48_509 = arith.constant 48 : index
    %c0_510 = arith.constant 0 : index
    %359 = vector.load %arg9[%c48_509, %c0_510] : memref<100x512xf32, #tpu.memory_space<vmem>>, vector<4x512xf32>
    tpu.vector_store %arg9[%c48_509, %c0_510], %358 {strides = array<i32>} : memref<100x512xf32, #tpu.memory_space<vmem>>, vector<4x512xf32>,
    %c0_511 = arith.constant 0 : index
    %c0_512 = arith.constant 0 : index
    %c896_513 = arith.constant 896 : index
    %360 = vector.load %arg2[%c0_511, %c0_512, %c896_513] : memref<1x4x1504xf32, #tpu.memory_space<vmem>>, vector<1x4x512xf32>
    %361 = vector.shape_cast %360 : vector<1x4x512xf32> to vector<4x512xf32>
    %c52_514 = arith.constant 52 : index
    %c0_515 = arith.constant 0 : index
    %362 = vector.load %arg9[%c52_514, %c0_515] : memref<100x512xf32, #tpu.memory_space<vmem>>, vector<4x512xf32>
    tpu.vector_store %arg9[%c52_514, %c0_515], %361 {strides = array<i32>} : memref<100x512xf32, #tpu.memory_space<vmem>>, vector<4x512xf32>,
    %c0_516 = arith.constant 0 : index
    %c0_517 = arith.constant 0 : index
    %c912 = arith.constant 912 : index
    %363 = vector.load %arg1[%c0_516, %c0_517, %c912] : memref<1x4x1504xf32, #tpu.memory_space<vmem>>, vector<1x4x512xf32>
    %364 = vector.shape_cast %363 : vector<1x4x512xf32> to vector<4x512xf32>
    %c56_518 = arith.constant 56 : index
    %c0_519 = arith.constant 0 : index
    %365 = vector.load %arg9[%c56_518, %c0_519] : memref<100x512xf32, #tpu.memory_space<vmem>>, vector<4x512xf32>
    tpu.vector_store %arg9[%c56_518, %c0_519], %364 {strides = array<i32>} : memref<100x512xf32, #tpu.memory_space<vmem>>, vector<4x512xf32>,
    %c0_520 = arith.constant 0 : index
    %c0_521 = arith.constant 0 : index
    %c912_522 = arith.constant 912 : index
    %366 = vector.load %arg2[%c0_520, %c0_521, %c912_522] : memref<1x4x1504xf32, #tpu.memory_space<vmem>>, vector<1x4x512xf32>
    %367 = vector.shape_cast %366 : vector<1x4x512xf32> to vector<4x512xf32>
    %c60_523 = arith.constant 60 : index
    %c0_524 = arith.constant 0 : index
    %368 = vector.load %arg9[%c60_523, %c0_524] : memref<100x512xf32, #tpu.memory_space<vmem>>, vector<4x512xf32>
    tpu.vector_store %arg9[%c60_523, %c0_524], %367 {strides = array<i32>} : memref<100x512xf32, #tpu.memory_space<vmem>>, vector<4x512xf32>,
    %c0_525 = arith.constant 0 : index
    %c0_526 = arith.constant 0 : index
    %c928 = arith.constant 928 : index
    %369 = vector.load %arg1[%c0_525, %c0_526, %c928] : memref<1x4x1504xf32, #tpu.memory_space<vmem>>, vector<1x4x512xf32>
    %370 = vector.shape_cast %369 : vector<1x4x512xf32> to vector<4x512xf32>
    %c64_527 = arith.constant 64 : index
    %c0_528 = arith.constant 0 : index
    %371 = vector.load %arg9[%c64_527, %c0_528] : memref<100x512xf32, #tpu.memory_space<vmem>>, vector<4x512xf32>
    tpu.vector_store %arg9[%c64_527, %c0_528], %370 {strides = array<i32>} : memref<100x512xf32, #tpu.memory_space<vmem>>, vector<4x512xf32>,
    %c0_529 = arith.constant 0 : index
    %c0_530 = arith.constant 0 : index
    %c928_531 = arith.constant 928 : index
    %372 = vector.load %arg2[%c0_529, %c0_530, %c928_531] : memref<1x4x1504xf32, #tpu.memory_space<vmem>>, vector<1x4x512xf32>
    %373 = vector.shape_cast %372 : vector<1x4x512xf32> to vector<4x512xf32>
    %c68_532 = arith.constant 68 : index
    %c0_533 = arith.constant 0 : index
    %374 = vector.load %arg9[%c68_532, %c0_533] : memref<100x512xf32, #tpu.memory_space<vmem>>, vector<4x512xf32>
    tpu.vector_store %arg9[%c68_532, %c0_533], %373 {strides = array<i32>} : memref<100x512xf32, #tpu.memory_space<vmem>>, vector<4x512xf32>,
    %c0_534 = arith.constant 0 : index
    %c0_535 = arith.constant 0 : index
    %c944 = arith.constant 944 : index
    %375 = vector.load %arg1[%c0_534, %c0_535, %c944] : memref<1x4x1504xf32, #tpu.memory_space<vmem>>, vector<1x4x512xf32>
    %376 = vector.shape_cast %375 : vector<1x4x512xf32> to vector<4x512xf32>
    %c72_536 = arith.constant 72 : index
    %c0_537 = arith.constant 0 : index
    %377 = vector.load %arg9[%c72_536, %c0_537] : memref<100x512xf32, #tpu.memory_space<vmem>>, vector<4x512xf32>
    tpu.vector_store %arg9[%c72_536, %c0_537], %376 {strides = array<i32>} : memref<100x512xf32, #tpu.memory_space<vmem>>, vector<4x512xf32>,
    %c0_538 = arith.constant 0 : index
    %c0_539 = arith.constant 0 : index
    %c944_540 = arith.constant 944 : index
    %378 = vector.load %arg2[%c0_538, %c0_539, %c944_540] : memref<1x4x1504xf32, #tpu.memory_space<vmem>>, vector<1x4x512xf32>
    %379 = vector.shape_cast %378 : vector<1x4x512xf32> to vector<4x512xf32>
    %c76_541 = arith.constant 76 : index
    %c0_542 = arith.constant 0 : index
    %380 = vector.load %arg9[%c76_541, %c0_542] : memref<100x512xf32, #tpu.memory_space<vmem>>, vector<4x512xf32>
    tpu.vector_store %arg9[%c76_541, %c0_542], %379 {strides = array<i32>} : memref<100x512xf32, #tpu.memory_space<vmem>>, vector<4x512xf32>,
    %c0_543 = arith.constant 0 : index
    %c0_544 = arith.constant 0 : index
    %c960 = arith.constant 960 : index
    %381 = vector.load %arg1[%c0_543, %c0_544, %c960] : memref<1x4x1504xf32, #tpu.memory_space<vmem>>, vector<1x4x512xf32>
    %382 = vector.shape_cast %381 : vector<1x4x512xf32> to vector<4x512xf32>
    %c80_545 = arith.constant 80 : index
    %c0_546 = arith.constant 0 : index
    %383 = vector.load %arg9[%c80_545, %c0_546] : memref<100x512xf32, #tpu.memory_space<vmem>>, vector<4x512xf32>
    tpu.vector_store %arg9[%c80_545, %c0_546], %382 {strides = array<i32>} : memref<100x512xf32, #tpu.memory_space<vmem>>, vector<4x512xf32>,
    %c0_547 = arith.constant 0 : index
    %c0_548 = arith.constant 0 : index
    %c960_549 = arith.constant 960 : index
    %384 = vector.load %arg2[%c0_547, %c0_548, %c960_549] : memref<1x4x1504xf32, #tpu.memory_space<vmem>>, vector<1x4x512xf32>
    %385 = vector.shape_cast %384 : vector<1x4x512xf32> to vector<4x512xf32>
    %c84_550 = arith.constant 84 : index
    %c0_551 = arith.constant 0 : index
    %386 = vector.load %arg9[%c84_550, %c0_551] : memref<100x512xf32, #tpu.memory_space<vmem>>, vector<4x512xf32>
    tpu.vector_store %arg9[%c84_550, %c0_551], %385 {strides = array<i32>} : memref<100x512xf32, #tpu.memory_space<vmem>>, vector<4x512xf32>,
    %c0_552 = arith.constant 0 : index
    %c0_553 = arith.constant 0 : index
    %c976 = arith.constant 976 : index
    %387 = vector.load %arg1[%c0_552, %c0_553, %c976] : memref<1x4x1504xf32, #tpu.memory_space<vmem>>, vector<1x4x512xf32>
    %388 = vector.shape_cast %387 : vector<1x4x512xf32> to vector<4x512xf32>
    %c88_554 = arith.constant 88 : index
    %c0_555 = arith.constant 0 : index
    %389 = vector.load %arg9[%c88_554, %c0_555] : memref<100x512xf32, #tpu.memory_space<vmem>>, vector<4x512xf32>
    tpu.vector_store %arg9[%c88_554, %c0_555], %388 {strides = array<i32>} : memref<100x512xf32, #tpu.memory_space<vmem>>, vector<4x512xf32>,
    %c0_556 = arith.constant 0 : index
    %c0_557 = arith.constant 0 : index
    %c976_558 = arith.constant 976 : index
    %390 = vector.load %arg2[%c0_556, %c0_557, %c976_558] : memref<1x4x1504xf32, #tpu.memory_space<vmem>>, vector<1x4x512xf32>
    %391 = vector.shape_cast %390 : vector<1x4x512xf32> to vector<4x512xf32>
    %c92_559 = arith.constant 92 : index
    %c0_560 = arith.constant 0 : index
    %392 = vector.load %arg9[%c92_559, %c0_560] : memref<100x512xf32, #tpu.memory_space<vmem>>, vector<4x512xf32>
    tpu.vector_store %arg9[%c92_559, %c0_560], %391 {strides = array<i32>} : memref<100x512xf32, #tpu.memory_space<vmem>>, vector<4x512xf32>,
    %c0_561 = arith.constant 0 : index
    %c0_562 = arith.constant 0 : index
    %c992 = arith.constant 992 : index
    %393 = vector.load %arg1[%c0_561, %c0_562, %c992] : memref<1x4x1504xf32, #tpu.memory_space<vmem>>, vector<1x4x512xf32>
    %394 = vector.shape_cast %393 : vector<1x4x512xf32> to vector<4x512xf32>
    %c96_563 = arith.constant 96 : index
    %c0_564 = arith.constant 0 : index
    %395 = vector.load %arg9[%c96_563, %c0_564] : memref<100x512xf32, #tpu.memory_space<vmem>>, vector<4x512xf32>
    tpu.vector_store %arg9[%c96_563, %c0_564], %394 {strides = array<i32>} : memref<100x512xf32, #tpu.memory_space<vmem>>, vector<4x512xf32>,
    %c4_565 = arith.constant 4 : index
    %c0_566 = arith.constant 0 : index
    %c0_567 = arith.constant 0 : index
    %396 = vector.load %arg3[%c4_565, %c0_566, %c0_567] : memref<5x32x100xf32, #tpu.memory_space<vmem>>, vector<1x32x100xf32>
    %397 = vector.shape_cast %396 : vector<1x32x100xf32> to vector<32x100xf32>
    %c0_568 = arith.constant 0 : index
    %c0_569 = arith.constant 0 : index
    %398 = vector.load %arg9[%c0_568, %c0_569] : memref<100x512xf32, #tpu.memory_space<vmem>>, vector<100x512xf32>
    %cst_570 = arith.constant dense<0.000000e+00> : vector<32x512xf32>
    %399 = tpu.matmul %397, %398, %cst_570 {dimension_numbers = #tpu.dot_dimension_numbers<[1], [0], [0], [1], [0, 0, 1, 1], [], []>} : vector<32x100xf32>, vector<100x512xf32>, vector<32x512xf32> -> vector<32x512xf32>
    %400 = arith.addf %320, %399 : vector<32x512xf32>
    %c0_571 = arith.constant 0 : index
    %c0_572 = arith.constant 0 : index
    %401 = vector.load %arg4[%c0_571, %c0_572] : memref<32x1xf32, #tpu.memory_space<vmem>>, vector<32x1xf32>
    %402 = vector.broadcast %401 : vector<32x1xf32> to vector<32x512xf32>
    %403 = arith.addf %400, %402 : vector<32x512xf32>
    %404 = vector.extract_strided_slice %403 {offsets = [0, 0], sizes = [8, 512], strides = [1, 1]} : vector<32x512xf32> to vector<8x512xf32>
    %cst_573 = arith.constant 0.000000e+00 : f32
    %405 = vector.broadcast %cst_573 : f32 to vector<8x512xf32>
    %406 = arith.maximumf %404, %405 : vector<8x512xf32>
    %407 = vector.extract_strided_slice %403 {offsets = [8, 0], sizes = [8, 512], strides = [1, 1]} : vector<32x512xf32> to vector<8x512xf32>
    %cst_574 = arith.constant 0.000000e+00 : f32
    %408 = vector.broadcast %cst_574 : f32 to vector<8x512xf32>
    %409 = arith.maximumf %407, %408 : vector<8x512xf32>
    %410 = vector.extract_strided_slice %403 {offsets = [16, 0], sizes = [8, 512], strides = [1, 1]} : vector<32x512xf32> to vector<8x512xf32>
    %cst_575 = arith.constant 0.000000e+00 : f32
    %411 = vector.broadcast %cst_575 : f32 to vector<8x512xf32>
    %412 = arith.maximumf %410, %411 : vector<8x512xf32>
    %413 = arith.addf %406, %409 : vector<8x512xf32>
    %414 = arith.addf %413, %412 : vector<8x512xf32>
    %c0_576 = arith.constant 0 : index
    %c0_577 = arith.constant 0 : index
    %c0_578 = arith.constant 0 : index
    %415 = vector.load %arg5[%c0_576, %c0_577, %c0_578] : memref<1x8x512xf32, #tpu.memory_space<vmem>>, vector<1x8x512xf32>
    %416 = vector.shape_cast %415 : vector<1x8x512xf32> to vector<8x512xf32>
    %417 = vector.shape_cast %414 : vector<8x512xf32> to vector<1x8x512xf32>
    tpu.vector_store %arg5[%c0_576, %c0_577, %c0_578], %417 {strides = array<i32>} : memref<1x8x512xf32, #tpu.memory_space<vmem>>, vector<1x8x512xf32>,
    %418 = vector.extract_strided_slice %403 {offsets = [24, 0], sizes = [8, 512], strides = [1, 1]} : vector<32x512xf32> to vector<8x512xf32>
    %c0_579 = arith.constant 0 : index
    %c0_580 = arith.constant 0 : index
    %c0_581 = arith.constant 0 : index
    %419 = vector.load %arg6[%c0_579, %c0_580, %c0_581] : memref<1x8x512xf32, #tpu.memory_space<vmem>>, vector<1x8x512xf32>
    %420 = vector.shape_cast %419 : vector<1x8x512xf32> to vector<8x512xf32>
    %421 = vector.shape_cast %418 : vector<8x512xf32> to vector<1x8x512xf32>
    tpu.vector_store %arg6[%c0_579, %c0_580, %c0_581], %421 {strides = array<i32>} : memref<1x8x512xf32, #tpu.memory_space<vmem>>, vector<1x8x512xf32>,
    %cst_582 = arith.constant dense<0.000000e+00> : vector<8xf32>
    %422 = vector.multi_reduction <add>, %414, %cst_582 [1] : vector<8x512xf32> to vector<8xf32>
    %423 = vector.shape_cast %422 : vector<8xf32> to vector<8x1xf32>
    %c0_583 = arith.constant 0 : index
    %c0_584 = arith.constant 0 : index
    %c0_585 = arith.constant 0 : index
    %424 = vector.load %arg7[%c0_583, %c0_584, %c0_585] : memref<1x8x1xf32, #tpu.memory_space<vmem>>, vector<1x8x1xf32>
    %425 = vector.shape_cast %424 : vector<1x8x1xf32> to vector<8x1xf32>
    %426 = vector.shape_cast %423 : vector<8x1xf32> to vector<1x8x1xf32>
    tpu.vector_store %arg7[%c0_583, %c0_584, %c0_585], %426 {strides = array<i32>} : memref<1x8x1xf32, #tpu.memory_space<vmem>>, vector<1x8x1xf32>,
    %427 = arith.mulf %414, %414 : vector<8x512xf32>
    %cst_586 = arith.constant dense<0.000000e+00> : vector<8xf32>
    %428 = vector.multi_reduction <add>, %427, %cst_586 [1] : vector<8x512xf32> to vector<8xf32>
    %429 = vector.shape_cast %428 : vector<8xf32> to vector<8x1xf32>
    %c0_587 = arith.constant 0 : index
    %c0_588 = arith.constant 0 : index
    %c0_589 = arith.constant 0 : index
    %430 = vector.load %arg8[%c0_587, %c0_588, %c0_589] : memref<1x8x1xf32, #tpu.memory_space<vmem>>, vector<1x8x1xf32>
    %431 = vector.shape_cast %430 : vector<1x8x1xf32> to vector<8x1xf32>
    %432 = vector.shape_cast %429 : vector<8x1xf32> to vector<1x8x1xf32>
    tpu.vector_store %arg8[%c0_587, %c0_588, %c0_589], %432 {strides = array<i32>} : memref<1x8x1xf32, #tpu.memory_space<vmem>>, vector<1x8x1xf32>,
    return
  }
  func.func @transform_0(%arg0: i32) -> (i32, i32, i32) {
    %c0_i32 = arith.constant 0 : i32
    %c0_i32_0 = arith.constant 0 : i32
    %c0_i32_1 = arith.constant 0 : i32
    return %arg0, %c0_i32, %c0_i32_0 : i32, i32, i32
  }
  func.func @transform_1(%arg0: i32) -> (i32, i32, i32) {
    %c0_i32 = arith.constant 0 : i32
    %c0_i32_0 = arith.constant 0 : i32
    %c0_i32_1 = arith.constant 0 : i32
    return %arg0, %c0_i32, %c0_i32_0 : i32, i32, i32
  }
  func.func @transform_2(%arg0: i32) -> (i32, i32, i32) {
    %c0_i32 = arith.constant 0 : i32
    %c0_i32_0 = arith.constant 0 : i32
    %c0_i32_1 = arith.constant 0 : i32
    %c0_i32_2 = arith.constant 0 : i32
    return %c0_i32, %c0_i32_0, %c0_i32_1 : i32, i32, i32
  }
  func.func @transform_3(%arg0: i32) -> (i32, i32) {
    %c0_i32 = arith.constant 0 : i32
    %c0_i32_0 = arith.constant 0 : i32
    %c0_i32_1 = arith.constant 0 : i32
    return %c0_i32, %c0_i32_0 : i32, i32
  }
  func.func @transform_4(%arg0: i32) -> (i32, i32, i32) {
    %c0_i32 = arith.constant 0 : i32
    %c0_i32_0 = arith.constant 0 : i32
    %c0_i32_1 = arith.constant 0 : i32
    return %arg0, %c0_i32, %c0_i32_0 : i32, i32, i32
  }
  func.func @transform_5(%arg0: i32) -> (i32, i32, i32) {
    %c0_i32 = arith.constant 0 : i32
    %c0_i32_0 = arith.constant 0 : i32
    %c0_i32_1 = arith.constant 0 : i32
    return %arg0, %c0_i32, %c0_i32_0 : i32, i32, i32
  }
  func.func @transform_6(%arg0: i32) -> (i32, i32, i32) {
    %c0_i32 = arith.constant 0 : i32
    %c0_i32_0 = arith.constant 0 : i32
    %c0_i32_1 = arith.constant 0 : i32
    return %arg0, %c0_i32, %c0_i32_0 : i32, i32, i32
  }
  func.func @transform_7(%arg0: i32) -> (i32, i32, i32) {
    %c0_i32 = arith.constant 0 : i32
    %c0_i32_0 = arith.constant 0 : i32
    %c0_i32_1 = arith.constant 0 : i32
    return %arg0, %c0_i32, %c0_i32_0 : i32, i32, i32
  }
}

module attributes {stable_mosaic.version = 11 : i64} {
  func.func @_bn_add_relu_kernel(%arg0: i32, %arg1: memref<1x8x512xf32, #tpu.memory_space<vmem>>, %arg2: memref<1x8x512xf32, #tpu.memory_space<vmem>>, %arg3: memref<8x1xf32, #tpu.memory_space<vmem>>, %arg4: memref<8x1xf32, #tpu.memory_space<vmem>>, %arg5: memref<1x8x512xf32, #tpu.memory_space<vmem>>) attributes {dimension_semantics = [#tpu.dimension_semantics<parallel>], iteration_bounds = array<i64: 2>, scalar_prefetch = 0 : i64, scratch_operands = 0 : i64, tpu.core_type = #tpu.core_type<tc>, window_params = [{transform_indices = @transform_0, window_bounds = array<i64: 1, 8, 512>}, {transform_indices = @transform_1, window_bounds = array<i64: 1, 8, 512>}, {pipeline_mode = #tpu.pipeline_mode<synchronous>, transform_indices = @transform_2, window_bounds = array<i64: 8, 1>}, {pipeline_mode = #tpu.pipeline_mode<synchronous>, transform_indices = @transform_3, window_bounds = array<i64: 8, 1>}, {transform_indices = @transform_4, window_bounds = array<i64: 1, 8, 512>}]} {
    %c0 = arith.constant 0 : index
    %c0_0 = arith.constant 0 : index
    %c0_1 = arith.constant 0 : index
    %0 = vector.load %arg1[%c0, %c0_0, %c0_1] : memref<1x8x512xf32, #tpu.memory_space<vmem>>, vector<1x8x512xf32>
    %1 = vector.shape_cast %0 : vector<1x8x512xf32> to vector<8x512xf32>
    %c0_2 = arith.constant 0 : index
    %c0_3 = arith.constant 0 : index
    %2 = vector.load %arg3[%c0_2, %c0_3] : memref<8x1xf32, #tpu.memory_space<vmem>>, vector<8x1xf32>
    %3 = vector.broadcast %2 : vector<8x1xf32> to vector<8x512xf32>
    %4 = arith.mulf %1, %3 : vector<8x512xf32>
    %c0_4 = arith.constant 0 : index
    %c0_5 = arith.constant 0 : index
    %5 = vector.load %arg4[%c0_4, %c0_5] : memref<8x1xf32, #tpu.memory_space<vmem>>, vector<8x1xf32>
    %6 = vector.broadcast %5 : vector<8x1xf32> to vector<8x512xf32>
    %7 = arith.addf %4, %6 : vector<8x512xf32>
    %c0_6 = arith.constant 0 : index
    %c0_7 = arith.constant 0 : index
    %c0_8 = arith.constant 0 : index
    %8 = vector.load %arg2[%c0_6, %c0_7, %c0_8] : memref<1x8x512xf32, #tpu.memory_space<vmem>>, vector<1x8x512xf32>
    %9 = vector.shape_cast %8 : vector<1x8x512xf32> to vector<8x512xf32>
    %10 = arith.addf %7, %9 : vector<8x512xf32>
    %cst = arith.constant 0.000000e+00 : f32
    %11 = vector.broadcast %cst : f32 to vector<8x512xf32>
    %12 = arith.maximumf %10, %11 : vector<8x512xf32>
    %c0_9 = arith.constant 0 : index
    %c0_10 = arith.constant 0 : index
    %c0_11 = arith.constant 0 : index
    %13 = vector.load %arg5[%c0_9, %c0_10, %c0_11] : memref<1x8x512xf32, #tpu.memory_space<vmem>>, vector<1x8x512xf32>
    %14 = vector.shape_cast %13 : vector<1x8x512xf32> to vector<8x512xf32>
    %15 = vector.shape_cast %12 : vector<8x512xf32> to vector<1x8x512xf32>
    tpu.vector_store %arg5[%c0_9, %c0_10, %c0_11], %15 {strides = array<i32>} : memref<1x8x512xf32, #tpu.memory_space<vmem>>, vector<1x8x512xf32>,
    return
  }
  func.func @transform_0(%arg0: i32) -> (i32, i32, i32) {
    %c0_i32 = arith.constant 0 : i32
    %c0_i32_0 = arith.constant 0 : i32
    %c0_i32_1 = arith.constant 0 : i32
    return %arg0, %c0_i32, %c0_i32_0 : i32, i32, i32
  }
  func.func @transform_1(%arg0: i32) -> (i32, i32, i32) {
    %c0_i32 = arith.constant 0 : i32
    %c0_i32_0 = arith.constant 0 : i32
    %c0_i32_1 = arith.constant 0 : i32
    return %arg0, %c0_i32, %c0_i32_0 : i32, i32, i32
  }
  func.func @transform_2(%arg0: i32) -> (i32, i32) {
    %c0_i32 = arith.constant 0 : i32
    %c0_i32_0 = arith.constant 0 : i32
    %c0_i32_1 = arith.constant 0 : i32
    return %c0_i32, %c0_i32_0 : i32, i32
  }
  func.func @transform_3(%arg0: i32) -> (i32, i32) {
    %c0_i32 = arith.constant 0 : i32
    %c0_i32_0 = arith.constant 0 : i32
    %c0_i32_1 = arith.constant 0 : i32
    return %c0_i32, %c0_i32_0 : i32, i32
  }
  func.func @transform_4(%arg0: i32) -> (i32, i32, i32) {
    %c0_i32 = arith.constant 0 : i32
    %c0_i32_0 = arith.constant 0 : i32
    %c0_i32_1 = arith.constant 0 : i32
    return %arg0, %c0_i32, %c0_i32_0 : i32, i32, i32
  }
}

</mosaic_0001>

<llo_original>
// kernel: vertical_inception_3p_forward.3
$region0: #{vertical_inception_3p_forward.3}
  #allocation0 [shape = 'u32[]', space=smem, size = 0x4, offset = 0x4, fixed_abs, tag = 'smem constant byte address 0x4 - core index']
  #allocation1 [shape = 'u32[144,128]{1,0:T(1,128)}', space=vmem, size = 0x12000, scoped, tag = 'internal scratch']
  %s0 = inlined_call_operand.vmem [shape: f32[2,8,512], index: 0, kind: input, shape index: {}]
  %s1 = inlined_call_operand.vmem [shape: f32[2,8,512], index: 1, kind: input, shape index: {}]
  %s2 = inlined_call_operand.vmem [shape: f32[8,1], index: 2, kind: input, shape index: {}]
  %s3 = inlined_call_operand.vmem [shape: f32[8,1], index: 3, kind: input, shape index: {}]
  %s4 = inlined_call_operand.vmem [shape: f32[2,8,512], index: 4, kind: output, shape index: {}]
  %s5 = sld [smem:[#allocation0]]
  $region49: #{vertical_inception_3p_forward.3} parent=0
    _
  %s7 = ssub.s32 1, %s5
  %s8 = scalar_select 0, %s7, %s5
  loop: start=0, step=1, limit=4
  $region2: #{vertical_inception_3p_forward.3} parent=0 // loop_pre_header
    _
  $region3: #{vertical_inception_3p_forward.3} parent=0 // loop_header
    %s10 = sphi 0, %s14
    %p11 = scmp.ge.s32.totalorder %s10, 4
    %s20 = sphi 0, %s22
    %s23 = sphi 0, %s20
    %s24 = sphi 0, %s23
    %s40 = sphi 0, %s24
    %s46 = sphi 0, %s48
    %s49 = sphi 0, %s46
    %s50 = sphi 0, %s49
    %s66 = sphi 0, %s50
    %s70 = sphi 0, %s70
    %s72 = sphi 0, %s70
    %s73 = sphi 0, %s72
    %s87 = sphi 0, %s73
    %s91 = sphi 0, %s91
    %s93 = sphi 0, %s91
    %s94 = sphi 0, %s93
    %s108 = sphi 0, %s94
    %s114 = sphi 0, %s116
    %s117 = sphi 0, %s114
    %s118 = sphi 0, %s117
    %s134 = sphi 0, %s118
  $region4: #{vertical_inception_3p_forward.3} parent=0 // loop_header_branch
    %13 = sbr.rel (%p11) target = $region8
  $region5: #{vertical_inception_3p_forward.3} parent=0 // loop_body
    %s15 = ssub.s32 %s10, 1
    %s16 = ssub.s32 %s10, 2
    %s17 = sadd.s32 %s10, 1
    %s18 = ssub.s32 %s10, %s17
    %p19 = scmp.eq.s32.totalorder %s18, 0
    %s21 = sadd.s32 %s20, 1
    %s22 = scalar_select %p19, %s20, %s21
    %p25 = pneg %p19
    %p26 = scmp.eq.s32.totalorder %s10, 1
    %p27 = por %p25, %p26
    %p28 = scmp.ne.s32.totalorder %s20, %s23
    %p29 = scmp.eq.s32.totalorder %s10, 0
    %p30 = por %p28, %p29
    %p31 = scmp.ne.s32.totalorder %s20, %s23
    %p32 = scmp.eq.s32.totalorder %s15, 1
    %p33 = por %p31, %p32
    %p34 = scmp.ne.s32.totalorder %s23, %s24
    %p35 = scmp.eq.s32.totalorder %s15, 0
    %p36 = por %p34, %p35
    %p37 = scmp.ne.s32.totalorder %s23, %s24
    %p38 = scmp.eq.s32.totalorder %s16, 1
    %p39 = por %p37, %p38
    %p41 = scmp.ne.s32.totalorder %s24, %s40
    %p42 = scmp.eq.s32.totalorder %s16, 0
    %p43 = por %p41, %p42
    %s44 = ssub.s32 %s10, %s17
    %p45 = scmp.eq.s32.totalorder %s44, 0
    %s47 = sadd.s32 %s46, 1
    %s48 = scalar_select %p45, %s46, %s47
    %p51 = pneg %p45
    %p52 = scmp.eq.s32.totalorder %s10, 1
    %p53 = por %p51, %p52
    %p54 = scmp.ne.s32.totalorder %s46, %s49
    %p55 = scmp.eq.s32.totalorder %s10, 0
    %p56 = por %p54, %p55
    %p57 = scmp.ne.s32.totalorder %s46, %s49
    %p58 = scmp.eq.s32.totalorder %s15, 1
    %p59 = por %p57, %p58
    %p60 = scmp.ne.s32.totalorder %s49, %s50
    %p61 = scmp.eq.s32.totalorder %s15, 0
    %p62 = por %p60, %p61
    %p63 = scmp.ne.s32.totalorder %s49, %s50
    %p64 = scmp.eq.s32.totalorder %s16, 1
    %p65 = por %p63, %p64
    %p67 = scmp.ne.s32.totalorder %s50, %s66
    %p68 = scmp.eq.s32.totalorder %s16, 0
    %p69 = por %p67, %p68
    %s71 = sadd.s32 %s70, 1
    %p74 = scmp.eq.s32.totalorder %s10, 1
    %p75 = scmp.ne.s32.totalorder %s70, %s72
    %p76 = scmp.eq.s32.totalorder %s10, 0
    %p77 = por %p75, %p76
    %p78 = scmp.ne.s32.totalorder %s70, %s72
    %p79 = scmp.eq.s32.totalorder %s15, 1
    %p80 = por %p78, %p79
    %p81 = scmp.ne.s32.totalorder %s72, %s73
    %p82 = scmp.eq.s32.totalorder %s15, 0
    %p83 = por %p81, %p82
    %p84 = scmp.ne.s32.totalorder %s72, %s73
    %p85 = scmp.eq.s32.totalorder %s16, 1
    %p86 = por %p84, %p85
    %p88 = scmp.ne.s32.totalorder %s73, %s87
    %p89 = scmp.eq.s32.totalorder %s16, 0
    %p90 = por %p88, %p89
    %s92 = sadd.s32 %s91, 1
    %p95 = scmp.eq.s32.totalorder %s10, 1
    %p96 = scmp.ne.s32.totalorder %s91, %s93
    %p97 = scmp.eq.s32.totalorder %s10, 0
    %p98 = por %p96, %p97
    %p99 = scmp.ne.s32.totalorder %s91, %s93
    %p100 = scmp.eq.s32.totalorder %s15, 1
    %p101 = por %p99, %p100
    %p102 = scmp.ne.s32.totalorder %s93, %s94
    %p103 = scmp.eq.s32.totalorder %s15, 0
    %p104 = por %p102, %p103
    %p105 = scmp.ne.s32.totalorder %s93, %s94
    %p106 = scmp.eq.s32.totalorder %s16, 1
    %p107 = por %p105, %p106
    %p109 = scmp.ne.s32.totalorder %s94, %s108
    %p110 = scmp.eq.s32.totalorder %s16, 0
    %p111 = por %p109, %p110
    %s112 = ssub.s32 %s10, %s17
    %p113 = scmp.eq.s32.totalorder %s112, 0
    %s115 = sadd.s32 %s114, 1
    %s116 = scalar_select %p113, %s114, %s115
    %p119 = pneg %p113
    %p120 = scmp.eq.s32.totalorder %s10, 1
    %p121 = por %p119, %p120
    %p122 = scmp.ne.s32.totalorder %s114, %s117
    %p123 = scmp.eq.s32.totalorder %s10, 0
    %p124 = por %p122, %p123
    %p125 = scmp.ne.s32.totalorder %s114, %s117
    %p126 = scmp.eq.s32.totalorder %s15, 1
    %p127 = por %p125, %p126
    %p128 = scmp.ne.s32.totalorder %s117, %s118
    %p129 = scmp.eq.s32.totalorder %s15, 0
    %p130 = por %p128, %p129
    %p131 = scmp.ne.s32.totalorder %s117, %s118
    %p132 = scmp.eq.s32.totalorder %s16, 1
    %p133 = por %p131, %p132
    %p135 = scmp.ne.s32.totalorder %s118, %s134
    %p136 = scmp.eq.s32.totalorder %s16, 0
    %p137 = por %p135, %p136
    %p138 = scmp.le.s32.totalorder 1, %s10
    %p139 = scmp.lt.s32.totalorder %s10, 3
    %p140 = pnand %p138, %p139
    %p141 = pneg %p140
    // Predicated region
    $region9: #{vertical_inception_3p_forward.3} parent=5 // pred_check
      _
    $region10: #{vertical_inception_3p_forward.3} parent=5 // pred_check_branch
      %143 = sbr.rel (%p140) target = $region12
    $region11: #{vertical_inception_3p_forward.3} parent=5 // pred_region
      %s144 = ssub.s32 %s10, 1
      // Predicated region
      $region13: #{vertical_inception_3p_forward.3} parent=11 // pred_check
        %p145 = pneg %p83
      $region14: #{vertical_inception_3p_forward.3} parent=11 // pred_check_branch
        %147 = sbr.rel (%p145) target = $region16
      $region15: #{vertical_inception_3p_forward.3} parent=11 // pred_region
        _
      $region16: #{vertical_inception_3p_forward.3} parent=11 // pred_fallthru
        _
      // Predicated region
      $region17: #{vertical_inception_3p_forward.3} parent=11 // pred_check
        %p148 = pneg %p104
      $region18: #{vertical_inception_3p_forward.3} parent=11 // pred_check_branch
        %150 = sbr.rel (%p148) target = $region20
      $region19: #{vertical_inception_3p_forward.3} parent=11 // pred_region
        _
      $region20: #{vertical_inception_3p_forward.3} parent=11 // pred_fallthru
        _
    $region12: #{vertical_inception_3p_forward.3} parent=5 // pred_fallthru
      _
    %p151 = scmp.lt.s32.totalorder %s10, 2
    // Predicated region
    $region21: #{vertical_inception_3p_forward.3} parent=5 // pred_check
      %p152 = pneg %p151
    $region22: #{vertical_inception_3p_forward.3} parent=5 // pred_check_branch
      %154 = sbr.rel (%p152) target = $region24
    $region23: #{vertical_inception_3p_forward.3} parent=5 // pred_region
      // Predicated region
      $region25: #{vertical_inception_3p_forward.3} parent=23 // pred_check
        %p155 = pneg %p30
      $region26: #{vertical_inception_3p_forward.3} parent=23 // pred_check_branch
        %157 = sbr.rel (%p155) target = $region28
      $region27: #{vertical_inception_3p_forward.3} parent=23 // pred_region
        %p158 = scmp.lt.s32.totalorder %s10, 1
        %s159 = scalar_select %p158, %s10, 1
        %s160 = smul.addr %s159, 4
        %s161 = smul.addr %s160, 8
        %s162 = scalar_lea.vmem %s0, %s161
      $region28: #{vertical_inception_3p_forward.3} parent=23 // pred_fallthru
        _
      // Predicated region
      $region29: #{vertical_inception_3p_forward.3} parent=23 // pred_check
        %p163 = pneg %p56
      $region30: #{vertical_inception_3p_forward.3} parent=23 // pred_check_branch
        %165 = sbr.rel (%p163) target = $region32
      $region31: #{vertical_inception_3p_forward.3} parent=23 // pred_region
        %p166 = scmp.lt.s32.totalorder %s10, 1
        %s167 = scalar_select %p166, %s10, 1
        %s168 = smul.addr %s167, 4
        %s169 = smul.addr %s168, 8
        %s170 = scalar_lea.vmem %s1, %s169
      $region32: #{vertical_inception_3p_forward.3} parent=23 // pred_fallthru
        _
    $region24: #{vertical_inception_3p_forward.3} parent=5 // pred_fallthru
      _
    %p171 = scmp.le.s32.totalorder 1, %s10
    %p172 = scmp.lt.s32.totalorder %s10, 3
    %p173 = pnand %p171, %p172
    %p174 = pneg %p173
    // Predicated region
    $region33: #{vertical_inception_3p_forward.3} parent=5 // pred_check
      _
    $region34: #{vertical_inception_3p_forward.3} parent=5 // pred_check_branch
      %176 = sbr.rel (%p173) target = $region36
    $region35: #{vertical_inception_3p_forward.3} parent=5 // pred_region
      %s177 = ssub.s32 %s10, 1
      %p178 = scmp.lt.s32.totalorder %s15, 1
      %s179 = scalar_select %p178, %s15, 1
      %s180 = smul.addr %s179, 4
      %s181 = smul.addr %s180, 8
      %s182 = scalar_lea.vmem %s0, %s181
      %p183 = pneg %p36
      %p184 = pneg %p33
      %p185 = scmp.lt.s32.totalorder %s15, 1
      %s186 = scalar_select %p185, %s15, 1
      %s187 = smul.addr %s186, 4
      %s188 = smul.addr %s187, 8
      %s189 = scalar_lea.vmem %s1, %s188
      %p190 = pneg %p62
      %p191 = pneg %p59
      %p192 = pneg %p83
      %p193 = pneg %p80
      %p194 = pneg %p104
      %p195 = pneg %p101
      %p196 = pneg %p130
      %p197 = pneg %p127
      %p198 = scmp.lt.s32.totalorder %s15, 1
      %s199 = scalar_select %p198, %s15, 1
      %s200 = smul.addr %s199, 4
      %s201 = smul.addr %s200, 8
      %s202 = scalar_lea.vmem %s4, %s201
      %p203 = scmp.lt.s32.totalorder %s15, 1
      %s204 = scalar_select %p203, %s15, 1
      %s205 = smul.addr %s204, 4
      %s206 = smul.addr %s205, 8
      %s207 = scalar_lea.vmem %s0, %s206
      %p208 = scmp.lt.s32.totalorder %s15, 1
      %s209 = scalar_select %p208, %s15, 1
      %s210 = smul.addr %s209, 4
      %s211 = smul.addr %s210, 8
      %s212 = scalar_lea.vmem %s1, %s211
      %p213 = scmp.lt.s32.totalorder %s15, 1
      %s214 = scalar_select %p213, %s15, 1
      %s215 = smul.addr %s214, 4
      %s216 = smul.addr %s215, 8
      %s217 = scalar_lea.vmem %s4, %s216
      %v218 = vld [vmem:[%s207] sm:$0xff]
      %v219 = vld [vmem:[%s207 + $0x8] sm:$0xff]
      %v220 = vld [vmem:[%s207 + $0x10] sm:$0xff]
      %v221 = vld [vmem:[%s207 + $0x18] sm:$0xff]
      %v222 = vld [vmem:[%s2] sm:$0xff]
      %224 = vset.pattern.permute.xlu0 0
      %225 = vperm.xlu0 %224, %v222
      %v226 = vpop.permute.xlu0 %225
      %v228 = vmul.f32 %v218, %v226
      %v229 = vmul.f32 %v219, %v226
      %v230 = vmul.f32 %v220, %v226
      %v231 = vmul.f32 %v221, %v226
      %v232 = vld [vmem:[%s3] sm:$0xff]
      %234 = vset.pattern.permute.xlu0 0
      %235 = vperm.xlu0 %234, %v232
      %v236 = vpop.permute.xlu0 %235
      %v238 = vadd.f32 %v228, %v236
      %v239 = vadd.f32 %v229, %v236
      %v240 = vadd.f32 %v230, %v236
      %v241 = vadd.f32 %v231, %v236
      %v242 = vld [vmem:[%s212] sm:$0xff]
      %v243 = vld [vmem:[%s212 + $0x8] sm:$0xff]
      %v244 = vld [vmem:[%s212 + $0x10] sm:$0xff]
      %v245 = vld [vmem:[%s212 + $0x18] sm:$0xff]
      %v246 = vadd.f32 %v238, %v242
      %v247 = vadd.f32 %v239, %v243
      %v248 = vadd.f32 %v240, %v244
      %v249 = vadd.f32 %v241, %v245
      %v250 = vmax.f32 %v246, 0.0
      %v251 = vmax.f32 %v247, 0.0
      %v252 = vmax.f32 %v248, 0.0
      %v253 = vmax.f32 %v249, 0.0
      %254 = vst [vmem:[%s217] sm:$0xff] %v250
      %255 = vst [vmem:[%s217 + $0x8] sm:$0xff] %v251
      %256 = vst [vmem:[%s217 + $0x10] sm:$0xff] %v252
      %257 = vst [vmem:[%s217 + $0x18] sm:$0xff] %v253
      %p258 = scmp.lt.s32.totalorder %s15, 1
      %s259 = scalar_select %p258, %s15, 1
      %s260 = smul.addr %s259, 4
      %s261 = smul.addr %s260, 8
      %s262 = scalar_lea.vmem %s4, %s261
      // Predicated region
      $region37: #{vertical_inception_3p_forward.3} parent=35 // pred_check
        %p263 = pneg %p127
      $region38: #{vertical_inception_3p_forward.3} parent=35 // pred_check_branch
        %265 = sbr.rel (%p263) target = $region40
      $region39: #{vertical_inception_3p_forward.3} parent=35 // pred_region
        _
      $region40: #{vertical_inception_3p_forward.3} parent=35 // pred_fallthru
        _
    $region36: #{vertical_inception_3p_forward.3} parent=5 // pred_fallthru
      _
    %p266 = scmp.le.s32.totalorder 2, %s10
    // Predicated region
    $region41: #{vertical_inception_3p_forward.3} parent=5 // pred_check
      %p267 = pneg %p266
    $region42: #{vertical_inception_3p_forward.3} parent=5 // pred_check_branch
      %269 = sbr.rel (%p267) target = $region44
    $region43: #{vertical_inception_3p_forward.3} parent=5 // pred_region
      %s270 = ssub.s32 %s10, 2
      // Predicated region
      $region45: #{vertical_inception_3p_forward.3} parent=43 // pred_check
        %p271 = pneg %p133
      $region46: #{vertical_inception_3p_forward.3} parent=43 // pred_check_branch
        %273 = sbr.rel (%p271) target = $region48
      $region47: #{vertical_inception_3p_forward.3} parent=43 // pred_region
        %p274 = scmp.lt.s32.totalorder %s16, 1
        %s275 = scalar_select %p274, %s16, 1
        %s276 = smul.addr %s275, 4
        %s277 = smul.addr %s276, 8
        %s278 = scalar_lea.vmem %s4, %s277
      $region48: #{vertical_inception_3p_forward.3} parent=43 // pred_fallthru
        _
    $region44: #{vertical_inception_3p_forward.3} parent=5 // pred_fallthru
      _
  $region6: #{vertical_inception_3p_forward.3} parent=0 // loop_footer
    %s14 = sadd.s32 1, %s10
  $region7: #{vertical_inception_3p_forward.3} parent=0 // loop_footer_branch
    %9 = sbr.rel target = $region3
  $region8: #{vertical_inception_3p_forward.3} parent=0 // loop_exit
    _

// kernel: vertical_inception_3p_forward.2
$region0: #{vertical_inception_3p_forward.2}
  #allocation0 [shape = 'u32[]', space=smem, size = 0x4, offset = 0x4, fixed_abs, tag = 'smem constant byte address 0x4 - core index']
  #allocation1 [shape = 'u32[144,128]{1,0:T(1,128)}', space=vmem, size = 0x12000, scoped, tag = 'internal scratch']
  #allocation2 [shape = 'f32[100,512]{1,0:T(8,128)}', space=vmem, size = 0x34000, scoped, tag = 'scratch operand']
  %s0 = inlined_call_operand.vmem [shape: f32[2,4,1504], index: 0, kind: input, shape index: {}]
  %s1 = inlined_call_operand.vmem [shape: f32[2,4,1504], index: 1, kind: input, shape index: {}]
  %s2 = inlined_call_operand.vmem [shape: f32[5,32,100], index: 2, kind: input, shape index: {}]
  %s3 = inlined_call_operand.vmem [shape: f32[32,1], index: 3, kind: input, shape index: {}]
  %s4 = inlined_call_operand.vmem [shape: f32[2,8,512], index: 4, kind: output, shape index: {0}]
  %s5 = inlined_call_operand.vmem [shape: f32[2,8,512], index: 5, kind: output, shape index: {1}]
  %s6 = inlined_call_operand.vmem [shape: f32[2,8,1], index: 6, kind: output, shape index: {2}]
  %s7 = inlined_call_operand.vmem [shape: f32[2,8,1], index: 7, kind: output, shape index: {3}]
  %8 = xla_tuple %s4, %s5, %s6, %s7
  %s9 = sld [smem:[#allocation0]]
  $region73: #{vertical_inception_3p_forward.2} parent=0
    _
  %s11 = ssub.s32 1, %s9
  %s12 = scalar_select 0, %s11, %s9
  loop: start=0, step=1, limit=4
  $region2: #{vertical_inception_3p_forward.2} parent=0 // loop_pre_header
    _
  $region3: #{vertical_inception_3p_forward.2} parent=0 // loop_header
    %s14 = sphi 0, %s18
    %p15 = scmp.ge.s32.totalorder %s14, 4
    %s24 = sphi 0, %s26
    %s27 = sphi 0, %s24
    %s28 = sphi 0, %s27
    %s44 = sphi 0, %s28
    %s50 = sphi 0, %s52
    %s53 = sphi 0, %s50
    %s54 = sphi 0, %s53
    %s70 = sphi 0, %s54
    %s74 = sphi 0, %s74
    %s76 = sphi 0, %s74
    %s77 = sphi 0, %s76
    %s91 = sphi 0, %s77
    %s95 = sphi 0, %s95
    %s97 = sphi 0, %s95
    %s98 = sphi 0, %s97
    %s112 = sphi 0, %s98
    %s118 = sphi 0, %s120
    %s121 = sphi 0, %s118
    %s122 = sphi 0, %s121
    %s138 = sphi 0, %s122
    %s144 = sphi 0, %s146
    %s147 = sphi 0, %s144
    %s148 = sphi 0, %s147
    %s164 = sphi 0, %s148
    %s170 = sphi 0, %s172
    %s173 = sphi 0, %s170
    %s174 = sphi 0, %s173
    %s190 = sphi 0, %s174
    %s196 = sphi 0, %s198
    %s199 = sphi 0, %s196
    %s200 = sphi 0, %s199
    %s216 = sphi 0, %s200
  $region4: #{vertical_inception_3p_forward.2} parent=0 // loop_header_branch
    %17 = sbr.rel (%p15) target = $region8
  $region5: #{vertical_inception_3p_forward.2} parent=0 // loop_body
    %s19 = ssub.s32 %s14, 1
    %s20 = ssub.s32 %s14, 2
    %s21 = sadd.s32 %s14, 1
    %s22 = ssub.s32 %s14, %s21
    %p23 = scmp.eq.s32.totalorder %s22, 0
    %s25 = sadd.s32 %s24, 1
    %s26 = scalar_select %p23, %s24, %s25
    %p29 = pneg %p23
    %p30 = scmp.eq.s32.totalorder %s14, 1
    %p31 = por %p29, %p30
    %p32 = scmp.ne.s32.totalorder %s24, %s27
    %p33 = scmp.eq.s32.totalorder %s14, 0
    %p34 = por %p32, %p33
    %p35 = scmp.ne.s32.totalorder %s24, %s27
    %p36 = scmp.eq.s32.totalorder %s19, 1
    %p37 = por %p35, %p36
    %p38 = scmp.ne.s32.totalorder %s27, %s28
    %p39 = scmp.eq.s32.totalorder %s19, 0
    %p40 = por %p38, %p39
    %p41 = scmp.ne.s32.totalorder %s27, %s28
    %p42 = scmp.eq.s32.totalorder %s20, 1
    %p43 = por %p41, %p42
    %p45 = scmp.ne.s32.totalorder %s28, %s44
    %p46 = scmp.eq.s32.totalorder %s20, 0
    %p47 = por %p45, %p46
    %s48 = ssub.s32 %s14, %s21
    %p49 = scmp.eq.s32.totalorder %s48, 0
    %s51 = sadd.s32 %s50, 1
    %s52 = scalar_select %p49, %s50, %s51
    %p55 = pneg %p49
    %p56 = scmp.eq.s32.totalorder %s14, 1
    %p57 = por %p55, %p56
    %p58 = scmp.ne.s32.totalorder %s50, %s53
    %p59 = scmp.eq.s32.totalorder %s14, 0
    %p60 = por %p58, %p59
    %p61 = scmp.ne.s32.totalorder %s50, %s53
    %p62 = scmp.eq.s32.totalorder %s19, 1
    %p63 = por %p61, %p62
    %p64 = scmp.ne.s32.totalorder %s53, %s54
    %p65 = scmp.eq.s32.totalorder %s19, 0
    %p66 = por %p64, %p65
    %p67 = scmp.ne.s32.totalorder %s53, %s54
    %p68 = scmp.eq.s32.totalorder %s20, 1
    %p69 = por %p67, %p68
    %p71 = scmp.ne.s32.totalorder %s54, %s70
    %p72 = scmp.eq.s32.totalorder %s20, 0
    %p73 = por %p71, %p72
    %s75 = sadd.s32 %s74, 1
    %p78 = scmp.eq.s32.totalorder %s14, 1
    %p79 = scmp.ne.s32.totalorder %s74, %s76
    %p80 = scmp.eq.s32.totalorder %s14, 0
    %p81 = por %p79, %p80
    %p82 = scmp.ne.s32.totalorder %s74, %s76
    %p83 = scmp.eq.s32.totalorder %s19, 1
    %p84 = por %p82, %p83
    %p85 = scmp.ne.s32.totalorder %s76, %s77
    %p86 = scmp.eq.s32.totalorder %s19, 0
    %p87 = por %p85, %p86
    %p88 = scmp.ne.s32.totalorder %s76, %s77
    %p89 = scmp.eq.s32.totalorder %s20, 1
    %p90 = por %p88, %p89
    %p92 = scmp.ne.s32.totalorder %s77, %s91
    %p93 = scmp.eq.s32.totalorder %s20, 0
    %p94 = por %p92, %p93
    %s96 = sadd.s32 %s95, 1
    %p99 = scmp.eq.s32.totalorder %s14, 1
    %p100 = scmp.ne.s32.totalorder %s95, %s97
    %p101 = scmp.eq.s32.totalorder %s14, 0
    %p102 = por %p100, %p101
    %p103 = scmp.ne.s32.totalorder %s95, %s97
    %p104 = scmp.eq.s32.totalorder %s19, 1
    %p105 = por %p103, %p104
    %p106 = scmp.ne.s32.totalorder %s97, %s98
    %p107 = scmp.eq.s32.totalorder %s19, 0
    %p108 = por %p106, %p107
    %p109 = scmp.ne.s32.totalorder %s97, %s98
    %p110 = scmp.eq.s32.totalorder %s20, 1
    %p111 = por %p109, %p110
    %p113 = scmp.ne.s32.totalorder %s98, %s112
    %p114 = scmp.eq.s32.totalorder %s20, 0
    %p115 = por %p113, %p114
    %s116 = ssub.s32 %s14, %s21
    %p117 = scmp.eq.s32.totalorder %s116, 0
    %s119 = sadd.s32 %s118, 1
    %s120 = scalar_select %p117, %s118, %s119
    %p123 = pneg %p117
    %p124 = scmp.eq.s32.totalorder %s14, 1
    %p125 = por %p123, %p124
    %p126 = scmp.ne.s32.totalorder %s118, %s121
    %p127 = scmp.eq.s32.totalorder %s14, 0
    %p128 = por %p126, %p127
    %p129 = scmp.ne.s32.totalorder %s118, %s121
    %p130 = scmp.eq.s32.totalorder %s19, 1
    %p131 = por %p129, %p130
    %p132 = scmp.ne.s32.totalorder %s121, %s122
    %p133 = scmp.eq.s32.totalorder %s19, 0
    %p134 = por %p132, %p133
    %p135 = scmp.ne.s32.totalorder %s121, %s122
    %p136 = scmp.eq.s32.totalorder %s20, 1
    %p137 = por %p135, %p136
    %p139 = scmp.ne.s32.totalorder %s122, %s138
    %p140 = scmp.eq.s32.totalorder %s20, 0
    %p141 = por %p139, %p140
    %s142 = ssub.s32 %s14, %s21
    %p143 = scmp.eq.s32.totalorder %s142, 0
    %s145 = sadd.s32 %s144, 1
    %s146 = scalar_select %p143, %s144, %s145
    %p149 = pneg %p143
    %p150 = scmp.eq.s32.totalorder %s14, 1
    %p151 = por %p149, %p150
    %p152 = scmp.ne.s32.totalorder %s144, %s147
    %p153 = scmp.eq.s32.totalorder %s14, 0
    %p154 = por %p152, %p153
    %p155 = scmp.ne.s32.totalorder %s144, %s147
    %p156 = scmp.eq.s32.totalorder %s19, 1
    %p157 = por %p155, %p156
    %p158 = scmp.ne.s32.totalorder %s147, %s148
    %p159 = scmp.eq.s32.totalorder %s19, 0
    %p160 = por %p158, %p159
    %p161 = scmp.ne.s32.totalorder %s147, %s148
    %p162 = scmp.eq.s32.totalorder %s20, 1
    %p163 = por %p161, %p162
    %p165 = scmp.ne.s32.totalorder %s148, %s164
    %p166 = scmp.eq.s32.totalorder %s20, 0
    %p167 = por %p165, %p166
    %s168 = ssub.s32 %s14, %s21
    %p169 = scmp.eq.s32.totalorder %s168, 0
    %s171 = sadd.s32 %s170, 1
    %s172 = scalar_select %p169, %s170, %s171
    %p175 = pneg %p169
    %p176 = scmp.eq.s32.totalorder %s14, 1
    %p177 = por %p175, %p176
    %p178 = scmp.ne.s32.totalorder %s170, %s173
    %p179 = scmp.eq.s32.totalorder %s14, 0
    %p180 = por %p178, %p179
    %p181 = scmp.ne.s32.totalorder %s170, %s173
    %p182 = scmp.eq.s32.totalorder %s19, 1
    %p183 = por %p181, %p182
    %p184 = scmp.ne.s32.totalorder %s173, %s174
    %p185 = scmp.eq.s32.totalorder %s19, 0
    %p186 = por %p184, %p185
    %p187 = scmp.ne.s32.totalorder %s173, %s174
    %p188 = scmp.eq.s32.totalorder %s20, 1
    %p189 = por %p187, %p188
    %p191 = scmp.ne.s32.totalorder %s174, %s190
    %p192 = scmp.eq.s32.totalorder %s20, 0
    %p193 = por %p191, %p192
    %s194 = ssub.s32 %s14, %s21
    %p195 = scmp.eq.s32.totalorder %s194, 0
    %s197 = sadd.s32 %s196, 1
    %s198 = scalar_select %p195, %s196, %s197
    %p201 = pneg %p195
    %p202 = scmp.eq.s32.totalorder %s14, 1
    %p203 = por %p201, %p202
    %p204 = scmp.ne.s32.totalorder %s196, %s199
    %p205 = scmp.eq.s32.totalorder %s14, 0
    %p206 = por %p204, %p205
    %p207 = scmp.ne.s32.totalorder %s196, %s199
    %p208 = scmp.eq.s32.totalorder %s19, 1
    %p209 = por %p207, %p208
    %p210 = scmp.ne.s32.totalorder %s199, %s200
    %p211 = scmp.eq.s32.totalorder %s19, 0
    %p212 = por %p210, %p211
    %p213 = scmp.ne.s32.totalorder %s199, %s200
    %p214 = scmp.eq.s32.totalorder %s20, 1
    %p215 = por %p213, %p214
    %p217 = scmp.ne.s32.totalorder %s200, %s216
    %p218 = scmp.eq.s32.totalorder %s20, 0
    %p219 = por %p217, %p218
    %p220 = scmp.le.s32.totalorder 1, %s14
    %p221 = scmp.lt.s32.totalorder %s14, 3
    %p222 = pnand %p220, %p221
    %p223 = pneg %p222
    // Predicated region
    $region9: #{vertical_inception_3p_forward.2} parent=5 // pred_check
      _
    $region10: #{vertical_inception_3p_forward.2} parent=5 // pred_check_branch
      %225 = sbr.rel (%p222) target = $region12
    $region11: #{vertical_inception_3p_forward.2} parent=5 // pred_region
      %s226 = ssub.s32 %s14, 1
      // Predicated region
      $region13: #{vertical_inception_3p_forward.2} parent=11 // pred_check
        %p227 = pneg %p87
      $region14: #{vertical_inception_3p_forward.2} parent=11 // pred_check_branch
        %229 = sbr.rel (%p227) target = $region16
      $region15: #{vertical_inception_3p_forward.2} parent=11 // pred_region
        _
      $region16: #{vertical_inception_3p_forward.2} parent=11 // pred_fallthru
        _
      // Predicated region
      $region17: #{vertical_inception_3p_forward.2} parent=11 // pred_check
        %p230 = pneg %p108
      $region18: #{vertical_inception_3p_forward.2} parent=11 // pred_check_branch
        %232 = sbr.rel (%p230) target = $region20
      $region19: #{vertical_inception_3p_forward.2} parent=11 // pred_region
        _
      $region20: #{vertical_inception_3p_forward.2} parent=11 // pred_fallthru
        _
    $region12: #{vertical_inception_3p_forward.2} parent=5 // pred_fallthru
      _
    %p233 = scmp.lt.s32.totalorder %s14, 2
    // Predicated region
    $region21: #{vertical_inception_3p_forward.2} parent=5 // pred_check
      %p234 = pneg %p233
    $region22: #{vertical_inception_3p_forward.2} parent=5 // pred_check_branch
      %236 = sbr.rel (%p234) target = $region24
    $region23: #{vertical_inception_3p_forward.2} parent=5 // pred_region
      // Predicated region
      $region25: #{vertical_inception_3p_forward.2} parent=23 // pred_check
        %p237 = pneg %p34
      $region26: #{vertical_inception_3p_forward.2} parent=23 // pred_check_branch
        %239 = sbr.rel (%p237) target = $region28
      $region27: #{vertical_inception_3p_forward.2} parent=23 // pred_region
        %p240 = scmp.lt.s32.totalorder %s14, 1
        %s241 = scalar_select %p240, %s14, 1
        %s242 = smul.addr %s241, 12
        %s243 = smul.addr %s242, 4
        %s244 = scalar_lea.vmem %s0, %s243
      $region28: #{vertical_inception_3p_forward.2} parent=23 // pred_fallthru
        _
      // Predicated region
      $region29: #{vertical_inception_3p_forward.2} parent=23 // pred_check
        %p245 = pneg %p60
      $region30: #{vertical_inception_3p_forward.2} parent=23 // pred_check_branch
        %247 = sbr.rel (%p245) target = $region32
      $region31: #{vertical_inception_3p_forward.2} parent=23 // pred_region
        %p248 = scmp.lt.s32.totalorder %s14, 1
        %s249 = scalar_select %p248, %s14, 1
        %s250 = smul.addr %s249, 12
        %s251 = smul.addr %s250, 4
        %s252 = scalar_lea.vmem %s1, %s251
      $region32: #{vertical_inception_3p_forward.2} parent=23 // pred_fallthru
        _
    $region24: #{vertical_inception_3p_forward.2} parent=5 // pred_fallthru
      _
    %p253 = scmp.le.s32.totalorder 1, %s14
    %p254 = scmp.lt.s32.totalorder %s14, 3
    %p255 = pnand %p253, %p254
    %p256 = pneg %p255
    // Predicated region
    $region33: #{vertical_inception_3p_forward.2} parent=5 // pred_check
      _
    $region34: #{vertical_inception_3p_forward.2} parent=5 // pred_check_branch
      %258 = sbr.rel (%p255) target = $region36
    $region35: #{vertical_inception_3p_forward.2} parent=5 // pred_region
      %s259 = ssub.s32 %s14, 1
      %p260 = scmp.lt.s32.totalorder %s19, 1
      %s261 = scalar_select %p260, %s19, 1
      %s262 = smul.addr %s261, 12
      %s263 = smul.addr %s262, 4
      %s264 = scalar_lea.vmem %s0, %s263
      %p265 = pneg %p40
      %p266 = pneg %p37
      %p267 = scmp.lt.s32.totalorder %s19, 1
      %s268 = scalar_select %p267, %s19, 1
      %s269 = smul.addr %s268, 12
      %s270 = smul.addr %s269, 4
      %s271 = scalar_lea.vmem %s1, %s270
      %p272 = pneg %p66
      %p273 = pneg %p63
      %p274 = pneg %p87
      %p275 = pneg %p84
      %p276 = pneg %p108
      %p277 = pneg %p105
      %p278 = pneg %p134
      %p279 = pneg %p131
      %p280 = scmp.lt.s32.totalorder %s19, 1
      %s281 = scalar_select %p280, %s19, 1
      %s282 = smul.addr %s281, 4
      %s283 = smul.addr %s282, 8
      %s284 = scalar_lea.vmem %s4, %s283
      %p285 = pneg %p160
      %p286 = pneg %p157
      %p287 = scmp.lt.s32.totalorder %s19, 1
      %s288 = scalar_select %p287, %s19, 1
      %s289 = smul.addr %s288, 4
      %s290 = smul.addr %s289, 8
      %s291 = scalar_lea.vmem %s5, %s290
      %p292 = pneg %p186
      %p293 = pneg %p183
      %p294 = scmp.lt.s32.totalorder %s19, 1
      %s295 = scalar_select %p294, %s19, 1
      %s296 = smul.addr %s295, 8
      %s297 = scalar_lea.vmem %s6, %s296
      %p298 = pneg %p212
      %p299 = pneg %p209
      %p300 = scmp.lt.s32.totalorder %s19, 1
      %s301 = scalar_select %p300, %s19, 1
      %s302 = smul.addr %s301, 8
      %s303 = scalar_lea.vmem %s7, %s302
      %p304 = scmp.lt.s32.totalorder %s19, 1
      %s305 = scalar_select %p304, %s19, 1
      %s306 = smul.addr %s305, 12
      %s307 = smul.addr %s306, 4
      %s308 = scalar_lea.vmem %s0, %s307
      %p309 = scmp.lt.s32.totalorder %s19, 1
      %s310 = scalar_select %p309, %s19, 1
      %s311 = smul.addr %s310, 12
      %s312 = smul.addr %s311, 4
      %s313 = scalar_lea.vmem %s1, %s312
      %p314 = scmp.lt.s32.totalorder %s19, 1
      %s315 = scalar_select %p314, %s19, 1
      %s316 = smul.addr %s315, 4
      %s317 = smul.addr %s316, 8
      %s318 = scalar_lea.vmem %s4, %s317
      %p319 = scmp.lt.s32.totalorder %s19, 1
      %s320 = scalar_select %p319, %s19, 1
      %s321 = smul.addr %s320, 4
      %s322 = smul.addr %s321, 8
      %s323 = scalar_lea.vmem %s5, %s322
      %p324 = scmp.lt.s32.totalorder %s19, 1
      %s325 = scalar_select %p324, %s19, 1
      %s326 = smul.addr %s325, 8
      %s327 = scalar_lea.vmem %s6, %s326
      %p328 = scmp.lt.s32.totalorder %s19, 1
      %s329 = scalar_select %p328, %s19, 1
      %s330 = smul.addr %s329, 8
      %s331 = scalar_lea.vmem %s7, %s330
      %v332 = vld [vmem:[%s308] sm:$0xff]
      %v333 = vld [vmem:[%s308 + $0x8] sm:$0xff]
      %v336 = vcombine.high %v332, %v332
      %v337 = vcombine.high %v333, %v333
      %340 = vst [vmem:[#allocation2] sm:$0xf] %v332
      %341 = vst [vmem:[#allocation2 + $0x8] sm:$0xf] %v336
      %342 = vst [vmem:[#allocation2 + $0x10] sm:$0xf] %v333
      %343 = vst [vmem:[#allocation2 + $0x18] sm:$0xf] %v337
      %v344 = vld [vmem:[%s313] sm:$0xff]
      %v345 = vld [vmem:[%s313 + $0x8] sm:$0xff]
      %v348 = vcombine.low %v344, %v344
      %v349 = vcombine.low %v345, %v345
      %352 = vst [vmem:[#allocation2] sm:$0xf0] %v348
      %353 = vst [vmem:[#allocation2 + $0x8] sm:$0xf0] %v344
      %354 = vst [vmem:[#allocation2 + $0x10] sm:$0xf0] %v349
      %355 = vst [vmem:[#allocation2 + $0x18] sm:$0xf0] %v345
      %v356 = vld [vmem:[%s308] sm:$0xff]
      %v357 = vld [vmem:[%s308 + $0x8] sm:$0xff]
      %v358 = vld [vmem:[%s308 + $0x10] sm:$0xf]
      %v362 = vcombine.high %v356, %v356
      %v363 = vcombine.high %v357, %v357
      %364 = vrot.lane.b32.xlu0 %v356, 112
      %v365 = vpop.permute.xlu0 %364
      %366 = vrot.lane.b32.xlu0 %v362, 112
      %v367 = vpop.permute.xlu0 %366
      %368 = vrot.lane.b32.xlu0 %v357, 112
      %v369 = vpop.permute.xlu0 %368
      %370 = vrot.lane.b32.xlu0 %v363, 112
      %v371 = vpop.permute.xlu0 %370
      %372 = vrot.lane.b32.xlu0 %v358, 112
      %v373 = vpop.permute.xlu0 %372
      %vm374 = vcmask 916480
      %v375 = vsel %vm374, %v365, %v367
      %v376 = vsel %vm374, %v367, %v369
      %v377 = vsel %vm374, %v369, %v371
      %v378 = vsel %vm374, %v371, %v373
      %383 = vst [vmem:[#allocation2 + $0x20] sm:$0xf] %v375
      %384 = vst [vmem:[#allocation2 + $0x28] sm:$0xf] %v376
      %385 = vst [vmem:[#allocation2 + $0x30] sm:$0xf] %v377
      %386 = vst [vmem:[#allocation2 + $0x38] sm:$0xf] %v378
      %v387 = vld [vmem:[%s313] sm:$0xff]
      %v388 = vld [vmem:[%s313 + $0x8] sm:$0xff]
      %v389 = vld [vmem:[%s313 + $0x10] sm:$0xf]
      %v393 = vcombine.low %v387, %v387
      %v394 = vcombine.low %v388, %v388
      %v395 = vcombine.low %v389, %v389
      %396 = vrot.lane.b32.xlu0 %v393, 112
      %v397 = vpop.permute.xlu0 %396
      %398 = vrot.lane.b32.xlu0 %v387, 112
      %v399 = vpop.permute.xlu0 %398
      %400 = vrot.lane.b32.xlu0 %v394, 112
      %v401 = vpop.permute.xlu0 %400
      %402 = vrot.lane.b32.xlu0 %v388, 112
      %v403 = vpop.permute.xlu0 %402
      %404 = vrot.lane.b32.xlu0 %v395, 112
      %v405 = vpop.permute.xlu0 %404
      %v406 = vsel %vm374, %v397, %v399
      %v407 = vsel %vm374, %v399, %v401
      %v408 = vsel %vm374, %v401, %v403
      %v409 = vsel %vm374, %v403, %v405
      %414 = vst [vmem:[#allocation2 + $0x20] sm:$0xf0] %v406
      %415 = vst [vmem:[#allocation2 + $0x28] sm:$0xf0] %v407
      %416 = vst [vmem:[#allocation2 + $0x30] sm:$0xf0] %v408
      %417 = vst [vmem:[#allocation2 + $0x38] sm:$0xf0] %v409
      %v418 = vld [vmem:[%s308] sm:$0xff]
      %v419 = vld [vmem:[%s308 + $0x8] sm:$0xff]
      %v420 = vld [vmem:[%s308 + $0x10] sm:$0xf]
      %v424 = vcombine.high %v418, %v418
      %v425 = vcombine.high %v419, %v419
      %426 = vrot.lane.b32.xlu0 %v418, 96
      %v427 = vpop.permute.xlu0 %426
      %428 = vrot.lane.b32.xlu0 %v424, 96
      %v429 = vpop.permute.xlu0 %428
      %430 = vrot.lane.b32.xlu0 %v419, 96
      %v431 = vpop.permute.xlu0 %430
      %432 = vrot.lane.b32.xlu0 %v425, 96
      %v433 = vpop.permute.xlu0 %432
      %434 = vrot.lane.b32.xlu0 %v420, 96
      %v435 = vpop.permute.xlu0 %434
      %vm436 = vcmask 785408
      %v437 = vsel %vm436, %v427, %v429
      %v438 = vsel %vm436, %v429, %v431
      %v439 = vsel %vm436, %v431, %v433
      %v440 = vsel %vm436, %v433, %v435
      %445 = vst [vmem:[#allocation2 + $0x40] sm:$0xf] %v437
      %446 = vst [vmem:[#allocation2 + $0x48] sm:$0xf] %v438
      %447 = vst [vmem:[#allocation2 + $0x50] sm:$0xf] %v439
      %448 = vst [vmem:[#allocation2 + $0x58] sm:$0xf] %v440
      %v449 = vld [vmem:[%s313] sm:$0xff]
      %v450 = vld [vmem:[%s313 + $0x8] sm:$0xff]
      %v451 = vld [vmem:[%s313 + $0x10] sm:$0xf]
      %v455 = vcombine.low %v449, %v449
      %v456 = vcombine.low %v450, %v450
      %v457 = vcombine.low %v451, %v451
      %458 = vrot.lane.b32.xlu0 %v455, 96
      %v459 = vpop.permute.xlu0 %458
      %460 = vrot.lane.b32.xlu0 %v449, 96
      %v461 = vpop.permute.xlu0 %460
      %462 = vrot.lane.b32.xlu0 %v456, 96
      %v463 = vpop.permute.xlu0 %462
      %464 = vrot.lane.b32.xlu0 %v450, 96
      %v465 = vpop.permute.xlu0 %464
      %466 = vrot.lane.b32.xlu0 %v457, 96
      %v467 = vpop.permute.xlu0 %466
      %v468 = vsel %vm436, %v459, %v461
      %v469 = vsel %vm436, %v461, %v463
      %v470 = vsel %vm436, %v463, %v465
      %v471 = vsel %vm436, %v465, %v467
      %476 = vst [vmem:[#allocation2 + $0x40] sm:$0xf0] %v468
      %477 = vst [vmem:[#allocation2 + $0x48] sm:$0xf0] %v469
      %478 = vst [vmem:[#allocation2 + $0x50] sm:$0xf0] %v470
      %479 = vst [vmem:[#allocation2 + $0x58] sm:$0xf0] %v471
      %v480 = vld [vmem:[%s308] sm:$0xff]
      %v481 = vld [vmem:[%s308 + $0x8] sm:$0xff]
      %v482 = vld [vmem:[%s308 + $0x10] sm:$0xf]
      %v486 = vcombine.high %v480, %v480
      %v487 = vcombine.high %v481, %v481
      %488 = vrot.lane.b32.xlu0 %v480, 80
      %v489 = vpop.permute.xlu0 %488
      %490 = vrot.lane.b32.xlu0 %v486, 80
      %v491 = vpop.permute.xlu0 %490
      %492 = vrot.lane.b32.xlu0 %v481, 80
      %v493 = vpop.permute.xlu0 %492
      %494 = vrot.lane.b32.xlu0 %v487, 80
      %v495 = vpop.permute.xlu0 %494
      %496 = vrot.lane.b32.xlu0 %v482, 80
      %v497 = vpop.permute.xlu0 %496
      %vm498 = vcmask 654336
      %v499 = vsel %vm498, %v489, %v491
      %v500 = vsel %vm498, %v491, %v493
      %v501 = vsel %vm498, %v493, %v495
      %v502 = vsel %vm498, %v495, %v497
      %507 = vst [vmem:[#allocation2 + $0x60] sm:$0xf] %v499
      %508 = vst [vmem:[#allocation2 + $0x68] sm:$0xf] %v500
      %509 = vst [vmem:[#allocation2 + $0x70] sm:$0xf] %v501
      %510 = vst [vmem:[#allocation2 + $0x78] sm:$0xf] %v502
      %v511 = vld [vmem:[%s313] sm:$0xff]
      %v512 = vld [vmem:[%s313 + $0x8] sm:$0xff]
      %v513 = vld [vmem:[%s313 + $0x10] sm:$0xf]
      %v517 = vcombine.low %v511, %v511
      %v518 = vcombine.low %v512, %v512
      %v519 = vcombine.low %v513, %v513
      %520 = vrot.lane.b32.xlu0 %v517, 80
      %v521 = vpop.permute.xlu0 %520
      %522 = vrot.lane.b32.xlu0 %v511, 80
      %v523 = vpop.permute.xlu0 %522
      %524 = vrot.lane.b32.xlu0 %v518, 80
      %v525 = vpop.permute.xlu0 %524
      %526 = vrot.lane.b32.xlu0 %v512, 80
      %v527 = vpop.permute.xlu0 %526
      %528 = vrot.lane.b32.xlu0 %v519, 80
      %v529 = vpop.permute.xlu0 %528
      %v530 = vsel %vm498, %v521, %v523
      %v531 = vsel %vm498, %v523, %v525
      %v532 = vsel %vm498, %v525, %v527
      %v533 = vsel %vm498, %v527, %v529
      %538 = vst [vmem:[#allocation2 + $0x60] sm:$0xf0] %v530
      %539 = vst [vmem:[#allocation2 + $0x68] sm:$0xf0] %v531
      %540 = vst [vmem:[#allocation2 + $0x70] sm:$0xf0] %v532
      %541 = vst [vmem:[#allocation2 + $0x78] sm:$0xf0] %v533
      %v542 = vld [vmem:[%s308] sm:$0xff]
      %v543 = vld [vmem:[%s308 + $0x8] sm:$0xff]
      %v544 = vld [vmem:[%s308 + $0x10] sm:$0xf]
      %v548 = vcombine.high %v542, %v542
      %v549 = vcombine.high %v543, %v543
      %550 = vrot.lane.b32.xlu0 %v542, 64
      %v551 = vpop.permute.xlu0 %550
      %552 = vrot.lane.b32.xlu0 %v548, 64
      %v553 = vpop.permute.xlu0 %552
      %554 = vrot.lane.b32.xlu0 %v543, 64
      %v555 = vpop.permute.xlu0 %554
      %556 = vrot.lane.b32.xlu0 %v549, 64
      %v557 = vpop.permute.xlu0 %556
      %558 = vrot.lane.b32.xlu0 %v544, 64
      %v559 = vpop.permute.xlu0 %558
      %vm560 = vcmask 523264
      %v561 = vsel %vm560, %v551, %v553
      %v562 = vsel %vm560, %v553, %v555
      %v563 = vsel %vm560, %v555, %v557
      %v564 = vsel %vm560, %v557, %v559
      %569 = vst [vmem:[#allocation2 + $0x80] sm:$0xf] %v561
      %570 = vst [vmem:[#allocation2 + $0x88] sm:$0xf] %v562
      %571 = vst [vmem:[#allocation2 + $0x90] sm:$0xf] %v563
      %572 = vst [vmem:[#allocation2 + $0x98] sm:$0xf] %v564
      %v573 = vld [vmem:[%s313] sm:$0xff]
      %v574 = vld [vmem:[%s313 + $0x8] sm:$0xff]
      %v575 = vld [vmem:[%s313 + $0x10] sm:$0xf]
      %v579 = vcombine.low %v573, %v573
      %v580 = vcombine.low %v574, %v574
      %v581 = vcombine.low %v575, %v575
      %582 = vrot.lane.b32.xlu0 %v579, 64
      %v583 = vpop.permute.xlu0 %582
      %584 = vrot.lane.b32.xlu0 %v573, 64
      %v585 = vpop.permute.xlu0 %584
      %586 = vrot.lane.b32.xlu0 %v580, 64
      %v587 = vpop.permute.xlu0 %586
      %588 = vrot.lane.b32.xlu0 %v574, 64
      %v589 = vpop.permute.xlu0 %588
      %590 = vrot.lane.b32.xlu0 %v581, 64
      %v591 = vpop.permute.xlu0 %590
      %v592 = vsel %vm560, %v583, %v585
      %v593 = vsel %vm560, %v585, %v587
      %v594 = vsel %vm560, %v587, %v589
      %v595 = vsel %vm560, %v589, %v591
      %600 = vst [vmem:[#allocation2 + $0x80] sm:$0xf0] %v592
      %601 = vst [vmem:[#allocation2 + $0x88] sm:$0xf0] %v593
      %602 = vst [vmem:[#allocation2 + $0x90] sm:$0xf0] %v594
      %603 = vst [vmem:[#allocation2 + $0x98] sm:$0xf0] %v595
      %v604 = vld [vmem:[%s308] sm:$0xff]
      %v605 = vld [vmem:[%s308 + $0x8] sm:$0xff]
      %v606 = vld [vmem:[%s308 + $0x10] sm:$0xf]
      %v610 = vcombine.high %v604, %v604
      %v611 = vcombine.high %v605, %v605
      %612 = vrot.lane.b32.xlu0 %v604, 48
      %v613 = vpop.permute.xlu0 %612
      %614 = vrot.lane.b32.xlu0 %v610, 48
      %v615 = vpop.permute.xlu0 %614
      %616 = vrot.lane.b32.xlu0 %v605, 48
      %v617 = vpop.permute.xlu0 %616
      %618 = vrot.lane.b32.xlu0 %v611, 48
      %v619 = vpop.permute.xlu0 %618
      %620 = vrot.lane.b32.xlu0 %v606, 48
      %v621 = vpop.permute.xlu0 %620
      %vm622 = vcmask 392192
      %v623 = vsel %vm622, %v613, %v615
      %v624 = vsel %vm622, %v615, %v617
      %v625 = vsel %vm622, %v617, %v619
      %v626 = vsel %vm622, %v619, %v621
      %631 = vst [vmem:[#allocation2 + $0xa0] sm:$0xf] %v623
      %632 = vst [vmem:[#allocation2 + $0xa8] sm:$0xf] %v624
      %633 = vst [vmem:[#allocation2 + $0xb0] sm:$0xf] %v625
      %634 = vst [vmem:[#allocation2 + $0xb8] sm:$0xf] %v626
      %v635 = vld [vmem:[%s313] sm:$0xff]
      %v636 = vld [vmem:[%s313 + $0x8] sm:$0xff]
      %v637 = vld [vmem:[%s313 + $0x10] sm:$0xf]
      %v641 = vcombine.low %v635, %v635
      %v642 = vcombine.low %v636, %v636
      %v643 = vcombine.low %v637, %v637
      %644 = vrot.lane.b32.xlu0 %v641, 48
      %v645 = vpop.permute.xlu0 %644
      %646 = vrot.lane.b32.xlu0 %v635, 48
      %v647 = vpop.permute.xlu0 %646
      %648 = vrot.lane.b32.xlu0 %v642, 48
      %v649 = vpop.permute.xlu0 %648
      %650 = vrot.lane.b32.xlu0 %v636, 48
      %v651 = vpop.permute.xlu0 %650
      %652 = vrot.lane.b32.xlu0 %v643, 48
      %v653 = vpop.permute.xlu0 %652
      %v654 = vsel %vm622, %v645, %v647
      %v655 = vsel %vm622, %v647, %v649
      %v656 = vsel %vm622, %v649, %v651
      %v657 = vsel %vm622, %v651, %v653
      %662 = vst [vmem:[#allocation2 + $0xa0] sm:$0xf0] %v654
      %663 = vst [vmem:[#allocation2 + $0xa8] sm:$0xf0] %v655
      %664 = vst [vmem:[#allocation2 + $0xb0] sm:$0xf0] %v656
      %665 = vst [vmem:[#allocation2 + $0xb8] sm:$0xf0] %v657
      %v666 = vld [vmem:[%s308] sm:$0xff]
      %v667 = vld [vmem:[%s308 + $0x8] sm:$0xff]
      %v668 = vld [vmem:[%s308 + $0x10] sm:$0xf]
      %v672 = vcombine.high %v666, %v666
      %v673 = vcombine.high %v667, %v667
      %674 = vrot.lane.b32.xlu0 %v666, 32
      %v675 = vpop.permute.xlu0 %674
      %676 = vrot.lane.b32.xlu0 %v672, 32
      %v677 = vpop.permute.xlu0 %676
      %678 = vrot.lane.b32.xlu0 %v667, 32
      %v679 = vpop.permute.xlu0 %678
      %680 = vrot.lane.b32.xlu0 %v673, 32
      %v681 = vpop.permute.xlu0 %680
      %682 = vrot.lane.b32.xlu0 %v668, 32
      %v683 = vpop.permute.xlu0 %682
      %vm684 = vcmask 261120
      %v685 = vsel %vm684, %v675, %v677
      %v686 = vsel %vm684, %v677, %v679
      %v687 = vsel %vm684, %v679, %v681
      %v688 = vsel %vm684, %v681, %v683
      %693 = vst [vmem:[#allocation2 + $0xc0] sm:$0xf] %v685
      %694 = vst [vmem:[#allocation2 + $0xc8] sm:$0xf] %v686
      %695 = vst [vmem:[#allocation2 + $0xd0] sm:$0xf] %v687
      %696 = vst [vmem:[#allocation2 + $0xd8] sm:$0xf] %v688
      %v697 = vld [vmem:[%s313] sm:$0xff]
      %v698 = vld [vmem:[%s313 + $0x8] sm:$0xff]
      %v699 = vld [vmem:[%s313 + $0x10] sm:$0xf]
      %v703 = vcombine.low %v697, %v697
      %v704 = vcombine.low %v698, %v698
      %v705 = vcombine.low %v699, %v699
      %706 = vrot.lane.b32.xlu0 %v703, 32
      %v707 = vpop.permute.xlu0 %706
      %708 = vrot.lane.b32.xlu0 %v697, 32
      %v709 = vpop.permute.xlu0 %708
      %710 = vrot.lane.b32.xlu0 %v704, 32
      %v711 = vpop.permute.xlu0 %710
      %712 = vrot.lane.b32.xlu0 %v698, 32
      %v713 = vpop.permute.xlu0 %712
      %714 = vrot.lane.b32.xlu0 %v705, 32
      %v715 = vpop.permute.xlu0 %714
      %v716 = vsel %vm684, %v707, %v709
      %v717 = vsel %vm684, %v709, %v711
      %v718 = vsel %vm684, %v711, %v713
      %v719 = vsel %vm684, %v713, %v715
      %724 = vst [vmem:[#allocation2 + $0xc0] sm:$0xf0] %v716
      %725 = vst [vmem:[#allocation2 + $0xc8] sm:$0xf0] %v717
      %726 = vst [vmem:[#allocation2 + $0xd0] sm:$0xf0] %v718
      %727 = vst [vmem:[#allocation2 + $0xd8] sm:$0xf0] %v719
      %v728 = vld [vmem:[%s308] sm:$0xff]
      %v729 = vld [vmem:[%s308 + $0x8] sm:$0xff]
      %v730 = vld [vmem:[%s308 + $0x10] sm:$0xf]
      %v734 = vcombine.high %v728, %v728
      %v735 = vcombine.high %v729, %v729
      %736 = vrot.lane.b32.xlu0 %v728, 16
      %v737 = vpop.permute.xlu0 %736
      %738 = vrot.lane.b32.xlu0 %v734, 16
      %v739 = vpop.permute.xlu0 %738
      %740 = vrot.lane.b32.xlu0 %v729, 16
      %v741 = vpop.permute.xlu0 %740
      %742 = vrot.lane.b32.xlu0 %v735, 16
      %v743 = vpop.permute.xlu0 %742
      %744 = vrot.lane.b32.xlu0 %v730, 16
      %v745 = vpop.permute.xlu0 %744
      %vm746 = vcmask 130048
      %v747 = vsel %vm746, %v737, %v739
      %v748 = vsel %vm746, %v739, %v741
      %v749 = vsel %vm746, %v741, %v743
      %v750 = vsel %vm746, %v743, %v745
      %755 = vst [vmem:[#allocation2 + $0xe0] sm:$0xf] %v747
      %756 = vst [vmem:[#allocation2 + $0xe8] sm:$0xf] %v748
      %757 = vst [vmem:[#allocation2 + $0xf0] sm:$0xf] %v749
      %758 = vst [vmem:[#allocation2 + $0xf8] sm:$0xf] %v750
      %v759 = vld [vmem:[%s313] sm:$0xff]
      %v760 = vld [vmem:[%s313 + $0x8] sm:$0xff]
      %v761 = vld [vmem:[%s313 + $0x10] sm:$0xf]
      %v765 = vcombine.low %v759, %v759
      %v766 = vcombine.low %v760, %v760
      %v767 = vcombine.low %v761, %v761
      %768 = vrot.lane.b32.xlu0 %v765, 16
      %v769 = vpop.permute.xlu0 %768
      %770 = vrot.lane.b32.xlu0 %v759, 16
      %v771 = vpop.permute.xlu0 %770
      %772 = vrot.lane.b32.xlu0 %v766, 16
      %v773 = vpop.permute.xlu0 %772
      %774 = vrot.lane.b32.xlu0 %v760, 16
      %v775 = vpop.permute.xlu0 %774
      %776 = vrot.lane.b32.xlu0 %v767, 16
      %v777 = vpop.permute.xlu0 %776
      %v778 = vsel %vm746, %v769, %v771
      %v779 = vsel %vm746, %v771, %v773
      %v780 = vsel %vm746, %v773, %v775
      %v781 = vsel %vm746, %v775, %v777
      %786 = vst [vmem:[#allocation2 + $0xe0] sm:$0xf0] %v778
      %787 = vst [vmem:[#allocation2 + $0xe8] sm:$0xf0] %v779
      %788 = vst [vmem:[#allocation2 + $0xf0] sm:$0xf0] %v780
      %789 = vst [vmem:[#allocation2 + $0xf8] sm:$0xf0] %v781
      %v790 = vld [vmem:[%s308 + $0x4] sm:$0xff]
      %v791 = vld [vmem:[%s308 + $0xc] sm:$0xff]
      %v794 = vcombine.high %v790, %v790
      %v795 = vcombine.high %v791, %v791
      %798 = vst [vmem:[#allocation2 + $0x100] sm:$0xf] %v790
      %799 = vst [vmem:[#allocation2 + $0x108] sm:$0xf] %v794
      %800 = vst [vmem:[#allocation2 + $0x110] sm:$0xf] %v791
      %801 = vst [vmem:[#allocation2 + $0x118] sm:$0xf] %v795
      %v802 = vld [vmem:[%s313 + $0x4] sm:$0xff]
      %v803 = vld [vmem:[%s313 + $0xc] sm:$0xff]
      %v806 = vcombine.low %v802, %v802
      %v807 = vcombine.low %v803, %v803
      %810 = vst [vmem:[#allocation2 + $0x100] sm:$0xf0] %v806
      %811 = vst [vmem:[#allocation2 + $0x108] sm:$0xf0] %v802
      %812 = vst [vmem:[#allocation2 + $0x110] sm:$0xf0] %v807
      %813 = vst [vmem:[#allocation2 + $0x118] sm:$0xf0] %v803
      %v814 = vld [vmem:[%s308 + $0x4] sm:$0xff]
      %v815 = vld [vmem:[%s308 + $0xc] sm:$0xff]
      %v816 = vld [vmem:[%s308 + $0x14] sm:$0xf]
      %v820 = vcombine.high %v814, %v814
      %v821 = vcombine.high %v815, %v815
      %822 = vrot.lane.b32.xlu0 %v814, 112
      %v823 = vpop.permute.xlu0 %822
      %824 = vrot.lane.b32.xlu0 %v820, 112
      %v825 = vpop.permute.xlu0 %824
      %826 = vrot.lane.b32.xlu0 %v815, 112
      %v827 = vpop.permute.xlu0 %826
      %828 = vrot.lane.b32.xlu0 %v821, 112
      %v829 = vpop.permute.xlu0 %828
      %830 = vrot.lane.b32.xlu0 %v816, 112
      %v831 = vpop.permute.xlu0 %830
      %v832 = vsel %vm374, %v823, %v825
      %v833 = vsel %vm374, %v825, %v827
      %v834 = vsel %vm374, %v827, %v829
      %v835 = vsel %vm374, %v829, %v831
      %840 = vst [vmem:[#allocation2 + $0x120] sm:$0xf] %v832
      %841 = vst [vmem:[#allocation2 + $0x128] sm:$0xf] %v833
      %842 = vst [vmem:[#allocation2 + $0x130] sm:$0xf] %v834
      %843 = vst [vmem:[#allocation2 + $0x138] sm:$0xf] %v835
      %v844 = vld [vmem:[%s313 + $0x4] sm:$0xff]
      %v845 = vld [vmem:[%s313 + $0xc] sm:$0xff]
      %v846 = vld [vmem:[%s313 + $0x14] sm:$0xf]
      %v850 = vcombine.low %v844, %v844
      %v851 = vcombine.low %v845, %v845
      %v852 = vcombine.low %v846, %v846
      %853 = vrot.lane.b32.xlu0 %v850, 112
      %v854 = vpop.permute.xlu0 %853
      %855 = vrot.lane.b32.xlu0 %v844, 112
      %v856 = vpop.permute.xlu0 %855
      %857 = vrot.lane.b32.xlu0 %v851, 112
      %v858 = vpop.permute.xlu0 %857
      %859 = vrot.lane.b32.xlu0 %v845, 112
      %v860 = vpop.permute.xlu0 %859
      %861 = vrot.lane.b32.xlu0 %v852, 112
      %v862 = vpop.permute.xlu0 %861
      %v863 = vsel %vm374, %v854, %v856
      %v864 = vsel %vm374, %v856, %v858
      %v865 = vsel %vm374, %v858, %v860
      %v866 = vsel %vm374, %v860, %v862
      %871 = vst [vmem:[#allocation2 + $0x120] sm:$0xf0] %v863
      %872 = vst [vmem:[#allocation2 + $0x128] sm:$0xf0] %v864
      %873 = vst [vmem:[#allocation2 + $0x130] sm:$0xf0] %v865
      %874 = vst [vmem:[#allocation2 + $0x138] sm:$0xf0] %v866
      %v875 = vld [vmem:[%s308 + $0x4] sm:$0xff]
      %v876 = vld [vmem:[%s308 + $0xc] sm:$0xff]
      %v877 = vld [vmem:[%s308 + $0x14] sm:$0xf]
      %v881 = vcombine.high %v875, %v875
      %v882 = vcombine.high %v876, %v876
      %883 = vrot.lane.b32.xlu0 %v875, 96
      %v884 = vpop.permute.xlu0 %883
      %885 = vrot.lane.b32.xlu0 %v881, 96
      %v886 = vpop.permute.xlu0 %885
      %887 = vrot.lane.b32.xlu0 %v876, 96
      %v888 = vpop.permute.xlu0 %887
      %889 = vrot.lane.b32.xlu0 %v882, 96
      %v890 = vpop.permute.xlu0 %889
      %891 = vrot.lane.b32.xlu0 %v877, 96
      %v892 = vpop.permute.xlu0 %891
      %v893 = vsel %vm436, %v884, %v886
      %v894 = vsel %vm436, %v886, %v888
      %v895 = vsel %vm436, %v888, %v890
      %v896 = vsel %vm436, %v890, %v892
      %901 = vst [vmem:[#allocation2 + $0x140] sm:$0xf] %v893
      %902 = vst [vmem:[#allocation2 + $0x148] sm:$0xf] %v894
      %903 = vst [vmem:[#allocation2 + $0x150] sm:$0xf] %v895
      %904 = vst [vmem:[#allocation2 + $0x158] sm:$0xf] %v896
      %v905 = vld [vmem:[%s313 + $0x4] sm:$0xff]
      %v906 = vld [vmem:[%s313 + $0xc] sm:$0xff]
      %v907 = vld [vmem:[%s313 + $0x14] sm:$0xf]
      %v911 = vcombine.low %v905, %v905
      %v912 = vcombine.low %v906, %v906
      %v913 = vcombine.low %v907, %v907
      %914 = vrot.lane.b32.xlu0 %v911, 96
      %v915 = vpop.permute.xlu0 %914
      %916 = vrot.lane.b32.xlu0 %v905, 96
      %v917 = vpop.permute.xlu0 %916
      %918 = vrot.lane.b32.xlu0 %v912, 96
      %v919 = vpop.permute.xlu0 %918
      %920 = vrot.lane.b32.xlu0 %v906, 96
      %v921 = vpop.permute.xlu0 %920
      %922 = vrot.lane.b32.xlu0 %v913, 96
      %v923 = vpop.permute.xlu0 %922
      %v924 = vsel %vm436, %v915, %v917
      %v925 = vsel %vm436, %v917, %v919
      %v926 = vsel %vm436, %v919, %v921
      %v927 = vsel %vm436, %v921, %v923
      %932 = vst [vmem:[#allocation2 + $0x140] sm:$0xf0] %v924
      %933 = vst [vmem:[#allocation2 + $0x148] sm:$0xf0] %v925
      %934 = vst [vmem:[#allocation2 + $0x150] sm:$0xf0] %v926
      %935 = vst [vmem:[#allocation2 + $0x158] sm:$0xf0] %v927
      %v936 = vld [vmem:[%s308 + $0x4] sm:$0xff]
      %v937 = vld [vmem:[%s308 + $0xc] sm:$0xff]
      %v938 = vld [vmem:[%s308 + $0x14] sm:$0xf]
      %v942 = vcombine.high %v936, %v936
      %v943 = vcombine.high %v937, %v937
      %944 = vrot.lane.b32.xlu0 %v936, 80
      %v945 = vpop.permute.xlu0 %944
      %946 = vrot.lane.b32.xlu0 %v942, 80
      %v947 = vpop.permute.xlu0 %946
      %948 = vrot.lane.b32.xlu0 %v937, 80
      %v949 = vpop.permute.xlu0 %948
      %950 = vrot.lane.b32.xlu0 %v943, 80
      %v951 = vpop.permute.xlu0 %950
      %952 = vrot.lane.b32.xlu0 %v938, 80
      %v953 = vpop.permute.xlu0 %952
      %v954 = vsel %vm498, %v945, %v947
      %v955 = vsel %vm498, %v947, %v949
      %v956 = vsel %vm498, %v949, %v951
      %v957 = vsel %vm498, %v951, %v953
      %962 = vst [vmem:[#allocation2 + $0x160] sm:$0xf] %v954
      %963 = vst [vmem:[#allocation2 + $0x168] sm:$0xf] %v955
      %964 = vst [vmem:[#allocation2 + $0x170] sm:$0xf] %v956
      %965 = vst [vmem:[#allocation2 + $0x178] sm:$0xf] %v957
      %v966 = vld [vmem:[%s313 + $0x4] sm:$0xff]
      %v967 = vld [vmem:[%s313 + $0xc] sm:$0xff]
      %v968 = vld [vmem:[%s313 + $0x14] sm:$0xf]
      %v972 = vcombine.low %v966, %v966
      %v973 = vcombine.low %v967, %v967
      %v974 = vcombine.low %v968, %v968
      %975 = vrot.lane.b32.xlu0 %v972, 80
      %v976 = vpop.permute.xlu0 %975
      %977 = vrot.lane.b32.xlu0 %v966, 80
      %v978 = vpop.permute.xlu0 %977
      %979 = vrot.lane.b32.xlu0 %v973, 80
      %v980 = vpop.permute.xlu0 %979
      %981 = vrot.lane.b32.xlu0 %v967, 80
      %v982 = vpop.permute.xlu0 %981
      %983 = vrot.lane.b32.xlu0 %v974, 80
      %v984 = vpop.permute.xlu0 %983
      %v985 = vsel %vm498, %v976, %v978
      %v986 = vsel %vm498, %v978, %v980
      %v987 = vsel %vm498, %v980, %v982
      %v988 = vsel %vm498, %v982, %v984
      %993 = vst [vmem:[#allocation2 + $0x160] sm:$0xf0] %v985
      %994 = vst [vmem:[#allocation2 + $0x168] sm:$0xf0] %v986
      %995 = vst [vmem:[#allocation2 + $0x170] sm:$0xf0] %v987
      %996 = vst [vmem:[#allocation2 + $0x178] sm:$0xf0] %v988
      %v997 = vld [vmem:[%s308 + $0x4] sm:$0xff]
      %v998 = vld [vmem:[%s308 + $0xc] sm:$0xff]
      %v999 = vld [vmem:[%s308 + $0x14] sm:$0xf]
      %v1003 = vcombine.high %v997, %v997
      %v1004 = vcombine.high %v998, %v998
      %1005 = vrot.lane.b32.xlu0 %v997, 64
      %v1006 = vpop.permute.xlu0 %1005
      %1007 = vrot.lane.b32.xlu0 %v1003, 64
      %v1008 = vpop.permute.xlu0 %1007
      %1009 = vrot.lane.b32.xlu0 %v998, 64
      %v1010 = vpop.permute.xlu0 %1009
      %1011 = vrot.lane.b32.xlu0 %v1004, 64
      %v1012 = vpop.permute.xlu0 %1011
      %1013 = vrot.lane.b32.xlu0 %v999, 64
      %v1014 = vpop.permute.xlu0 %1013
      %v1015 = vsel %vm560, %v1006, %v1008
      %v1016 = vsel %vm560, %v1008, %v1010
      %v1017 = vsel %vm560, %v1010, %v1012
      %v1018 = vsel %vm560, %v1012, %v1014
      %1023 = vst [vmem:[#allocation2 + $0x180] sm:$0xf] %v1015
      %1024 = vst [vmem:[#allocation2 + $0x188] sm:$0xf] %v1016
      %1025 = vst [vmem:[#allocation2 + $0x190] sm:$0xf] %v1017
      %1026 = vst [vmem:[#allocation2 + $0x198] sm:$0xf] %v1018
      %v1027 = vld [vmem:[%s2] sm:$0xff]
      %v1028 = vld [vmem:[%s2 + $0x8] sm:$0xff]
      %v1029 = vld [vmem:[%s2 + $0x10] sm:$0xff]
      %v1030 = vld [vmem:[%s2 + $0x18] sm:$0xff]
      %v1031 = vld [vmem:[#allocation2] sm:$0xff]
      %v1032 = vld [vmem:[#allocation2 + $0x8] sm:$0xff]
      %v1033 = vld [vmem:[#allocation2 + $0x10] sm:$0xff]
      %v1034 = vld [vmem:[#allocation2 + $0x18] sm:$0xff]
      %v1035 = vld [vmem:[#allocation2 + $0x20] sm:$0xff]
      %v1036 = vld [vmem:[#allocation2 + $0x28] sm:$0xff]
      %v1037 = vld [vmem:[#allocation2 + $0x30] sm:$0xff]
      %v1038 = vld [vmem:[#allocation2 + $0x38] sm:$0xff]
      %v1039 = vld [vmem:[#allocation2 + $0x40] sm:$0xff]
      %v1040 = vld [vmem:[#allocation2 + $0x48] sm:$0xff]
      %v1041 = vld [vmem:[#allocation2 + $0x50] sm:$0xff]
      %v1042 = vld [vmem:[#allocation2 + $0x58] sm:$0xff]
      %v1043 = vld [vmem:[#allocation2 + $0x60] sm:$0xff]
      %v1044 = vld [vmem:[#allocation2 + $0x68] sm:$0xff]
      %v1045 = vld [vmem:[#allocation2 + $0x70] sm:$0xff]
      %v1046 = vld [vmem:[#allocation2 + $0x78] sm:$0xff]
      %v1047 = vld [vmem:[#allocation2 + $0x80] sm:$0xff]
      %v1048 = vld [vmem:[#allocation2 + $0x88] sm:$0xff]
      %v1049 = vld [vmem:[#allocation2 + $0x90] sm:$0xff]
      %v1050 = vld [vmem:[#allocation2 + $0x98] sm:$0xff]
      %v1051 = vld [vmem:[#allocation2 + $0xa0] sm:$0xff]
      %v1052 = vld [vmem:[#allocation2 + $0xa8] sm:$0xff]
      %v1053 = vld [vmem:[#allocation2 + $0xb0] sm:$0xff]
      %v1054 = vld [vmem:[#allocation2 + $0xb8] sm:$0xff]
      %v1055 = vld [vmem:[#allocation2 + $0xc0] sm:$0xff]
      %v1056 = vld [vmem:[#allocation2 + $0xc8] sm:$0xff]
      %v1057 = vld [vmem:[#allocation2 + $0xd0] sm:$0xff]
      %v1058 = vld [vmem:[#allocation2 + $0xd8] sm:$0xff]
      %v1059 = vld [vmem:[#allocation2 + $0xe0] sm:$0xff]
      %v1060 = vld [vmem:[#allocation2 + $0xe8] sm:$0xff]
      %v1061 = vld [vmem:[#allocation2 + $0xf0] sm:$0xff]
      %v1062 = vld [vmem:[#allocation2 + $0xf8] sm:$0xff]
      %v1063 = vld [vmem:[#allocation2 + $0x100] sm:$0xff]
      %v1064 = vld [vmem:[#allocation2 + $0x108] sm:$0xff]
      %v1065 = vld [vmem:[#allocation2 + $0x110] sm:$0xff]
      %v1066 = vld [vmem:[#allocation2 + $0x118] sm:$0xff]
      %v1067 = vld [vmem:[#allocation2 + $0x120] sm:$0xff]
      %v1068 = vld [vmem:[#allocation2 + $0x128] sm:$0xff]
      %v1069 = vld [vmem:[#allocation2 + $0x130] sm:$0xff]
      %v1070 = vld [vmem:[#allocation2 + $0x138] sm:$0xff]
      %v1071 = vld [vmem:[#allocation2 + $0x140] sm:$0xff]
      %v1072 = vld [vmem:[#allocation2 + $0x148] sm:$0xff]
      %v1073 = vld [vmem:[#allocation2 + $0x150] sm:$0xff]
      %v1074 = vld [vmem:[#allocation2 + $0x158] sm:$0xff]
      %v1075 = vld [vmem:[#allocation2 + $0x160] sm:$0xff]
      %v1076 = vld [vmem:[#allocation2 + $0x168] sm:$0xff]
      %v1077 = vld [vmem:[#allocation2 + $0x170] sm:$0xff]
      %v1078 = vld [vmem:[#allocation2 + $0x178] sm:$0xff]
      %v1079 = vld [vmem:[#allocation2 + $0x180] sm:$0xf]
      %v1080 = vld [vmem:[#allocation2 + $0x188] sm:$0xf]
      %v1081 = vld [vmem:[#allocation2 + $0x190] sm:$0xf]
      %v1082 = vld [vmem:[#allocation2 + $0x198] sm:$0xf]
      %v1083 = vld [vmem:[%s313 + $0x4] sm:$0xff]
      %v1084 = vld [vmem:[%s313 + $0xc] sm:$0xff]
      %v1085 = vld [vmem:[%s313 + $0x14] sm:$0xf]
      %v1089 = vcombine.high %v1083, %v1083
      %v1090 = vcombine.high %v1084, %v1084
      %1091 = vrot.lane.b32.xlu0 %v1083, 64
      %v1092 = vpop.permute.xlu0 %1091
      %1093 = vrot.lane.b32.xlu0 %v1089, 64
      %v1094 = vpop.permute.xlu0 %1093
      %1095 = vrot.lane.b32.xlu0 %v1084, 64
      %v1096 = vpop.permute.xlu0 %1095
      %1097 = vrot.lane.b32.xlu0 %v1090, 64
      %v1098 = vpop.permute.xlu0 %1097
      %1099 = vrot.lane.b32.xlu0 %v1085, 64
      %v1100 = vpop.permute.xlu0 %1099
      %v1101 = vsel %vm560, %v1092, %v1094
      %v1102 = vsel %vm560, %v1094, %v1096
      %v1103 = vsel %vm560, %v1096, %v1098
      %v1104 = vsel %vm560, %v1098, %v1100
      %1109 = vst [vmem:[#allocation2] sm:$0xf] %v1101
      %1110 = vst [vmem:[#allocation2 + $0x8] sm:$0xf] %v1102
      %1111 = vst [vmem:[#allocation2 + $0x10] sm:$0xf] %v1103
      %1112 = vst [vmem:[#allocation2 + $0x18] sm:$0xf] %v1104
      %v1113 = vld [vmem:[%s308 + $0x4] sm:$0xff]
      %v1114 = vld [vmem:[%s308 + $0xc] sm:$0xff]
      %v1115 = vld [vmem:[%s308 + $0x14] sm:$0xf]
      %v1119 = vcombine.low %v1113, %v1113
      %v1120 = vcombine.low %v1114, %v1114
      %v1121 = vcombine.low %v1115, %v1115
      %1122 = vrot.lane.b32.xlu0 %v1119, 48
      %v1123 = vpop.permute.xlu0 %1122
      %1124 = vrot.lane.b32.xlu0 %v1113, 48
      %v1125 = vpop.permute.xlu0 %1124
      %1126 = vrot.lane.b32.xlu0 %v1120, 48
      %v1127 = vpop.permute.xlu0 %1126
      %1128 = vrot.lane.b32.xlu0 %v1114, 48
      %v1129 = vpop.permute.xlu0 %1128
      %1130 = vrot.lane.b32.xlu0 %v1121, 48
      %v1131 = vpop.permute.xlu0 %1130
      %v1132 = vsel %vm622, %v1123, %v1125
      %v1133 = vsel %vm622, %v1125, %v1127
      %v1134 = vsel %vm622, %v1127, %v1129
      %v1135 = vsel %vm622, %v1129, %v1131
      %1140 = vst [vmem:[#allocation2] sm:$0xf0] %v1132
      %1141 = vst [vmem:[#allocation2 + $0x8] sm:$0xf0] %v1133
      %1142 = vst [vmem:[#allocation2 + $0x10] sm:$0xf0] %v1134
      %1143 = vst [vmem:[#allocation2 + $0x18] sm:$0xf0] %v1135
      %v1144 = vld [vmem:[%s313 + $0x4] sm:$0xff]
      %v1145 = vld [vmem:[%s313 + $0xc] sm:$0xff]
      %v1146 = vld [vmem:[%s313 + $0x14] sm:$0xf]
      %v1150 = vcombine.high %v1144, %v1144
      %v1151 = vcombine.high %v1145, %v1145
      %1152 = vrot.lane.b32.xlu0 %v1144, 48
      %v1153 = vpop.permute.xlu0 %1152
      %1154 = vrot.lane.b32.xlu0 %v1150, 48
      %v1155 = vpop.permute.xlu0 %1154
      %1156 = vrot.lane.b32.xlu0 %v1145, 48
      %v1157 = vpop.permute.xlu0 %1156
      %1158 = vrot.lane.b32.xlu0 %v1151, 48
      %v1159 = vpop.permute.xlu0 %1158
      %1160 = vrot.lane.b32.xlu0 %v1146, 48
      %v1161 = vpop.permute.xlu0 %1160
      %v1162 = vsel %vm622, %v1153, %v1155
      %v1163 = vsel %vm622, %v1155, %v1157
      %v1164 = vsel %vm622, %v1157, %v1159
      %v1165 = vsel %vm622, %v1159, %v1161
      %1170 = vst [vmem:[#allocation2 + $0x20] sm:$0xf] %v1162
      %1171 = vst [vmem:[#allocation2 + $0x28] sm:$0xf] %v1163
      %1172 = vst [vmem:[#allocation2 + $0x30] sm:$0xf] %v1164
      %1173 = vst [vmem:[#allocation2 + $0x38] sm:$0xf] %v1165
      %v1174 = vld [vmem:[%s308 + $0x4] sm:$0xff]
      %v1175 = vld [vmem:[%s308 + $0xc] sm:$0xff]
      %v1176 = vld [vmem:[%s308 + $0x14] sm:$0xf]
      %v1180 = vcombine.low %v1174, %v1174
      %v1181 = vcombine.low %v1175, %v1175
      %v1182 = vcombine.low %v1176, %v1176
      %1183 = vrot.lane.b32.xlu0 %v1180, 32
      %v1184 = vpop.permute.xlu0 %1183
      %1185 = vrot.lane.b32.xlu0 %v1174, 32
      %v1186 = vpop.permute.xlu0 %1185
      %1187 = vrot.lane.b32.xlu0 %v1181, 32
      %v1188 = vpop.permute.xlu0 %1187
      %1189 = vrot.lane.b32.xlu0 %v1175, 32
      %v1190 = vpop.permute.xlu0 %1189
      %1191 = vrot.lane.b32.xlu0 %v1182, 32
      %v1192 = vpop.permute.xlu0 %1191
      %v1193 = vsel %vm684, %v1184, %v1186
      %v1194 = vsel %vm684, %v1186, %v1188
      %v1195 = vsel %vm684, %v1188, %v1190
      %v1196 = vsel %vm684, %v1190, %v1192
      %1201 = vst [vmem:[#allocation2 + $0x20] sm:$0xf0] %v1193
      %1202 = vst [vmem:[#allocation2 + $0x28] sm:$0xf0] %v1194
      %1203 = vst [vmem:[#allocation2 + $0x30] sm:$0xf0] %v1195
      %1204 = vst [vmem:[#allocation2 + $0x38] sm:$0xf0] %v1196
      %v1205 = vld [vmem:[%s313 + $0x4] sm:$0xff]
      %v1206 = vld [vmem:[%s313 + $0xc] sm:$0xff]
      %v1207 = vld [vmem:[%s313 + $0x14] sm:$0xf]
      %v1211 = vcombine.high %v1205, %v1205
      %v1212 = vcombine.high %v1206, %v1206
      %1213 = vrot.lane.b32.xlu0 %v1205, 32
      %v1214 = vpop.permute.xlu0 %1213
      %1215 = vrot.lane.b32.xlu0 %v1211, 32
      %v1216 = vpop.permute.xlu0 %1215
      %1217 = vrot.lane.b32.xlu0 %v1206, 32
      %v1218 = vpop.permute.xlu0 %1217
      %1219 = vrot.lane.b32.xlu0 %v1212, 32
      %v1220 = vpop.permute.xlu0 %1219
      %1221 = vrot.lane.b32.xlu0 %v1207, 32
      %v1222 = vpop.permute.xlu0 %1221
      %v1223 = vsel %vm684, %v1214, %v1216
      %v1224 = vsel %vm684, %v1216, %v1218
      %v1225 = vsel %vm684, %v1218, %v1220
      %v1226 = vsel %vm684, %v1220, %v1222
      %1231 = vst [vmem:[#allocation2 + $0x40] sm:$0xf] %v1223
      %1232 = vst [vmem:[#allocation2 + $0x48] sm:$0xf] %v1224
      %1233 = vst [vmem:[#allocation2 + $0x50] sm:$0xf] %v1225
      %1234 = vst [vmem:[#allocation2 + $0x58] sm:$0xf] %v1226
      %v1235 = vld [vmem:[%s308 + $0x4] sm:$0xff]
      %v1236 = vld [vmem:[%s308 + $0xc] sm:$0xff]
      %v1237 = vld [vmem:[%s308 + $0x14] sm:$0xf]
      %v1241 = vcombine.low %v1235, %v1235
      %v1242 = vcombine.low %v1236, %v1236
      %v1243 = vcombine.low %v1237, %v1237
      %1244 = vrot.lane.b32.xlu0 %v1241, 16
      %v1245 = vpop.permute.xlu0 %1244
      %1246 = vrot.lane.b32.xlu0 %v1235, 16
      %v1247 = vpop.permute.xlu0 %1246
      %1248 = vrot.lane.b32.xlu0 %v1242, 16
      %v1249 = vpop.permute.xlu0 %1248
      %1250 = vrot.lane.b32.xlu0 %v1236, 16
      %v1251 = vpop.permute.xlu0 %1250
      %1252 = vrot.lane.b32.xlu0 %v1243, 16
      %v1253 = vpop.permute.xlu0 %1252
      %v1254 = vsel %vm746, %v1245, %v1247
      %v1255 = vsel %vm746, %v1247, %v1249
      %v1256 = vsel %vm746, %v1249, %v1251
      %v1257 = vsel %vm746, %v1251, %v1253
      %1262 = vst [vmem:[#allocation2 + $0x40] sm:$0xf0] %v1254
      %1263 = vst [vmem:[#allocation2 + $0x48] sm:$0xf0] %v1255
      %1264 = vst [vmem:[#allocation2 + $0x50] sm:$0xf0] %v1256
      %1265 = vst [vmem:[#allocation2 + $0x58] sm:$0xf0] %v1257
      %v1266 = vld [vmem:[%s313 + $0x4] sm:$0xff]
      %v1267 = vld [vmem:[%s313 + $0xc] sm:$0xff]
      %v1268 = vld [vmem:[%s313 + $0x14] sm:$0xf]
      %v1272 = vcombine.high %v1266, %v1266
      %v1273 = vcombine.high %v1267, %v1267
      %1274 = vrot.lane.b32.xlu0 %v1266, 16
      %v1275 = vpop.permute.xlu0 %1274
      %1276 = vrot.lane.b32.xlu0 %v1272, 16
      %v1277 = vpop.permute.xlu0 %1276
      %1278 = vrot.lane.b32.xlu0 %v1267, 16
      %v1279 = vpop.permute.xlu0 %1278
      %1280 = vrot.lane.b32.xlu0 %v1273, 16
      %v1281 = vpop.permute.xlu0 %1280
      %1282 = vrot.lane.b32.xlu0 %v1268, 16
      %v1283 = vpop.permute.xlu0 %1282
      %v1284 = vsel %vm746, %v1275, %v1277
      %v1285 = vsel %vm746, %v1277, %v1279
      %v1286 = vsel %vm746, %v1279, %v1281
      %v1287 = vsel %vm746, %v1281, %v1283
      %1292 = vst [vmem:[#allocation2 + $0x60] sm:$0xf] %v1284
      %1293 = vst [vmem:[#allocation2 + $0x68] sm:$0xf] %v1285
      %1294 = vst [vmem:[#allocation2 + $0x70] sm:$0xf] %v1286
      %1295 = vst [vmem:[#allocation2 + $0x78] sm:$0xf] %v1287
      %v1296 = vld [vmem:[%s308 + $0x8] sm:$0xff]
      %v1297 = vld [vmem:[%s308 + $0x10] sm:$0xff]
      %v1300 = vcombine.low %v1296, %v1296
      %v1301 = vcombine.low %v1297, %v1297
      %1304 = vst [vmem:[#allocation2 + $0x60] sm:$0xf0] %v1300
      %1305 = vst [vmem:[#allocation2 + $0x68] sm:$0xf0] %v1296
      %1306 = vst [vmem:[#allocation2 + $0x70] sm:$0xf0] %v1301
      %1307 = vst [vmem:[#allocation2 + $0x78] sm:$0xf0] %v1297
      %v1308 = vld [vmem:[%s313 + $0x8] sm:$0xff]
      %v1309 = vld [vmem:[%s313 + $0x10] sm:$0xff]
      %v1312 = vcombine.high %v1308, %v1308
      %v1313 = vcombine.high %v1309, %v1309
      %1316 = vst [vmem:[#allocation2 + $0x80] sm:$0xf] %v1308
      %1317 = vst [vmem:[#allocation2 + $0x88] sm:$0xf] %v1312
      %1318 = vst [vmem:[#allocation2 + $0x90] sm:$0xf] %v1309
      %1319 = vst [vmem:[#allocation2 + $0x98] sm:$0xf] %v1313
      %v1320 = vld [vmem:[%s308 + $0x8] sm:$0xff]
      %v1321 = vld [vmem:[%s308 + $0x10] sm:$0xff]
      %v1322 = vld [vmem:[%s308 + $0x18] sm:$0xf]
      %v1326 = vcombine.low %v1320, %v1320
      %v1327 = vcombine.low %v1321, %v1321
      %v1328 = vcombine.low %v1322, %v1322
      %1329 = vrot.lane.b32.xlu0 %v1326, 112
      %v1330 = vpop.permute.xlu0 %1329
      %1331 = vrot.lane.b32.xlu0 %v1320, 112
      %v1332 = vpop.permute.xlu0 %1331
      %1333 = vrot.lane.b32.xlu0 %v1327, 112
      %v1334 = vpop.permute.xlu0 %1333
      %1335 = vrot.lane.b32.xlu0 %v1321, 112
      %v1336 = vpop.permute.xlu0 %1335
      %1337 = vrot.lane.b32.xlu0 %v1328, 112
      %v1338 = vpop.permute.xlu0 %1337
      %v1339 = vsel %vm374, %v1330, %v1332
      %v1340 = vsel %vm374, %v1332, %v1334
      %v1341 = vsel %vm374, %v1334, %v1336
      %v1342 = vsel %vm374, %v1336, %v1338
      %1347 = vst [vmem:[#allocation2 + $0x80] sm:$0xf0] %v1339
      %1348 = vst [vmem:[#allocation2 + $0x88] sm:$0xf0] %v1340
      %1349 = vst [vmem:[#allocation2 + $0x90] sm:$0xf0] %v1341
      %1350 = vst [vmem:[#allocation2 + $0x98] sm:$0xf0] %v1342
      %v1351 = vld [vmem:[%s313 + $0x8] sm:$0xff]
      %v1352 = vld [vmem:[%s313 + $0x10] sm:$0xff]
      %v1353 = vld [vmem:[%s313 + $0x18] sm:$0xf]
      %v1357 = vcombine.high %v1351, %v1351
      %v1358 = vcombine.high %v1352, %v1352
      %1359 = vrot.lane.b32.xlu0 %v1351, 112
      %v1360 = vpop.permute.xlu0 %1359
      %1361 = vrot.lane.b32.xlu0 %v1357, 112
      %v1362 = vpop.permute.xlu0 %1361
      %1363 = vrot.lane.b32.xlu0 %v1352, 112
      %v1364 = vpop.permute.xlu0 %1363
      %1365 = vrot.lane.b32.xlu0 %v1358, 112
      %v1366 = vpop.permute.xlu0 %1365
      %1367 = vrot.lane.b32.xlu0 %v1353, 112
      %v1368 = vpop.permute.xlu0 %1367
      %v1369 = vsel %vm374, %v1360, %v1362
      %v1370 = vsel %vm374, %v1362, %v1364
      %v1371 = vsel %vm374, %v1364, %v1366
      %v1372 = vsel %vm374, %v1366, %v1368
      %1377 = vst [vmem:[#allocation2 + $0xa0] sm:$0xf] %v1369
      %1378 = vst [vmem:[#allocation2 + $0xa8] sm:$0xf] %v1370
      %1379 = vst [vmem:[#allocation2 + $0xb0] sm:$0xf] %v1371
      %1380 = vst [vmem:[#allocation2 + $0xb8] sm:$0xf] %v1372
      %v1381 = vld [vmem:[%s308 + $0x8] sm:$0xff]
      %v1382 = vld [vmem:[%s308 + $0x10] sm:$0xff]
      %v1383 = vld [vmem:[%s308 + $0x18] sm:$0xf]
      %v1387 = vcombine.low %v1381, %v1381
      %v1388 = vcombine.low %v1382, %v1382
      %v1389 = vcombine.low %v1383, %v1383
      %1390 = vrot.lane.b32.xlu0 %v1387, 96
      %v1391 = vpop.permute.xlu0 %1390
      %1392 = vrot.lane.b32.xlu0 %v1381, 96
      %v1393 = vpop.permute.xlu0 %1392
      %1394 = vrot.lane.b32.xlu0 %v1388, 96
      %v1395 = vpop.permute.xlu0 %1394
      %1396 = vrot.lane.b32.xlu0 %v1382, 96
      %v1397 = vpop.permute.xlu0 %1396
      %1398 = vrot.lane.b32.xlu0 %v1389, 96
      %v1399 = vpop.permute.xlu0 %1398
      %v1400 = vsel %vm436, %v1391, %v1393
      %v1401 = vsel %vm436, %v1393, %v1395
      %v1402 = vsel %vm436, %v1395, %v1397
      %v1403 = vsel %vm436, %v1397, %v1399
      %1408 = vst [vmem:[#allocation2 + $0xa0] sm:$0xf0] %v1400
      %1409 = vst [vmem:[#allocation2 + $0xa8] sm:$0xf0] %v1401
      %1410 = vst [vmem:[#allocation2 + $0xb0] sm:$0xf0] %v1402
      %1411 = vst [vmem:[#allocation2 + $0xb8] sm:$0xf0] %v1403
      %v1412 = vld [vmem:[%s313 + $0x8] sm:$0xff]
      %v1413 = vld [vmem:[%s313 + $0x10] sm:$0xff]
      %v1414 = vld [vmem:[%s313 + $0x18] sm:$0xf]
      %v1418 = vcombine.high %v1412, %v1412
      %v1419 = vcombine.high %v1413, %v1413
      %1420 = vrot.lane.b32.xlu0 %v1412, 96
      %v1421 = vpop.permute.xlu0 %1420
      %1422 = vrot.lane.b32.xlu0 %v1418, 96
      %v1423 = vpop.permute.xlu0 %1422
      %1424 = vrot.lane.b32.xlu0 %v1413, 96
      %v1425 = vpop.permute.xlu0 %1424
      %1426 = vrot.lane.b32.xlu0 %v1419, 96
      %v1427 = vpop.permute.xlu0 %1426
      %1428 = vrot.lane.b32.xlu0 %v1414, 96
      %v1429 = vpop.permute.xlu0 %1428
      %v1430 = vsel %vm436, %v1421, %v1423
      %v1431 = vsel %vm436, %v1423, %v1425
      %v1432 = vsel %vm436, %v1425, %v1427
      %v1433 = vsel %vm436, %v1427, %v1429
      %1438 = vst [vmem:[#allocation2 + $0xc0] sm:$0xf] %v1430
      %1439 = vst [vmem:[#allocation2 + $0xc8] sm:$0xf] %v1431
      %1440 = vst [vmem:[#allocation2 + $0xd0] sm:$0xf] %v1432
      %1441 = vst [vmem:[#allocation2 + $0xd8] sm:$0xf] %v1433
      %v1442 = vld [vmem:[%s308 + $0x8] sm:$0xff]
      %v1443 = vld [vmem:[%s308 + $0x10] sm:$0xff]
      %v1444 = vld [vmem:[%s308 + $0x18] sm:$0xf]
      %v1448 = vcombine.low %v1442, %v1442
      %v1449 = vcombine.low %v1443, %v1443
      %v1450 = vcombine.low %v1444, %v1444
      %1451 = vrot.lane.b32.xlu0 %v1448, 80
      %v1452 = vpop.permute.xlu0 %1451
      %1453 = vrot.lane.b32.xlu0 %v1442, 80
      %v1454 = vpop.permute.xlu0 %1453
      %1455 = vrot.lane.b32.xlu0 %v1449, 80
      %v1456 = vpop.permute.xlu0 %1455
      %1457 = vrot.lane.b32.xlu0 %v1443, 80
      %v1458 = vpop.permute.xlu0 %1457
      %1459 = vrot.lane.b32.xlu0 %v1450, 80
      %v1460 = vpop.permute.xlu0 %1459
      %v1461 = vsel %vm498, %v1452, %v1454
      %v1462 = vsel %vm498, %v1454, %v1456
      %v1463 = vsel %vm498, %v1456, %v1458
      %v1464 = vsel %vm498, %v1458, %v1460
      %1469 = vst [vmem:[#allocation2 + $0xc0] sm:$0xf0] %v1461
      %1470 = vst [vmem:[#allocation2 + $0xc8] sm:$0xf0] %v1462
      %1471 = vst [vmem:[#allocation2 + $0xd0] sm:$0xf0] %v1463
      %1472 = vst [vmem:[#allocation2 + $0xd8] sm:$0xf0] %v1464
      %v1473 = vld [vmem:[%s313 + $0x8] sm:$0xff]
      %v1474 = vld [vmem:[%s313 + $0x10] sm:$0xff]
      %v1475 = vld [vmem:[%s313 + $0x18] sm:$0xf]
      %v1479 = vcombine.high %v1473, %v1473
      %v1480 = vcombine.high %v1474, %v1474
      %1481 = vrot.lane.b32.xlu0 %v1473, 80
      %v1482 = vpop.permute.xlu0 %1481
      %1483 = vrot.lane.b32.xlu0 %v1479, 80
      %v1484 = vpop.permute.xlu0 %1483
      %1485 = vrot.lane.b32.xlu0 %v1474, 80
      %v1486 = vpop.permute.xlu0 %1485
      %1487 = vrot.lane.b32.xlu0 %v1480, 80
      %v1488 = vpop.permute.xlu0 %1487
      %1489 = vrot.lane.b32.xlu0 %v1475, 80
      %v1490 = vpop.permute.xlu0 %1489
      %v1491 = vsel %vm498, %v1482, %v1484
      %v1492 = vsel %vm498, %v1484, %v1486
      %v1493 = vsel %vm498, %v1486, %v1488
      %v1494 = vsel %vm498, %v1488, %v1490
      %1499 = vst [vmem:[#allocation2 + $0xe0] sm:$0xf] %v1491
      %1500 = vst [vmem:[#allocation2 + $0xe8] sm:$0xf] %v1492
      %1501 = vst [vmem:[#allocation2 + $0xf0] sm:$0xf] %v1493
      %1502 = vst [vmem:[#allocation2 + $0xf8] sm:$0xf] %v1494
      %v1503 = vld [vmem:[%s308 + $0x8] sm:$0xff]
      %v1504 = vld [vmem:[%s308 + $0x10] sm:$0xff]
      %v1505 = vld [vmem:[%s308 + $0x18] sm:$0xf]
      %v1509 = vcombine.low %v1503, %v1503
      %v1510 = vcombine.low %v1504, %v1504
      %v1511 = vcombine.low %v1505, %v1505
      %1512 = vrot.lane.b32.xlu0 %v1509, 64
      %v1513 = vpop.permute.xlu0 %1512
      %1514 = vrot.lane.b32.xlu0 %v1503, 64
      %v1515 = vpop.permute.xlu0 %1514
      %1516 = vrot.lane.b32.xlu0 %v1510, 64
      %v1517 = vpop.permute.xlu0 %1516
      %1518 = vrot.lane.b32.xlu0 %v1504, 64
      %v1519 = vpop.permute.xlu0 %1518
      %1520 = vrot.lane.b32.xlu0 %v1511, 64
      %v1521 = vpop.permute.xlu0 %1520
      %v1522 = vsel %vm560, %v1513, %v1515
      %v1523 = vsel %vm560, %v1515, %v1517
      %v1524 = vsel %vm560, %v1517, %v1519
      %v1525 = vsel %vm560, %v1519, %v1521
      %1530 = vst [vmem:[#allocation2 + $0xe0] sm:$0xf0] %v1522
      %1531 = vst [vmem:[#allocation2 + $0xe8] sm:$0xf0] %v1523
      %1532 = vst [vmem:[#allocation2 + $0xf0] sm:$0xf0] %v1524
      %1533 = vst [vmem:[#allocation2 + $0xf8] sm:$0xf0] %v1525
      %v1534 = vld [vmem:[%s313 + $0x8] sm:$0xff]
      %v1535 = vld [vmem:[%s313 + $0x10] sm:$0xff]
      %v1536 = vld [vmem:[%s313 + $0x18] sm:$0xf]
      %v1540 = vcombine.high %v1534, %v1534
      %v1541 = vcombine.high %v1535, %v1535
      %1542 = vrot.lane.b32.xlu0 %v1534, 64
      %v1543 = vpop.permute.xlu0 %1542
      %1544 = vrot.lane.b32.xlu0 %v1540, 64
      %v1545 = vpop.permute.xlu0 %1544
      %1546 = vrot.lane.b32.xlu0 %v1535, 64
      %v1547 = vpop.permute.xlu0 %1546
      %1548 = vrot.lane.b32.xlu0 %v1541, 64
      %v1549 = vpop.permute.xlu0 %1548
      %1550 = vrot.lane.b32.xlu0 %v1536, 64
      %v1551 = vpop.permute.xlu0 %1550
      %v1552 = vsel %vm560, %v1543, %v1545
      %v1553 = vsel %vm560, %v1545, %v1547
      %v1554 = vsel %vm560, %v1547, %v1549
      %v1555 = vsel %vm560, %v1549, %v1551
      %1560 = vst [vmem:[#allocation2 + $0x100] sm:$0xf] %v1552
      %1561 = vst [vmem:[#allocation2 + $0x108] sm:$0xf] %v1553
      %1562 = vst [vmem:[#allocation2 + $0x110] sm:$0xf] %v1554
      %1563 = vst [vmem:[#allocation2 + $0x118] sm:$0xf] %v1555
      %v1564 = vld [vmem:[%s308 + $0x8] sm:$0xff]
      %v1565 = vld [vmem:[%s308 + $0x10] sm:$0xff]
      %v1566 = vld [vmem:[%s308 + $0x18] sm:$0xf]
      %v1570 = vcombine.low %v1564, %v1564
      %v1571 = vcombine.low %v1565, %v1565
      %v1572 = vcombine.low %v1566, %v1566
      %1573 = vrot.lane.b32.xlu0 %v1570, 48
      %v1574 = vpop.permute.xlu0 %1573
      %1575 = vrot.lane.b32.xlu0 %v1564, 48
      %v1576 = vpop.permute.xlu0 %1575
      %1577 = vrot.lane.b32.xlu0 %v1571, 48
      %v1578 = vpop.permute.xlu0 %1577
      %1579 = vrot.lane.b32.xlu0 %v1565, 48
      %v1580 = vpop.permute.xlu0 %1579
      %1581 = vrot.lane.b32.xlu0 %v1572, 48
      %v1582 = vpop.permute.xlu0 %1581
      %v1583 = vsel %vm622, %v1574, %v1576
      %v1584 = vsel %vm622, %v1576, %v1578
      %v1585 = vsel %vm622, %v1578, %v1580
      %v1586 = vsel %vm622, %v1580, %v1582
      %1591 = vst [vmem:[#allocation2 + $0x100] sm:$0xf0] %v1583
      %1592 = vst [vmem:[#allocation2 + $0x108] sm:$0xf0] %v1584
      %1593 = vst [vmem:[#allocation2 + $0x110] sm:$0xf0] %v1585
      %1594 = vst [vmem:[#allocation2 + $0x118] sm:$0xf0] %v1586
      %v1595 = vld [vmem:[%s313 + $0x8] sm:$0xff]
      %v1596 = vld [vmem:[%s313 + $0x10] sm:$0xff]
      %v1597 = vld [vmem:[%s313 + $0x18] sm:$0xf]
      %v1601 = vcombine.high %v1595, %v1595
      %v1602 = vcombine.high %v1596, %v1596
      %1603 = vrot.lane.b32.xlu0 %v1595, 48
      %v1604 = vpop.permute.xlu0 %1603
      %1605 = vrot.lane.b32.xlu0 %v1601, 48
      %v1606 = vpop.permute.xlu0 %1605
      %1607 = vrot.lane.b32.xlu0 %v1596, 48
      %v1608 = vpop.permute.xlu0 %1607
      %1609 = vrot.lane.b32.xlu0 %v1602, 48
      %v1610 = vpop.permute.xlu0 %1609
      %1611 = vrot.lane.b32.xlu0 %v1597, 48
      %v1612 = vpop.permute.xlu0 %1611
      %v1613 = vsel %vm622, %v1604, %v1606
      %v1614 = vsel %vm622, %v1606, %v1608
      %v1615 = vsel %vm622, %v1608, %v1610
      %v1616 = vsel %vm622, %v1610, %v1612
      %1621 = vst [vmem:[#allocation2 + $0x120] sm:$0xf] %v1613
      %1622 = vst [vmem:[#allocation2 + $0x128] sm:$0xf] %v1614
      %1623 = vst [vmem:[#allocation2 + $0x130] sm:$0xf] %v1615
      %1624 = vst [vmem:[#allocation2 + $0x138] sm:$0xf] %v1616
      %v1625 = vld [vmem:[%s308 + $0x8] sm:$0xff]
      %v1626 = vld [vmem:[%s308 + $0x10] sm:$0xff]
      %v1627 = vld [vmem:[%s308 + $0x18] sm:$0xf]
      %v1631 = vcombine.low %v1625, %v1625
      %v1632 = vcombine.low %v1626, %v1626
      %v1633 = vcombine.low %v1627, %v1627
      %1634 = vrot.lane.b32.xlu0 %v1631, 32
      %v1635 = vpop.permute.xlu0 %1634
      %1636 = vrot.lane.b32.xlu0 %v1625, 32
      %v1637 = vpop.permute.xlu0 %1636
      %1638 = vrot.lane.b32.xlu0 %v1632, 32
      %v1639 = vpop.permute.xlu0 %1638
      %1640 = vrot.lane.b32.xlu0 %v1626, 32
      %v1641 = vpop.permute.xlu0 %1640
      %1642 = vrot.lane.b32.xlu0 %v1633, 32
      %v1643 = vpop.permute.xlu0 %1642
      %v1644 = vsel %vm684, %v1635, %v1637
      %v1645 = vsel %vm684, %v1637, %v1639
      %v1646 = vsel %vm684, %v1639, %v1641
      %v1647 = vsel %vm684, %v1641, %v1643
      %1652 = vst [vmem:[#allocation2 + $0x120] sm:$0xf0] %v1644
      %1653 = vst [vmem:[#allocation2 + $0x128] sm:$0xf0] %v1645
      %1654 = vst [vmem:[#allocation2 + $0x130] sm:$0xf0] %v1646
      %1655 = vst [vmem:[#allocation2 + $0x138] sm:$0xf0] %v1647
      %v1656 = vld [vmem:[%s313 + $0x8] sm:$0xff]
      %v1657 = vld [vmem:[%s313 + $0x10] sm:$0xff]
      %v1658 = vld [vmem:[%s313 + $0x18] sm:$0xf]
      %v1662 = vcombine.high %v1656, %v1656
      %v1663 = vcombine.high %v1657, %v1657
      %1664 = vrot.lane.b32.xlu0 %v1656, 32
      %v1665 = vpop.permute.xlu0 %1664
      %1666 = vrot.lane.b32.xlu0 %v1662, 32
      %v1667 = vpop.permute.xlu0 %1666
      %1668 = vrot.lane.b32.xlu0 %v1657, 32
      %v1669 = vpop.permute.xlu0 %1668
      %1670 = vrot.lane.b32.xlu0 %v1663, 32
      %v1671 = vpop.permute.xlu0 %1670
      %1672 = vrot.lane.b32.xlu0 %v1658, 32
      %v1673 = vpop.permute.xlu0 %1672
      %v1674 = vsel %vm684, %v1665, %v1667
      %v1675 = vsel %vm684, %v1667, %v1669
      %v1676 = vsel %vm684, %v1669, %v1671
      %v1677 = vsel %vm684, %v1671, %v1673
      %1682 = vst [vmem:[#allocation2 + $0x140] sm:$0xf] %v1674
      %1683 = vst [vmem:[#allocation2 + $0x148] sm:$0xf] %v1675
      %1684 = vst [vmem:[#allocation2 + $0x150] sm:$0xf] %v1676
      %1685 = vst [vmem:[#allocation2 + $0x158] sm:$0xf] %v1677
      %v1686 = vld [vmem:[%s308 + $0x8] sm:$0xff]
      %v1687 = vld [vmem:[%s308 + $0x10] sm:$0xff]
      %v1688 = vld [vmem:[%s308 + $0x18] sm:$0xf]
      %v1692 = vcombine.low %v1686, %v1686
      %v1693 = vcombine.low %v1687, %v1687
      %v1694 = vcombine.low %v1688, %v1688
      %1695 = vrot.lane.b32.xlu0 %v1692, 16
      %v1696 = vpop.permute.xlu0 %1695
      %1697 = vrot.lane.b32.xlu0 %v1686, 16
      %v1698 = vpop.permute.xlu0 %1697
      %1699 = vrot.lane.b32.xlu0 %v1693, 16
      %v1700 = vpop.permute.xlu0 %1699
      %1701 = vrot.lane.b32.xlu0 %v1687, 16
      %v1702 = vpop.permute.xlu0 %1701
      %1703 = vrot.lane.b32.xlu0 %v1694, 16
      %v1704 = vpop.permute.xlu0 %1703
      %v1705 = vsel %vm746, %v1696, %v1698
      %v1706 = vsel %vm746, %v1698, %v1700
      %v1707 = vsel %vm746, %v1700, %v1702
      %v1708 = vsel %vm746, %v1702, %v1704
      %1713 = vst [vmem:[#allocation2 + $0x140] sm:$0xf0] %v1705
      %1714 = vst [vmem:[#allocation2 + $0x148] sm:$0xf0] %v1706
      %1715 = vst [vmem:[#allocation2 + $0x150] sm:$0xf0] %v1707
      %1716 = vst [vmem:[#allocation2 + $0x158] sm:$0xf0] %v1708
      %v1717 = vld [vmem:[%s313 + $0x8] sm:$0xff]
      %v1718 = vld [vmem:[%s313 + $0x10] sm:$0xff]
      %v1719 = vld [vmem:[%s313 + $0x18] sm:$0xf]
      %v1723 = vcombine.high %v1717, %v1717
      %v1724 = vcombine.high %v1718, %v1718
      %1725 = vrot.lane.b32.xlu0 %v1717, 16
      %v1726 = vpop.permute.xlu0 %1725
      %1727 = vrot.lane.b32.xlu0 %v1723, 16
      %v1728 = vpop.permute.xlu0 %1727
      %1729 = vrot.lane.b32.xlu0 %v1718, 16
      %v1730 = vpop.permute.xlu0 %1729
      %1731 = vrot.lane.b32.xlu0 %v1724, 16
      %v1732 = vpop.permute.xlu0 %1731
      %1733 = vrot.lane.b32.xlu0 %v1719, 16
      %v1734 = vpop.permute.xlu0 %1733
      %v1735 = vsel %vm746, %v1726, %v1728
      %v1736 = vsel %vm746, %v1728, %v1730
      %v1737 = vsel %vm746, %v1730, %v1732
      %v1738 = vsel %vm746, %v1732, %v1734
      %1743 = vst [vmem:[#allocation2 + $0x160] sm:$0xf] %v1735
      %1744 = vst [vmem:[#allocation2 + $0x168] sm:$0xf] %v1736
      %1745 = vst [vmem:[#allocation2 + $0x170] sm:$0xf] %v1737
      %1746 = vst [vmem:[#allocation2 + $0x178] sm:$0xf] %v1738
      %v1747 = vld [vmem:[%s308 + $0xc] sm:$0xff]
      %v1748 = vld [vmem:[%s308 + $0x14] sm:$0xff]
      %v1751 = vcombine.low %v1747, %v1747
      %v1752 = vcombine.low %v1748, %v1748
      %1755 = vst [vmem:[#allocation2 + $0x160] sm:$0xf0] %v1751
      %1756 = vst [vmem:[#allocation2 + $0x168] sm:$0xf0] %v1747
      %1757 = vst [vmem:[#allocation2 + $0x170] sm:$0xf0] %v1752
      %1758 = vst [vmem:[#allocation2 + $0x178] sm:$0xf0] %v1748
      %v1759 = vld [vmem:[%s313 + $0xc] sm:$0xff]
      %v1760 = vld [vmem:[%s313 + $0x14] sm:$0xff]
      %v1763 = vcombine.high %v1759, %v1759
      %v1764 = vcombine.high %v1760, %v1760
      %1767 = vst [vmem:[#allocation2 + $0x180] sm:$0xf] %v1759
      %1768 = vst [vmem:[#allocation2 + $0x188] sm:$0xf] %v1763
      %1769 = vst [vmem:[#allocation2 + $0x190] sm:$0xf] %v1760
      %1770 = vst [vmem:[#allocation2 + $0x198] sm:$0xf] %v1764
      %s1771 = scalar_lea.vmem %s2, 32
      %v1772 = vld [vmem:[%s1771] sm:$0xff]
      %v1773 = vld [vmem:[%s1771 + $0x8] sm:$0xff]
      %v1774 = vld [vmem:[%s1771 + $0x10] sm:$0xff]
      %v1775 = vld [vmem:[%s1771 + $0x18] sm:$0xff]
      %v1776 = vld [vmem:[#allocation2] sm:$0xff]
      %v1777 = vld [vmem:[#allocation2 + $0x8] sm:$0xff]
      %v1778 = vld [vmem:[#allocation2 + $0x10] sm:$0xff]
      %v1779 = vld [vmem:[#allocation2 + $0x18] sm:$0xff]
      %v1780 = vld [vmem:[#allocation2 + $0x20] sm:$0xff]
      %v1781 = vld [vmem:[#allocation2 + $0x28] sm:$0xff]
      %v1782 = vld [vmem:[#allocation2 + $0x30] sm:$0xff]
      %v1783 = vld [vmem:[#allocation2 + $0x38] sm:$0xff]
      %v1784 = vld [vmem:[#allocation2 + $0x40] sm:$0xff]
      %v1785 = vld [vmem:[#allocation2 + $0x48] sm:$0xff]
      %v1786 = vld [vmem:[#allocation2 + $0x50] sm:$0xff]
      %v1787 = vld [vmem:[#allocation2 + $0x58] sm:$0xff]
      %v1788 = vld [vmem:[#allocation2 + $0x60] sm:$0xff]
      %v1789 = vld [vmem:[#allocation2 + $0x68] sm:$0xff]
      %v1790 = vld [vmem:[#allocation2 + $0x70] sm:$0xff]
      %v1791 = vld [vmem:[#allocation2 + $0x78] sm:$0xff]
      %v1792 = vld [vmem:[#allocation2 + $0x80] sm:$0xff]
      %v1793 = vld [vmem:[#allocation2 + $0x88] sm:$0xff]
      %v1794 = vld [vmem:[#allocation2 + $0x90] sm:$0xff]
      %v1795 = vld [vmem:[#allocation2 + $0x98] sm:$0xff]
      %v1796 = vld [vmem:[#allocation2 + $0xa0] sm:$0xff]
      %v1797 = vld [vmem:[#allocation2 + $0xa8] sm:$0xff]
      %v1798 = vld [vmem:[#allocation2 + $0xb0] sm:$0xff]
      %v1799 = vld [vmem:[#allocation2 + $0xb8] sm:$0xff]
      %v1800 = vld [vmem:[#allocation2 + $0xc0] sm:$0xff]
      %v1801 = vld [vmem:[#allocation2 + $0xc8] sm:$0xff]
      %v1802 = vld [vmem:[#allocation2 + $0xd0] sm:$0xff]
      %v1803 = vld [vmem:[#allocation2 + $0xd8] sm:$0xff]
      %v1804 = vld [vmem:[#allocation2 + $0xe0] sm:$0xff]
      %v1805 = vld [vmem:[#allocation2 + $0xe8] sm:$0xff]
      %v1806 = vld [vmem:[#allocation2 + $0xf0] sm:$0xff]
      %v1807 = vld [vmem:[#allocation2 + $0xf8] sm:$0xff]
      %v1808 = vld [vmem:[#allocation2 + $0x100] sm:$0xff]
      %v1809 = vld [vmem:[#allocation2 + $0x108] sm:$0xff]
      %v1810 = vld [vmem:[#allocation2 + $0x110] sm:$0xff]
      %v1811 = vld [vmem:[#allocation2 + $0x118] sm:$0xff]
      %v1812 = vld [vmem:[#allocation2 + $0x120] sm:$0xff]
      %v1813 = vld [vmem:[#allocation2 + $0x128] sm:$0xff]
      %v1814 = vld [vmem:[#allocation2 + $0x130] sm:$0xff]
      %v1815 = vld [vmem:[#allocation2 + $0x138] sm:$0xff]
      %v1816 = vld [vmem:[#allocation2 + $0x140] sm:$0xff]
      %v1817 = vld [vmem:[#allocation2 + $0x148] sm:$0xff]
      %v1818 = vld [vmem:[#allocation2 + $0x150] sm:$0xff]
      %v1819 = vld [vmem:[#allocation2 + $0x158] sm:$0xff]
      %v1820 = vld [vmem:[#allocation2 + $0x160] sm:$0xff]
      %v1821 = vld [vmem:[#allocation2 + $0x168] sm:$0xff]
      %v1822 = vld [vmem:[#allocation2 + $0x170] sm:$0xff]
      %v1823 = vld [vmem:[#allocation2 + $0x178] sm:$0xff]
      %v1824 = vld [vmem:[#allocation2 + $0x180] sm:$0xf]
      %v1825 = vld [vmem:[#allocation2 + $0x188] sm:$0xf]
      %v1826 = vld [vmem:[#allocation2 + $0x190] sm:$0xf]
      %v1827 = vld [vmem:[#allocation2 + $0x198] sm:$0xf]
      %vm1828 = vcmask 818176
      %v1830 = vsel %vm1828, %v1772, 0
      %v1833 = vsel %vm1828, %v1773, 0
      %v1836 = vsel %vm1828, %v1774, 0
      %v1839 = vsel %vm1828, %v1775, 0
      %vm1841 = vcmask 1043456
      %v1843 = vsel %vm1841, %v1824, 0
      %v1846 = vsel %vm1841, %v1825, 0
      %v1849 = vsel %vm1841, %v1826, 0
      %v1852 = vsel %vm1841, %v1827, 0
      %1854 = vmatprep.subr.mxu0 %v1777
      %1855 = vmatpush1.msra.mxu0 %v1776
      %1856 = vmatprep.subr.mxu0 %v1781
      %1857 = vmatpush1.msra.mxu0 %v1780
      %1858 = vmatprep.subr.mxu0 %v1785
      %1859 = vmatpush1.msra.mxu0 %v1784
      %1860 = vmatprep.subr.mxu0 %v1789
      %1861 = vmatpush1.msra.mxu0 %v1788
      %1862 = vmatprep.subr.mxu0 %v1793
      %1863 = vmatpush1.msra.mxu0 %v1792
      %1864 = vmatprep.subr.mxu0 %v1797
      %1865 = vmatpush1.msra.mxu0 %v1796
      %1866 = vmatprep.subr.mxu0 %v1801
      %1867 = vmatpush1.msra.mxu0 %v1800
      %1868 = vmatprep.subr.mxu0 %v1805
      %1869 = vmatpush1.msra.mxu0 %v1804
      %1870 = vmatprep.subr.mxu0 %v1809
      %1871 = vmatpush1.msra.mxu0 %v1808
      %1872 = vmatprep.subr.mxu0 %v1813
      %1873 = vmatpush1.msra.mxu0 %v1812
      %1874 = vmatprep.subr.mxu0 %v1817
      %1875 = vmatpush1.msra.mxu0 %v1816
      %1876 = vmatprep.subr.mxu0 %v1821
      %1877 = vmatpush1.msra.mxu0 %v1820
      %1878 = vmatprep.subr.mxu0 %v1846
      %1879 = vmatpush1.msra.mxu0 %v1843
      %1880 = vmatprep.subr.mxu0 0.0
      %1881 = vmatpush1.msra.mxu0 0.0
      %1882 = vmatprep.subr.mxu0 0.0
      %1883 = vmatpush1.msra.mxu0 0.0
      %1884 = vmatprep.subr.mxu0 0.0
      %1885 = vmatpush1.msra.mxu0 0.0
      %1886 = vmatprep.subr.mxu0 0.0
      %1887 = vmatpush1.msra.mxu0 0.0
      %1888 = vmatprep.subr.mxu0 0.0
      %1889 = vmatpush1.msra.mxu0 0.0
      %1890 = vmatprep.subr.mxu0 0.0
      %1891 = vmatpush1.msra.mxu0 0.0
      %1892 = vmatprep.subr.mxu0 0.0
      %1893 = vmatpush1.msra.mxu0 0.0
      %1894 = vmatprep.subr.mxu0 0.0
      %1895 = vmatpush1.msra.mxu0 0.0
      %1896 = vmatprep.subr.mxu0 0.0
      %1897 = vmatpush1.msra.mxu0 0.0
      %1898 = vmatprep.subr.mxu0 0.0
      %1899 = vmatpush1.msra.mxu0 0.0
      %1900 = vmatprep.subr.mxu0 0.0
      %1901 = vmatpush1.msra.mxu0 0.0
      %1902 = vmatprep.subr.mxu0 0.0
      %1903 = vmatpush1.msra.mxu0 0.0
      %1904 = vmatprep.subr.mxu0 0.0
      %1905 = vmatpush1.msra.mxu0 0.0
      %1906 = vmatprep.subr.mxu0 0.0
      %1907 = vmatpush1.msra.mxu0 0.0
      %1908 = vmatprep.subr.mxu0 0.0
      %1909 = vmatpush1.msra.mxu0 0.0
      %1910 = vmatprep.subr.mxu0 0.0
      %1911 = vmatpush1.msra.mxu0 0.0
      %1912 = vmatprep.subr.mxu0 0.0
      %1913 = vmatpush1.msra.mxu0 0.0
      %1914 = vmatprep.subr.mxu0 0.0
      %1915 = vmatpush1.msra.mxu0 0.0
      %1916 = vmatprep.subr.mxu0 0.0
      %1917 = vmatpush1.msra.mxu0 0.0
      %1918 = vmatprep.mubr.f32.mxu0 0.0
      %1919 = vmatmul.mubr.f32.gmra.mrb[0].mxu0 %v1830
      %v1920 = vpop.f32.mrb[0].mxu0
      %v1921 = vadd.f32 0.0, %v1920
      %v1922 = vpop.f32.mrb[0].mxu0
      %v1923 = vadd.f32 0.0, %v1922
      %1924 = vmatprep.mubr.f32.mxu0 0.0
      %1925 = vmatmul.mubr.f32.gmra.mrb[0].mxu0 %v1833
      %v1926 = vpop.f32.mrb[0].mxu0
      %v1927 = vadd.f32 0.0, %v1926
      %v1928 = vpop.f32.mrb[0].mxu0
      %v1929 = vadd.f32 0.0, %v1928
      %1930 = vmatprep.mubr.f32.mxu0 0.0
      %1931 = vmatmul.mubr.f32.gmra.mrb[0].mxu0 %v1836
      %v1932 = vpop.f32.mrb[0].mxu0
      %v1933 = vadd.f32 0.0, %v1932
      %v1934 = vpop.f32.mrb[0].mxu0
      %v1935 = vadd.f32 0.0, %v1934
      %1936 = vmatprep.mubr.f32.mxu0 0.0
      %1937 = vmatmul.mubr.f32.gmra.mrb[0].mxu0 %v1839
      %v1938 = vpop.f32.mrb[0].mxu0
      %v1939 = vadd.f32 0.0, %v1938
      %v1940 = vpop.f32.mrb[0].mxu0
      %v1941 = vadd.f32 0.0, %v1940
      %1942 = vdwg.mxu0
      %1943 = vmatprep.subr.mxu0 %v1779
      %1944 = vmatpush1.msra.mxu0 %v1778
      %1945 = vmatprep.subr.mxu0 %v1783
      %1946 = vmatpush1.msra.mxu0 %v1782
      %1947 = vmatprep.subr.mxu0 %v1787
      %1948 = vmatpush1.msra.mxu0 %v1786
      %1949 = vmatprep.subr.mxu0 %v1791
      %1950 = vmatpush1.msra.mxu0 %v1790
      %1951 = vmatprep.subr.mxu0 %v1795
      %1952 = vmatpush1.msra.mxu0 %v1794
      %1953 = vmatprep.subr.mxu0 %v1799
      %1954 = vmatpush1.msra.mxu0 %v1798
      %1955 = vmatprep.subr.mxu0 %v1803
      %1956 = vmatpush1.msra.mxu0 %v1802
      %1957 = vmatprep.subr.mxu0 %v1807
      %1958 = vmatpush1.msra.mxu0 %v1806
      %1959 = vmatprep.subr.mxu0 %v1811
      %1960 = vmatpush1.msra.mxu0 %v1810
      %1961 = vmatprep.subr.mxu0 %v1815
      %1962 = vmatpush1.msra.mxu0 %v1814
      %1963 = vmatprep.subr.mxu0 %v1819
      %1964 = vmatpush1.msra.mxu0 %v1818
      %1965 = vmatprep.subr.mxu0 %v1823
      %1966 = vmatpush1.msra.mxu0 %v1822
      %1967 = vmatprep.subr.mxu0 %v1852
      %1968 = vmatpush1.msra.mxu0 %v1849
      %1969 = vmatprep.subr.mxu0 0.0
      %1970 = vmatpush1.msra.mxu0 0.0
      %1971 = vmatprep.subr.mxu0 0.0
      %1972 = vmatpush1.msra.mxu0 0.0
      %1973 = vmatprep.subr.mxu0 0.0
      %1974 = vmatpush1.msra.mxu0 0.0
      %1975 = vmatprep.subr.mxu0 0.0
      %1976 = vmatpush1.msra.mxu0 0.0
      %1977 = vmatprep.subr.mxu0 0.0
      %1978 = vmatpush1.msra.mxu0 0.0
      %1979 = vmatprep.subr.mxu0 0.0
      %1980 = vmatpush1.msra.mxu0 0.0
      %1981 = vmatprep.subr.mxu0 0.0
      %1982 = vmatpush1.msra.mxu0 0.0
      %1983 = vmatprep.subr.mxu0 0.0
      %1984 = vmatpush1.msra.mxu0 0.0
      %1985 = vmatprep.subr.mxu0 0.0
      %1986 = vmatpush1.msra.mxu0 0.0
      %1987 = vmatprep.subr.mxu0 0.0
      %1988 = vmatpush1.msra.mxu0 0.0
      %1989 = vmatprep.subr.mxu0 0.0
      %1990 = vmatpush1.msra.mxu0 0.0
      %1991 = vmatprep.subr.mxu0 0.0
      %1992 = vmatpush1.msra.mxu0 0.0
      %1993 = vmatprep.subr.mxu0 0.0
      %1994 = vmatpush1.msra.mxu0 0.0
      %1995 = vmatprep.subr.mxu0 0.0
      %1996 = vmatpush1.msra.mxu0 0.0
      %1997 = vmatprep.subr.mxu0 0.0
      %1998 = vmatpush1.msra.mxu0 0.0
      %1999 = vmatprep.subr.mxu0 0.0
      %2000 = vmatpush1.msra.mxu0 0.0
      %2001 = vmatprep.subr.mxu0 0.0
      %2002 = vmatpush1.msra.mxu0 0.0
      %2003 = vmatprep.subr.mxu0 0.0
      %2004 = vmatpush1.msra.mxu0 0.0
      %2005 = vmatprep.subr.mxu0 0.0
      %2006 = vmatpush1.msra.mxu0 0.0
      %2007 = vmatprep.mubr.f32.mxu0 0.0
      %2008 = vmatmul.mubr.f32.gmra.mrb[0].mxu0 %v1830
      %v2009 = vpop.f32.mrb[0].mxu0
      %v2010 = vadd.f32 0.0, %v2009
      %v2011 = vpop.f32.mrb[0].mxu0
      %v2012 = vadd.f32 0.0, %v2011
      %2013 = vmatprep.mubr.f32.mxu0 0.0
      %2014 = vmatmul.mubr.f32.gmra.mrb[0].mxu0 %v1833
      %v2015 = vpop.f32.mrb[0].mxu0
      %v2016 = vadd.f32 0.0, %v2015
      %v2017 = vpop.f32.mrb[0].mxu0
      %v2018 = vadd.f32 0.0, %v2017
      %2019 = vmatprep.mubr.f32.mxu0 0.0
      %2020 = vmatmul.mubr.f32.gmra.mrb[0].mxu0 %v1836
      %v2021 = vpop.f32.mrb[0].mxu0
      %v2022 = vadd.f32 0.0, %v2021
      %v2023 = vpop.f32.mrb[0].mxu0
      %v2024 = vadd.f32 0.0, %v2023
      %2025 = vmatprep.mubr.f32.mxu0 0.0
      %2026 = vmatmul.mubr.f32.gmra.mrb[0].mxu0 %v1839
      %v2027 = vpop.f32.mrb[0].mxu0
      %v2028 = vadd.f32 0.0, %v2027
      %v2029 = vpop.f32.mrb[0].mxu0
      %v2030 = vadd.f32 0.0, %v2029
      %2031 = vdwg.mxu0
      %v2033 = vsel %vm1828, %v1027, 0
      %v2036 = vsel %vm1828, %v1028, 0
      %v2039 = vsel %vm1828, %v1029, 0
      %v2042 = vsel %vm1828, %v1030, 0
      %v2045 = vsel %vm1841, %v1079, 0
      %v2048 = vsel %vm1841, %v1080, 0
      %v2051 = vsel %vm1841, %v1081, 0
      %v2054 = vsel %vm1841, %v1082, 0
      %2056 = vmatprep.subr.mxu0 %v1032
      %2057 = vmatpush1.msra.mxu0 %v1031
      %2058 = vmatprep.subr.mxu0 %v1036
      %2059 = vmatpush1.msra.mxu0 %v1035
      %2060 = vmatprep.subr.mxu0 %v1040
      %2061 = vmatpush1.msra.mxu0 %v1039
      %2062 = vmatprep.subr.mxu0 %v1044
      %2063 = vmatpush1.msra.mxu0 %v1043
      %2064 = vmatprep.subr.mxu0 %v1048
      %2065 = vmatpush1.msra.mxu0 %v1047
      %2066 = vmatprep.subr.mxu0 %v1052
      %2067 = vmatpush1.msra.mxu0 %v1051
      %2068 = vmatprep.subr.mxu0 %v1056
      %2069 = vmatpush1.msra.mxu0 %v1055
      %2070 = vmatprep.subr.mxu0 %v1060
      %2071 = vmatpush1.msra.mxu0 %v1059
      %2072 = vmatprep.subr.mxu0 %v1064
      %2073 = vmatpush1.msra.mxu0 %v1063
      %2074 = vmatprep.subr.mxu0 %v1068
      %2075 = vmatpush1.msra.mxu0 %v1067
      %2076 = vmatprep.subr.mxu0 %v1072
      %2077 = vmatpush1.msra.mxu0 %v1071
      %2078 = vmatprep.subr.mxu0 %v1076
      %2079 = vmatpush1.msra.mxu0 %v1075
      %2080 = vmatprep.subr.mxu0 %v2048
      %2081 = vmatpush1.msra.mxu0 %v2045
      %2082 = vmatprep.subr.mxu0 0.0
      %2083 = vmatpush1.msra.mxu0 0.0
      %2084 = vmatprep.subr.mxu0 0.0
      %2085 = vmatpush1.msra.mxu0 0.0
      %2086 = vmatprep.subr.mxu0 0.0
      %2087 = vmatpush1.msra.mxu0 0.0
      %2088 = vmatprep.subr.mxu0 0.0
      %2089 = vmatpush1.msra.mxu0 0.0
      %2090 = vmatprep.subr.mxu0 0.0
      %2091 = vmatpush1.msra.mxu0 0.0
      %2092 = vmatprep.subr.mxu0 0.0
      %2093 = vmatpush1.msra.mxu0 0.0
      %2094 = vmatprep.subr.mxu0 0.0
      %2095 = vmatpush1.msra.mxu0 0.0
      %2096 = vmatprep.subr.mxu0 0.0
      %2097 = vmatpush1.msra.mxu0 0.0
      %2098 = vmatprep.subr.mxu0 0.0
      %2099 = vmatpush1.msra.mxu0 0.0
      %2100 = vmatprep.subr.mxu0 0.0
      %2101 = vmatpush1.msra.mxu0 0.0
      %2102 = vmatprep.subr.mxu0 0.0
      %2103 = vmatpush1.msra.mxu0 0.0
      %2104 = vmatprep.subr.mxu0 0.0
      %2105 = vmatpush1.msra.mxu0 0.0
      %2106 = vmatprep.subr.mxu0 0.0
      %2107 = vmatpush1.msra.mxu0 0.0
      %2108 = vmatprep.subr.mxu0 0.0
      %2109 = vmatpush1.msra.mxu0 0.0
      %2110 = vmatprep.subr.mxu0 0.0
      %2111 = vmatpush1.msra.mxu0 0.0
      %2112 = vmatprep.subr.mxu0 0.0
      %2113 = vmatpush1.msra.mxu0 0.0
      %2114 = vmatprep.subr.mxu0 0.0
      %2115 = vmatpush1.msra.mxu0 0.0
      %2116 = vmatprep.subr.mxu0 0.0
      %2117 = vmatpush1.msra.mxu0 0.0
      %2118 = vmatprep.subr.mxu0 0.0
      %2119 = vmatpush1.msra.mxu0 0.0
      %2120 = vmatprep.mubr.f32.mxu0 0.0
      %2121 = vmatmul.mubr.f32.gmra.mrb[0].mxu0 %v2033
      %v2122 = vpop.f32.mrb[0].mxu0
      %v2123 = vadd.f32 %v1921, %v2122
      %v2124 = vpop.f32.mrb[0].mxu0
      %v2125 = vadd.f32 %v1923, %v2124
      %2126 = vmatprep.mubr.f32.mxu0 0.0
      %2127 = vmatmul.mubr.f32.gmra.mrb[0].mxu0 %v2036
      %v2128 = vpop.f32.mrb[0].mxu0
      %v2129 = vadd.f32 %v1927, %v2128
      %v2130 = vpop.f32.mrb[0].mxu0
      %v2131 = vadd.f32 %v1929, %v2130
      %2132 = vmatprep.mubr.f32.mxu0 0.0
      %2133 = vmatmul.mubr.f32.gmra.mrb[0].mxu0 %v2039
      %v2134 = vpop.f32.mrb[0].mxu0
      %v2135 = vadd.f32 %v1933, %v2134
      %v2136 = vpop.f32.mrb[0].mxu0
      %v2137 = vadd.f32 %v1935, %v2136
      %2138 = vmatprep.mubr.f32.mxu0 0.0
      %2139 = vmatmul.mubr.f32.gmra.mrb[0].mxu0 %v2042
      %v2140 = vpop.f32.mrb[0].mxu0
      %v2141 = vadd.f32 %v1939, %v2140
      %v2142 = vpop.f32.mrb[0].mxu0
      %v2143 = vadd.f32 %v1941, %v2142
      %2144 = vdwg.mxu0
      %2145 = vmatprep.subr.mxu0 %v1034
      %2146 = vmatpush1.msra.mxu0 %v1033
      %2147 = vmatprep.subr.mxu0 %v1038
      %2148 = vmatpush1.msra.mxu0 %v1037
      %2149 = vmatprep.subr.mxu0 %v1042
      %2150 = vmatpush1.msra.mxu0 %v1041
      %2151 = vmatprep.subr.mxu0 %v1046
      %2152 = vmatpush1.msra.mxu0 %v1045
      %2153 = vmatprep.subr.mxu0 %v1050
      %2154 = vmatpush1.msra.mxu0 %v1049
      %2155 = vmatprep.subr.mxu0 %v1054
      %2156 = vmatpush1.msra.mxu0 %v1053
      %2157 = vmatprep.subr.mxu0 %v1058
      %2158 = vmatpush1.msra.mxu0 %v1057
      %2159 = vmatprep.subr.mxu0 %v1062
      %2160 = vmatpush1.msra.mxu0 %v1061
      %2161 = vmatprep.subr.mxu0 %v1066
      %2162 = vmatpush1.msra.mxu0 %v1065
      %2163 = vmatprep.subr.mxu0 %v1070
      %2164 = vmatpush1.msra.mxu0 %v1069
      %2165 = vmatprep.subr.mxu0 %v1074
      %2166 = vmatpush1.msra.mxu0 %v1073
      %2167 = vmatprep.subr.mxu0 %v1078
      %2168 = vmatpush1.msra.mxu0 %v1077
      %2169 = vmatprep.subr.mxu0 %v2054
      %2170 = vmatpush1.msra.mxu0 %v2051
      %2171 = vmatprep.subr.mxu0 0.0
      %2172 = vmatpush1.msra.mxu0 0.0
      %2173 = vmatprep.subr.mxu0 0.0
      %2174 = vmatpush1.msra.mxu0 0.0
      %2175 = vmatprep.subr.mxu0 0.0
      %2176 = vmatpush1.msra.mxu0 0.0
      %2177 = vmatprep.subr.mxu0 0.0
      %2178 = vmatpush1.msra.mxu0 0.0
      %2179 = vmatprep.subr.mxu0 0.0
      %2180 = vmatpush1.msra.mxu0 0.0
      %2181 = vmatprep.subr.mxu0 0.0
      %2182 = vmatpush1.msra.mxu0 0.0
      %2183 = vmatprep.subr.mxu0 0.0
      %2184 = vmatpush1.msra.mxu0 0.0
      %2185 = vmatprep.subr.mxu0 0.0
      %2186 = vmatpush1.msra.mxu0 0.0
      %2187 = vmatprep.subr.mxu0 0.0
      %2188 = vmatpush1.msra.mxu0 0.0
      %2189 = vmatprep.subr.mxu0 0.0
      %2190 = vmatpush1.msra.mxu0 0.0
      %2191 = vmatprep.subr.mxu0 0.0
      %2192 = vmatpush1.msra.mxu0 0.0
      %2193 = vmatprep.subr.mxu0 0.0
      %2194 = vmatpush1.msra.mxu0 0.0
      %2195 = vmatprep.subr.mxu0 0.0
      %2196 = vmatpush1.msra.mxu0 0.0
      %2197 = vmatprep.subr.mxu0 0.0
      %2198 = vmatpush1.msra.mxu0 0.0
      %2199 = vmatprep.subr.mxu0 0.0
      %2200 = vmatpush1.msra.mxu0 0.0
      %2201 = vmatprep.subr.mxu0 0.0
      %2202 = vmatpush1.msra.mxu0 0.0
      %2203 = vmatprep.subr.mxu0 0.0
      %2204 = vmatpush1.msra.mxu0 0.0
      %2205 = vmatprep.subr.mxu0 0.0
      %2206 = vmatpush1.msra.mxu0 0.0
      %2207 = vmatprep.subr.mxu0 0.0
      %2208 = vmatpush1.msra.mxu0 0.0
      %2209 = vmatprep.mubr.f32.mxu0 0.0
      %2210 = vmatmul.mubr.f32.gmra.mrb[0].mxu0 %v2033
      %v2211 = vpop.f32.mrb[0].mxu0
      %v2212 = vadd.f32 %v2010, %v2211
      %v2213 = vpop.f32.mrb[0].mxu0
      %v2214 = vadd.f32 %v2012, %v2213
      %2215 = vmatprep.mubr.f32.mxu0 0.0
      %2216 = vmatmul.mubr.f32.gmra.mrb[0].mxu0 %v2036
      %v2217 = vpop.f32.mrb[0].mxu0
      %v2218 = vadd.f32 %v2016, %v2217
      %v2219 = vpop.f32.mrb[0].mxu0
      %v2220 = vadd.f32 %v2018, %v2219
      %2221 = vmatprep.mubr.f32.mxu0 0.0
      %2222 = vmatmul.mubr.f32.gmra.mrb[0].mxu0 %v2039
      %v2223 = vpop.f32.mrb[0].mxu0
      %v2224 = vadd.f32 %v2022, %v2223
      %v2225 = vpop.f32.mrb[0].mxu0
      %v2226 = vadd.f32 %v2024, %v2225
      %2227 = vmatprep.mubr.f32.mxu0 0.0
      %2228 = vmatmul.mubr.f32.gmra.mrb[0].mxu0 %v2042
      %v2229 = vpop.f32.mrb[0].mxu0
      %v2230 = vadd.f32 %v2028, %v2229
      %v2231 = vpop.f32.mrb[0].mxu0
      %v2232 = vadd.f32 %v2030, %v2231
      %2233 = vdwg.mxu0
      %v2234 = vld [vmem:[%s308 + $0xc] sm:$0xff]
      %v2235 = vld [vmem:[%s308 + $0x14] sm:$0xff]
      %v2236 = vld [vmem:[%s308 + $0x1c] sm:$0xf]
      %v2240 = vcombine.high %v2234, %v2234
      %v2241 = vcombine.high %v2235, %v2235
      %2242 = vrot.lane.b32.xlu0 %v2234, 112
      %v2243 = vpop.permute.xlu0 %2242
      %2244 = vrot.lane.b32.xlu0 %v2240, 112
      %v2245 = vpop.permute.xlu0 %2244
      %2246 = vrot.lane.b32.xlu0 %v2235, 112
      %v2247 = vpop.permute.xlu0 %2246
      %2248 = vrot.lane.b32.xlu0 %v2241, 112
      %v2249 = vpop.permute.xlu0 %2248
      %2250 = vrot.lane.b32.xlu0 %v2236, 112
      %v2251 = vpop.permute.xlu0 %2250
      %v2252 = vsel %vm374, %v2243, %v2245
      %v2253 = vsel %vm374, %v2245, %v2247
      %v2254 = vsel %vm374, %v2247, %v2249
      %v2255 = vsel %vm374, %v2249, %v2251
      %2260 = vst [vmem:[#allocation2] sm:$0xf] %v2252
      %2261 = vst [vmem:[#allocation2 + $0x8] sm:$0xf] %v2253
      %2262 = vst [vmem:[#allocation2 + $0x10] sm:$0xf] %v2254
      %2263 = vst [vmem:[#allocation2 + $0x18] sm:$0xf] %v2255
      %v2264 = vld [vmem:[%s313 + $0xc] sm:$0xff]
      %v2265 = vld [vmem:[%s313 + $0x14] sm:$0xff]
      %v2266 = vld [vmem:[%s313 + $0x1c] sm:$0xf]
      %v2270 = vcombine.low %v2264, %v2264
      %v2271 = vcombine.low %v2265, %v2265
      %v2272 = vcombine.low %v2266, %v2266
      %2273 = vrot.lane.b32.xlu0 %v2270, 112
      %v2274 = vpop.permute.xlu0 %2273
      %2275 = vrot.lane.b32.xlu0 %v2264, 112
      %v2276 = vpop.permute.xlu0 %2275
      %2277 = vrot.lane.b32.xlu0 %v2271, 112
      %v2278 = vpop.permute.xlu0 %2277
      %2279 = vrot.lane.b32.xlu0 %v2265, 112
      %v2280 = vpop.permute.xlu0 %2279
      %2281 = vrot.lane.b32.xlu0 %v2272, 112
      %v2282 = vpop.permute.xlu0 %2281
      %v2283 = vsel %vm374, %v2274, %v2276
      %v2284 = vsel %vm374, %v2276, %v2278
      %v2285 = vsel %vm374, %v2278, %v2280
      %v2286 = vsel %vm374, %v2280, %v2282
      %2291 = vst [vmem:[#allocation2] sm:$0xf0] %v2283
      %2292 = vst [vmem:[#allocation2 + $0x8] sm:$0xf0] %v2284
      %2293 = vst [vmem:[#allocation2 + $0x10] sm:$0xf0] %v2285
      %2294 = vst [vmem:[#allocation2 + $0x18] sm:$0xf0] %v2286
      %v2295 = vld [vmem:[%s308 + $0xc] sm:$0xff]
      %v2296 = vld [vmem:[%s308 + $0x14] sm:$0xff]
      %v2297 = vld [vmem:[%s308 + $0x1c] sm:$0xf]
      %v2301 = vcombine.high %v2295, %v2295
      %v2302 = vcombine.high %v2296, %v2296
      %2303 = vrot.lane.b32.xlu0 %v2295, 96
      %v2304 = vpop.permute.xlu0 %2303
      %2305 = vrot.lane.b32.xlu0 %v2301, 96
      %v2306 = vpop.permute.xlu0 %2305
      %2307 = vrot.lane.b32.xlu0 %v2296, 96
      %v2308 = vpop.permute.xlu0 %2307
      %2309 = vrot.lane.b32.xlu0 %v2302, 96
      %v2310 = vpop.permute.xlu0 %2309
      %2311 = vrot.lane.b32.xlu0 %v2297, 96
      %v2312 = vpop.permute.xlu0 %2311
      %v2313 = vsel %vm436, %v2304, %v2306
      %v2314 = vsel %vm436, %v2306, %v2308
      %v2315 = vsel %vm436, %v2308, %v2310
      %v2316 = vsel %vm436, %v2310, %v2312
      %2321 = vst [vmem:[#allocation2 + $0x20] sm:$0xf] %v2313
      %2322 = vst [vmem:[#allocation2 + $0x28] sm:$0xf] %v2314
      %2323 = vst [vmem:[#allocation2 + $0x30] sm:$0xf] %v2315
      %2324 = vst [vmem:[#allocation2 + $0x38] sm:$0xf] %v2316
      %v2325 = vld [vmem:[%s313 + $0xc] sm:$0xff]
      %v2326 = vld [vmem:[%s313 + $0x14] sm:$0xff]
      %v2327 = vld [vmem:[%s313 + $0x1c] sm:$0xf]
      %v2331 = vcombine.low %v2325, %v2325
      %v2332 = vcombine.low %v2326, %v2326
      %v2333 = vcombine.low %v2327, %v2327
      %2334 = vrot.lane.b32.xlu0 %v2331, 96
      %v2335 = vpop.permute.xlu0 %2334
      %2336 = vrot.lane.b32.xlu0 %v2325, 96
      %v2337 = vpop.permute.xlu0 %2336
      %2338 = vrot.lane.b32.xlu0 %v2332, 96
      %v2339 = vpop.permute.xlu0 %2338
      %2340 = vrot.lane.b32.xlu0 %v2326, 96
      %v2341 = vpop.permute.xlu0 %2340
      %2342 = vrot.lane.b32.xlu0 %v2333, 96
      %v2343 = vpop.permute.xlu0 %2342
      %v2344 = vsel %vm436, %v2335, %v2337
      %v2345 = vsel %vm436, %v2337, %v2339
      %v2346 = vsel %vm436, %v2339, %v2341
      %v2347 = vsel %vm436, %v2341, %v2343
      %2352 = vst [vmem:[#allocation2 + $0x20] sm:$0xf0] %v2344
      %2353 = vst [vmem:[#allocation2 + $0x28] sm:$0xf0] %v2345
      %2354 = vst [vmem:[#allocation2 + $0x30] sm:$0xf0] %v2346
      %2355 = vst [vmem:[#allocation2 + $0x38] sm:$0xf0] %v2347
      %v2356 = vld [vmem:[%s308 + $0xc] sm:$0xff]
      %v2357 = vld [vmem:[%s308 + $0x14] sm:$0xff]
      %v2358 = vld [vmem:[%s308 + $0x1c] sm:$0xf]
      %v2362 = vcombine.high %v2356, %v2356
      %v2363 = vcombine.high %v2357, %v2357
      %2364 = vrot.lane.b32.xlu0 %v2356, 80
      %v2365 = vpop.permute.xlu0 %2364
      %2366 = vrot.lane.b32.xlu0 %v2362, 80
      %v2367 = vpop.permute.xlu0 %2366
      %2368 = vrot.lane.b32.xlu0 %v2357, 80
      %v2369 = vpop.permute.xlu0 %2368
      %2370 = vrot.lane.b32.xlu0 %v2363, 80
      %v2371 = vpop.permute.xlu0 %2370
      %2372 = vrot.lane.b32.xlu0 %v2358, 80
      %v2373 = vpop.permute.xlu0 %2372
      %v2374 = vsel %vm498, %v2365, %v2367
      %v2375 = vsel %vm498, %v2367, %v2369
      %v2376 = vsel %vm498, %v2369, %v2371
      %v2377 = vsel %vm498, %v2371, %v2373
      %2382 = vst [vmem:[#allocation2 + $0x40] sm:$0xf] %v2374
      %2383 = vst [vmem:[#allocation2 + $0x48] sm:$0xf] %v2375
      %2384 = vst [vmem:[#allocation2 + $0x50] sm:$0xf] %v2376
      %2385 = vst [vmem:[#allocation2 + $0x58] sm:$0xf] %v2377
      %v2386 = vld [vmem:[%s313 + $0xc] sm:$0xff]
      %v2387 = vld [vmem:[%s313 + $0x14] sm:$0xff]
      %v2388 = vld [vmem:[%s313 + $0x1c] sm:$0xf]
      %v2392 = vcombine.low %v2386, %v2386
      %v2393 = vcombine.low %v2387, %v2387
      %v2394 = vcombine.low %v2388, %v2388
      %2395 = vrot.lane.b32.xlu0 %v2392, 80
      %v2396 = vpop.permute.xlu0 %2395
      %2397 = vrot.lane.b32.xlu0 %v2386, 80
      %v2398 = vpop.permute.xlu0 %2397
      %2399 = vrot.lane.b32.xlu0 %v2393, 80
      %v2400 = vpop.permute.xlu0 %2399
      %2401 = vrot.lane.b32.xlu0 %v2387, 80
      %v2402 = vpop.permute.xlu0 %2401
      %2403 = vrot.lane.b32.xlu0 %v2394, 80
      %v2404 = vpop.permute.xlu0 %2403
      %v2405 = vsel %vm498, %v2396, %v2398
      %v2406 = vsel %vm498, %v2398, %v2400
      %v2407 = vsel %vm498, %v2400, %v2402
      %v2408 = vsel %vm498, %v2402, %v2404
      %2413 = vst [vmem:[#allocation2 + $0x40] sm:$0xf0] %v2405
      %2414 = vst [vmem:[#allocation2 + $0x48] sm:$0xf0] %v2406
      %2415 = vst [vmem:[#allocation2 + $0x50] sm:$0xf0] %v2407
      %2416 = vst [vmem:[#allocation2 + $0x58] sm:$0xf0] %v2408
      %v2417 = vld [vmem:[%s308 + $0xc] sm:$0xff]
      %v2418 = vld [vmem:[%s308 + $0x14] sm:$0xff]
      %v2419 = vld [vmem:[%s308 + $0x1c] sm:$0xf]
      %v2423 = vcombine.high %v2417, %v2417
      %v2424 = vcombine.high %v2418, %v2418
      %2425 = vrot.lane.b32.xlu0 %v2417, 64
      %v2426 = vpop.permute.xlu0 %2425
      %2427 = vrot.lane.b32.xlu0 %v2423, 64
      %v2428 = vpop.permute.xlu0 %2427
      %2429 = vrot.lane.b32.xlu0 %v2418, 64
      %v2430 = vpop.permute.xlu0 %2429
      %2431 = vrot.lane.b32.xlu0 %v2424, 64
      %v2432 = vpop.permute.xlu0 %2431
      %2433 = vrot.lane.b32.xlu0 %v2419, 64
      %v2434 = vpop.permute.xlu0 %2433
      %v2435 = vsel %vm560, %v2426, %v2428
      %v2436 = vsel %vm560, %v2428, %v2430
      %v2437 = vsel %vm560, %v2430, %v2432
      %v2438 = vsel %vm560, %v2432, %v2434
      %2443 = vst [vmem:[#allocation2 + $0x60] sm:$0xf] %v2435
      %2444 = vst [vmem:[#allocation2 + $0x68] sm:$0xf] %v2436
      %2445 = vst [vmem:[#allocation2 + $0x70] sm:$0xf] %v2437
      %2446 = vst [vmem:[#allocation2 + $0x78] sm:$0xf] %v2438
      %v2447 = vld [vmem:[%s313 + $0xc] sm:$0xff]
      %v2448 = vld [vmem:[%s313 + $0x14] sm:$0xff]
      %v2449 = vld [vmem:[%s313 + $0x1c] sm:$0xf]
      %v2453 = vcombine.low %v2447, %v2447
      %v2454 = vcombine.low %v2448, %v2448
      %v2455 = vcombine.low %v2449, %v2449
      %2456 = vrot.lane.b32.xlu0 %v2453, 64
      %v2457 = vpop.permute.xlu0 %2456
      %2458 = vrot.lane.b32.xlu0 %v2447, 64
      %v2459 = vpop.permute.xlu0 %2458
      %2460 = vrot.lane.b32.xlu0 %v2454, 64
      %v2461 = vpop.permute.xlu0 %2460
      %2462 = vrot.lane.b32.xlu0 %v2448, 64
      %v2463 = vpop.permute.xlu0 %2462
      %2464 = vrot.lane.b32.xlu0 %v2455, 64
      %v2465 = vpop.permute.xlu0 %2464
      %v2466 = vsel %vm560, %v2457, %v2459
      %v2467 = vsel %vm560, %v2459, %v2461
      %v2468 = vsel %vm560, %v2461, %v2463
      %v2469 = vsel %vm560, %v2463, %v2465
      %2474 = vst [vmem:[#allocation2 + $0x60] sm:$0xf0] %v2466
      %2475 = vst [vmem:[#allocation2 + $0x68] sm:$0xf0] %v2467
      %2476 = vst [vmem:[#allocation2 + $0x70] sm:$0xf0] %v2468
      %2477 = vst [vmem:[#allocation2 + $0x78] sm:$0xf0] %v2469
      %v2478 = vld [vmem:[%s308 + $0xc] sm:$0xff]
      %v2479 = vld [vmem:[%s308 + $0x14] sm:$0xff]
      %v2480 = vld [vmem:[%s308 + $0x1c] sm:$0xf]
      %v2484 = vcombine.high %v2478, %v2478
      %v2485 = vcombine.high %v2479, %v2479
      %2486 = vrot.lane.b32.xlu0 %v2478, 48
      %v2487 = vpop.permute.xlu0 %2486
      %2488 = vrot.lane.b32.xlu0 %v2484, 48
      %v2489 = vpop.permute.xlu0 %2488
      %2490 = vrot.lane.b32.xlu0 %v2479, 48
      %v2491 = vpop.permute.xlu0 %2490
      %2492 = vrot.lane.b32.xlu0 %v2485, 48
      %v2493 = vpop.permute.xlu0 %2492
      %2494 = vrot.lane.b32.xlu0 %v2480, 48
      %v2495 = vpop.permute.xlu0 %2494
      %v2496 = vsel %vm622, %v2487, %v2489
      %v2497 = vsel %vm622, %v2489, %v2491
      %v2498 = vsel %vm622, %v2491, %v2493
      %v2499 = vsel %vm622, %v2493, %v2495
      %2504 = vst [vmem:[#allocation2 + $0x80] sm:$0xf] %v2496
      %2505 = vst [vmem:[#allocation2 + $0x88] sm:$0xf] %v2497
      %2506 = vst [vmem:[#allocation2 + $0x90] sm:$0xf] %v2498
      %2507 = vst [vmem:[#allocation2 + $0x98] sm:$0xf] %v2499
      %v2508 = vld [vmem:[%s313 + $0xc] sm:$0xff]
      %v2509 = vld [vmem:[%s313 + $0x14] sm:$0xff]
      %v2510 = vld [vmem:[%s313 + $0x1c] sm:$0xf]
      %v2514 = vcombine.low %v2508, %v2508
      %v2515 = vcombine.low %v2509, %v2509
      %v2516 = vcombine.low %v2510, %v2510
      %2517 = vrot.lane.b32.xlu0 %v2514, 48
      %v2518 = vpop.permute.xlu0 %2517
      %2519 = vrot.lane.b32.xlu0 %v2508, 48
      %v2520 = vpop.permute.xlu0 %2519
      %2521 = vrot.lane.b32.xlu0 %v2515, 48
      %v2522 = vpop.permute.xlu0 %2521
      %2523 = vrot.lane.b32.xlu0 %v2509, 48
      %v2524 = vpop.permute.xlu0 %2523
      %2525 = vrot.lane.b32.xlu0 %v2516, 48
      %v2526 = vpop.permute.xlu0 %2525
      %v2527 = vsel %vm622, %v2518, %v2520
      %v2528 = vsel %vm622, %v2520, %v2522
      %v2529 = vsel %vm622, %v2522, %v2524
      %v2530 = vsel %vm622, %v2524, %v2526
      %2535 = vst [vmem:[#allocation2 + $0x80] sm:$0xf0] %v2527
      %2536 = vst [vmem:[#allocation2 + $0x88] sm:$0xf0] %v2528
      %2537 = vst [vmem:[#allocation2 + $0x90] sm:$0xf0] %v2529
      %2538 = vst [vmem:[#allocation2 + $0x98] sm:$0xf0] %v2530
      %v2539 = vld [vmem:[%s308 + $0xc] sm:$0xff]
      %v2540 = vld [vmem:[%s308 + $0x14] sm:$0xff]
      %v2541 = vld [vmem:[%s308 + $0x1c] sm:$0xf]
      %v2545 = vcombine.high %v2539, %v2539
      %v2546 = vcombine.high %v2540, %v2540
      %2547 = vrot.lane.b32.xlu0 %v2539, 32
      %v2548 = vpop.permute.xlu0 %2547
      %2549 = vrot.lane.b32.xlu0 %v2545, 32
      %v2550 = vpop.permute.xlu0 %2549
      %2551 = vrot.lane.b32.xlu0 %v2540, 32
      %v2552 = vpop.permute.xlu0 %2551
      %2553 = vrot.lane.b32.xlu0 %v2546, 32
      %v2554 = vpop.permute.xlu0 %2553
      %2555 = vrot.lane.b32.xlu0 %v2541, 32
      %v2556 = vpop.permute.xlu0 %2555
      %v2557 = vsel %vm684, %v2548, %v2550
      %v2558 = vsel %vm684, %v2550, %v2552
      %v2559 = vsel %vm684, %v2552, %v2554
      %v2560 = vsel %vm684, %v2554, %v2556
      %2565 = vst [vmem:[#allocation2 + $0xa0] sm:$0xf] %v2557
      %2566 = vst [vmem:[#allocation2 + $0xa8] sm:$0xf] %v2558
      %2567 = vst [vmem:[#allocation2 + $0xb0] sm:$0xf] %v2559
      %2568 = vst [vmem:[#allocation2 + $0xb8] sm:$0xf] %v2560
      %v2569 = vld [vmem:[%s313 + $0xc] sm:$0xff]
      %v2570 = vld [vmem:[%s313 + $0x14] sm:$0xff]
      %v2571 = vld [vmem:[%s313 + $0x1c] sm:$0xf]
      %v2575 = vcombine.low %v2569, %v2569
      %v2576 = vcombine.low %v2570, %v2570
      %v2577 = vcombine.low %v2571, %v2571
      %2578 = vrot.lane.b32.xlu0 %v2575, 32
      %v2579 = vpop.permute.xlu0 %2578
      %2580 = vrot.lane.b32.xlu0 %v2569, 32
      %v2581 = vpop.permute.xlu0 %2580
      %2582 = vrot.lane.b32.xlu0 %v2576, 32
      %v2583 = vpop.permute.xlu0 %2582
      %2584 = vrot.lane.b32.xlu0 %v2570, 32
      %v2585 = vpop.permute.xlu0 %2584
      %2586 = vrot.lane.b32.xlu0 %v2577, 32
      %v2587 = vpop.permute.xlu0 %2586
      %v2588 = vsel %vm684, %v2579, %v2581
      %v2589 = vsel %vm684, %v2581, %v2583
      %v2590 = vsel %vm684, %v2583, %v2585
      %v2591 = vsel %vm684, %v2585, %v2587
      %2596 = vst [vmem:[#allocation2 + $0xa0] sm:$0xf0] %v2588
      %2597 = vst [vmem:[#allocation2 + $0xa8] sm:$0xf0] %v2589
      %2598 = vst [vmem:[#allocation2 + $0xb0] sm:$0xf0] %v2590
      %2599 = vst [vmem:[#allocation2 + $0xb8] sm:$0xf0] %v2591
      %v2600 = vld [vmem:[%s308 + $0xc] sm:$0xff]
      %v2601 = vld [vmem:[%s308 + $0x14] sm:$0xff]
      %v2602 = vld [vmem:[%s308 + $0x1c] sm:$0xf]
      %v2606 = vcombine.high %v2600, %v2600
      %v2607 = vcombine.high %v2601, %v2601
      %2608 = vrot.lane.b32.xlu0 %v2600, 16
      %v2609 = vpop.permute.xlu0 %2608
      %2610 = vrot.lane.b32.xlu0 %v2606, 16
      %v2611 = vpop.permute.xlu0 %2610
      %2612 = vrot.lane.b32.xlu0 %v2601, 16
      %v2613 = vpop.permute.xlu0 %2612
      %2614 = vrot.lane.b32.xlu0 %v2607, 16
      %v2615 = vpop.permute.xlu0 %2614
      %2616 = vrot.lane.b32.xlu0 %v2602, 16
      %v2617 = vpop.permute.xlu0 %2616
      %v2618 = vsel %vm746, %v2609, %v2611
      %v2619 = vsel %vm746, %v2611, %v2613
      %v2620 = vsel %vm746, %v2613, %v2615
      %v2621 = vsel %vm746, %v2615, %v2617
      %2626 = vst [vmem:[#allocation2 + $0xc0] sm:$0xf] %v2618
      %2627 = vst [vmem:[#allocation2 + $0xc8] sm:$0xf] %v2619
      %2628 = vst [vmem:[#allocation2 + $0xd0] sm:$0xf] %v2620
      %2629 = vst [vmem:[#allocation2 + $0xd8] sm:$0xf] %v2621
      %v2630 = vld [vmem:[%s313 + $0xc] sm:$0xff]
      %v2631 = vld [vmem:[%s313 + $0x14] sm:$0xff]
      %v2632 = vld [vmem:[%s313 + $0x1c] sm:$0xf]
      %v2636 = vcombine.low %v2630, %v2630
      %v2637 = vcombine.low %v2631, %v2631
      %v2638 = vcombine.low %v2632, %v2632
      %2639 = vrot.lane.b32.xlu0 %v2636, 16
      %v2640 = vpop.permute.xlu0 %2639
      %2641 = vrot.lane.b32.xlu0 %v2630, 16
      %v2642 = vpop.permute.xlu0 %2641
      %2643 = vrot.lane.b32.xlu0 %v2637, 16
      %v2644 = vpop.permute.xlu0 %2643
      %2645 = vrot.lane.b32.xlu0 %v2631, 16
      %v2646 = vpop.permute.xlu0 %2645
      %2647 = vrot.lane.b32.xlu0 %v2638, 16
      %v2648 = vpop.permute.xlu0 %2647
      %v2649 = vsel %vm746, %v2640, %v2642
      %v2650 = vsel %vm746, %v2642, %v2644
      %v2651 = vsel %vm746, %v2644, %v2646
      %v2652 = vsel %vm746, %v2646, %v2648
      %2657 = vst [vmem:[#allocation2 + $0xc0] sm:$0xf0] %v2649
      %2658 = vst [vmem:[#allocation2 + $0xc8] sm:$0xf0] %v2650
      %2659 = vst [vmem:[#allocation2 + $0xd0] sm:$0xf0] %v2651
      %2660 = vst [vmem:[#allocation2 + $0xd8] sm:$0xf0] %v2652
      %v2661 = vld [vmem:[%s308 + $0x10] sm:$0xff]
      %v2662 = vld [vmem:[%s308 + $0x18] sm:$0xff]
      %v2665 = vcombine.high %v2661, %v2661
      %v2666 = vcombine.high %v2662, %v2662
      %2669 = vst [vmem:[#allocation2 + $0xe0] sm:$0xf] %v2661
      %2670 = vst [vmem:[#allocation2 + $0xe8] sm:$0xf] %v2665
      %2671 = vst [vmem:[#allocation2 + $0xf0] sm:$0xf] %v2662
      %2672 = vst [vmem:[#allocation2 + $0xf8] sm:$0xf] %v2666
      %v2673 = vld [vmem:[%s313 + $0x10] sm:$0xff]
      %v2674 = vld [vmem:[%s313 + $0x18] sm:$0xff]
      %v2677 = vcombine.low %v2673, %v2673
      %v2678 = vcombine.low %v2674, %v2674
      %2681 = vst [vmem:[#allocation2 + $0xe0] sm:$0xf0] %v2677
      %2682 = vst [vmem:[#allocation2 + $0xe8] sm:$0xf0] %v2673
      %2683 = vst [vmem:[#allocation2 + $0xf0] sm:$0xf0] %v2678
      %2684 = vst [vmem:[#allocation2 + $0xf8] sm:$0xf0] %v2674
      %v2685 = vld [vmem:[%s308 + $0x10] sm:$0xff]
      %v2686 = vld [vmem:[%s308 + $0x18] sm:$0xff]
      %v2687 = vld [vmem:[%s308 + $0x20] sm:$0xf]
      %v2691 = vcombine.high %v2685, %v2685
      %v2692 = vcombine.high %v2686, %v2686
      %2693 = vrot.lane.b32.xlu0 %v2685, 112
      %v2694 = vpop.permute.xlu0 %2693
      %2695 = vrot.lane.b32.xlu0 %v2691, 112
      %v2696 = vpop.permute.xlu0 %2695
      %2697 = vrot.lane.b32.xlu0 %v2686, 112
      %v2698 = vpop.permute.xlu0 %2697
      %2699 = vrot.lane.b32.xlu0 %v2692, 112
      %v2700 = vpop.permute.xlu0 %2699
      %2701 = vrot.lane.b32.xlu0 %v2687, 112
      %v2702 = vpop.permute.xlu0 %2701
      %v2703 = vsel %vm374, %v2694, %v2696
      %v2704 = vsel %vm374, %v2696, %v2698
      %v2705 = vsel %vm374, %v2698, %v2700
      %v2706 = vsel %vm374, %v2700, %v2702
      %2711 = vst [vmem:[#allocation2 + $0x100] sm:$0xf] %v2703
      %2712 = vst [vmem:[#allocation2 + $0x108] sm:$0xf] %v2704
      %2713 = vst [vmem:[#allocation2 + $0x110] sm:$0xf] %v2705
      %2714 = vst [vmem:[#allocation2 + $0x118] sm:$0xf] %v2706
      %v2715 = vld [vmem:[%s313 + $0x10] sm:$0xff]
      %v2716 = vld [vmem:[%s313 + $0x18] sm:$0xff]
      %v2717 = vld [vmem:[%s313 + $0x20] sm:$0xf]
      %v2721 = vcombine.low %v2715, %v2715
      %v2722 = vcombine.low %v2716, %v2716
      %v2723 = vcombine.low %v2717, %v2717
      %2724 = vrot.lane.b32.xlu0 %v2721, 112
      %v2725 = vpop.permute.xlu0 %2724
      %2726 = vrot.lane.b32.xlu0 %v2715, 112
      %v2727 = vpop.permute.xlu0 %2726
      %2728 = vrot.lane.b32.xlu0 %v2722, 112
      %v2729 = vpop.permute.xlu0 %2728
      %2730 = vrot.lane.b32.xlu0 %v2716, 112
      %v2731 = vpop.permute.xlu0 %2730
      %2732 = vrot.lane.b32.xlu0 %v2723, 112
      %v2733 = vpop.permute.xlu0 %2732
      %v2734 = vsel %vm374, %v2725, %v2727
      %v2735 = vsel %vm374, %v2727, %v2729
      %v2736 = vsel %vm374, %v2729, %v2731
      %v2737 = vsel %vm374, %v2731, %v2733
      %2742 = vst [vmem:[#allocation2 + $0x100] sm:$0xf0] %v2734
      %2743 = vst [vmem:[#allocation2 + $0x108] sm:$0xf0] %v2735
      %2744 = vst [vmem:[#allocation2 + $0x110] sm:$0xf0] %v2736
      %2745 = vst [vmem:[#allocation2 + $0x118] sm:$0xf0] %v2737
      %v2746 = vld [vmem:[%s308 + $0x10] sm:$0xff]
      %v2747 = vld [vmem:[%s308 + $0x18] sm:$0xff]
      %v2748 = vld [vmem:[%s308 + $0x20] sm:$0xf]
      %v2752 = vcombine.high %v2746, %v2746
      %v2753 = vcombine.high %v2747, %v2747
      %2754 = vrot.lane.b32.xlu0 %v2746, 96
      %v2755 = vpop.permute.xlu0 %2754
      %2756 = vrot.lane.b32.xlu0 %v2752, 96
      %v2757 = vpop.permute.xlu0 %2756
      %2758 = vrot.lane.b32.xlu0 %v2747, 96
      %v2759 = vpop.permute.xlu0 %2758
      %2760 = vrot.lane.b32.xlu0 %v2753, 96
      %v2761 = vpop.permute.xlu0 %2760
      %2762 = vrot.lane.b32.xlu0 %v2748, 96
      %v2763 = vpop.permute.xlu0 %2762
      %v2764 = vsel %vm436, %v2755, %v2757
      %v2765 = vsel %vm436, %v2757, %v2759
      %v2766 = vsel %vm436, %v2759, %v2761
      %v2767 = vsel %vm436, %v2761, %v2763
      %2772 = vst [vmem:[#allocation2 + $0x120] sm:$0xf] %v2764
      %2773 = vst [vmem:[#allocation2 + $0x128] sm:$0xf] %v2765
      %2774 = vst [vmem:[#allocation2 + $0x130] sm:$0xf] %v2766
      %2775 = vst [vmem:[#allocation2 + $0x138] sm:$0xf] %v2767
      %v2776 = vld [vmem:[%s313 + $0x10] sm:$0xff]
      %v2777 = vld [vmem:[%s313 + $0x18] sm:$0xff]
      %v2778 = vld [vmem:[%s313 + $0x20] sm:$0xf]
      %v2782 = vcombine.low %v2776, %v2776
      %v2783 = vcombine.low %v2777, %v2777
      %v2784 = vcombine.low %v2778, %v2778
      %2785 = vrot.lane.b32.xlu0 %v2782, 96
      %v2786 = vpop.permute.xlu0 %2785
      %2787 = vrot.lane.b32.xlu0 %v2776, 96
      %v2788 = vpop.permute.xlu0 %2787
      %2789 = vrot.lane.b32.xlu0 %v2783, 96
      %v2790 = vpop.permute.xlu0 %2789
      %2791 = vrot.lane.b32.xlu0 %v2777, 96
      %v2792 = vpop.permute.xlu0 %2791
      %2793 = vrot.lane.b32.xlu0 %v2784, 96
      %v2794 = vpop.permute.xlu0 %2793
      %v2795 = vsel %vm436, %v2786, %v2788
      %v2796 = vsel %vm436, %v2788, %v2790
      %v2797 = vsel %vm436, %v2790, %v2792
      %v2798 = vsel %vm436, %v2792, %v2794
      %2803 = vst [vmem:[#allocation2 + $0x120] sm:$0xf0] %v2795
      %2804 = vst [vmem:[#allocation2 + $0x128] sm:$0xf0] %v2796
      %2805 = vst [vmem:[#allocation2 + $0x130] sm:$0xf0] %v2797
      %2806 = vst [vmem:[#allocation2 + $0x138] sm:$0xf0] %v2798
      %v2807 = vld [vmem:[%s308 + $0x10] sm:$0xff]
      %v2808 = vld [vmem:[%s308 + $0x18] sm:$0xff]
      %v2809 = vld [vmem:[%s308 + $0x20] sm:$0xf]
      %v2813 = vcombine.high %v2807, %v2807
      %v2814 = vcombine.high %v2808, %v2808
      %2815 = vrot.lane.b32.xlu0 %v2807, 80
      %v2816 = vpop.permute.xlu0 %2815
      %2817 = vrot.lane.b32.xlu0 %v2813, 80
      %v2818 = vpop.permute.xlu0 %2817
      %2819 = vrot.lane.b32.xlu0 %v2808, 80
      %v2820 = vpop.permute.xlu0 %2819
      %2821 = vrot.lane.b32.xlu0 %v2814, 80
      %v2822 = vpop.permute.xlu0 %2821
      %2823 = vrot.lane.b32.xlu0 %v2809, 80
      %v2824 = vpop.permute.xlu0 %2823
      %v2825 = vsel %vm498, %v2816, %v2818
      %v2826 = vsel %vm498, %v2818, %v2820
      %v2827 = vsel %vm498, %v2820, %v2822
      %v2828 = vsel %vm498, %v2822, %v2824
      %2833 = vst [vmem:[#allocation2 + $0x140] sm:$0xf] %v2825
      %2834 = vst [vmem:[#allocation2 + $0x148] sm:$0xf] %v2826
      %2835 = vst [vmem:[#allocation2 + $0x150] sm:$0xf] %v2827
      %2836 = vst [vmem:[#allocation2 + $0x158] sm:$0xf] %v2828
      %v2837 = vld [vmem:[%s313 + $0x10] sm:$0xff]
      %v2838 = vld [vmem:[%s313 + $0x18] sm:$0xff]
      %v2839 = vld [vmem:[%s313 + $0x20] sm:$0xf]
      %v2843 = vcombine.low %v2837, %v2837
      %v2844 = vcombine.low %v2838, %v2838
      %v2845 = vcombine.low %v2839, %v2839
      %2846 = vrot.lane.b32.xlu0 %v2843, 80
      %v2847 = vpop.permute.xlu0 %2846
      %2848 = vrot.lane.b32.xlu0 %v2837, 80
      %v2849 = vpop.permute.xlu0 %2848
      %2850 = vrot.lane.b32.xlu0 %v2844, 80
      %v2851 = vpop.permute.xlu0 %2850
      %2852 = vrot.lane.b32.xlu0 %v2838, 80
      %v2853 = vpop.permute.xlu0 %2852
      %2854 = vrot.lane.b32.xlu0 %v2845, 80
      %v2855 = vpop.permute.xlu0 %2854
      %v2856 = vsel %vm498, %v2847, %v2849
      %v2857 = vsel %vm498, %v2849, %v2851
      %v2858 = vsel %vm498, %v2851, %v2853
      %v2859 = vsel %vm498, %v2853, %v2855
      %2864 = vst [vmem:[#allocation2 + $0x140] sm:$0xf0] %v2856
      %2865 = vst [vmem:[#allocation2 + $0x148] sm:$0xf0] %v2857
      %2866 = vst [vmem:[#allocation2 + $0x150] sm:$0xf0] %v2858
      %2867 = vst [vmem:[#allocation2 + $0x158] sm:$0xf0] %v2859
      %v2868 = vld [vmem:[%s308 + $0x10] sm:$0xff]
      %v2869 = vld [vmem:[%s308 + $0x18] sm:$0xff]
      %v2870 = vld [vmem:[%s308 + $0x20] sm:$0xf]
      %v2874 = vcombine.high %v2868, %v2868
      %v2875 = vcombine.high %v2869, %v2869
      %2876 = vrot.lane.b32.xlu0 %v2868, 64
      %v2877 = vpop.permute.xlu0 %2876
      %2878 = vrot.lane.b32.xlu0 %v2874, 64
      %v2879 = vpop.permute.xlu0 %2878
      %2880 = vrot.lane.b32.xlu0 %v2869, 64
      %v2881 = vpop.permute.xlu0 %2880
      %2882 = vrot.lane.b32.xlu0 %v2875, 64
      %v2883 = vpop.permute.xlu0 %2882
      %2884 = vrot.lane.b32.xlu0 %v2870, 64
      %v2885 = vpop.permute.xlu0 %2884
      %v2886 = vsel %vm560, %v2877, %v2879
      %v2887 = vsel %vm560, %v2879, %v2881
      %v2888 = vsel %vm560, %v2881, %v2883
      %v2889 = vsel %vm560, %v2883, %v2885
      %2894 = vst [vmem:[#allocation2 + $0x160] sm:$0xf] %v2886
      %2895 = vst [vmem:[#allocation2 + $0x168] sm:$0xf] %v2887
      %2896 = vst [vmem:[#allocation2 + $0x170] sm:$0xf] %v2888
      %2897 = vst [vmem:[#allocation2 + $0x178] sm:$0xf] %v2889
      %v2898 = vld [vmem:[%s313 + $0x10] sm:$0xff]
      %v2899 = vld [vmem:[%s313 + $0x18] sm:$0xff]
      %v2900 = vld [vmem:[%s313 + $0x20] sm:$0xf]
      %v2904 = vcombine.low %v2898, %v2898
      %v2905 = vcombine.low %v2899, %v2899
      %v2906 = vcombine.low %v2900, %v2900
      %2907 = vrot.lane.b32.xlu0 %v2904, 64
      %v2908 = vpop.permute.xlu0 %2907
      %2909 = vrot.lane.b32.xlu0 %v2898, 64
      %v2910 = vpop.permute.xlu0 %2909
      %2911 = vrot.lane.b32.xlu0 %v2905, 64
      %v2912 = vpop.permute.xlu0 %2911
      %2913 = vrot.lane.b32.xlu0 %v2899, 64
      %v2914 = vpop.permute.xlu0 %2913
      %2915 = vrot.lane.b32.xlu0 %v2906, 64
      %v2916 = vpop.permute.xlu0 %2915
      %v2917 = vsel %vm560, %v2908, %v2910
      %v2918 = vsel %vm560, %v2910, %v2912
      %v2919 = vsel %vm560, %v2912, %v2914
      %v2920 = vsel %vm560, %v2914, %v2916
      %2925 = vst [vmem:[#allocation2 + $0x160] sm:$0xf0] %v2917
      %2926 = vst [vmem:[#allocation2 + $0x168] sm:$0xf0] %v2918
      %2927 = vst [vmem:[#allocation2 + $0x170] sm:$0xf0] %v2919
      %2928 = vst [vmem:[#allocation2 + $0x178] sm:$0xf0] %v2920
      %v2929 = vld [vmem:[%s308 + $0x10] sm:$0xff]
      %v2930 = vld [vmem:[%s308 + $0x18] sm:$0xff]
      %v2931 = vld [vmem:[%s308 + $0x20] sm:$0xf]
      %v2935 = vcombine.high %v2929, %v2929
      %v2936 = vcombine.high %v2930, %v2930
      %2937 = vrot.lane.b32.xlu0 %v2929, 48
      %v2938 = vpop.permute.xlu0 %2937
      %2939 = vrot.lane.b32.xlu0 %v2935, 48
      %v2940 = vpop.permute.xlu0 %2939
      %2941 = vrot.lane.b32.xlu0 %v2930, 48
      %v2942 = vpop.permute.xlu0 %2941
      %2943 = vrot.lane.b32.xlu0 %v2936, 48
      %v2944 = vpop.permute.xlu0 %2943
      %2945 = vrot.lane.b32.xlu0 %v2931, 48
      %v2946 = vpop.permute.xlu0 %2945
      %v2947 = vsel %vm622, %v2938, %v2940
      %v2948 = vsel %vm622, %v2940, %v2942
      %v2949 = vsel %vm622, %v2942, %v2944
      %v2950 = vsel %vm622, %v2944, %v2946
      %2955 = vst [vmem:[#allocation2 + $0x180] sm:$0xf] %v2947
      %2956 = vst [vmem:[#allocation2 + $0x188] sm:$0xf] %v2948
      %2957 = vst [vmem:[#allocation2 + $0x190] sm:$0xf] %v2949
      %2958 = vst [vmem:[#allocation2 + $0x198] sm:$0xf] %v2950
      %s2959 = scalar_lea.vmem %s2, 64
      %v2960 = vld [vmem:[%s2959] sm:$0xff]
      %v2961 = vld [vmem:[%s2959 + $0x8] sm:$0xff]
      %v2962 = vld [vmem:[%s2959 + $0x10] sm:$0xff]
      %v2963 = vld [vmem:[%s2959 + $0x18] sm:$0xff]
      %v2964 = vld [vmem:[#allocation2] sm:$0xff]
      %v2965 = vld [vmem:[#allocation2 + $0x8] sm:$0xff]
      %v2966 = vld [vmem:[#allocation2 + $0x10] sm:$0xff]
      %v2967 = vld [vmem:[#allocation2 + $0x18] sm:$0xff]
      %v2968 = vld [vmem:[#allocation2 + $0x20] sm:$0xff]
      %v2969 = vld [vmem:[#allocation2 + $0x28] sm:$0xff]
      %v2970 = vld [vmem:[#allocation2 + $0x30] sm:$0xff]
      %v2971 = vld [vmem:[#allocation2 + $0x38] sm:$0xff]
      %v2972 = vld [vmem:[#allocation2 + $0x40] sm:$0xff]
      %v2973 = vld [vmem:[#allocation2 + $0x48] sm:$0xff]
      %v2974 = vld [vmem:[#allocation2 + $0x50] sm:$0xff]
      %v2975 = vld [vmem:[#allocation2 + $0x58] sm:$0xff]
      %v2976 = vld [vmem:[#allocation2 + $0x60] sm:$0xff]
      %v2977 = vld [vmem:[#allocation2 + $0x68] sm:$0xff]
      %v2978 = vld [vmem:[#allocation2 + $0x70] sm:$0xff]
      %v2979 = vld [vmem:[#allocation2 + $0x78] sm:$0xff]
      %v2980 = vld [vmem:[#allocation2 + $0x80] sm:$0xff]
      %v2981 = vld [vmem:[#allocation2 + $0x88] sm:$0xff]
      %v2982 = vld [vmem:[#allocation2 + $0x90] sm:$0xff]
      %v2983 = vld [vmem:[#allocation2 + $0x98] sm:$0xff]
      %v2984 = vld [vmem:[#allocation2 + $0xa0] sm:$0xff]
      %v2985 = vld [vmem:[#allocation2 + $0xa8] sm:$0xff]
      %v2986 = vld [vmem:[#allocation2 + $0xb0] sm:$0xff]
      %v2987 = vld [vmem:[#allocation2 + $0xb8] sm:$0xff]
      %v2988 = vld [vmem:[#allocation2 + $0xc0] sm:$0xff]
      %v2989 = vld [vmem:[#allocation2 + $0xc8] sm:$0xff]
      %v2990 = vld [vmem:[#allocation2 + $0xd0] sm:$0xff]
      %v2991 = vld [vmem:[#allocation2 + $0xd8] sm:$0xff]
      %v2992 = vld [vmem:[#allocation2 + $0xe0] sm:$0xff]
      %v2993 = vld [vmem:[#allocation2 + $0xe8] sm:$0xff]
      %v2994 = vld [vmem:[#allocation2 + $0xf0] sm:$0xff]
      %v2995 = vld [vmem:[#allocation2 + $0xf8] sm:$0xff]
      %v2996 = vld [vmem:[#allocation2 + $0x100] sm:$0xff]
      %v2997 = vld [vmem:[#allocation2 + $0x108] sm:$0xff]
      %v2998 = vld [vmem:[#allocation2 + $0x110] sm:$0xff]
      %v2999 = vld [vmem:[#allocation2 + $0x118] sm:$0xff]
      %v3000 = vld [vmem:[#allocation2 + $0x120] sm:$0xff]
      %v3001 = vld [vmem:[#allocation2 + $0x128] sm:$0xff]
      %v3002 = vld [vmem:[#allocation2 + $0x130] sm:$0xff]
      %v3003 = vld [vmem:[#allocation2 + $0x138] sm:$0xff]
      %v3004 = vld [vmem:[#allocation2 + $0x140] sm:$0xff]
      %v3005 = vld [vmem:[#allocation2 + $0x148] sm:$0xff]
      %v3006 = vld [vmem:[#allocation2 + $0x150] sm:$0xff]
      %v3007 = vld [vmem:[#allocation2 + $0x158] sm:$0xff]
      %v3008 = vld [vmem:[#allocation2 + $0x160] sm:$0xff]
      %v3009 = vld [vmem:[#allocation2 + $0x168] sm:$0xff]
      %v3010 = vld [vmem:[#allocation2 + $0x170] sm:$0xff]
      %v3011 = vld [vmem:[#allocation2 + $0x178] sm:$0xff]
      %v3012 = vld [vmem:[#allocation2 + $0x180] sm:$0xf]
      %v3013 = vld [vmem:[#allocation2 + $0x188] sm:$0xf]
      %v3014 = vld [vmem:[#allocation2 + $0x190] sm:$0xf]
      %v3015 = vld [vmem:[#allocation2 + $0x198] sm:$0xf]
      %v3017 = vsel %vm1828, %v2960, 0
      %v3020 = vsel %vm1828, %v2961, 0
      %v3023 = vsel %vm1828, %v2962, 0
      %v3026 = vsel %vm1828, %v2963, 0
      %v3029 = vsel %vm1841, %v3012, 0
      %v3032 = vsel %vm1841, %v3013, 0
      %v3035 = vsel %vm1841, %v3014, 0
      %v3038 = vsel %vm1841, %v3015, 0
      %3040 = vmatprep.subr.mxu0 %v2965
      %3041 = vmatpush1.msra.mxu0 %v2964
      %3042 = vmatprep.subr.mxu0 %v2969
      %3043 = vmatpush1.msra.mxu0 %v2968
      %3044 = vmatprep.subr.mxu0 %v2973
      %3045 = vmatpush1.msra.mxu0 %v2972
      %3046 = vmatprep.subr.mxu0 %v2977
      %3047 = vmatpush1.msra.mxu0 %v2976
      %3048 = vmatprep.subr.mxu0 %v2981
      %3049 = vmatpush1.msra.mxu0 %v2980
      %3050 = vmatprep.subr.mxu0 %v2985
      %3051 = vmatpush1.msra.mxu0 %v2984
      %3052 = vmatprep.subr.mxu0 %v2989
      %3053 = vmatpush1.msra.mxu0 %v2988
      %3054 = vmatprep.subr.mxu0 %v2993
      %3055 = vmatpush1.msra.mxu0 %v2992
      %3056 = vmatprep.subr.mxu0 %v2997
      %3057 = vmatpush1.msra.mxu0 %v2996
      %3058 = vmatprep.subr.mxu0 %v3001
      %3059 = vmatpush1.msra.mxu0 %v3000
      %3060 = vmatprep.subr.mxu0 %v3005
      %3061 = vmatpush1.msra.mxu0 %v3004
      %3062 = vmatprep.subr.mxu0 %v3009
      %3063 = vmatpush1.msra.mxu0 %v3008
      %3064 = vmatprep.subr.mxu0 %v3032
      %3065 = vmatpush1.msra.mxu0 %v3029
      %3066 = vmatprep.subr.mxu0 0.0
      %3067 = vmatpush1.msra.mxu0 0.0
      %3068 = vmatprep.subr.mxu0 0.0
      %3069 = vmatpush1.msra.mxu0 0.0
      %3070 = vmatprep.subr.mxu0 0.0
      %3071 = vmatpush1.msra.mxu0 0.0
      %3072 = vmatprep.subr.mxu0 0.0
      %3073 = vmatpush1.msra.mxu0 0.0
      %3074 = vmatprep.subr.mxu0 0.0
      %3075 = vmatpush1.msra.mxu0 0.0
      %3076 = vmatprep.subr.mxu0 0.0
      %3077 = vmatpush1.msra.mxu0 0.0
      %3078 = vmatprep.subr.mxu0 0.0
      %3079 = vmatpush1.msra.mxu0 0.0
      %3080 = vmatprep.subr.mxu0 0.0
      %3081 = vmatpush1.msra.mxu0 0.0
      %3082 = vmatprep.subr.mxu0 0.0
      %3083 = vmatpush1.msra.mxu0 0.0
      %3084 = vmatprep.subr.mxu0 0.0
      %3085 = vmatpush1.msra.mxu0 0.0
      %3086 = vmatprep.subr.mxu0 0.0
      %3087 = vmatpush1.msra.mxu0 0.0
      %3088 = vmatprep.subr.mxu0 0.0
      %3089 = vmatpush1.msra.mxu0 0.0
      %3090 = vmatprep.subr.mxu0 0.0
      %3091 = vmatpush1.msra.mxu0 0.0
      %3092 = vmatprep.subr.mxu0 0.0
      %3093 = vmatpush1.msra.mxu0 0.0
      %3094 = vmatprep.subr.mxu0 0.0
      %3095 = vmatpush1.msra.mxu0 0.0
      %3096 = vmatprep.subr.mxu0 0.0
      %3097 = vmatpush1.msra.mxu0 0.0
      %3098 = vmatprep.subr.mxu0 0.0
      %3099 = vmatpush1.msra.mxu0 0.0
      %3100 = vmatprep.subr.mxu0 0.0
      %3101 = vmatpush1.msra.mxu0 0.0
      %3102 = vmatprep.subr.mxu0 0.0
      %3103 = vmatpush1.msra.mxu0 0.0
      %3104 = vmatprep.mubr.f32.mxu0 0.0
      %3105 = vmatmul.mubr.f32.gmra.mrb[0].mxu0 %v3017
      %v3106 = vpop.f32.mrb[0].mxu0
      %v3107 = vadd.f32 0.0, %v3106
      %v3108 = vpop.f32.mrb[0].mxu0
      %v3109 = vadd.f32 0.0, %v3108
      %3110 = vmatprep.mubr.f32.mxu0 0.0
      %3111 = vmatmul.mubr.f32.gmra.mrb[0].mxu0 %v3020
      %v3112 = vpop.f32.mrb[0].mxu0
      %v3113 = vadd.f32 0.0, %v3112
      %v3114 = vpop.f32.mrb[0].mxu0
      %v3115 = vadd.f32 0.0, %v3114
      %3116 = vmatprep.mubr.f32.mxu0 0.0
      %3117 = vmatmul.mubr.f32.gmra.mrb[0].mxu0 %v3023
      %v3118 = vpop.f32.mrb[0].mxu0
      %v3119 = vadd.f32 0.0, %v3118
      %v3120 = vpop.f32.mrb[0].mxu0
      %v3121 = vadd.f32 0.0, %v3120
      %3122 = vmatprep.mubr.f32.mxu0 0.0
      %3123 = vmatmul.mubr.f32.gmra.mrb[0].mxu0 %v3026
      %v3124 = vpop.f32.mrb[0].mxu0
      %v3125 = vadd.f32 0.0, %v3124
      %v3126 = vpop.f32.mrb[0].mxu0
      %v3127 = vadd.f32 0.0, %v3126
      %3128 = vdwg.mxu0
      %3129 = vmatprep.subr.mxu0 %v2967
      %3130 = vmatpush1.msra.mxu0 %v2966
      %3131 = vmatprep.subr.mxu0 %v2971
      %3132 = vmatpush1.msra.mxu0 %v2970
      %3133 = vmatprep.subr.mxu0 %v2975
      %3134 = vmatpush1.msra.mxu0 %v2974
      %3135 = vmatprep.subr.mxu0 %v2979
      %3136 = vmatpush1.msra.mxu0 %v2978
      %3137 = vmatprep.subr.mxu0 %v2983
      %3138 = vmatpush1.msra.mxu0 %v2982
      %3139 = vmatprep.subr.mxu0 %v2987
      %3140 = vmatpush1.msra.mxu0 %v2986
      %3141 = vmatprep.subr.mxu0 %v2991
      %3142 = vmatpush1.msra.mxu0 %v2990
      %3143 = vmatprep.subr.mxu0 %v2995
      %3144 = vmatpush1.msra.mxu0 %v2994
      %3145 = vmatprep.subr.mxu0 %v2999
      %3146 = vmatpush1.msra.mxu0 %v2998
      %3147 = vmatprep.subr.mxu0 %v3003
      %3148 = vmatpush1.msra.mxu0 %v3002
      %3149 = vmatprep.subr.mxu0 %v3007
      %3150 = vmatpush1.msra.mxu0 %v3006
      %3151 = vmatprep.subr.mxu0 %v3011
      %3152 = vmatpush1.msra.mxu0 %v3010
      %3153 = vmatprep.subr.mxu0 %v3038
      %3154 = vmatpush1.msra.mxu0 %v3035
      %3155 = vmatprep.subr.mxu0 0.0
      %3156 = vmatpush1.msra.mxu0 0.0
      %3157 = vmatprep.subr.mxu0 0.0
      %3158 = vmatpush1.msra.mxu0 0.0
      %3159 = vmatprep.subr.mxu0 0.0
      %3160 = vmatpush1.msra.mxu0 0.0
      %3161 = vmatprep.subr.mxu0 0.0
      %3162 = vmatpush1.msra.mxu0 0.0
      %3163 = vmatprep.subr.mxu0 0.0
      %3164 = vmatpush1.msra.mxu0 0.0
      %3165 = vmatprep.subr.mxu0 0.0
      %3166 = vmatpush1.msra.mxu0 0.0
      %3167 = vmatprep.subr.mxu0 0.0
      %3168 = vmatpush1.msra.mxu0 0.0
      %3169 = vmatprep.subr.mxu0 0.0
      %3170 = vmatpush1.msra.mxu0 0.0
      %3171 = vmatprep.subr.mxu0 0.0
      %3172 = vmatpush1.msra.mxu0 0.0
      %3173 = vmatprep.subr.mxu0 0.0
      %3174 = vmatpush1.msra.mxu0 0.0
      %3175 = vmatprep.subr.mxu0 0.0
      %3176 = vmatpush1.msra.mxu0 0.0
      %3177 = vmatprep.subr.mxu0 0.0
      %3178 = vmatpush1.msra.mxu0 0.0
      %3179 = vmatprep.subr.mxu0 0.0
      %3180 = vmatpush1.msra.mxu0 0.0
      %3181 = vmatprep.subr.mxu0 0.0
      %3182 = vmatpush1.msra.mxu0 0.0
      %3183 = vmatprep.subr.mxu0 0.0
      %3184 = vmatpush1.msra.mxu0 0.0
      %3185 = vmatprep.subr.mxu0 0.0
      %3186 = vmatpush1.msra.mxu0 0.0
      %3187 = vmatprep.subr.mxu0 0.0
      %3188 = vmatpush1.msra.mxu0 0.0
      %3189 = vmatprep.subr.mxu0 0.0
      %3190 = vmatpush1.msra.mxu0 0.0
      %3191 = vmatprep.subr.mxu0 0.0
      %3192 = vmatpush1.msra.mxu0 0.0
      %3193 = vmatprep.mubr.f32.mxu0 0.0
      %3194 = vmatmul.mubr.f32.gmra.mrb[0].mxu0 %v3017
      %v3195 = vpop.f32.mrb[0].mxu0
      %v3196 = vadd.f32 0.0, %v3195
      %v3197 = vpop.f32.mrb[0].mxu0
      %v3198 = vadd.f32 0.0, %v3197
      %3199 = vmatprep.mubr.f32.mxu0 0.0
      %3200 = vmatmul.mubr.f32.gmra.mrb[0].mxu0 %v3020
      %v3201 = vpop.f32.mrb[0].mxu0
      %v3202 = vadd.f32 0.0, %v3201
      %v3203 = vpop.f32.mrb[0].mxu0
      %v3204 = vadd.f32 0.0, %v3203
      %3205 = vmatprep.mubr.f32.mxu0 0.0
      %3206 = vmatmul.mubr.f32.gmra.mrb[0].mxu0 %v3023
      %v3207 = vpop.f32.mrb[0].mxu0
      %v3208 = vadd.f32 0.0, %v3207
      %v3209 = vpop.f32.mrb[0].mxu0
      %v3210 = vadd.f32 0.0, %v3209
      %3211 = vmatprep.mubr.f32.mxu0 0.0
      %3212 = vmatmul.mubr.f32.gmra.mrb[0].mxu0 %v3026
      %v3213 = vpop.f32.mrb[0].mxu0
      %v3214 = vadd.f32 0.0, %v3213
      %v3215 = vpop.f32.mrb[0].mxu0
      %v3216 = vadd.f32 0.0, %v3215
      %3217 = vdwg.mxu0
      %v3218 = vadd.f32 %v2123, %v3107
      %v3219 = vadd.f32 %v2125, %v3109
      %v3220 = vadd.f32 %v2212, %v3196
      %v3221 = vadd.f32 %v2214, %v3198
      %v3222 = vadd.f32 %v2129, %v3113
      %v3223 = vadd.f32 %v2131, %v3115
      %v3224 = vadd.f32 %v2218, %v3202
      %v3225 = vadd.f32 %v2220, %v3204
      %v3226 = vadd.f32 %v2135, %v3119
      %v3227 = vadd.f32 %v2137, %v3121
      %v3228 = vadd.f32 %v2224, %v3208
      %v3229 = vadd.f32 %v2226, %v3210
      %v3230 = vadd.f32 %v2141, %v3125
      %v3231 = vadd.f32 %v2143, %v3127
      %v3232 = vadd.f32 %v2230, %v3214
      %v3233 = vadd.f32 %v2232, %v3216
      %v3234 = vld [vmem:[%s313 + $0x10] sm:$0xff]
      %v3235 = vld [vmem:[%s313 + $0x18] sm:$0xff]
      %v3236 = vld [vmem:[%s313 + $0x20] sm:$0xf]
      %v3240 = vcombine.high %v3234, %v3234
      %v3241 = vcombine.high %v3235, %v3235
      %3242 = vrot.lane.b32.xlu0 %v3234, 48
      %v3243 = vpop.permute.xlu0 %3242
      %3244 = vrot.lane.b32.xlu0 %v3240, 48
      %v3245 = vpop.permute.xlu0 %3244
      %3246 = vrot.lane.b32.xlu0 %v3235, 48
      %v3247 = vpop.permute.xlu0 %3246
      %3248 = vrot.lane.b32.xlu0 %v3241, 48
      %v3249 = vpop.permute.xlu0 %3248
      %3250 = vrot.lane.b32.xlu0 %v3236, 48
      %v3251 = vpop.permute.xlu0 %3250
      %v3252 = vsel %vm622, %v3243, %v3245
      %v3253 = vsel %vm622, %v3245, %v3247
      %v3254 = vsel %vm622, %v3247, %v3249
      %v3255 = vsel %vm622, %v3249, %v3251
      %3260 = vst [vmem:[#allocation2] sm:$0xf] %v3252
      %3261 = vst [vmem:[#allocation2 + $0x8] sm:$0xf] %v3253
      %3262 = vst [vmem:[#allocation2 + $0x10] sm:$0xf] %v3254
      %3263 = vst [vmem:[#allocation2 + $0x18] sm:$0xf] %v3255
      %v3264 = vld [vmem:[%s308 + $0x10] sm:$0xff]
      %v3265 = vld [vmem:[%s308 + $0x18] sm:$0xff]
      %v3266 = vld [vmem:[%s308 + $0x20] sm:$0xf]
      %v3270 = vcombine.low %v3264, %v3264
      %v3271 = vcombine.low %v3265, %v3265
      %v3272 = vcombine.low %v3266, %v3266
      %3273 = vrot.lane.b32.xlu0 %v3270, 32
      %v3274 = vpop.permute.xlu0 %3273
      %3275 = vrot.lane.b32.xlu0 %v3264, 32
      %v3276 = vpop.permute.xlu0 %3275
      %3277 = vrot.lane.b32.xlu0 %v3271, 32
      %v3278 = vpop.permute.xlu0 %3277
      %3279 = vrot.lane.b32.xlu0 %v3265, 32
      %v3280 = vpop.permute.xlu0 %3279
      %3281 = vrot.lane.b32.xlu0 %v3272, 32
      %v3282 = vpop.permute.xlu0 %3281
      %v3283 = vsel %vm684, %v3274, %v3276
      %v3284 = vsel %vm684, %v3276, %v3278
      %v3285 = vsel %vm684, %v3278, %v3280
      %v3286 = vsel %vm684, %v3280, %v3282
      %3291 = vst [vmem:[#allocation2] sm:$0xf0] %v3283
      %3292 = vst [vmem:[#allocation2 + $0x8] sm:$0xf0] %v3284
      %3293 = vst [vmem:[#allocation2 + $0x10] sm:$0xf0] %v3285
      %3294 = vst [vmem:[#allocation2 + $0x18] sm:$0xf0] %v3286
      %v3295 = vld [vmem:[%s313 + $0x10] sm:$0xff]
      %v3296 = vld [vmem:[%s313 + $0x18] sm:$0xff]
      %v3297 = vld [vmem:[%s313 + $0x20] sm:$0xf]
      %v3301 = vcombine.high %v3295, %v3295
      %v3302 = vcombine.high %v3296, %v3296
      %3303 = vrot.lane.b32.xlu0 %v3295, 32
      %v3304 = vpop.permute.xlu0 %3303
      %3305 = vrot.lane.b32.xlu0 %v3301, 32
      %v3306 = vpop.permute.xlu0 %3305
      %3307 = vrot.lane.b32.xlu0 %v3296, 32
      %v3308 = vpop.permute.xlu0 %3307
      %3309 = vrot.lane.b32.xlu0 %v3302, 32
      %v3310 = vpop.permute.xlu0 %3309
      %3311 = vrot.lane.b32.xlu0 %v3297, 32
      %v3312 = vpop.permute.xlu0 %3311
      %v3313 = vsel %vm684, %v3304, %v3306
      %v3314 = vsel %vm684, %v3306, %v3308
      %v3315 = vsel %vm684, %v3308, %v3310
      %v3316 = vsel %vm684, %v3310, %v3312
      %3321 = vst [vmem:[#allocation2 + $0x20] sm:$0xf] %v3313
      %3322 = vst [vmem:[#allocation2 + $0x28] sm:$0xf] %v3314
      %3323 = vst [vmem:[#allocation2 + $0x30] sm:$0xf] %v3315
      %3324 = vst [vmem:[#allocation2 + $0x38] sm:$0xf] %v3316
      %v3325 = vld [vmem:[%s308 + $0x10] sm:$0xff]
      %v3326 = vld [vmem:[%s308 + $0x18] sm:$0xff]
      %v3327 = vld [vmem:[%s308 + $0x20] sm:$0xf]
      %v3331 = vcombine.low %v3325, %v3325
      %v3332 = vcombine.low %v3326, %v3326
      %v3333 = vcombine.low %v3327, %v3327
      %3334 = vrot.lane.b32.xlu0 %v3331, 16
      %v3335 = vpop.permute.xlu0 %3334
      %3336 = vrot.lane.b32.xlu0 %v3325, 16
      %v3337 = vpop.permute.xlu0 %3336
      %3338 = vrot.lane.b32.xlu0 %v3332, 16
      %v3339 = vpop.permute.xlu0 %3338
      %3340 = vrot.lane.b32.xlu0 %v3326, 16
      %v3341 = vpop.permute.xlu0 %3340
      %3342 = vrot.lane.b32.xlu0 %v3333, 16
      %v3343 = vpop.permute.xlu0 %3342
      %v3344 = vsel %vm746, %v3335, %v3337
      %v3345 = vsel %vm746, %v3337, %v3339
      %v3346 = vsel %vm746, %v3339, %v3341
      %v3347 = vsel %vm746, %v3341, %v3343
      %3352 = vst [vmem:[#allocation2 + $0x20] sm:$0xf0] %v3344
      %3353 = vst [vmem:[#allocation2 + $0x28] sm:$0xf0] %v3345
      %3354 = vst [vmem:[#allocation2 + $0x30] sm:$0xf0] %v3346
      %3355 = vst [vmem:[#allocation2 + $0x38] sm:$0xf0] %v3347
      %v3356 = vld [vmem:[%s313 + $0x10] sm:$0xff]
      %v3357 = vld [vmem:[%s313 + $0x18] sm:$0xff]
      %v3358 = vld [vmem:[%s313 + $0x20] sm:$0xf]
      %v3362 = vcombine.high %v3356, %v3356
      %v3363 = vcombine.high %v3357, %v3357
      %3364 = vrot.lane.b32.xlu0 %v3356, 16
      %v3365 = vpop.permute.xlu0 %3364
      %3366 = vrot.lane.b32.xlu0 %v3362, 16
      %v3367 = vpop.permute.xlu0 %3366
      %3368 = vrot.lane.b32.xlu0 %v3357, 16
      %v3369 = vpop.permute.xlu0 %3368
      %3370 = vrot.lane.b32.xlu0 %v3363, 16
      %v3371 = vpop.permute.xlu0 %3370
      %3372 = vrot.lane.b32.xlu0 %v3358, 16
      %v3373 = vpop.permute.xlu0 %3372
      %v3374 = vsel %vm746, %v3365, %v3367
      %v3375 = vsel %vm746, %v3367, %v3369
      %v3376 = vsel %vm746, %v3369, %v3371
      %v3377 = vsel %vm746, %v3371, %v3373
      %3382 = vst [vmem:[#allocation2 + $0x40] sm:$0xf] %v3374
      %3383 = vst [vmem:[#allocation2 + $0x48] sm:$0xf] %v3375
      %3384 = vst [vmem:[#allocation2 + $0x50] sm:$0xf] %v3376
      %3385 = vst [vmem:[#allocation2 + $0x58] sm:$0xf] %v3377
      %v3386 = vld [vmem:[%s308 + $0x14] sm:$0xff]
      %v3387 = vld [vmem:[%s308 + $0x1c] sm:$0xff]
      %v3390 = vcombine.low %v3386, %v3386
      %v3391 = vcombine.low %v3387, %v3387
      %3394 = vst [vmem:[#allocation2 + $0x40] sm:$0xf0] %v3390
      %3395 = vst [vmem:[#allocation2 + $0x48] sm:$0xf0] %v3386
      %3396 = vst [vmem:[#allocation2 + $0x50] sm:$0xf0] %v3391
      %3397 = vst [vmem:[#allocation2 + $0x58] sm:$0xf0] %v3387
      %v3398 = vld [vmem:[%s313 + $0x14] sm:$0xff]
      %v3399 = vld [vmem:[%s313 + $0x1c] sm:$0xff]
      %v3402 = vcombine.high %v3398, %v3398
      %v3403 = vcombine.high %v3399, %v3399
      %3406 = vst [vmem:[#allocation2 + $0x60] sm:$0xf] %v3398
      %3407 = vst [vmem:[#allocation2 + $0x68] sm:$0xf] %v3402
      %3408 = vst [vmem:[#allocation2 + $0x70] sm:$0xf] %v3399
      %3409 = vst [vmem:[#allocation2 + $0x78] sm:$0xf] %v3403
      %v3410 = vld [vmem:[%s308 + $0x14] sm:$0xff]
      %v3411 = vld [vmem:[%s308 + $0x1c] sm:$0xff]
      %v3412 = vld [vmem:[%s308 + $0x24] sm:$0xf]
      %v3416 = vcombine.low %v3410, %v3410
      %v3417 = vcombine.low %v3411, %v3411
      %v3418 = vcombine.low %v3412, %v3412
      %3419 = vrot.lane.b32.xlu0 %v3416, 112
      %v3420 = vpop.permute.xlu0 %3419
      %3421 = vrot.lane.b32.xlu0 %v3410, 112
      %v3422 = vpop.permute.xlu0 %3421
      %3423 = vrot.lane.b32.xlu0 %v3417, 112
      %v3424 = vpop.permute.xlu0 %3423
      %3425 = vrot.lane.b32.xlu0 %v3411, 112
      %v3426 = vpop.permute.xlu0 %3425
      %3427 = vrot.lane.b32.xlu0 %v3418, 112
      %v3428 = vpop.permute.xlu0 %3427
      %v3429 = vsel %vm374, %v3420, %v3422
      %v3430 = vsel %vm374, %v3422, %v3424
      %v3431 = vsel %vm374, %v3424, %v3426
      %v3432 = vsel %vm374, %v3426, %v3428
      %3437 = vst [vmem:[#allocation2 + $0x60] sm:$0xf0] %v3429
      %3438 = vst [vmem:[#allocation2 + $0x68] sm:$0xf0] %v3430
      %3439 = vst [vmem:[#allocation2 + $0x70] sm:$0xf0] %v3431
      %3440 = vst [vmem:[#allocation2 + $0x78] sm:$0xf0] %v3432
      %v3441 = vld [vmem:[%s313 + $0x14] sm:$0xff]
      %v3442 = vld [vmem:[%s313 + $0x1c] sm:$0xff]
      %v3443 = vld [vmem:[%s313 + $0x24] sm:$0xf]
      %v3447 = vcombine.high %v3441, %v3441
      %v3448 = vcombine.high %v3442, %v3442
      %3449 = vrot.lane.b32.xlu0 %v3441, 112
      %v3450 = vpop.permute.xlu0 %3449
      %3451 = vrot.lane.b32.xlu0 %v3447, 112
      %v3452 = vpop.permute.xlu0 %3451
      %3453 = vrot.lane.b32.xlu0 %v3442, 112
      %v3454 = vpop.permute.xlu0 %3453
      %3455 = vrot.lane.b32.xlu0 %v3448, 112
      %v3456 = vpop.permute.xlu0 %3455
      %3457 = vrot.lane.b32.xlu0 %v3443, 112
      %v3458 = vpop.permute.xlu0 %3457
      %v3459 = vsel %vm374, %v3450, %v3452
      %v3460 = vsel %vm374, %v3452, %v3454
      %v3461 = vsel %vm374, %v3454, %v3456
      %v3462 = vsel %vm374, %v3456, %v3458
      %3467 = vst [vmem:[#allocation2 + $0x80] sm:$0xf] %v3459
      %3468 = vst [vmem:[#allocation2 + $0x88] sm:$0xf] %v3460
      %3469 = vst [vmem:[#allocation2 + $0x90] sm:$0xf] %v3461
      %3470 = vst [vmem:[#allocation2 + $0x98] sm:$0xf] %v3462
      %v3471 = vld [vmem:[%s308 + $0x14] sm:$0xff]
      %v3472 = vld [vmem:[%s308 + $0x1c] sm:$0xff]
      %v3473 = vld [vmem:[%s308 + $0x24] sm:$0xf]
      %v3477 = vcombine.low %v3471, %v3471
      %v3478 = vcombine.low %v3472, %v3472
      %v3479 = vcombine.low %v3473, %v3473
      %3480 = vrot.lane.b32.xlu0 %v3477, 96
      %v3481 = vpop.permute.xlu0 %3480
      %3482 = vrot.lane.b32.xlu0 %v3471, 96
      %v3483 = vpop.permute.xlu0 %3482
      %3484 = vrot.lane.b32.xlu0 %v3478, 96
      %v3485 = vpop.permute.xlu0 %3484
      %3486 = vrot.lane.b32.xlu0 %v3472, 96
      %v3487 = vpop.permute.xlu0 %3486
      %3488 = vrot.lane.b32.xlu0 %v3479, 96
      %v3489 = vpop.permute.xlu0 %3488
      %v3490 = vsel %vm436, %v3481, %v3483
      %v3491 = vsel %vm436, %v3483, %v3485
      %v3492 = vsel %vm436, %v3485, %v3487
      %v3493 = vsel %vm436, %v3487, %v3489
      %3498 = vst [vmem:[#allocation2 + $0x80] sm:$0xf0] %v3490
      %3499 = vst [vmem:[#allocation2 + $0x88] sm:$0xf0] %v3491
      %3500 = vst [vmem:[#allocation2 + $0x90] sm:$0xf0] %v3492
      %3501 = vst [vmem:[#allocation2 + $0x98] sm:$0xf0] %v3493
      %v3502 = vld [vmem:[%s313 + $0x14] sm:$0xff]
      %v3503 = vld [vmem:[%s313 + $0x1c] sm:$0xff]
      %v3504 = vld [vmem:[%s313 + $0x24] sm:$0xf]
      %v3508 = vcombine.high %v3502, %v3502
      %v3509 = vcombine.high %v3503, %v3503
      %3510 = vrot.lane.b32.xlu0 %v3502, 96
      %v3511 = vpop.permute.xlu0 %3510
      %3512 = vrot.lane.b32.xlu0 %v3508, 96
      %v3513 = vpop.permute.xlu0 %3512
      %3514 = vrot.lane.b32.xlu0 %v3503, 96
      %v3515 = vpop.permute.xlu0 %3514
      %3516 = vrot.lane.b32.xlu0 %v3509, 96
      %v3517 = vpop.permute.xlu0 %3516
      %3518 = vrot.lane.b32.xlu0 %v3504, 96
      %v3519 = vpop.permute.xlu0 %3518
      %v3520 = vsel %vm436, %v3511, %v3513
      %v3521 = vsel %vm436, %v3513, %v3515
      %v3522 = vsel %vm436, %v3515, %v3517
      %v3523 = vsel %vm436, %v3517, %v3519
      %3528 = vst [vmem:[#allocation2 + $0xa0] sm:$0xf] %v3520
      %3529 = vst [vmem:[#allocation2 + $0xa8] sm:$0xf] %v3521
      %3530 = vst [vmem:[#allocation2 + $0xb0] sm:$0xf] %v3522
      %3531 = vst [vmem:[#allocation2 + $0xb8] sm:$0xf] %v3523
      %v3532 = vld [vmem:[%s308 + $0x14] sm:$0xff]
      %v3533 = vld [vmem:[%s308 + $0x1c] sm:$0xff]
      %v3534 = vld [vmem:[%s308 + $0x24] sm:$0xf]
      %v3538 = vcombine.low %v3532, %v3532
      %v3539 = vcombine.low %v3533, %v3533
      %v3540 = vcombine.low %v3534, %v3534
      %3541 = vrot.lane.b32.xlu0 %v3538, 80
      %v3542 = vpop.permute.xlu0 %3541
      %3543 = vrot.lane.b32.xlu0 %v3532, 80
      %v3544 = vpop.permute.xlu0 %3543
      %3545 = vrot.lane.b32.xlu0 %v3539, 80
      %v3546 = vpop.permute.xlu0 %3545
      %3547 = vrot.lane.b32.xlu0 %v3533, 80
      %v3548 = vpop.permute.xlu0 %3547
      %3549 = vrot.lane.b32.xlu0 %v3540, 80
      %v3550 = vpop.permute.xlu0 %3549
      %v3551 = vsel %vm498, %v3542, %v3544
      %v3552 = vsel %vm498, %v3544, %v3546
      %v3553 = vsel %vm498, %v3546, %v3548
      %v3554 = vsel %vm498, %v3548, %v3550
      %3559 = vst [vmem:[#allocation2 + $0xa0] sm:$0xf0] %v3551
      %3560 = vst [vmem:[#allocation2 + $0xa8] sm:$0xf0] %v3552
      %3561 = vst [vmem:[#allocation2 + $0xb0] sm:$0xf0] %v3553
      %3562 = vst [vmem:[#allocation2 + $0xb8] sm:$0xf0] %v3554
      %v3563 = vld [vmem:[%s313 + $0x14] sm:$0xff]
      %v3564 = vld [vmem:[%s313 + $0x1c] sm:$0xff]
      %v3565 = vld [vmem:[%s313 + $0x24] sm:$0xf]
      %v3569 = vcombine.high %v3563, %v3563
      %v3570 = vcombine.high %v3564, %v3564
      %3571 = vrot.lane.b32.xlu0 %v3563, 80
      %v3572 = vpop.permute.xlu0 %3571
      %3573 = vrot.lane.b32.xlu0 %v3569, 80
      %v3574 = vpop.permute.xlu0 %3573
      %3575 = vrot.lane.b32.xlu0 %v3564, 80
      %v3576 = vpop.permute.xlu0 %3575
      %3577 = vrot.lane.b32.xlu0 %v3570, 80
      %v3578 = vpop.permute.xlu0 %3577
      %3579 = vrot.lane.b32.xlu0 %v3565, 80
      %v3580 = vpop.permute.xlu0 %3579
      %v3581 = vsel %vm498, %v3572, %v3574
      %v3582 = vsel %vm498, %v3574, %v3576
      %v3583 = vsel %vm498, %v3576, %v3578
      %v3584 = vsel %vm498, %v3578, %v3580
      %3589 = vst [vmem:[#allocation2 + $0xc0] sm:$0xf] %v3581
      %3590 = vst [vmem:[#allocation2 + $0xc8] sm:$0xf] %v3582
      %3591 = vst [vmem:[#allocation2 + $0xd0] sm:$0xf] %v3583
      %3592 = vst [vmem:[#allocation2 + $0xd8] sm:$0xf] %v3584
      %v3593 = vld [vmem:[%s308 + $0x14] sm:$0xff]
      %v3594 = vld [vmem:[%s308 + $0x1c] sm:$0xff]
      %v3595 = vld [vmem:[%s308 + $0x24] sm:$0xf]
      %v3599 = vcombine.low %v3593, %v3593
      %v3600 = vcombine.low %v3594, %v3594
      %v3601 = vcombine.low %v3595, %v3595
      %3602 = vrot.lane.b32.xlu0 %v3599, 64
      %v3603 = vpop.permute.xlu0 %3602
      %3604 = vrot.lane.b32.xlu0 %v3593, 64
      %v3605 = vpop.permute.xlu0 %3604
      %3606 = vrot.lane.b32.xlu0 %v3600, 64
      %v3607 = vpop.permute.xlu0 %3606
      %3608 = vrot.lane.b32.xlu0 %v3594, 64
      %v3609 = vpop.permute.xlu0 %3608
      %3610 = vrot.lane.b32.xlu0 %v3601, 64
      %v3611 = vpop.permute.xlu0 %3610
      %v3612 = vsel %vm560, %v3603, %v3605
      %v3613 = vsel %vm560, %v3605, %v3607
      %v3614 = vsel %vm560, %v3607, %v3609
      %v3615 = vsel %vm560, %v3609, %v3611
      %3620 = vst [vmem:[#allocation2 + $0xc0] sm:$0xf0] %v3612
      %3621 = vst [vmem:[#allocation2 + $0xc8] sm:$0xf0] %v3613
      %3622 = vst [vmem:[#allocation2 + $0xd0] sm:$0xf0] %v3614
      %3623 = vst [vmem:[#allocation2 + $0xd8] sm:$0xf0] %v3615
      %v3624 = vld [vmem:[%s313 + $0x14] sm:$0xff]
      %v3625 = vld [vmem:[%s313 + $0x1c] sm:$0xff]
      %v3626 = vld [vmem:[%s313 + $0x24] sm:$0xf]
      %v3630 = vcombine.high %v3624, %v3624
      %v3631 = vcombine.high %v3625, %v3625
      %3632 = vrot.lane.b32.xlu0 %v3624, 64
      %v3633 = vpop.permute.xlu0 %3632
      %3634 = vrot.lane.b32.xlu0 %v3630, 64
      %v3635 = vpop.permute.xlu0 %3634
      %3636 = vrot.lane.b32.xlu0 %v3625, 64
      %v3637 = vpop.permute.xlu0 %3636
      %3638 = vrot.lane.b32.xlu0 %v3631, 64
      %v3639 = vpop.permute.xlu0 %3638
      %3640 = vrot.lane.b32.xlu0 %v3626, 64
      %v3641 = vpop.permute.xlu0 %3640
      %v3642 = vsel %vm560, %v3633, %v3635
      %v3643 = vsel %vm560, %v3635, %v3637
      %v3644 = vsel %vm560, %v3637, %v3639
      %v3645 = vsel %vm560, %v3639, %v3641
      %3650 = vst [vmem:[#allocation2 + $0xe0] sm:$0xf] %v3642
      %3651 = vst [vmem:[#allocation2 + $0xe8] sm:$0xf] %v3643
      %3652 = vst [vmem:[#allocation2 + $0xf0] sm:$0xf] %v3644
      %3653 = vst [vmem:[#allocation2 + $0xf8] sm:$0xf] %v3645
      %v3654 = vld [vmem:[%s308 + $0x14] sm:$0xff]
      %v3655 = vld [vmem:[%s308 + $0x1c] sm:$0xff]
      %v3656 = vld [vmem:[%s308 + $0x24] sm:$0xf]
      %v3660 = vcombine.low %v3654, %v3654
      %v3661 = vcombine.low %v3655, %v3655
      %v3662 = vcombine.low %v3656, %v3656
      %3663 = vrot.lane.b32.xlu0 %v3660, 48
      %v3664 = vpop.permute.xlu0 %3663
      %3665 = vrot.lane.b32.xlu0 %v3654, 48
      %v3666 = vpop.permute.xlu0 %3665
      %3667 = vrot.lane.b32.xlu0 %v3661, 48
      %v3668 = vpop.permute.xlu0 %3667
      %3669 = vrot.lane.b32.xlu0 %v3655, 48
      %v3670 = vpop.permute.xlu0 %3669
      %3671 = vrot.lane.b32.xlu0 %v3662, 48
      %v3672 = vpop.permute.xlu0 %3671
      %v3673 = vsel %vm622, %v3664, %v3666
      %v3674 = vsel %vm622, %v3666, %v3668
      %v3675 = vsel %vm622, %v3668, %v3670
      %v3676 = vsel %vm622, %v3670, %v3672
      %3681 = vst [vmem:[#allocation2 + $0xe0] sm:$0xf0] %v3673
      %3682 = vst [vmem:[#allocation2 + $0xe8] sm:$0xf0] %v3674
      %3683 = vst [vmem:[#allocation2 + $0xf0] sm:$0xf0] %v3675
      %3684 = vst [vmem:[#allocation2 + $0xf8] sm:$0xf0] %v3676
      %v3685 = vld [vmem:[%s313 + $0x14] sm:$0xff]
      %v3686 = vld [vmem:[%s313 + $0x1c] sm:$0xff]
      %v3687 = vld [vmem:[%s313 + $0x24] sm:$0xf]
      %v3691 = vcombine.high %v3685, %v3685
      %v3692 = vcombine.high %v3686, %v3686
      %3693 = vrot.lane.b32.xlu0 %v3685, 48
      %v3694 = vpop.permute.xlu0 %3693
      %3695 = vrot.lane.b32.xlu0 %v3691, 48
      %v3696 = vpop.permute.xlu0 %3695
      %3697 = vrot.lane.b32.xlu0 %v3686, 48
      %v3698 = vpop.permute.xlu0 %3697
      %3699 = vrot.lane.b32.xlu0 %v3692, 48
      %v3700 = vpop.permute.xlu0 %3699
      %3701 = vrot.lane.b32.xlu0 %v3687, 48
      %v3702 = vpop.permute.xlu0 %3701
      %v3703 = vsel %vm622, %v3694, %v3696
      %v3704 = vsel %vm622, %v3696, %v3698
      %v3705 = vsel %vm622, %v3698, %v3700
      %v3706 = vsel %vm622, %v3700, %v3702
      %3711 = vst [vmem:[#allocation2 + $0x100] sm:$0xf] %v3703
      %3712 = vst [vmem:[#allocation2 + $0x108] sm:$0xf] %v3704
      %3713 = vst [vmem:[#allocation2 + $0x110] sm:$0xf] %v3705
      %3714 = vst [vmem:[#allocation2 + $0x118] sm:$0xf] %v3706
      %v3715 = vld [vmem:[%s308 + $0x14] sm:$0xff]
      %v3716 = vld [vmem:[%s308 + $0x1c] sm:$0xff]
      %v3717 = vld [vmem:[%s308 + $0x24] sm:$0xf]
      %v3721 = vcombine.low %v3715, %v3715
      %v3722 = vcombine.low %v3716, %v3716
      %v3723 = vcombine.low %v3717, %v3717
      %3724 = vrot.lane.b32.xlu0 %v3721, 32
      %v3725 = vpop.permute.xlu0 %3724
      %3726 = vrot.lane.b32.xlu0 %v3715, 32
      %v3727 = vpop.permute.xlu0 %3726
      %3728 = vrot.lane.b32.xlu0 %v3722, 32
      %v3729 = vpop.permute.xlu0 %3728
      %3730 = vrot.lane.b32.xlu0 %v3716, 32
      %v3731 = vpop.permute.xlu0 %3730
      %3732 = vrot.lane.b32.xlu0 %v3723, 32
      %v3733 = vpop.permute.xlu0 %3732
      %v3734 = vsel %vm684, %v3725, %v3727
      %v3735 = vsel %vm684, %v3727, %v3729
      %v3736 = vsel %vm684, %v3729, %v3731
      %v3737 = vsel %vm684, %v3731, %v3733
      %3742 = vst [vmem:[#allocation2 + $0x100] sm:$0xf0] %v3734
      %3743 = vst [vmem:[#allocation2 + $0x108] sm:$0xf0] %v3735
      %3744 = vst [vmem:[#allocation2 + $0x110] sm:$0xf0] %v3736
      %3745 = vst [vmem:[#allocation2 + $0x118] sm:$0xf0] %v3737
      %v3746 = vld [vmem:[%s313 + $0x14] sm:$0xff]
      %v3747 = vld [vmem:[%s313 + $0x1c] sm:$0xff]
      %v3748 = vld [vmem:[%s313 + $0x24] sm:$0xf]
      %v3752 = vcombine.high %v3746, %v3746
      %v3753 = vcombine.high %v3747, %v3747
      %3754 = vrot.lane.b32.xlu0 %v3746, 32
      %v3755 = vpop.permute.xlu0 %3754
      %3756 = vrot.lane.b32.xlu0 %v3752, 32
      %v3757 = vpop.permute.xlu0 %3756
      %3758 = vrot.lane.b32.xlu0 %v3747, 32
      %v3759 = vpop.permute.xlu0 %3758
      %3760 = vrot.lane.b32.xlu0 %v3753, 32
      %v3761 = vpop.permute.xlu0 %3760
      %3762 = vrot.lane.b32.xlu0 %v3748, 32
      %v3763 = vpop.permute.xlu0 %3762
      %v3764 = vsel %vm684, %v3755, %v3757
      %v3765 = vsel %vm684, %v3757, %v3759
      %v3766 = vsel %vm684, %v3759, %v3761
      %v3767 = vsel %vm684, %v3761, %v3763
      %3772 = vst [vmem:[#allocation2 + $0x120] sm:$0xf] %v3764
      %3773 = vst [vmem:[#allocation2 + $0x128] sm:$0xf] %v3765
      %3774 = vst [vmem:[#allocation2 + $0x130] sm:$0xf] %v3766
      %3775 = vst [vmem:[#allocation2 + $0x138] sm:$0xf] %v3767
      %v3776 = vld [vmem:[%s308 + $0x14] sm:$0xff]
      %v3777 = vld [vmem:[%s308 + $0x1c] sm:$0xff]
      %v3778 = vld [vmem:[%s308 + $0x24] sm:$0xf]
      %v3782 = vcombine.low %v3776, %v3776
      %v3783 = vcombine.low %v3777, %v3777
      %v3784 = vcombine.low %v3778, %v3778
      %3785 = vrot.lane.b32.xlu0 %v3782, 16
      %v3786 = vpop.permute.xlu0 %3785
      %3787 = vrot.lane.b32.xlu0 %v3776, 16
      %v3788 = vpop.permute.xlu0 %3787
      %3789 = vrot.lane.b32.xlu0 %v3783, 16
      %v3790 = vpop.permute.xlu0 %3789
      %3791 = vrot.lane.b32.xlu0 %v3777, 16
      %v3792 = vpop.permute.xlu0 %3791
      %3793 = vrot.lane.b32.xlu0 %v3784, 16
      %v3794 = vpop.permute.xlu0 %3793
      %v3795 = vsel %vm746, %v3786, %v3788
      %v3796 = vsel %vm746, %v3788, %v3790
      %v3797 = vsel %vm746, %v3790, %v3792
      %v3798 = vsel %vm746, %v3792, %v3794
      %3803 = vst [vmem:[#allocation2 + $0x120] sm:$0xf0] %v3795
      %3804 = vst [vmem:[#allocation2 + $0x128] sm:$0xf0] %v3796
      %3805 = vst [vmem:[#allocation2 + $0x130] sm:$0xf0] %v3797
      %3806 = vst [vmem:[#allocation2 + $0x138] sm:$0xf0] %v3798
      %v3807 = vld [vmem:[%s313 + $0x14] sm:$0xff]
      %v3808 = vld [vmem:[%s313 + $0x1c] sm:$0xff]
      %v3809 = vld [vmem:[%s313 + $0x24] sm:$0xf]
      %v3813 = vcombine.high %v3807, %v3807
      %v3814 = vcombine.high %v3808, %v3808
      %3815 = vrot.lane.b32.xlu0 %v3807, 16
      %v3816 = vpop.permute.xlu0 %3815
      %3817 = vrot.lane.b32.xlu0 %v3813, 16
      %v3818 = vpop.permute.xlu0 %3817
      %3819 = vrot.lane.b32.xlu0 %v3808, 16
      %v3820 = vpop.permute.xlu0 %3819
      %3821 = vrot.lane.b32.xlu0 %v3814, 16
      %v3822 = vpop.permute.xlu0 %3821
      %3823 = vrot.lane.b32.xlu0 %v3809, 16
      %v3824 = vpop.permute.xlu0 %3823
      %v3825 = vsel %vm746, %v3816, %v3818
      %v3826 = vsel %vm746, %v3818, %v3820
      %v3827 = vsel %vm746, %v3820, %v3822
      %v3828 = vsel %vm746, %v3822, %v3824
      %3833 = vst [vmem:[#allocation2 + $0x140] sm:$0xf] %v3825
      %3834 = vst [vmem:[#allocation2 + $0x148] sm:$0xf] %v3826
      %3835 = vst [vmem:[#allocation2 + $0x150] sm:$0xf] %v3827
      %3836 = vst [vmem:[#allocation2 + $0x158] sm:$0xf] %v3828
      %v3837 = vld [vmem:[%s308 + $0x18] sm:$0xff]
      %v3838 = vld [vmem:[%s308 + $0x20] sm:$0xff]
      %v3841 = vcombine.low %v3837, %v3837
      %v3842 = vcombine.low %v3838, %v3838
      %3845 = vst [vmem:[#allocation2 + $0x140] sm:$0xf0] %v3841
      %3846 = vst [vmem:[#allocation2 + $0x148] sm:$0xf0] %v3837
      %3847 = vst [vmem:[#allocation2 + $0x150] sm:$0xf0] %v3842
      %3848 = vst [vmem:[#allocation2 + $0x158] sm:$0xf0] %v3838
      %v3849 = vld [vmem:[%s313 + $0x18] sm:$0xff]
      %v3850 = vld [vmem:[%s313 + $0x20] sm:$0xff]
      %v3853 = vcombine.high %v3849, %v3849
      %v3854 = vcombine.high %v3850, %v3850
      %3857 = vst [vmem:[#allocation2 + $0x160] sm:$0xf] %v3849
      %3858 = vst [vmem:[#allocation2 + $0x168] sm:$0xf] %v3853
      %3859 = vst [vmem:[#allocation2 + $0x170] sm:$0xf] %v3850
      %3860 = vst [vmem:[#allocation2 + $0x178] sm:$0xf] %v3854
      %v3861 = vld [vmem:[%s308 + $0x18] sm:$0xff]
      %v3862 = vld [vmem:[%s308 + $0x20] sm:$0xff]
      %v3863 = vld [vmem:[%s308 + $0x28] sm:$0xf]
      %v3867 = vcombine.low %v3861, %v3861
      %v3868 = vcombine.low %v3862, %v3862
      %v3869 = vcombine.low %v3863, %v3863
      %3870 = vrot.lane.b32.xlu0 %v3867, 112
      %v3871 = vpop.permute.xlu0 %3870
      %3872 = vrot.lane.b32.xlu0 %v3861, 112
      %v3873 = vpop.permute.xlu0 %3872
      %3874 = vrot.lane.b32.xlu0 %v3868, 112
      %v3875 = vpop.permute.xlu0 %3874
      %3876 = vrot.lane.b32.xlu0 %v3862, 112
      %v3877 = vpop.permute.xlu0 %3876
      %3878 = vrot.lane.b32.xlu0 %v3869, 112
      %v3879 = vpop.permute.xlu0 %3878
      %v3880 = vsel %vm374, %v3871, %v3873
      %v3881 = vsel %vm374, %v3873, %v3875
      %v3882 = vsel %vm374, %v3875, %v3877
      %v3883 = vsel %vm374, %v3877, %v3879
      %3888 = vst [vmem:[#allocation2 + $0x160] sm:$0xf0] %v3880
      %3889 = vst [vmem:[#allocation2 + $0x168] sm:$0xf0] %v3881
      %3890 = vst [vmem:[#allocation2 + $0x170] sm:$0xf0] %v3882
      %3891 = vst [vmem:[#allocation2 + $0x178] sm:$0xf0] %v3883
      %v3892 = vld [vmem:[%s313 + $0x18] sm:$0xff]
      %v3893 = vld [vmem:[%s313 + $0x20] sm:$0xff]
      %v3894 = vld [vmem:[%s313 + $0x28] sm:$0xf]
      %v3898 = vcombine.high %v3892, %v3892
      %v3899 = vcombine.high %v3893, %v3893
      %3900 = vrot.lane.b32.xlu0 %v3892, 112
      %v3901 = vpop.permute.xlu0 %3900
      %3902 = vrot.lane.b32.xlu0 %v3898, 112
      %v3903 = vpop.permute.xlu0 %3902
      %3904 = vrot.lane.b32.xlu0 %v3893, 112
      %v3905 = vpop.permute.xlu0 %3904
      %3906 = vrot.lane.b32.xlu0 %v3899, 112
      %v3907 = vpop.permute.xlu0 %3906
      %3908 = vrot.lane.b32.xlu0 %v3894, 112
      %v3909 = vpop.permute.xlu0 %3908
      %v3910 = vsel %vm374, %v3901, %v3903
      %v3911 = vsel %vm374, %v3903, %v3905
      %v3912 = vsel %vm374, %v3905, %v3907
      %v3913 = vsel %vm374, %v3907, %v3909
      %3918 = vst [vmem:[#allocation2 + $0x180] sm:$0xf] %v3910
      %3919 = vst [vmem:[#allocation2 + $0x188] sm:$0xf] %v3911
      %3920 = vst [vmem:[#allocation2 + $0x190] sm:$0xf] %v3912
      %3921 = vst [vmem:[#allocation2 + $0x198] sm:$0xf] %v3913
      %s3922 = scalar_lea.vmem %s2, 96
      %v3923 = vld [vmem:[%s3922] sm:$0xff]
      %v3924 = vld [vmem:[%s3922 + $0x8] sm:$0xff]
      %v3925 = vld [vmem:[%s3922 + $0x10] sm:$0xff]
      %v3926 = vld [vmem:[%s3922 + $0x18] sm:$0xff]
      %v3927 = vld [vmem:[#allocation2] sm:$0xff]
      %v3928 = vld [vmem:[#allocation2 + $0x8] sm:$0xff]
      %v3929 = vld [vmem:[#allocation2 + $0x10] sm:$0xff]
      %v3930 = vld [vmem:[#allocation2 + $0x18] sm:$0xff]
      %v3931 = vld [vmem:[#allocation2 + $0x20] sm:$0xff]
      %v3932 = vld [vmem:[#allocation2 + $0x28] sm:$0xff]
      %v3933 = vld [vmem:[#allocation2 + $0x30] sm:$0xff]
      %v3934 = vld [vmem:[#allocation2 + $0x38] sm:$0xff]
      %v3935 = vld [vmem:[#allocation2 + $0x40] sm:$0xff]
      %v3936 = vld [vmem:[#allocation2 + $0x48] sm:$0xff]
      %v3937 = vld [vmem:[#allocation2 + $0x50] sm:$0xff]
      %v3938 = vld [vmem:[#allocation2 + $0x58] sm:$0xff]
      %v3939 = vld [vmem:[#allocation2 + $0x60] sm:$0xff]
      %v3940 = vld [vmem:[#allocation2 + $0x68] sm:$0xff]
      %v3941 = vld [vmem:[#allocation2 + $0x70] sm:$0xff]
      %v3942 = vld [vmem:[#allocation2 + $0x78] sm:$0xff]
      %v3943 = vld [vmem:[#allocation2 + $0x80] sm:$0xff]
      %v3944 = vld [vmem:[#allocation2 + $0x88] sm:$0xff]
      %v3945 = vld [vmem:[#allocation2 + $0x90] sm:$0xff]
      %v3946 = vld [vmem:[#allocation2 + $0x98] sm:$0xff]
      %v3947 = vld [vmem:[#allocation2 + $0xa0] sm:$0xff]
      %v3948 = vld [vmem:[#allocation2 + $0xa8] sm:$0xff]
      %v3949 = vld [vmem:[#allocation2 + $0xb0] sm:$0xff]
      %v3950 = vld [vmem:[#allocation2 + $0xb8] sm:$0xff]
      %v3951 = vld [vmem:[#allocation2 + $0xc0] sm:$0xff]
      %v3952 = vld [vmem:[#allocation2 + $0xc8] sm:$0xff]
      %v3953 = vld [vmem:[#allocation2 + $0xd0] sm:$0xff]
      %v3954 = vld [vmem:[#allocation2 + $0xd8] sm:$0xff]
      %v3955 = vld [vmem:[#allocation2 + $0xe0] sm:$0xff]
      %v3956 = vld [vmem:[#allocation2 + $0xe8] sm:$0xff]
      %v3957 = vld [vmem:[#allocation2 + $0xf0] sm:$0xff]
      %v3958 = vld [vmem:[#allocation2 + $0xf8] sm:$0xff]
      %v3959 = vld [vmem:[#allocation2 + $0x100] sm:$0xff]
      %v3960 = vld [vmem:[#allocation2 + $0x108] sm:$0xff]
      %v3961 = vld [vmem:[#allocation2 + $0x110] sm:$0xff]
      %v3962 = vld [vmem:[#allocation2 + $0x118] sm:$0xff]
      %v3963 = vld [vmem:[#allocation2 + $0x120] sm:$0xff]
      %v3964 = vld [vmem:[#allocation2 + $0x128] sm:$0xff]
      %v3965 = vld [vmem:[#allocation2 + $0x130] sm:$0xff]
      %v3966 = vld [vmem:[#allocation2 + $0x138] sm:$0xff]
      %v3967 = vld [vmem:[#allocation2 + $0x140] sm:$0xff]
      %v3968 = vld [vmem:[#allocation2 + $0x148] sm:$0xff]
      %v3969 = vld [vmem:[#allocation2 + $0x150] sm:$0xff]
      %v3970 = vld [vmem:[#allocation2 + $0x158] sm:$0xff]
      %v3971 = vld [vmem:[#allocation2 + $0x160] sm:$0xff]
      %v3972 = vld [vmem:[#allocation2 + $0x168] sm:$0xff]
      %v3973 = vld [vmem:[#allocation2 + $0x170] sm:$0xff]
      %v3974 = vld [vmem:[#allocation2 + $0x178] sm:$0xff]
      %v3975 = vld [vmem:[#allocation2 + $0x180] sm:$0xf]
      %v3976 = vld [vmem:[#allocation2 + $0x188] sm:$0xf]
      %v3977 = vld [vmem:[#allocation2 + $0x190] sm:$0xf]
      %v3978 = vld [vmem:[#allocation2 + $0x198] sm:$0xf]
      %v3980 = vsel %vm1828, %v3923, 0
      %v3983 = vsel %vm1828, %v3924, 0
      %v3986 = vsel %vm1828, %v3925, 0
      %v3989 = vsel %vm1828, %v3926, 0
      %v3992 = vsel %vm1841, %v3975, 0
      %v3995 = vsel %vm1841, %v3976, 0
      %v3998 = vsel %vm1841, %v3977, 0
      %v4001 = vsel %vm1841, %v3978, 0
      %4003 = vmatprep.subr.mxu0 %v3928
      %4004 = vmatpush1.msra.mxu0 %v3927
      %4005 = vmatprep.subr.mxu0 %v3932
      %4006 = vmatpush1.msra.mxu0 %v3931
      %4007 = vmatprep.subr.mxu0 %v3936
      %4008 = vmatpush1.msra.mxu0 %v3935
      %4009 = vmatprep.subr.mxu0 %v3940
      %4010 = vmatpush1.msra.mxu0 %v3939
      %4011 = vmatprep.subr.mxu0 %v3944
      %4012 = vmatpush1.msra.mxu0 %v3943
      %4013 = vmatprep.subr.mxu0 %v3948
      %4014 = vmatpush1.msra.mxu0 %v3947
      %4015 = vmatprep.subr.mxu0 %v3952
      %4016 = vmatpush1.msra.mxu0 %v3951
      %4017 = vmatprep.subr.mxu0 %v3956
      %4018 = vmatpush1.msra.mxu0 %v3955
      %4019 = vmatprep.subr.mxu0 %v3960
      %4020 = vmatpush1.msra.mxu0 %v3959
      %4021 = vmatprep.subr.mxu0 %v3964
      %4022 = vmatpush1.msra.mxu0 %v3963
      %4023 = vmatprep.subr.mxu0 %v3968
      %4024 = vmatpush1.msra.mxu0 %v3967
      %4025 = vmatprep.subr.mxu0 %v3972
      %4026 = vmatpush1.msra.mxu0 %v3971
      %4027 = vmatprep.subr.mxu0 %v3995
      %4028 = vmatpush1.msra.mxu0 %v3992
      %4029 = vmatprep.subr.mxu0 0.0
      %4030 = vmatpush1.msra.mxu0 0.0
      %4031 = vmatprep.subr.mxu0 0.0
      %4032 = vmatpush1.msra.mxu0 0.0
      %4033 = vmatprep.subr.mxu0 0.0
      %4034 = vmatpush1.msra.mxu0 0.0
      %4035 = vmatprep.subr.mxu0 0.0
      %4036 = vmatpush1.msra.mxu0 0.0
      %4037 = vmatprep.subr.mxu0 0.0
      %4038 = vmatpush1.msra.mxu0 0.0
      %4039 = vmatprep.subr.mxu0 0.0
      %4040 = vmatpush1.msra.mxu0 0.0
      %4041 = vmatprep.subr.mxu0 0.0
      %4042 = vmatpush1.msra.mxu0 0.0
      %4043 = vmatprep.subr.mxu0 0.0
      %4044 = vmatpush1.msra.mxu0 0.0
      %4045 = vmatprep.subr.mxu0 0.0
      %4046 = vmatpush1.msra.mxu0 0.0
      %4047 = vmatprep.subr.mxu0 0.0
      %4048 = vmatpush1.msra.mxu0 0.0
      %4049 = vmatprep.subr.mxu0 0.0
      %4050 = vmatpush1.msra.mxu0 0.0
      %4051 = vmatprep.subr.mxu0 0.0
      %4052 = vmatpush1.msra.mxu0 0.0
      %4053 = vmatprep.subr.mxu0 0.0
      %4054 = vmatpush1.msra.mxu0 0.0
      %4055 = vmatprep.subr.mxu0 0.0
      %4056 = vmatpush1.msra.mxu0 0.0
      %4057 = vmatprep.subr.mxu0 0.0
      %4058 = vmatpush1.msra.mxu0 0.0
      %4059 = vmatprep.subr.mxu0 0.0
      %4060 = vmatpush1.msra.mxu0 0.0
      %4061 = vmatprep.subr.mxu0 0.0
      %4062 = vmatpush1.msra.mxu0 0.0
      %4063 = vmatprep.subr.mxu0 0.0
      %4064 = vmatpush1.msra.mxu0 0.0
      %4065 = vmatprep.subr.mxu0 0.0
      %4066 = vmatpush1.msra.mxu0 0.0
      %4067 = vmatprep.mubr.f32.mxu0 0.0
      %4068 = vmatmul.mubr.f32.gmra.mrb[0].mxu0 %v3980
      %v4069 = vpop.f32.mrb[0].mxu0
      %v4070 = vadd.f32 0.0, %v4069
      %v4071 = vpop.f32.mrb[0].mxu0
      %v4072 = vadd.f32 0.0, %v4071
      %4073 = vmatprep.mubr.f32.mxu0 0.0
      %4074 = vmatmul.mubr.f32.gmra.mrb[0].mxu0 %v3983
      %v4075 = vpop.f32.mrb[0].mxu0
      %v4076 = vadd.f32 0.0, %v4075
      %v4077 = vpop.f32.mrb[0].mxu0
      %v4078 = vadd.f32 0.0, %v4077
      %4079 = vmatprep.mubr.f32.mxu0 0.0
      %4080 = vmatmul.mubr.f32.gmra.mrb[0].mxu0 %v3986
      %v4081 = vpop.f32.mrb[0].mxu0
      %v4082 = vadd.f32 0.0, %v4081
      %v4083 = vpop.f32.mrb[0].mxu0
      %v4084 = vadd.f32 0.0, %v4083
      %4085 = vmatprep.mubr.f32.mxu0 0.0
      %4086 = vmatmul.mubr.f32.gmra.mrb[0].mxu0 %v3989
      %v4087 = vpop.f32.mrb[0].mxu0
      %v4088 = vadd.f32 0.0, %v4087
      %v4089 = vpop.f32.mrb[0].mxu0
      %v4090 = vadd.f32 0.0, %v4089
      %4091 = vdwg.mxu0
      %4092 = vmatprep.subr.mxu0 %v3930
      %4093 = vmatpush1.msra.mxu0 %v3929
      %4094 = vmatprep.subr.mxu0 %v3934
      %4095 = vmatpush1.msra.mxu0 %v3933
      %4096 = vmatprep.subr.mxu0 %v3938
      %4097 = vmatpush1.msra.mxu0 %v3937
      %4098 = vmatprep.subr.mxu0 %v3942
      %4099 = vmatpush1.msra.mxu0 %v3941
      %4100 = vmatprep.subr.mxu0 %v3946
      %4101 = vmatpush1.msra.mxu0 %v3945
      %4102 = vmatprep.subr.mxu0 %v3950
      %4103 = vmatpush1.msra.mxu0 %v3949
      %4104 = vmatprep.subr.mxu0 %v3954
      %4105 = vmatpush1.msra.mxu0 %v3953
      %4106 = vmatprep.subr.mxu0 %v3958
      %4107 = vmatpush1.msra.mxu0 %v3957
      %4108 = vmatprep.subr.mxu0 %v3962
      %4109 = vmatpush1.msra.mxu0 %v3961
      %4110 = vmatprep.subr.mxu0 %v3966
      %4111 = vmatpush1.msra.mxu0 %v3965
      %4112 = vmatprep.subr.mxu0 %v3970
      %4113 = vmatpush1.msra.mxu0 %v3969
      %4114 = vmatprep.subr.mxu0 %v3974
      %4115 = vmatpush1.msra.mxu0 %v3973
      %4116 = vmatprep.subr.mxu0 %v4001
      %4117 = vmatpush1.msra.mxu0 %v3998
      %4118 = vmatprep.subr.mxu0 0.0
      %4119 = vmatpush1.msra.mxu0 0.0
      %4120 = vmatprep.subr.mxu0 0.0
      %4121 = vmatpush1.msra.mxu0 0.0
      %4122 = vmatprep.subr.mxu0 0.0
      %4123 = vmatpush1.msra.mxu0 0.0
      %4124 = vmatprep.subr.mxu0 0.0
      %4125 = vmatpush1.msra.mxu0 0.0
      %4126 = vmatprep.subr.mxu0 0.0
      %4127 = vmatpush1.msra.mxu0 0.0
      %4128 = vmatprep.subr.mxu0 0.0
      %4129 = vmatpush1.msra.mxu0 0.0
      %4130 = vmatprep.subr.mxu0 0.0
      %4131 = vmatpush1.msra.mxu0 0.0
      %4132 = vmatprep.subr.mxu0 0.0
      %4133 = vmatpush1.msra.mxu0 0.0
      %4134 = vmatprep.subr.mxu0 0.0
      %4135 = vmatpush1.msra.mxu0 0.0
      %4136 = vmatprep.subr.mxu0 0.0
      %4137 = vmatpush1.msra.mxu0 0.0
      %4138 = vmatprep.subr.mxu0 0.0
      %4139 = vmatpush1.msra.mxu0 0.0
      %4140 = vmatprep.subr.mxu0 0.0
      %4141 = vmatpush1.msra.mxu0 0.0
      %4142 = vmatprep.subr.mxu0 0.0
      %4143 = vmatpush1.msra.mxu0 0.0
      %4144 = vmatprep.subr.mxu0 0.0
      %4145 = vmatpush1.msra.mxu0 0.0
      %4146 = vmatprep.subr.mxu0 0.0
      %4147 = vmatpush1.msra.mxu0 0.0
      %4148 = vmatprep.subr.mxu0 0.0
      %4149 = vmatpush1.msra.mxu0 0.0
      %4150 = vmatprep.subr.mxu0 0.0
      %4151 = vmatpush1.msra.mxu0 0.0
      %4152 = vmatprep.subr.mxu0 0.0
      %4153 = vmatpush1.msra.mxu0 0.0
      %4154 = vmatprep.subr.mxu0 0.0
      %4155 = vmatpush1.msra.mxu0 0.0
      %4156 = vmatprep.mubr.f32.mxu0 0.0
      %4157 = vmatmul.mubr.f32.gmra.mrb[0].mxu0 %v3980
      %v4158 = vpop.f32.mrb[0].mxu0
      %v4159 = vadd.f32 0.0, %v4158
      %v4160 = vpop.f32.mrb[0].mxu0
      %v4161 = vadd.f32 0.0, %v4160
      %4162 = vmatprep.mubr.f32.mxu0 0.0
      %4163 = vmatmul.mubr.f32.gmra.mrb[0].mxu0 %v3983
      %v4164 = vpop.f32.mrb[0].mxu0
      %v4165 = vadd.f32 0.0, %v4164
      %v4166 = vpop.f32.mrb[0].mxu0
      %v4167 = vadd.f32 0.0, %v4166
      %4168 = vmatprep.mubr.f32.mxu0 0.0
      %4169 = vmatmul.mubr.f32.gmra.mrb[0].mxu0 %v3986
      %v4170 = vpop.f32.mrb[0].mxu0
      %v4171 = vadd.f32 0.0, %v4170
      %v4172 = vpop.f32.mrb[0].mxu0
      %v4173 = vadd.f32 0.0, %v4172
      %4174 = vmatprep.mubr.f32.mxu0 0.0
      %4175 = vmatmul.mubr.f32.gmra.mrb[0].mxu0 %v3989
      %v4176 = vpop.f32.mrb[0].mxu0
      %v4177 = vadd.f32 0.0, %v4176
      %v4178 = vpop.f32.mrb[0].mxu0
      %v4179 = vadd.f32 0.0, %v4178
      %4180 = vdwg.mxu0
      %v4181 = vadd.f32 %v3218, %v4070
      %v4182 = vadd.f32 %v3219, %v4072
      %v4183 = vadd.f32 %v3220, %v4159
      %v4184 = vadd.f32 %v3221, %v4161
      %v4185 = vadd.f32 %v3222, %v4076
      %v4186 = vadd.f32 %v3223, %v4078
      %v4187 = vadd.f32 %v3224, %v4165
      %v4188 = vadd.f32 %v3225, %v4167
      %v4189 = vadd.f32 %v3226, %v4082
      %v4190 = vadd.f32 %v3227, %v4084
      %v4191 = vadd.f32 %v3228, %v4171
      %v4192 = vadd.f32 %v3229, %v4173
      %v4193 = vadd.f32 %v3230, %v4088
      %v4194 = vadd.f32 %v3231, %v4090
      %v4195 = vadd.f32 %v3232, %v4177
      %v4196 = vadd.f32 %v3233, %v4179
      %v4197 = vld [vmem:[%s308 + $0x18] sm:$0xff]
      %v4198 = vld [vmem:[%s308 + $0x20] sm:$0xff]
      %v4199 = vld [vmem:[%s308 + $0x28] sm:$0xf]
      %v4203 = vcombine.high %v4197, %v4197
      %v4204 = vcombine.high %v4198, %v4198
      %4205 = vrot.lane.b32.xlu0 %v4197, 96
      %v4206 = vpop.permute.xlu0 %4205
      %4207 = vrot.lane.b32.xlu0 %v4203, 96
      %v4208 = vpop.permute.xlu0 %4207
      %4209 = vrot.lane.b32.xlu0 %v4198, 96
      %v4210 = vpop.permute.xlu0 %4209
      %4211 = vrot.lane.b32.xlu0 %v4204, 96
      %v4212 = vpop.permute.xlu0 %4211
      %4213 = vrot.lane.b32.xlu0 %v4199, 96
      %v4214 = vpop.permute.xlu0 %4213
      %v4215 = vsel %vm436, %v4206, %v4208
      %v4216 = vsel %vm436, %v4208, %v4210
      %v4217 = vsel %vm436, %v4210, %v4212
      %v4218 = vsel %vm436, %v4212, %v4214
      %4223 = vst [vmem:[#allocation2] sm:$0xf] %v4215
      %4224 = vst [vmem:[#allocation2 + $0x8] sm:$0xf] %v4216
      %4225 = vst [vmem:[#allocation2 + $0x10] sm:$0xf] %v4217
      %4226 = vst [vmem:[#allocation2 + $0x18] sm:$0xf] %v4218
      %v4227 = vld [vmem:[%s313 + $0x18] sm:$0xff]
      %v4228 = vld [vmem:[%s313 + $0x20] sm:$0xff]
      %v4229 = vld [vmem:[%s313 + $0x28] sm:$0xf]
      %v4233 = vcombine.low %v4227, %v4227
      %v4234 = vcombine.low %v4228, %v4228
      %v4235 = vcombine.low %v4229, %v4229
      %4236 = vrot.lane.b32.xlu0 %v4233, 96
      %v4237 = vpop.permute.xlu0 %4236
      %4238 = vrot.lane.b32.xlu0 %v4227, 96
      %v4239 = vpop.permute.xlu0 %4238
      %4240 = vrot.lane.b32.xlu0 %v4234, 96
      %v4241 = vpop.permute.xlu0 %4240
      %4242 = vrot.lane.b32.xlu0 %v4228, 96
      %v4243 = vpop.permute.xlu0 %4242
      %4244 = vrot.lane.b32.xlu0 %v4235, 96
      %v4245 = vpop.permute.xlu0 %4244
      %v4246 = vsel %vm436, %v4237, %v4239
      %v4247 = vsel %vm436, %v4239, %v4241
      %v4248 = vsel %vm436, %v4241, %v4243
      %v4249 = vsel %vm436, %v4243, %v4245
      %4254 = vst [vmem:[#allocation2] sm:$0xf0] %v4246
      %4255 = vst [vmem:[#allocation2 + $0x8] sm:$0xf0] %v4247
      %4256 = vst [vmem:[#allocation2 + $0x10] sm:$0xf0] %v4248
      %4257 = vst [vmem:[#allocation2 + $0x18] sm:$0xf0] %v4249
      %v4258 = vld [vmem:[%s308 + $0x18] sm:$0xff]
      %v4259 = vld [vmem:[%s308 + $0x20] sm:$0xff]
      %v4260 = vld [vmem:[%s308 + $0x28] sm:$0xf]
      %v4264 = vcombine.high %v4258, %v4258
      %v4265 = vcombine.high %v4259, %v4259
      %4266 = vrot.lane.b32.xlu0 %v4258, 80
      %v4267 = vpop.permute.xlu0 %4266
      %4268 = vrot.lane.b32.xlu0 %v4264, 80
      %v4269 = vpop.permute.xlu0 %4268
      %4270 = vrot.lane.b32.xlu0 %v4259, 80
      %v4271 = vpop.permute.xlu0 %4270
      %4272 = vrot.lane.b32.xlu0 %v4265, 80
      %v4273 = vpop.permute.xlu0 %4272
      %4274 = vrot.lane.b32.xlu0 %v4260, 80
      %v4275 = vpop.permute.xlu0 %4274
      %v4276 = vsel %vm498, %v4267, %v4269
      %v4277 = vsel %vm498, %v4269, %v4271
      %v4278 = vsel %vm498, %v4271, %v4273
      %v4279 = vsel %vm498, %v4273, %v4275
      %4284 = vst [vmem:[#allocation2 + $0x20] sm:$0xf] %v4276
      %4285 = vst [vmem:[#allocation2 + $0x28] sm:$0xf] %v4277
      %4286 = vst [vmem:[#allocation2 + $0x30] sm:$0xf] %v4278
      %4287 = vst [vmem:[#allocation2 + $0x38] sm:$0xf] %v4279
      %v4288 = vld [vmem:[%s313 + $0x18] sm:$0xff]
      %v4289 = vld [vmem:[%s313 + $0x20] sm:$0xff]
      %v4290 = vld [vmem:[%s313 + $0x28] sm:$0xf]
      %v4294 = vcombine.low %v4288, %v4288
      %v4295 = vcombine.low %v4289, %v4289
      %v4296 = vcombine.low %v4290, %v4290
      %4297 = vrot.lane.b32.xlu0 %v4294, 80
      %v4298 = vpop.permute.xlu0 %4297
      %4299 = vrot.lane.b32.xlu0 %v4288, 80
      %v4300 = vpop.permute.xlu0 %4299
      %4301 = vrot.lane.b32.xlu0 %v4295, 80
      %v4302 = vpop.permute.xlu0 %4301
      %4303 = vrot.lane.b32.xlu0 %v4289, 80
      %v4304 = vpop.permute.xlu0 %4303
      %4305 = vrot.lane.b32.xlu0 %v4296, 80
      %v4306 = vpop.permute.xlu0 %4305
      %v4307 = vsel %vm498, %v4298, %v4300
      %v4308 = vsel %vm498, %v4300, %v4302
      %v4309 = vsel %vm498, %v4302, %v4304
      %v4310 = vsel %vm498, %v4304, %v4306
      %4315 = vst [vmem:[#allocation2 + $0x20] sm:$0xf0] %v4307
      %4316 = vst [vmem:[#allocation2 + $0x28] sm:$0xf0] %v4308
      %4317 = vst [vmem:[#allocation2 + $0x30] sm:$0xf0] %v4309
      %4318 = vst [vmem:[#allocation2 + $0x38] sm:$0xf0] %v4310
      %v4319 = vld [vmem:[%s308 + $0x18] sm:$0xff]
      %v4320 = vld [vmem:[%s308 + $0x20] sm:$0xff]
      %v4321 = vld [vmem:[%s308 + $0x28] sm:$0xf]
      %v4325 = vcombine.high %v4319, %v4319
      %v4326 = vcombine.high %v4320, %v4320
      %4327 = vrot.lane.b32.xlu0 %v4319, 64
      %v4328 = vpop.permute.xlu0 %4327
      %4329 = vrot.lane.b32.xlu0 %v4325, 64
      %v4330 = vpop.permute.xlu0 %4329
      %4331 = vrot.lane.b32.xlu0 %v4320, 64
      %v4332 = vpop.permute.xlu0 %4331
      %4333 = vrot.lane.b32.xlu0 %v4326, 64
      %v4334 = vpop.permute.xlu0 %4333
      %4335 = vrot.lane.b32.xlu0 %v4321, 64
      %v4336 = vpop.permute.xlu0 %4335
      %v4337 = vsel %vm560, %v4328, %v4330
      %v4338 = vsel %vm560, %v4330, %v4332
      %v4339 = vsel %vm560, %v4332, %v4334
      %v4340 = vsel %vm560, %v4334, %v4336
      %4345 = vst [vmem:[#allocation2 + $0x40] sm:$0xf] %v4337
      %4346 = vst [vmem:[#allocation2 + $0x48] sm:$0xf] %v4338
      %4347 = vst [vmem:[#allocation2 + $0x50] sm:$0xf] %v4339
      %4348 = vst [vmem:[#allocation2 + $0x58] sm:$0xf] %v4340
      %v4349 = vld [vmem:[%s313 + $0x18] sm:$0xff]
      %v4350 = vld [vmem:[%s313 + $0x20] sm:$0xff]
      %v4351 = vld [vmem:[%s313 + $0x28] sm:$0xf]
      %v4355 = vcombine.low %v4349, %v4349
      %v4356 = vcombine.low %v4350, %v4350
      %v4357 = vcombine.low %v4351, %v4351
      %4358 = vrot.lane.b32.xlu0 %v4355, 64
      %v4359 = vpop.permute.xlu0 %4358
      %4360 = vrot.lane.b32.xlu0 %v4349, 64
      %v4361 = vpop.permute.xlu0 %4360
      %4362 = vrot.lane.b32.xlu0 %v4356, 64
      %v4363 = vpop.permute.xlu0 %4362
      %4364 = vrot.lane.b32.xlu0 %v4350, 64
      %v4365 = vpop.permute.xlu0 %4364
      %4366 = vrot.lane.b32.xlu0 %v4357, 64
      %v4367 = vpop.permute.xlu0 %4366
      %v4368 = vsel %vm560, %v4359, %v4361
      %v4369 = vsel %vm560, %v4361, %v4363
      %v4370 = vsel %vm560, %v4363, %v4365
      %v4371 = vsel %vm560, %v4365, %v4367
      %4376 = vst [vmem:[#allocation2 + $0x40] sm:$0xf0] %v4368
      %4377 = vst [vmem:[#allocation2 + $0x48] sm:$0xf0] %v4369
      %4378 = vst [vmem:[#allocation2 + $0x50] sm:$0xf0] %v4370
      %4379 = vst [vmem:[#allocation2 + $0x58] sm:$0xf0] %v4371
      %v4380 = vld [vmem:[%s308 + $0x18] sm:$0xff]
      %v4381 = vld [vmem:[%s308 + $0x20] sm:$0xff]
      %v4382 = vld [vmem:[%s308 + $0x28] sm:$0xf]
      %v4386 = vcombine.high %v4380, %v4380
      %v4387 = vcombine.high %v4381, %v4381
      %4388 = vrot.lane.b32.xlu0 %v4380, 48
      %v4389 = vpop.permute.xlu0 %4388
      %4390 = vrot.lane.b32.xlu0 %v4386, 48
      %v4391 = vpop.permute.xlu0 %4390
      %4392 = vrot.lane.b32.xlu0 %v4381, 48
      %v4393 = vpop.permute.xlu0 %4392
      %4394 = vrot.lane.b32.xlu0 %v4387, 48
      %v4395 = vpop.permute.xlu0 %4394
      %4396 = vrot.lane.b32.xlu0 %v4382, 48
      %v4397 = vpop.permute.xlu0 %4396
      %v4398 = vsel %vm622, %v4389, %v4391
      %v4399 = vsel %vm622, %v4391, %v4393
      %v4400 = vsel %vm622, %v4393, %v4395
      %v4401 = vsel %vm622, %v4395, %v4397
      %4406 = vst [vmem:[#allocation2 + $0x60] sm:$0xf] %v4398
      %4407 = vst [vmem:[#allocation2 + $0x68] sm:$0xf] %v4399
      %4408 = vst [vmem:[#allocation2 + $0x70] sm:$0xf] %v4400
      %4409 = vst [vmem:[#allocation2 + $0x78] sm:$0xf] %v4401
      %v4410 = vld [vmem:[%s313 + $0x18] sm:$0xff]
      %v4411 = vld [vmem:[%s313 + $0x20] sm:$0xff]
      %v4412 = vld [vmem:[%s313 + $0x28] sm:$0xf]
      %v4416 = vcombine.low %v4410, %v4410
      %v4417 = vcombine.low %v4411, %v4411
      %v4418 = vcombine.low %v4412, %v4412
      %4419 = vrot.lane.b32.xlu0 %v4416, 48
      %v4420 = vpop.permute.xlu0 %4419
      %4421 = vrot.lane.b32.xlu0 %v4410, 48
      %v4422 = vpop.permute.xlu0 %4421
      %4423 = vrot.lane.b32.xlu0 %v4417, 48
      %v4424 = vpop.permute.xlu0 %4423
      %4425 = vrot.lane.b32.xlu0 %v4411, 48
      %v4426 = vpop.permute.xlu0 %4425
      %4427 = vrot.lane.b32.xlu0 %v4418, 48
      %v4428 = vpop.permute.xlu0 %4427
      %v4429 = vsel %vm622, %v4420, %v4422
      %v4430 = vsel %vm622, %v4422, %v4424
      %v4431 = vsel %vm622, %v4424, %v4426
      %v4432 = vsel %vm622, %v4426, %v4428
      %4437 = vst [vmem:[#allocation2 + $0x60] sm:$0xf0] %v4429
      %4438 = vst [vmem:[#allocation2 + $0x68] sm:$0xf0] %v4430
      %4439 = vst [vmem:[#allocation2 + $0x70] sm:$0xf0] %v4431
      %4440 = vst [vmem:[#allocation2 + $0x78] sm:$0xf0] %v4432
      %v4441 = vld [vmem:[%s308 + $0x18] sm:$0xff]
      %v4442 = vld [vmem:[%s308 + $0x20] sm:$0xff]
      %v4443 = vld [vmem:[%s308 + $0x28] sm:$0xf]
      %v4447 = vcombine.high %v4441, %v4441
      %v4448 = vcombine.high %v4442, %v4442
      %4449 = vrot.lane.b32.xlu0 %v4441, 32
      %v4450 = vpop.permute.xlu0 %4449
      %4451 = vrot.lane.b32.xlu0 %v4447, 32
      %v4452 = vpop.permute.xlu0 %4451
      %4453 = vrot.lane.b32.xlu0 %v4442, 32
      %v4454 = vpop.permute.xlu0 %4453
      %4455 = vrot.lane.b32.xlu0 %v4448, 32
      %v4456 = vpop.permute.xlu0 %4455
      %4457 = vrot.lane.b32.xlu0 %v4443, 32
      %v4458 = vpop.permute.xlu0 %4457
      %v4459 = vsel %vm684, %v4450, %v4452
      %v4460 = vsel %vm684, %v4452, %v4454
      %v4461 = vsel %vm684, %v4454, %v4456
      %v4462 = vsel %vm684, %v4456, %v4458
      %4467 = vst [vmem:[#allocation2 + $0x80] sm:$0xf] %v4459
      %4468 = vst [vmem:[#allocation2 + $0x88] sm:$0xf] %v4460
      %4469 = vst [vmem:[#allocation2 + $0x90] sm:$0xf] %v4461
      %4470 = vst [vmem:[#allocation2 + $0x98] sm:$0xf] %v4462
      %v4471 = vld [vmem:[%s313 + $0x18] sm:$0xff]
      %v4472 = vld [vmem:[%s313 + $0x20] sm:$0xff]
      %v4473 = vld [vmem:[%s313 + $0x28] sm:$0xf]
      %v4477 = vcombine.low %v4471, %v4471
      %v4478 = vcombine.low %v4472, %v4472
      %v4479 = vcombine.low %v4473, %v4473
      %4480 = vrot.lane.b32.xlu0 %v4477, 32
      %v4481 = vpop.permute.xlu0 %4480
      %4482 = vrot.lane.b32.xlu0 %v4471, 32
      %v4483 = vpop.permute.xlu0 %4482
      %4484 = vrot.lane.b32.xlu0 %v4478, 32
      %v4485 = vpop.permute.xlu0 %4484
      %4486 = vrot.lane.b32.xlu0 %v4472, 32
      %v4487 = vpop.permute.xlu0 %4486
      %4488 = vrot.lane.b32.xlu0 %v4479, 32
      %v4489 = vpop.permute.xlu0 %4488
      %v4490 = vsel %vm684, %v4481, %v4483
      %v4491 = vsel %vm684, %v4483, %v4485
      %v4492 = vsel %vm684, %v4485, %v4487
      %v4493 = vsel %vm684, %v4487, %v4489
      %4498 = vst [vmem:[#allocation2 + $0x80] sm:$0xf0] %v4490
      %4499 = vst [vmem:[#allocation2 + $0x88] sm:$0xf0] %v4491
      %4500 = vst [vmem:[#allocation2 + $0x90] sm:$0xf0] %v4492
      %4501 = vst [vmem:[#allocation2 + $0x98] sm:$0xf0] %v4493
      %v4502 = vld [vmem:[%s308 + $0x18] sm:$0xff]
      %v4503 = vld [vmem:[%s308 + $0x20] sm:$0xff]
      %v4504 = vld [vmem:[%s308 + $0x28] sm:$0xf]
      %v4508 = vcombine.high %v4502, %v4502
      %v4509 = vcombine.high %v4503, %v4503
      %4510 = vrot.lane.b32.xlu0 %v4502, 16
      %v4511 = vpop.permute.xlu0 %4510
      %4512 = vrot.lane.b32.xlu0 %v4508, 16
      %v4513 = vpop.permute.xlu0 %4512
      %4514 = vrot.lane.b32.xlu0 %v4503, 16
      %v4515 = vpop.permute.xlu0 %4514
      %4516 = vrot.lane.b32.xlu0 %v4509, 16
      %v4517 = vpop.permute.xlu0 %4516
      %4518 = vrot.lane.b32.xlu0 %v4504, 16
      %v4519 = vpop.permute.xlu0 %4518
      %v4520 = vsel %vm746, %v4511, %v4513
      %v4521 = vsel %vm746, %v4513, %v4515
      %v4522 = vsel %vm746, %v4515, %v4517
      %v4523 = vsel %vm746, %v4517, %v4519
      %4528 = vst [vmem:[#allocation2 + $0xa0] sm:$0xf] %v4520
      %4529 = vst [vmem:[#allocation2 + $0xa8] sm:$0xf] %v4521
      %4530 = vst [vmem:[#allocation2 + $0xb0] sm:$0xf] %v4522
      %4531 = vst [vmem:[#allocation2 + $0xb8] sm:$0xf] %v4523
      %v4532 = vld [vmem:[%s313 + $0x18] sm:$0xff]
      %v4533 = vld [vmem:[%s313 + $0x20] sm:$0xff]
      %v4534 = vld [vmem:[%s313 + $0x28] sm:$0xf]
      %v4538 = vcombine.low %v4532, %v4532
      %v4539 = vcombine.low %v4533, %v4533
      %v4540 = vcombine.low %v4534, %v4534
      %4541 = vrot.lane.b32.xlu0 %v4538, 16
      %v4542 = vpop.permute.xlu0 %4541
      %4543 = vrot.lane.b32.xlu0 %v4532, 16
      %v4544 = vpop.permute.xlu0 %4543
      %4545 = vrot.lane.b32.xlu0 %v4539, 16
      %v4546 = vpop.permute.xlu0 %4545
      %4547 = vrot.lane.b32.xlu0 %v4533, 16
      %v4548 = vpop.permute.xlu0 %4547
      %4549 = vrot.lane.b32.xlu0 %v4540, 16
      %v4550 = vpop.permute.xlu0 %4549
      %v4551 = vsel %vm746, %v4542, %v4544
      %v4552 = vsel %vm746, %v4544, %v4546
      %v4553 = vsel %vm746, %v4546, %v4548
      %v4554 = vsel %vm746, %v4548, %v4550
      %4559 = vst [vmem:[#allocation2 + $0xa0] sm:$0xf0] %v4551
      %4560 = vst [vmem:[#allocation2 + $0xa8] sm:$0xf0] %v4552
      %4561 = vst [vmem:[#allocation2 + $0xb0] sm:$0xf0] %v4553
      %4562 = vst [vmem:[#allocation2 + $0xb8] sm:$0xf0] %v4554
      %v4563 = vld [vmem:[%s308 + $0x1c] sm:$0xff]
      %v4564 = vld [vmem:[%s308 + $0x24] sm:$0xff]
      %v4567 = vcombine.high %v4563, %v4563
      %v4568 = vcombine.high %v4564, %v4564
      %4571 = vst [vmem:[#allocation2 + $0xc0] sm:$0xf] %v4563
      %4572 = vst [vmem:[#allocation2 + $0xc8] sm:$0xf] %v4567
      %4573 = vst [vmem:[#allocation2 + $0xd0] sm:$0xf] %v4564
      %4574 = vst [vmem:[#allocation2 + $0xd8] sm:$0xf] %v4568
      %v4575 = vld [vmem:[%s313 + $0x1c] sm:$0xff]
      %v4576 = vld [vmem:[%s313 + $0x24] sm:$0xff]
      %v4579 = vcombine.low %v4575, %v4575
      %v4580 = vcombine.low %v4576, %v4576
      %4583 = vst [vmem:[#allocation2 + $0xc0] sm:$0xf0] %v4579
      %4584 = vst [vmem:[#allocation2 + $0xc8] sm:$0xf0] %v4575
      %4585 = vst [vmem:[#allocation2 + $0xd0] sm:$0xf0] %v4580
      %4586 = vst [vmem:[#allocation2 + $0xd8] sm:$0xf0] %v4576
      %v4587 = vld [vmem:[%s308 + $0x1c] sm:$0xff]
      %v4588 = vld [vmem:[%s308 + $0x24] sm:$0xff]
      %v4589 = vld [vmem:[%s308 + $0x2c] sm:$0xf]
      %v4593 = vcombine.high %v4587, %v4587
      %v4594 = vcombine.high %v4588, %v4588
      %4595 = vrot.lane.b32.xlu0 %v4587, 112
      %v4596 = vpop.permute.xlu0 %4595
      %4597 = vrot.lane.b32.xlu0 %v4593, 112
      %v4598 = vpop.permute.xlu0 %4597
      %4599 = vrot.lane.b32.xlu0 %v4588, 112
      %v4600 = vpop.permute.xlu0 %4599
      %4601 = vrot.lane.b32.xlu0 %v4594, 112
      %v4602 = vpop.permute.xlu0 %4601
      %4603 = vrot.lane.b32.xlu0 %v4589, 112
      %v4604 = vpop.permute.xlu0 %4603
      %v4605 = vsel %vm374, %v4596, %v4598
      %v4606 = vsel %vm374, %v4598, %v4600
      %v4607 = vsel %vm374, %v4600, %v4602
      %v4608 = vsel %vm374, %v4602, %v4604
      %4613 = vst [vmem:[#allocation2 + $0xe0] sm:$0xf] %v4605
      %4614 = vst [vmem:[#allocation2 + $0xe8] sm:$0xf] %v4606
      %4615 = vst [vmem:[#allocation2 + $0xf0] sm:$0xf] %v4607
      %4616 = vst [vmem:[#allocation2 + $0xf8] sm:$0xf] %v4608
      %v4617 = vld [vmem:[%s313 + $0x1c] sm:$0xff]
      %v4618 = vld [vmem:[%s313 + $0x24] sm:$0xff]
      %v4619 = vld [vmem:[%s313 + $0x2c] sm:$0xf]
      %v4623 = vcombine.low %v4617, %v4617
      %v4624 = vcombine.low %v4618, %v4618
      %v4625 = vcombine.low %v4619, %v4619
      %4626 = vrot.lane.b32.xlu0 %v4623, 112
      %v4627 = vpop.permute.xlu0 %4626
      %4628 = vrot.lane.b32.xlu0 %v4617, 112
      %v4629 = vpop.permute.xlu0 %4628
      %4630 = vrot.lane.b32.xlu0 %v4624, 112
      %v4631 = vpop.permute.xlu0 %4630
      %4632 = vrot.lane.b32.xlu0 %v4618, 112
      %v4633 = vpop.permute.xlu0 %4632
      %4634 = vrot.lane.b32.xlu0 %v4625, 112
      %v4635 = vpop.permute.xlu0 %4634
      %v4636 = vsel %vm374, %v4627, %v4629
      %v4637 = vsel %vm374, %v4629, %v4631
      %v4638 = vsel %vm374, %v4631, %v4633
      %v4639 = vsel %vm374, %v4633, %v4635
      %4644 = vst [vmem:[#allocation2 + $0xe0] sm:$0xf0] %v4636
      %4645 = vst [vmem:[#allocation2 + $0xe8] sm:$0xf0] %v4637
      %4646 = vst [vmem:[#allocation2 + $0xf0] sm:$0xf0] %v4638
      %4647 = vst [vmem:[#allocation2 + $0xf8] sm:$0xf0] %v4639
      %v4648 = vld [vmem:[%s308 + $0x1c] sm:$0xff]
      %v4649 = vld [vmem:[%s308 + $0x24] sm:$0xff]
      %v4650 = vld [vmem:[%s308 + $0x2c] sm:$0xf]
      %v4654 = vcombine.high %v4648, %v4648
      %v4655 = vcombine.high %v4649, %v4649
      %4656 = vrot.lane.b32.xlu0 %v4648, 96
      %v4657 = vpop.permute.xlu0 %4656
      %4658 = vrot.lane.b32.xlu0 %v4654, 96
      %v4659 = vpop.permute.xlu0 %4658
      %4660 = vrot.lane.b32.xlu0 %v4649, 96
      %v4661 = vpop.permute.xlu0 %4660
      %4662 = vrot.lane.b32.xlu0 %v4655, 96
      %v4663 = vpop.permute.xlu0 %4662
      %4664 = vrot.lane.b32.xlu0 %v4650, 96
      %v4665 = vpop.permute.xlu0 %4664
      %v4666 = vsel %vm436, %v4657, %v4659
      %v4667 = vsel %vm436, %v4659, %v4661
      %v4668 = vsel %vm436, %v4661, %v4663
      %v4669 = vsel %vm436, %v4663, %v4665
      %4674 = vst [vmem:[#allocation2 + $0x100] sm:$0xf] %v4666
      %4675 = vst [vmem:[#allocation2 + $0x108] sm:$0xf] %v4667
      %4676 = vst [vmem:[#allocation2 + $0x110] sm:$0xf] %v4668
      %4677 = vst [vmem:[#allocation2 + $0x118] sm:$0xf] %v4669
      %v4678 = vld [vmem:[%s313 + $0x1c] sm:$0xff]
      %v4679 = vld [vmem:[%s313 + $0x24] sm:$0xff]
      %v4680 = vld [vmem:[%s313 + $0x2c] sm:$0xf]
      %v4684 = vcombine.low %v4678, %v4678
      %v4685 = vcombine.low %v4679, %v4679
      %v4686 = vcombine.low %v4680, %v4680
      %4687 = vrot.lane.b32.xlu0 %v4684, 96
      %v4688 = vpop.permute.xlu0 %4687
      %4689 = vrot.lane.b32.xlu0 %v4678, 96
      %v4690 = vpop.permute.xlu0 %4689
      %4691 = vrot.lane.b32.xlu0 %v4685, 96
      %v4692 = vpop.permute.xlu0 %4691
      %4693 = vrot.lane.b32.xlu0 %v4679, 96
      %v4694 = vpop.permute.xlu0 %4693
      %4695 = vrot.lane.b32.xlu0 %v4686, 96
      %v4696 = vpop.permute.xlu0 %4695
      %v4697 = vsel %vm436, %v4688, %v4690
      %v4698 = vsel %vm436, %v4690, %v4692
      %v4699 = vsel %vm436, %v4692, %v4694
      %v4700 = vsel %vm436, %v4694, %v4696
      %4705 = vst [vmem:[#allocation2 + $0x100] sm:$0xf0] %v4697
      %4706 = vst [vmem:[#allocation2 + $0x108] sm:$0xf0] %v4698
      %4707 = vst [vmem:[#allocation2 + $0x110] sm:$0xf0] %v4699
      %4708 = vst [vmem:[#allocation2 + $0x118] sm:$0xf0] %v4700
      %v4709 = vld [vmem:[%s308 + $0x1c] sm:$0xff]
      %v4710 = vld [vmem:[%s308 + $0x24] sm:$0xff]
      %v4711 = vld [vmem:[%s308 + $0x2c] sm:$0xf]
      %v4715 = vcombine.high %v4709, %v4709
      %v4716 = vcombine.high %v4710, %v4710
      %4717 = vrot.lane.b32.xlu0 %v4709, 80
      %v4718 = vpop.permute.xlu0 %4717
      %4719 = vrot.lane.b32.xlu0 %v4715, 80
      %v4720 = vpop.permute.xlu0 %4719
      %4721 = vrot.lane.b32.xlu0 %v4710, 80
      %v4722 = vpop.permute.xlu0 %4721
      %4723 = vrot.lane.b32.xlu0 %v4716, 80
      %v4724 = vpop.permute.xlu0 %4723
      %4725 = vrot.lane.b32.xlu0 %v4711, 80
      %v4726 = vpop.permute.xlu0 %4725
      %v4727 = vsel %vm498, %v4718, %v4720
      %v4728 = vsel %vm498, %v4720, %v4722
      %v4729 = vsel %vm498, %v4722, %v4724
      %v4730 = vsel %vm498, %v4724, %v4726
      %4735 = vst [vmem:[#allocation2 + $0x120] sm:$0xf] %v4727
      %4736 = vst [vmem:[#allocation2 + $0x128] sm:$0xf] %v4728
      %4737 = vst [vmem:[#allocation2 + $0x130] sm:$0xf] %v4729
      %4738 = vst [vmem:[#allocation2 + $0x138] sm:$0xf] %v4730
      %v4739 = vld [vmem:[%s313 + $0x1c] sm:$0xff]
      %v4740 = vld [vmem:[%s313 + $0x24] sm:$0xff]
      %v4741 = vld [vmem:[%s313 + $0x2c] sm:$0xf]
      %v4745 = vcombine.low %v4739, %v4739
      %v4746 = vcombine.low %v4740, %v4740
      %v4747 = vcombine.low %v4741, %v4741
      %4748 = vrot.lane.b32.xlu0 %v4745, 80
      %v4749 = vpop.permute.xlu0 %4748
      %4750 = vrot.lane.b32.xlu0 %v4739, 80
      %v4751 = vpop.permute.xlu0 %4750
      %4752 = vrot.lane.b32.xlu0 %v4746, 80
      %v4753 = vpop.permute.xlu0 %4752
      %4754 = vrot.lane.b32.xlu0 %v4740, 80
      %v4755 = vpop.permute.xlu0 %4754
      %4756 = vrot.lane.b32.xlu0 %v4747, 80
      %v4757 = vpop.permute.xlu0 %4756
      %v4758 = vsel %vm498, %v4749, %v4751
      %v4759 = vsel %vm498, %v4751, %v4753
      %v4760 = vsel %vm498, %v4753, %v4755
      %v4761 = vsel %vm498, %v4755, %v4757
      %4766 = vst [vmem:[#allocation2 + $0x120] sm:$0xf0] %v4758
      %4767 = vst [vmem:[#allocation2 + $0x128] sm:$0xf0] %v4759
      %4768 = vst [vmem:[#allocation2 + $0x130] sm:$0xf0] %v4760
      %4769 = vst [vmem:[#allocation2 + $0x138] sm:$0xf0] %v4761
      %v4770 = vld [vmem:[%s308 + $0x1c] sm:$0xff]
      %v4771 = vld [vmem:[%s308 + $0x24] sm:$0xff]
      %v4772 = vld [vmem:[%s308 + $0x2c] sm:$0xf]
      %v4776 = vcombine.high %v4770, %v4770
      %v4777 = vcombine.high %v4771, %v4771
      %4778 = vrot.lane.b32.xlu0 %v4770, 64
      %v4779 = vpop.permute.xlu0 %4778
      %4780 = vrot.lane.b32.xlu0 %v4776, 64
      %v4781 = vpop.permute.xlu0 %4780
      %4782 = vrot.lane.b32.xlu0 %v4771, 64
      %v4783 = vpop.permute.xlu0 %4782
      %4784 = vrot.lane.b32.xlu0 %v4777, 64
      %v4785 = vpop.permute.xlu0 %4784
      %4786 = vrot.lane.b32.xlu0 %v4772, 64
      %v4787 = vpop.permute.xlu0 %4786
      %v4788 = vsel %vm560, %v4779, %v4781
      %v4789 = vsel %vm560, %v4781, %v4783
      %v4790 = vsel %vm560, %v4783, %v4785
      %v4791 = vsel %vm560, %v4785, %v4787
      %4796 = vst [vmem:[#allocation2 + $0x140] sm:$0xf] %v4788
      %4797 = vst [vmem:[#allocation2 + $0x148] sm:$0xf] %v4789
      %4798 = vst [vmem:[#allocation2 + $0x150] sm:$0xf] %v4790
      %4799 = vst [vmem:[#allocation2 + $0x158] sm:$0xf] %v4791
      %v4800 = vld [vmem:[%s313 + $0x1c] sm:$0xff]
      %v4801 = vld [vmem:[%s313 + $0x24] sm:$0xff]
      %v4802 = vld [vmem:[%s313 + $0x2c] sm:$0xf]
      %v4806 = vcombine.low %v4800, %v4800
      %v4807 = vcombine.low %v4801, %v4801
      %v4808 = vcombine.low %v4802, %v4802
      %4809 = vrot.lane.b32.xlu0 %v4806, 64
      %v4810 = vpop.permute.xlu0 %4809
      %4811 = vrot.lane.b32.xlu0 %v4800, 64
      %v4812 = vpop.permute.xlu0 %4811
      %4813 = vrot.lane.b32.xlu0 %v4807, 64
      %v4814 = vpop.permute.xlu0 %4813
      %4815 = vrot.lane.b32.xlu0 %v4801, 64
      %v4816 = vpop.permute.xlu0 %4815
      %4817 = vrot.lane.b32.xlu0 %v4808, 64
      %v4818 = vpop.permute.xlu0 %4817
      %v4819 = vsel %vm560, %v4810, %v4812
      %v4820 = vsel %vm560, %v4812, %v4814
      %v4821 = vsel %vm560, %v4814, %v4816
      %v4822 = vsel %vm560, %v4816, %v4818
      %4827 = vst [vmem:[#allocation2 + $0x140] sm:$0xf0] %v4819
      %4828 = vst [vmem:[#allocation2 + $0x148] sm:$0xf0] %v4820
      %4829 = vst [vmem:[#allocation2 + $0x150] sm:$0xf0] %v4821
      %4830 = vst [vmem:[#allocation2 + $0x158] sm:$0xf0] %v4822
      %v4831 = vld [vmem:[%s308 + $0x1c] sm:$0xff]
      %v4832 = vld [vmem:[%s308 + $0x24] sm:$0xff]
      %v4833 = vld [vmem:[%s308 + $0x2c] sm:$0xf]
      %v4837 = vcombine.high %v4831, %v4831
      %v4838 = vcombine.high %v4832, %v4832
      %4839 = vrot.lane.b32.xlu0 %v4831, 48
      %v4840 = vpop.permute.xlu0 %4839
      %4841 = vrot.lane.b32.xlu0 %v4837, 48
      %v4842 = vpop.permute.xlu0 %4841
      %4843 = vrot.lane.b32.xlu0 %v4832, 48
      %v4844 = vpop.permute.xlu0 %4843
      %4845 = vrot.lane.b32.xlu0 %v4838, 48
      %v4846 = vpop.permute.xlu0 %4845
      %4847 = vrot.lane.b32.xlu0 %v4833, 48
      %v4848 = vpop.permute.xlu0 %4847
      %v4849 = vsel %vm622, %v4840, %v4842
      %v4850 = vsel %vm622, %v4842, %v4844
      %v4851 = vsel %vm622, %v4844, %v4846
      %v4852 = vsel %vm622, %v4846, %v4848
      %4857 = vst [vmem:[#allocation2 + $0x160] sm:$0xf] %v4849
      %4858 = vst [vmem:[#allocation2 + $0x168] sm:$0xf] %v4850
      %4859 = vst [vmem:[#allocation2 + $0x170] sm:$0xf] %v4851
      %4860 = vst [vmem:[#allocation2 + $0x178] sm:$0xf] %v4852
      %v4861 = vld [vmem:[%s313 + $0x1c] sm:$0xff]
      %v4862 = vld [vmem:[%s313 + $0x24] sm:$0xff]
      %v4863 = vld [vmem:[%s313 + $0x2c] sm:$0xf]
      %v4867 = vcombine.low %v4861, %v4861
      %v4868 = vcombine.low %v4862, %v4862
      %v4869 = vcombine.low %v4863, %v4863
      %4870 = vrot.lane.b32.xlu0 %v4867, 48
      %v4871 = vpop.permute.xlu0 %4870
      %4872 = vrot.lane.b32.xlu0 %v4861, 48
      %v4873 = vpop.permute.xlu0 %4872
      %4874 = vrot.lane.b32.xlu0 %v4868, 48
      %v4875 = vpop.permute.xlu0 %4874
      %4876 = vrot.lane.b32.xlu0 %v4862, 48
      %v4877 = vpop.permute.xlu0 %4876
      %4878 = vrot.lane.b32.xlu0 %v4869, 48
      %v4879 = vpop.permute.xlu0 %4878
      %v4880 = vsel %vm622, %v4871, %v4873
      %v4881 = vsel %vm622, %v4873, %v4875
      %v4882 = vsel %vm622, %v4875, %v4877
      %v4883 = vsel %vm622, %v4877, %v4879
      %4888 = vst [vmem:[#allocation2 + $0x160] sm:$0xf0] %v4880
      %4889 = vst [vmem:[#allocation2 + $0x168] sm:$0xf0] %v4881
      %4890 = vst [vmem:[#allocation2 + $0x170] sm:$0xf0] %v4882
      %4891 = vst [vmem:[#allocation2 + $0x178] sm:$0xf0] %v4883
      %v4892 = vld [vmem:[%s308 + $0x1c] sm:$0xff]
      %v4893 = vld [vmem:[%s308 + $0x24] sm:$0xff]
      %v4894 = vld [vmem:[%s308 + $0x2c] sm:$0xf]
      %v4898 = vcombine.high %v4892, %v4892
      %v4899 = vcombine.high %v4893, %v4893
      %4900 = vrot.lane.b32.xlu0 %v4892, 32
      %v4901 = vpop.permute.xlu0 %4900
      %4902 = vrot.lane.b32.xlu0 %v4898, 32
      %v4903 = vpop.permute.xlu0 %4902
      %4904 = vrot.lane.b32.xlu0 %v4893, 32
      %v4905 = vpop.permute.xlu0 %4904
      %4906 = vrot.lane.b32.xlu0 %v4899, 32
      %v4907 = vpop.permute.xlu0 %4906
      %4908 = vrot.lane.b32.xlu0 %v4894, 32
      %v4909 = vpop.permute.xlu0 %4908
      %v4910 = vsel %vm684, %v4901, %v4903
      %v4911 = vsel %vm684, %v4903, %v4905
      %v4912 = vsel %vm684, %v4905, %v4907
      %v4913 = vsel %vm684, %v4907, %v4909
      %4918 = vst [vmem:[#allocation2 + $0x180] sm:$0xf] %v4910
      %4919 = vst [vmem:[#allocation2 + $0x188] sm:$0xf] %v4911
      %4920 = vst [vmem:[#allocation2 + $0x190] sm:$0xf] %v4912
      %4921 = vst [vmem:[#allocation2 + $0x198] sm:$0xf] %v4913
      %s4922 = scalar_lea.vmem %s2, 128
      %v4923 = vld [vmem:[%s4922] sm:$0xff]
      %v4924 = vld [vmem:[%s4922 + $0x8] sm:$0xff]
      %v4925 = vld [vmem:[%s4922 + $0x10] sm:$0xff]
      %v4926 = vld [vmem:[%s4922 + $0x18] sm:$0xff]
      %v4927 = vld [vmem:[#allocation2] sm:$0xff]
      %v4928 = vld [vmem:[#allocation2 + $0x8] sm:$0xff]
      %v4929 = vld [vmem:[#allocation2 + $0x10] sm:$0xff]
      %v4930 = vld [vmem:[#allocation2 + $0x18] sm:$0xff]
      %v4931 = vld [vmem:[#allocation2 + $0x20] sm:$0xff]
      %v4932 = vld [vmem:[#allocation2 + $0x28] sm:$0xff]
      %v4933 = vld [vmem:[#allocation2 + $0x30] sm:$0xff]
      %v4934 = vld [vmem:[#allocation2 + $0x38] sm:$0xff]
      %v4935 = vld [vmem:[#allocation2 + $0x40] sm:$0xff]
      %v4936 = vld [vmem:[#allocation2 + $0x48] sm:$0xff]
      %v4937 = vld [vmem:[#allocation2 + $0x50] sm:$0xff]
      %v4938 = vld [vmem:[#allocation2 + $0x58] sm:$0xff]
      %v4939 = vld [vmem:[#allocation2 + $0x60] sm:$0xff]
      %v4940 = vld [vmem:[#allocation2 + $0x68] sm:$0xff]
      %v4941 = vld [vmem:[#allocation2 + $0x70] sm:$0xff]
      %v4942 = vld [vmem:[#allocation2 + $0x78] sm:$0xff]
      %v4943 = vld [vmem:[#allocation2 + $0x80] sm:$0xff]
      %v4944 = vld [vmem:[#allocation2 + $0x88] sm:$0xff]
      %v4945 = vld [vmem:[#allocation2 + $0x90] sm:$0xff]
      %v4946 = vld [vmem:[#allocation2 + $0x98] sm:$0xff]
      %v4947 = vld [vmem:[#allocation2 + $0xa0] sm:$0xff]
      %v4948 = vld [vmem:[#allocation2 + $0xa8] sm:$0xff]
      %v4949 = vld [vmem:[#allocation2 + $0xb0] sm:$0xff]
      %v4950 = vld [vmem:[#allocation2 + $0xb8] sm:$0xff]
      %v4951 = vld [vmem:[#allocation2 + $0xc0] sm:$0xff]
      %v4952 = vld [vmem:[#allocation2 + $0xc8] sm:$0xff]
      %v4953 = vld [vmem:[#allocation2 + $0xd0] sm:$0xff]
      %v4954 = vld [vmem:[#allocation2 + $0xd8] sm:$0xff]
      %v4955 = vld [vmem:[#allocation2 + $0xe0] sm:$0xff]
      %v4956 = vld [vmem:[#allocation2 + $0xe8] sm:$0xff]
      %v4957 = vld [vmem:[#allocation2 + $0xf0] sm:$0xff]
      %v4958 = vld [vmem:[#allocation2 + $0xf8] sm:$0xff]
      %v4959 = vld [vmem:[#allocation2 + $0x100] sm:$0xff]
      %v4960 = vld [vmem:[#allocation2 + $0x108] sm:$0xff]
      %v4961 = vld [vmem:[#allocation2 + $0x110] sm:$0xff]
      %v4962 = vld [vmem:[#allocation2 + $0x118] sm:$0xff]
      %v4963 = vld [vmem:[#allocation2 + $0x120] sm:$0xff]
      %v4964 = vld [vmem:[#allocation2 + $0x128] sm:$0xff]
      %v4965 = vld [vmem:[#allocation2 + $0x130] sm:$0xff]
      %v4966 = vld [vmem:[#allocation2 + $0x138] sm:$0xff]
      %v4967 = vld [vmem:[#allocation2 + $0x140] sm:$0xff]
      %v4968 = vld [vmem:[#allocation2 + $0x148] sm:$0xff]
      %v4969 = vld [vmem:[#allocation2 + $0x150] sm:$0xff]
      %v4970 = vld [vmem:[#allocation2 + $0x158] sm:$0xff]
      %v4971 = vld [vmem:[#allocation2 + $0x160] sm:$0xff]
      %v4972 = vld [vmem:[#allocation2 + $0x168] sm:$0xff]
      %v4973 = vld [vmem:[#allocation2 + $0x170] sm:$0xff]
      %v4974 = vld [vmem:[#allocation2 + $0x178] sm:$0xff]
      %v4975 = vld [vmem:[#allocation2 + $0x180] sm:$0xf]
      %v4976 = vld [vmem:[#allocation2 + $0x188] sm:$0xf]
      %v4977 = vld [vmem:[#allocation2 + $0x190] sm:$0xf]
      %v4978 = vld [vmem:[#allocation2 + $0x198] sm:$0xf]
      %v4980 = vsel %vm1828, %v4923, 0
      %v4983 = vsel %vm1828, %v4924, 0
      %v4986 = vsel %vm1828, %v4925, 0
      %v4989 = vsel %vm1828, %v4926, 0
      %v4992 = vsel %vm1841, %v4975, 0
      %v4995 = vsel %vm1841, %v4976, 0
      %v4998 = vsel %vm1841, %v4977, 0
      %v5001 = vsel %vm1841, %v4978, 0
      %5003 = vmatprep.subr.mxu0 %v4928
      %5004 = vmatpush1.msra.mxu0 %v4927
      %5005 = vmatprep.subr.mxu0 %v4932
      %5006 = vmatpush1.msra.mxu0 %v4931
      %5007 = vmatprep.subr.mxu0 %v4936
      %5008 = vmatpush1.msra.mxu0 %v4935
      %5009 = vmatprep.subr.mxu0 %v4940
      %5010 = vmatpush1.msra.mxu0 %v4939
      %5011 = vmatprep.subr.mxu0 %v4944
      %5012 = vmatpush1.msra.mxu0 %v4943
      %5013 = vmatprep.subr.mxu0 %v4948
      %5014 = vmatpush1.msra.mxu0 %v4947
      %5015 = vmatprep.subr.mxu0 %v4952
      %5016 = vmatpush1.msra.mxu0 %v4951
      %5017 = vmatprep.subr.mxu0 %v4956
      %5018 = vmatpush1.msra.mxu0 %v4955
      %5019 = vmatprep.subr.mxu0 %v4960
      %5020 = vmatpush1.msra.mxu0 %v4959
      %5021 = vmatprep.subr.mxu0 %v4964
      %5022 = vmatpush1.msra.mxu0 %v4963
      %5023 = vmatprep.subr.mxu0 %v4968
      %5024 = vmatpush1.msra.mxu0 %v4967
      %5025 = vmatprep.subr.mxu0 %v4972
      %5026 = vmatpush1.msra.mxu0 %v4971
      %5027 = vmatprep.subr.mxu0 %v4995
      %5028 = vmatpush1.msra.mxu0 %v4992
      %5029 = vmatprep.subr.mxu0 0.0
      %5030 = vmatpush1.msra.mxu0 0.0
      %5031 = vmatprep.subr.mxu0 0.0
      %5032 = vmatpush1.msra.mxu0 0.0
      %5033 = vmatprep.subr.mxu0 0.0
      %5034 = vmatpush1.msra.mxu0 0.0
      %5035 = vmatprep.subr.mxu0 0.0
      %5036 = vmatpush1.msra.mxu0 0.0
      %5037 = vmatprep.subr.mxu0 0.0
      %5038 = vmatpush1.msra.mxu0 0.0
      %5039 = vmatprep.subr.mxu0 0.0
      %5040 = vmatpush1.msra.mxu0 0.0
      %5041 = vmatprep.subr.mxu0 0.0
      %5042 = vmatpush1.msra.mxu0 0.0
      %5043 = vmatprep.subr.mxu0 0.0
      %5044 = vmatpush1.msra.mxu0 0.0
      %5045 = vmatprep.subr.mxu0 0.0
      %5046 = vmatpush1.msra.mxu0 0.0
      %5047 = vmatprep.subr.mxu0 0.0
      %5048 = vmatpush1.msra.mxu0 0.0
      %5049 = vmatprep.subr.mxu0 0.0
      %5050 = vmatpush1.msra.mxu0 0.0
      %5051 = vmatprep.subr.mxu0 0.0
      %5052 = vmatpush1.msra.mxu0 0.0
      %5053 = vmatprep.subr.mxu0 0.0
      %5054 = vmatpush1.msra.mxu0 0.0
      %5055 = vmatprep.subr.mxu0 0.0
      %5056 = vmatpush1.msra.mxu0 0.0
      %5057 = vmatprep.subr.mxu0 0.0
      %5058 = vmatpush1.msra.mxu0 0.0
      %5059 = vmatprep.subr.mxu0 0.0
      %5060 = vmatpush1.msra.mxu0 0.0
      %5061 = vmatprep.subr.mxu0 0.0
      %5062 = vmatpush1.msra.mxu0 0.0
      %5063 = vmatprep.subr.mxu0 0.0
      %5064 = vmatpush1.msra.mxu0 0.0
      %5065 = vmatprep.subr.mxu0 0.0
      %5066 = vmatpush1.msra.mxu0 0.0
      %5067 = vmatprep.mubr.f32.mxu0 0.0
      %5068 = vmatmul.mubr.f32.gmra.mrb[0].mxu0 %v4980
      %v5069 = vpop.f32.mrb[0].mxu0
      %v5070 = vadd.f32 0.0, %v5069
      %v5071 = vpop.f32.mrb[0].mxu0
      %v5072 = vadd.f32 0.0, %v5071
      %5073 = vmatprep.mubr.f32.mxu0 0.0
      %5074 = vmatmul.mubr.f32.gmra.mrb[0].mxu0 %v4983
      %v5075 = vpop.f32.mrb[0].mxu0
      %v5076 = vadd.f32 0.0, %v5075
      %v5077 = vpop.f32.mrb[0].mxu0
      %v5078 = vadd.f32 0.0, %v5077
      %5079 = vmatprep.mubr.f32.mxu0 0.0
      %5080 = vmatmul.mubr.f32.gmra.mrb[0].mxu0 %v4986
      %v5081 = vpop.f32.mrb[0].mxu0
      %v5082 = vadd.f32 0.0, %v5081
      %v5083 = vpop.f32.mrb[0].mxu0
      %v5084 = vadd.f32 0.0, %v5083
      %5085 = vmatprep.mubr.f32.mxu0 0.0
      %5086 = vmatmul.mubr.f32.gmra.mrb[0].mxu0 %v4989
      %v5087 = vpop.f32.mrb[0].mxu0
      %v5088 = vadd.f32 0.0, %v5087
      %v5089 = vpop.f32.mrb[0].mxu0
      %v5090 = vadd.f32 0.0, %v5089
      %5091 = vdwg.mxu0
      %5092 = vmatprep.subr.mxu0 %v4930
      %5093 = vmatpush1.msra.mxu0 %v4929
      %5094 = vmatprep.subr.mxu0 %v4934
      %5095 = vmatpush1.msra.mxu0 %v4933
      %5096 = vmatprep.subr.mxu0 %v4938
      %5097 = vmatpush1.msra.mxu0 %v4937
      %5098 = vmatprep.subr.mxu0 %v4942
      %5099 = vmatpush1.msra.mxu0 %v4941
      %5100 = vmatprep.subr.mxu0 %v4946
      %5101 = vmatpush1.msra.mxu0 %v4945
      %5102 = vmatprep.subr.mxu0 %v4950
      %5103 = vmatpush1.msra.mxu0 %v4949
      %5104 = vmatprep.subr.mxu0 %v4954
      %5105 = vmatpush1.msra.mxu0 %v4953
      %5106 = vmatprep.subr.mxu0 %v4958
      %5107 = vmatpush1.msra.mxu0 %v4957
      %5108 = vmatprep.subr.mxu0 %v4962
      %5109 = vmatpush1.msra.mxu0 %v4961
      %5110 = vmatprep.subr.mxu0 %v4966
      %5111 = vmatpush1.msra.mxu0 %v4965
      %5112 = vmatprep.subr.mxu0 %v4970
      %5113 = vmatpush1.msra.mxu0 %v4969
      %5114 = vmatprep.subr.mxu0 %v4974
      %5115 = vmatpush1.msra.mxu0 %v4973
      %5116 = vmatprep.subr.mxu0 %v5001
      %5117 = vmatpush1.msra.mxu0 %v4998
      %5118 = vmatprep.subr.mxu0 0.0
      %5119 = vmatpush1.msra.mxu0 0.0
      %5120 = vmatprep.subr.mxu0 0.0
      %5121 = vmatpush1.msra.mxu0 0.0
      %5122 = vmatprep.subr.mxu0 0.0
      %5123 = vmatpush1.msra.mxu0 0.0
      %5124 = vmatprep.subr.mxu0 0.0
      %5125 = vmatpush1.msra.mxu0 0.0
      %5126 = vmatprep.subr.mxu0 0.0
      %5127 = vmatpush1.msra.mxu0 0.0
      %5128 = vmatprep.subr.mxu0 0.0
      %5129 = vmatpush1.msra.mxu0 0.0
      %5130 = vmatprep.subr.mxu0 0.0
      %5131 = vmatpush1.msra.mxu0 0.0
      %5132 = vmatprep.subr.mxu0 0.0
      %5133 = vmatpush1.msra.mxu0 0.0
      %5134 = vmatprep.subr.mxu0 0.0
      %5135 = vmatpush1.msra.mxu0 0.0
      %5136 = vmatprep.subr.mxu0 0.0
      %5137 = vmatpush1.msra.mxu0 0.0
      %5138 = vmatprep.subr.mxu0 0.0
      %5139 = vmatpush1.msra.mxu0 0.0
      %5140 = vmatprep.subr.mxu0 0.0
      %5141 = vmatpush1.msra.mxu0 0.0
      %5142 = vmatprep.subr.mxu0 0.0
      %5143 = vmatpush1.msra.mxu0 0.0
      %5144 = vmatprep.subr.mxu0 0.0
      %5145 = vmatpush1.msra.mxu0 0.0
      %5146 = vmatprep.subr.mxu0 0.0
      %5147 = vmatpush1.msra.mxu0 0.0
      %5148 = vmatprep.subr.mxu0 0.0
      %5149 = vmatpush1.msra.mxu0 0.0
      %5150 = vmatprep.subr.mxu0 0.0
      %5151 = vmatpush1.msra.mxu0 0.0
      %5152 = vmatprep.subr.mxu0 0.0
      %5153 = vmatpush1.msra.mxu0 0.0
      %5154 = vmatprep.subr.mxu0 0.0
      %5155 = vmatpush1.msra.mxu0 0.0
      %5156 = vmatprep.mubr.f32.mxu0 0.0
      %5157 = vmatmul.mubr.f32.gmra.mrb[0].mxu0 %v4980
      %v5158 = vpop.f32.mrb[0].mxu0
      %v5159 = vadd.f32 0.0, %v5158
      %v5160 = vpop.f32.mrb[0].mxu0
      %v5161 = vadd.f32 0.0, %v5160
      %5162 = vmatprep.mubr.f32.mxu0 0.0
      %5163 = vmatmul.mubr.f32.gmra.mrb[0].mxu0 %v4983
      %v5164 = vpop.f32.mrb[0].mxu0
      %v5165 = vadd.f32 0.0, %v5164
      %v5166 = vpop.f32.mrb[0].mxu0
      %v5167 = vadd.f32 0.0, %v5166
      %5168 = vmatprep.mubr.f32.mxu0 0.0
      %5169 = vmatmul.mubr.f32.gmra.mrb[0].mxu0 %v4986
      %v5170 = vpop.f32.mrb[0].mxu0
      %v5171 = vadd.f32 0.0, %v5170
      %v5172 = vpop.f32.mrb[0].mxu0
      %v5173 = vadd.f32 0.0, %v5172
      %5174 = vmatprep.mubr.f32.mxu0 0.0
      %5175 = vmatmul.mubr.f32.gmra.mrb[0].mxu0 %v4989
      %v5176 = vpop.f32.mrb[0].mxu0
      %v5177 = vadd.f32 0.0, %v5176
      %v5178 = vpop.f32.mrb[0].mxu0
      %v5179 = vadd.f32 0.0, %v5178
      %5180 = vdwg.mxu0
      %v5181 = vadd.f32 %v4181, %v5070
      %v5182 = vadd.f32 %v4182, %v5072
      %v5183 = vadd.f32 %v4183, %v5159
      %v5184 = vadd.f32 %v4184, %v5161
      %v5185 = vadd.f32 %v4185, %v5076
      %v5186 = vadd.f32 %v4186, %v5078
      %v5187 = vadd.f32 %v4187, %v5165
      %v5188 = vadd.f32 %v4188, %v5167
      %v5189 = vadd.f32 %v4189, %v5082
      %v5190 = vadd.f32 %v4190, %v5084
      %v5191 = vadd.f32 %v4191, %v5171
      %v5192 = vadd.f32 %v4192, %v5173
      %v5193 = vadd.f32 %v4193, %v5088
      %v5194 = vadd.f32 %v4194, %v5090
      %v5195 = vadd.f32 %v4195, %v5177
      %v5196 = vadd.f32 %v4196, %v5179
      %v5197 = vld [vmem:[%s3] sm:$0xff]
      %v5198 = vld [vmem:[%s3 + $0x8] sm:$0xff]
      %v5199 = vld [vmem:[%s3 + $0x10] sm:$0xff]
      %v5200 = vld [vmem:[%s3 + $0x18] sm:$0xff]
      %5202 = vset.pattern.permute.xlu0 0
      %5203 = vperm.xlu0 %5202, %v5197
      %v5204 = vpop.permute.xlu0 %5203
      %5207 = vset.pattern.permute.xlu0 0
      %5208 = vperm.xlu0 %5207, %v5198
      %v5209 = vpop.permute.xlu0 %5208
      %5212 = vset.pattern.permute.xlu0 0
      %5213 = vperm.xlu0 %5212, %v5199
      %v5214 = vpop.permute.xlu0 %5213
      %5217 = vset.pattern.permute.xlu0 0
      %5218 = vperm.xlu0 %5217, %v5200
      %v5219 = vpop.permute.xlu0 %5218
      %v5221 = vadd.f32 %v5181, %v5204
      %v5222 = vadd.f32 %v5182, %v5204
      %v5223 = vadd.f32 %v5183, %v5204
      %v5224 = vadd.f32 %v5184, %v5204
      %v5225 = vadd.f32 %v5185, %v5209
      %v5226 = vadd.f32 %v5186, %v5209
      %v5227 = vadd.f32 %v5187, %v5209
      %v5228 = vadd.f32 %v5188, %v5209
      %v5229 = vadd.f32 %v5189, %v5214
      %v5230 = vadd.f32 %v5190, %v5214
      %v5231 = vadd.f32 %v5191, %v5214
      %v5232 = vadd.f32 %v5192, %v5214
      %v5233 = vadd.f32 %v5193, %v5219
      %v5234 = vadd.f32 %v5194, %v5219
      %v5235 = vadd.f32 %v5195, %v5219
      %v5236 = vadd.f32 %v5196, %v5219
      %v5237 = vmax.f32 %v5221, 0.0
      %v5238 = vmax.f32 %v5222, 0.0
      %v5239 = vmax.f32 %v5223, 0.0
      %v5240 = vmax.f32 %v5224, 0.0
      %v5241 = vmax.f32 %v5225, 0.0
      %v5242 = vmax.f32 %v5226, 0.0
      %v5243 = vmax.f32 %v5227, 0.0
      %v5244 = vmax.f32 %v5228, 0.0
      %v5245 = vmax.f32 %v5229, 0.0
      %v5246 = vmax.f32 %v5230, 0.0
      %v5247 = vmax.f32 %v5231, 0.0
      %v5248 = vmax.f32 %v5232, 0.0
      %v5249 = vadd.f32 %v5237, %v5241
      %v5250 = vadd.f32 %v5238, %v5242
      %v5251 = vadd.f32 %v5239, %v5243
      %v5252 = vadd.f32 %v5240, %v5244
      %v5253 = vadd.f32 %v5249, %v5245
      %v5254 = vadd.f32 %v5250, %v5246
      %v5255 = vadd.f32 %v5251, %v5247
      %v5256 = vadd.f32 %v5252, %v5248
      %5257 = vst [vmem:[%s318] sm:$0xff] %v5253
      %5258 = vst [vmem:[%s318 + $0x8] sm:$0xff] %v5254
      %5259 = vst [vmem:[%s318 + $0x10] sm:$0xff] %v5255
      %5260 = vst [vmem:[%s318 + $0x18] sm:$0xff] %v5256
      %5261 = vst [vmem:[%s323] sm:$0xff] %v5233
      %5262 = vst [vmem:[%s323 + $0x8] sm:$0xff] %v5234
      %5263 = vst [vmem:[%s323 + $0x10] sm:$0xff] %v5235
      %5264 = vst [vmem:[%s323 + $0x18] sm:$0xff] %v5236
      %v5265 = vadd.f32 %v5253, %v5254
      %v5266 = vadd.f32 %v5265, %v5255
      %v5267 = vadd.f32 %v5266, %v5256
      %5268 = vadd.xlane.f32.xlu0 %v5267
      %v5269 = vpop.xlane.xlu0 %5268
      %vm5270 = vcmask 7168
      %5271 = vst.msk [vmem:[%s327] sm:$0xff] %vm5270, %v5269
      %v5272 = vmul.f32 %v5253, %v5253
      %v5273 = vmul.f32 %v5254, %v5254
      %v5274 = vmul.f32 %v5255, %v5255
      %v5275 = vmul.f32 %v5256, %v5256
      %v5276 = vadd.f32 %v5272, %v5273
      %v5277 = vadd.f32 %v5276, %v5274
      %v5278 = vadd.f32 %v5277, %v5275
      %5279 = vadd.xlane.f32.xlu0 %v5278
      %v5280 = vpop.xlane.xlu0 %5279
      %5281 = vst.msk [vmem:[%s331] sm:$0xff] %vm5270, %v5280
      %p5282 = scmp.lt.s32.totalorder %s19, 1
      %s5283 = scalar_select %p5282, %s19, 1
      %s5284 = smul.addr %s5283, 4
      %s5285 = smul.addr %s5284, 8
      %s5286 = scalar_lea.vmem %s4, %s5285
      %p5287 = scmp.lt.s32.totalorder %s19, 1
      %s5288 = scalar_select %p5287, %s19, 1
      %s5289 = smul.addr %s5288, 4
      %s5290 = smul.addr %s5289, 8
      %s5291 = scalar_lea.vmem %s5, %s5290
      %p5292 = scmp.lt.s32.totalorder %s19, 1
      %s5293 = scalar_select %p5292, %s19, 1
      %s5294 = smul.addr %s5293, 8
      %s5295 = scalar_lea.vmem %s6, %s5294
      %p5296 = scmp.lt.s32.totalorder %s19, 1
      %s5297 = scalar_select %p5296, %s19, 1
      %s5298 = smul.addr %s5297, 8
      %s5299 = scalar_lea.vmem %s7, %s5298
      // Predicated region
      $region37: #{vertical_inception_3p_forward.2} parent=35 // pred_check
        %p5300 = pneg %p131
      $region38: #{vertical_inception_3p_forward.2} parent=35 // pred_check_branch
        %5302 = sbr.rel (%p5300) target = $region40
      $region39: #{vertical_inception_3p_forward.2} parent=35 // pred_region
        _
      $region40: #{vertical_inception_3p_forward.2} parent=35 // pred_fallthru
        _
      // Predicated region
      $region41: #{vertical_inception_3p_forward.2} parent=35 // pred_check
        %p5303 = pneg %p157
      $region42: #{vertical_inception_3p_forward.2} parent=35 // pred_check_branch
        %5305 = sbr.rel (%p5303) target = $region44
      $region43: #{vertical_inception_3p_forward.2} parent=35 // pred_region
        _
      $region44: #{vertical_inception_3p_forward.2} parent=35 // pred_fallthru
        _
      // Predicated region
      $region45: #{vertical_inception_3p_forward.2} parent=35 // pred_check
        %p5306 = pneg %p183
      $region46: #{vertical_inception_3p_forward.2} parent=35 // pred_check_branch
        %5308 = sbr.rel (%p5306) target = $region48
      $region47: #{vertical_inception_3p_forward.2} parent=35 // pred_region
        _
      $region48: #{vertical_inception_3p_forward.2} parent=35 // pred_fallthru
        _
      // Predicated region
      $region49: #{vertical_inception_3p_forward.2} parent=35 // pred_check
        %p5309 = pneg %p209
      $region50: #{vertical_inception_3p_forward.2} parent=35 // pred_check_branch
        %5311 = sbr.rel (%p5309) target = $region52
      $region51: #{vertical_inception_3p_forward.2} parent=35 // pred_region
        _
      $region52: #{vertical_inception_3p_forward.2} parent=35 // pred_fallthru
        _
    $region36: #{vertical_inception_3p_forward.2} parent=5 // pred_fallthru
      _
    %p5312 = scmp.le.s32.totalorder 2, %s14
    // Predicated region
    $region53: #{vertical_inception_3p_forward.2} parent=5 // pred_check
      %p5313 = pneg %p5312
    $region54: #{vertical_inception_3p_forward.2} parent=5 // pred_check_branch
      %5315 = sbr.rel (%p5313) target = $region56
    $region55: #{vertical_inception_3p_forward.2} parent=5 // pred_region
      %s5316 = ssub.s32 %s14, 2
      // Predicated region
      $region57: #{vertical_inception_3p_forward.2} parent=55 // pred_check
        %p5317 = pneg %p137
      $region58: #{vertical_inception_3p_forward.2} parent=55 // pred_check_branch
        %5319 = sbr.rel (%p5317) target = $region60
      $region59: #{vertical_inception_3p_forward.2} parent=55 // pred_region
        %p5320 = scmp.lt.s32.totalorder %s20, 1
        %s5321 = scalar_select %p5320, %s20, 1
        %s5322 = smul.addr %s5321, 4
        %s5323 = smul.addr %s5322, 8
        %s5324 = scalar_lea.vmem %s4, %s5323
      $region60: #{vertical_inception_3p_forward.2} parent=55 // pred_fallthru
        _
      // Predicated region
      $region61: #{vertical_inception_3p_forward.2} parent=55 // pred_check
        %p5325 = pneg %p163
      $region62: #{vertical_inception_3p_forward.2} parent=55 // pred_check_branch
        %5327 = sbr.rel (%p5325) target = $region64
      $region63: #{vertical_inception_3p_forward.2} parent=55 // pred_region
        %p5328 = scmp.lt.s32.totalorder %s20, 1
        %s5329 = scalar_select %p5328, %s20, 1
        %s5330 = smul.addr %s5329, 4
        %s5331 = smul.addr %s5330, 8
        %s5332 = scalar_lea.vmem %s5, %s5331
      $region64: #{vertical_inception_3p_forward.2} parent=55 // pred_fallthru
        _
      // Predicated region
      $region65: #{vertical_inception_3p_forward.2} parent=55 // pred_check
        %p5333 = pneg %p189
      $region66: #{vertical_inception_3p_forward.2} parent=55 // pred_check_branch
        %5335 = sbr.rel (%p5333) target = $region68
      $region67: #{vertical_inception_3p_forward.2} parent=55 // pred_region
        %p5336 = scmp.lt.s32.totalorder %s20, 1
        %s5337 = scalar_select %p5336, %s20, 1
        %s5338 = smul.addr %s5337, 8
        %s5339 = scalar_lea.vmem %s6, %s5338
      $region68: #{vertical_inception_3p_forward.2} parent=55 // pred_fallthru
        _
      // Predicated region
      $region69: #{vertical_inception_3p_forward.2} parent=55 // pred_check
        %p5340 = pneg %p215
      $region70: #{vertical_inception_3p_forward.2} parent=55 // pred_check_branch
        %5342 = sbr.rel (%p5340) target = $region72
      $region71: #{vertical_inception_3p_forward.2} parent=55 // pred_region
        %p5343 = scmp.lt.s32.totalorder %s20, 1
        %s5344 = scalar_select %p5343, %s20, 1
        %s5345 = smul.addr %s5344, 8
        %s5346 = scalar_lea.vmem %s7, %s5345
      $region72: #{vertical_inception_3p_forward.2} parent=55 // pred_fallthru
        _
    $region56: #{vertical_inception_3p_forward.2} parent=5 // pred_fallthru
      _
  $region6: #{vertical_inception_3p_forward.2} parent=0 // loop_footer
    %s18 = sadd.s32 1, %s14
  $region7: #{vertical_inception_3p_forward.2} parent=0 // loop_footer_branch
    %13 = sbr.rel target = $region3
  $region8: #{vertical_inception_3p_forward.2} parent=0 // loop_exit
    _

</llo_original>
